<compile_context>
chip_gen: v5e
topology: v5e:2x2
jax: 0.10.0
libtpu: 0.0.40
codegen_flags: <defaults>
</compile_context>

<pallas_src>
import functools

import jax
import jax.numpy as jnp
from jax.experimental import pallas as pl
from jax.experimental.pallas import tpu as pltpu


def _round_up(x, m):
    return ((x + m - 1) // m) * m


def _derive_time_chunk(T, B, Hp, max_chunk=128, budget_bytes=14 * 1024 * 1024):
    """VMEM-aware, balanced time-chunk.  Never degrades to TC=1 for prime T."""
    # bytes per timestep of double-buffered kernel blocks:
    #   gi blocks (2 dirs, bf16) + out blocks (2 dirs, bf16)
    per_t = 2 * 2 * (B * 3 * Hp * 2) + 2 * 2 * (B * Hp * 2)
    fixed = (2 * 2 * Hp * 3 * Hp * 2     # w_hh, double buffered (bf16)
             + 4 * 2 * 3 * Hp * 4 * 2    # biases
             + 2 * 2 * B * Hp * 4        # final-hidden output block
             + 2 * B * Hp * 4)           # hidden-state scratch
    avail = max(budget_bytes - fixed, per_t)
    cap = int(max(1, min(max_chunk, avail // per_t)))
    nc = -(-T // cap)            # cdiv
    tc = -(-T // nc)             # balanced chunks; padding < nc timesteps
    return tc, nc, nc * tc


# ----------------------------------------------------------------------------
# Pallas kernel: fused forward+backward GRU recurrence for one layer.
# grid = (NC time-chunks,). Each fori_loop step advances BOTH directions
# (forward chunk c, backward chunk NC-1-c), interleaving the two serial chains.
# gi = x @ W_ih is precomputed outside (bf16); b_ih is added here.
# Hidden states live in VMEM scratch carried across time-chunks.
# ----------------------------------------------------------------------------
def _bigru_kernel(gif_ref, gib_ref, whh_ref, bih_ref, bhh_ref,
                  outf_ref, outb_ref, hn_ref, hf_ref, hb_ref, *,
                  hid_pad, chunk, batch, seq_len, n_chunks, has_pad):
    c = pl.program_id(0)
    Hp, B, TC = hid_pad, batch, chunk

    @pl.when(c == 0)
    def _():
        hf_ref[...] = jnp.zeros_like(hf_ref)
        hb_ref[...] = jnp.zeros_like(hb_ref)

    # Hoisted weight loads / bias broadcasts (broadcast_in_dim is not CSE'd).
    whh_f = whh_ref[0]                                      # (Hp, 3Hp) bf16
    whh_b = whh_ref[1]
    bih_f = jnp.broadcast_to(bih_ref[0], (B, 3 * Hp))
    bih_b = jnp.broadcast_to(bih_ref[1], (B, 3 * Hp))
    bhh_f = jnp.broadcast_to(bhh_ref[0], (B, 3 * Hp))
    bhh_b = jnp.broadcast_to(bhh_ref[1], (B, 3 * Hp))

    fwd_t0 = c * TC                        # global time of fwd in-chunk idx 0
    bwd_t0 = (n_chunks - 1 - c) * TC       # global time of bwd in-chunk idx 0

    def sigmoid(x):                        # 1 EUP op instead of exp + recip
        return 0.5 * (1.0 + jnp.tanh(0.5 * x))

    def gru_cell(gi, gh, h):
        # PyTorch gate order (r, z, n); every slice is 128-lane aligned.
        r = sigmoid(gi[:, 0:Hp] + gh[:, 0:Hp])
        z = sigmoid(gi[:, Hp:2 * Hp] + gh[:, Hp:2 * Hp])
        n = jnp.tanh(gi[:, 2 * Hp:3 * Hp] + r * gh[:, 2 * Hp:3 * Hp])
        return (1.0 - z) * n + z * h

    def step(i, carry):
        j = TC - 1 - i                     # backward in-chunk index
        hf = hf_ref[...]                   # (B, Hp) f32
        hb = hb_ref[...]
        # Two independent chains per iteration -> latency of one hides under
        # the other on the serial recurrence.
        gif = gif_ref[i].astype(jnp.float32) + bih_f
        gib = gib_ref[j].astype(jnp.float32) + bih_b
        ghf = jnp.dot(hf.astype(jnp.bfloat16), whh_f,
                      preferred_element_type=jnp.float32) + bhh_f
        ghb = jnp.dot(hb.astype(jnp.bfloat16), whh_b,
                      preferred_element_type=jnp.float32) + bhh_b
        hf_new = gru_cell(gif, ghf, hf)
        hb_new = gru_cell(gib, ghb, hb)
        if has_pad:
            # Freeze the hidden state on padded timesteps (t >= seq_len).
            hf_new = jnp.where(fwd_t0 + i < seq_len, hf_new, hf)
            hb_new = jnp.where(bwd_t0 + j < seq_len, hb_new, hb)
        hf_ref[...] = hf_new
        hb_ref[...] = hb_new
        outf_ref[i] = hf_new.astype(outf_ref.dtype)
        outb_ref[j] = hb_new.astype(outb_ref.dtype)
        return carry

    unroll = True if TC <= 16 else 4
    jax.lax.fori_loop(0, TC, step, 0, unroll=unroll)

    # Snapshot of the running hidden state; after the last chunk this is the
    # GRU's final hidden (fwd: h at t=T-1, bwd: h at t=0).  The block index is
    # constant, so writeback to HBM happens only once at the end of the grid.
    hn_ref[0] = hf_ref[...]
    hn_ref[1] = hb_ref[...]


def bigru_layer(gi, w_hh, b_ih, b_hh, *, seq_len, hid_pad, time_chunk):
    """One bidirectional GRU layer (recurrence only; gi precomputed).

    gi   : (2, Tp, B, 3Hp) bf16   x @ W_ih per direction (no bias)
    w_hh : (2, Hp, 3Hp) bf16
    b_ih : (2, 1, 3Hp)  f32
    b_hh : (2, 1, 3Hp)  f32
    returns: out_f (Tp,B,Hp) bf16, out_b (Tp,B,Hp) bf16 (original time order),
             h_n (2,B,Hp) f32 final hidden.
    """
    _, Tp, B, G = gi.shape
    Hp = hid_pad
    TC = time_chunk
    NC = Tp // TC
    assert G == 3 * Hp and NC * TC == Tp

    kernel = functools.partial(
        _bigru_kernel, hid_pad=Hp, chunk=TC, batch=B, seq_len=seq_len,
        n_chunks=NC, has_pad=(Tp != seq_len))

    out_f, out_b, h_n = pl.pallas_call(
        kernel,
        out_shape=(
            jax.ShapeDtypeStruct((Tp, B, Hp), jnp.bfloat16),   # fwd outputs
            jax.ShapeDtypeStruct((Tp, B, Hp), jnp.bfloat16),   # bwd outputs
            jax.ShapeDtypeStruct((2, B, Hp), jnp.float32),     # final hidden
        ),
        grid=(NC,),
        in_specs=[
            # Same gi array passed twice: fwd chunk c, bwd chunk NC-1-c.
            pl.BlockSpec((None, TC, B, 3 * Hp), lambda c: (0, c, 0, 0)),
            pl.BlockSpec((None, TC, B, 3 * Hp), lambda c: (1, NC - 1 - c, 0, 0)),
            pl.BlockSpec((2, Hp, 3 * Hp), lambda c: (0, 0, 0)),
            pl.BlockSpec((2, 1, 3 * Hp), lambda c: (0, 0, 0)),
            pl.BlockSpec((2, 1, 3 * Hp), lambda c: (0, 0, 0)),
        ],
        out_specs=[
            pl.BlockSpec((TC, B, Hp), lambda c: (c, 0, 0)),
            pl.BlockSpec((TC, B, Hp), lambda c: (NC - 1 - c, 0, 0)),
            pl.BlockSpec((2, B, Hp), lambda c: (0, 0, 0)),
        ],
        scratch_shapes=[pltpu.VMEM((B, Hp), jnp.float32),
                        pltpu.VMEM((B, Hp), jnp.float32)],
        compiler_params=pltpu.CompilerParams(
            dimension_semantics=("arbitrary",),
            vmem_limit_bytes=32 * 1024 * 1024),
    )(gi, gi, w_hh, b_ih, b_hh)
    return out_f, out_b, h_n


# ----------------------------------------------------------------------------
# Parameter packing / initialization (PyTorch layout -> padded kernel layout)
# ----------------------------------------------------------------------------
def _pad_gate_cols(m, H, Hp):
    # m: (rows, 3H) -> (rows, 3Hp): each gate block (r, z, n) right-padded to Hp
    blocks = [jnp.pad(m[:, g * H:(g + 1) * H], ((0, 0), (0, Hp - H)))
              for g in range(3)]
    return jnp.concatenate(blocks, axis=1)


def init_params(key, inp_dim, emb_dim, hid_dim, n_layers, hid_pad):
    H, Hp = hid_dim, hid_pad
    k_emb, key = jax.random.split(key)
    emb = jax.random.normal(k_emb, (inp_dim, emb_dim), dtype=jnp.float32)
    emb = emb.at[0].set(0.0)  # padding_idx=0

    bound = 1.0 / float(H) ** 0.5
    gru = []
    for layer in range(n_layers):
        d_in = emb_dim if layer == 0 else 2 * H
        w_ih_list, w_ih_f_list, w_ih_b_list = [], [], []
        w_hh_list, b_ih_list, b_hh_list = [], [], []
        for _ in range(2):   # forward, backward direction of this layer
            key, k1, k2, k3, k4 = jax.random.split(key, 5)
            w_ih_t = jax.random.uniform(k1, (3 * H, d_in), jnp.float32,
                                        -bound, bound)
            w_hh_t = jax.random.uniform(k2, (3 * H, H), jnp.float32,
                                        -bound, bound)
            b_ih = jax.random.uniform(k3, (3 * H,), jnp.float32, -bound, bound)
            b_hh = jax.random.uniform(k4, (3 * H,), jnp.float32, -bound, bound)

            if layer == 0:
                # (E, 3Hp)
                w_ih_list.append(
                    _pad_gate_cols(w_ih_t.T, H, Hp).astype(jnp.bfloat16))
            else:
                # split the 2H input rows into fwd / bwd halves so the next
                # layer can consume the two output slabs without a concat.
                wt = w_ih_t.T                               # (2H, 3H)
                wf = _pad_gate_cols(wt[:H], H, Hp)          # (H, 3Hp)
                wb = _pad_gate_cols(wt[H:], H, Hp)
                w_ih_f_list.append(
                    jnp.pad(wf, ((0, Hp - H), (0, 0))).astype(jnp.bfloat16))
                w_ih_b_list.append(
                    jnp.pad(wb, ((0, Hp - H), (0, 0))).astype(jnp.bfloat16))

            whh = _pad_gate_cols(w_hh_t.T, H, Hp)           # (H, 3Hp)
            w_hh_list.append(
                jnp.pad(whh, ((0, Hp - H), (0, 0))).astype(jnp.bfloat16))
            b_ih_list.append(_pad_gate_cols(b_ih[None, :], H, Hp))  # (1, 3Hp)
            b_hh_list.append(_pad_gate_cols(b_hh[None, :], H, Hp))

        p = {
            "w_hh": jnp.stack(w_hh_list, 0),                          # (2,Hp,3Hp) bf16
            "b_ih": jnp.stack(b_ih_list, 0).astype(jnp.float32),      # (2,1,3Hp)
            "b_hh": jnp.stack(b_hh_list, 0).astype(jnp.float32),
        }
        if layer == 0:
            p["w_ih"] = jnp.stack(w_ih_list, 0)                       # (2,E,3Hp) bf16
        else:
            p["w_ih_f"] = jnp.stack(w_ih_f_list, 0)                   # (2,Hp,3Hp) bf16
            p["w_ih_b"] = jnp.stack(w_ih_b_list, 0)
        gru.append(p)
    # Note: self.fc (Linear(2H, H)) is defined but unused in forward(); omitted.
    return {"embedding": emb, "gru": gru}


# ----------------------------------------------------------------------------
# Encoder forward: embedding -> bidirectional multi-layer GRU
# ----------------------------------------------------------------------------
def encoder_forward(params, src, *, n_layers, hid_dim, hid_pad, max_chunk=128):
    # src: (B, T) int32 token ids
    assert len(params["gru"]) == n_layers
    B, T = src.shape
    Hp = hid_pad

    embedded = jnp.take(params["embedding"], src, axis=0)     # (B, T, E)
    # TODO(synk): self.dropout(embedded) (p=0.3) -> eval-mode identity
    x = jnp.transpose(embedded, (1, 0, 2))                    # (T, B, E)

    TC, NC, Tp = _derive_time_chunk(T, B, Hp, max_chunk=max_chunk)
    if Tp != T:
        x = jnp.pad(x, ((0, Tp - T), (0, 0), (0, 0)))

    hiddens = []
    out_f = out_b = None
    for layer, p in enumerate(params["gru"]):
        # Hoisted input projection: one bf16 GEMM over all timesteps & both
        # directions; gi stored bf16, b_ih added inside the kernel.
        if layer == 0:
            gi = jnp.einsum("tbe,keg->ktbg", x.astype(jnp.bfloat16), p["w_ih"],
                            preferred_element_type=jnp.float32)
        else:
            # next-layer input = concat(fwd, bwd) -- consumed as a split GEMM
            # over the two bf16 slabs, so no HBM slice/concat pass is needed.
            gi = (jnp.einsum("tbh,khg->ktbg", out_f, p["w_ih_f"],
                             preferred_element_type=jnp.float32) +
                  jnp.einsum("tbh,khg->ktbg", out_b, p["w_ih_b"],
                             preferred_element_type=jnp.float32))
        gi = gi.astype(jnp.bfloat16)                          # (2, Tp, B, 3Hp)

        out_f, out_b, h_n = bigru_layer(gi, p["w_hh"], p["b_ih"], p["b_hh"],
                                        seq_len=T, hid_pad=Hp, time_chunk=TC)
        hiddens.append(h_n[0, :, :hid_dim])                   # layer-l forward
        hiddens.append(h_n[1, :, :hid_dim])                   # layer-l backward
        # TODO(synk): inter-layer dropout (p=0.3) -> eval-mode identity

    outputs = jnp.concatenate(
        [out_f[:T, :, :hid_dim], out_b[:T, :, :hid_dim]], axis=-1)
    outputs = jnp.transpose(outputs, (1, 0, 2)).astype(jnp.float32)  # (B, T, 2H)
    hidden = jnp.stack(hiddens, axis=0)                       # (2*n_layers, B, H)
    return outputs, hidden


if __name__ == "__main__":
    B, T = 2, 8
    INP_DIM, EMB_DIM, HID_DIM, N_LAYERS = 20, 16, 32, 2
    HID_PAD = _round_up(HID_DIM, 128)   # lane-aligned gates / lane-dense output

    key = jax.random.PRNGKey(0)
    k_src, k_par = jax.random.split(key)
    src = jax.random.randint(k_src, (B, T), 0, INP_DIM, dtype=jnp.int32)
    params = init_params(k_par, INP_DIM, EMB_DIM, HID_DIM, N_LAYERS, HID_PAD)

    fwd_fn = jax.jit(functools.partial(
        encoder_forward, n_layers=N_LAYERS, hid_dim=HID_DIM, hid_pad=HID_PAD))
    outputs, hidden = fwd_fn(params, src)
    jax.block_until_ready((outputs, hidden))

    assert outputs.shape == (B, T, 2 * HID_DIM), outputs.shape
    assert hidden.shape == (2 * N_LAYERS, B, HID_DIM), hidden.shape
    assert outputs.dtype == jnp.float32 and hidden.dtype == jnp.float32
    print("KERNEL_OK")
</pallas_src>

<mosaic_0001>
module attributes {stable_mosaic.version = 11 : i64} {
  func.func @_bigru_kernel(%arg0: i32, %arg1: memref<1x8x2x384xbf16, #tpu.memory_space<vmem>>, %arg2: memref<1x8x2x384xbf16, #tpu.memory_space<vmem>>, %arg3: memref<2x128x384xbf16, #tpu.memory_space<vmem>>, %arg4: memref<2x1x384xf32, #tpu.memory_space<vmem>>, %arg5: memref<2x1x384xf32, #tpu.memory_space<vmem>>, %arg6: memref<8x2x128xbf16, #tpu.memory_space<vmem>>, %arg7: memref<8x2x128xbf16, #tpu.memory_space<vmem>>, %arg8: memref<2x2x128xf32, #tpu.memory_space<vmem>>, %arg9: memref<2x128xf32, #tpu.memory_space<vmem>>, %arg10: memref<2x128xf32, #tpu.memory_space<vmem>>) attributes {dimension_semantics = [#tpu.dimension_semantics<arbitrary>], iteration_bounds = array<i64: 1>, scalar_prefetch = 0 : i64, scratch_operands = 2 : i64, tpu.core_type = #tpu.core_type<tc>, window_params = [{transform_indices = @transform_0, window_bounds = array<i64: 1, 8, 2, 384>}, {transform_indices = @transform_1, window_bounds = array<i64: 1, 8, 2, 384>}, {pipeline_mode = #tpu.pipeline_mode<synchronous>, transform_indices = @transform_2, window_bounds = array<i64: 2, 128, 384>}, {pipeline_mode = #tpu.pipeline_mode<synchronous>, transform_indices = @transform_3, window_bounds = array<i64: 2, 1, 384>}, {pipeline_mode = #tpu.pipeline_mode<synchronous>, transform_indices = @transform_4, window_bounds = array<i64: 2, 1, 384>}, {transform_indices = @transform_5, window_bounds = array<i64: 8, 2, 128>}, {transform_indices = @transform_6, window_bounds = array<i64: 8, 2, 128>}, {pipeline_mode = #tpu.pipeline_mode<synchronous>, transform_indices = @transform_7, window_bounds = array<i64: 2, 2, 128>}]} {
    %c0_i32 = arith.constant 0 : i32
    %0 = arith.cmpi eq, %arg0, %c0_i32 : i32
    %1 = arith.extui %0 : i1 to i32
    %c0_i32_0 = arith.constant 0 : i32
    %2 = arith.cmpi ne, %1, %c0_i32_0 : i32
    scf.if %2 {
      %cst_307 = arith.constant 0.000000e+00 : f32
      %759 = vector.broadcast %cst_307 : f32 to vector<2x128xf32>
      %c0_308 = arith.constant 0 : index
      %c0_309 = arith.constant 0 : index
      %760 = vector.load %arg9[%c0_308, %c0_309] : memref<2x128xf32, #tpu.memory_space<vmem>>, vector<2x128xf32>
      tpu.vector_store %arg9[%c0_308, %c0_309], %759 {strides = array<i32>} : memref<2x128xf32, #tpu.memory_space<vmem>>, vector<2x128xf32>,
      %cst_310 = arith.constant 0.000000e+00 : f32
      %761 = vector.broadcast %cst_310 : f32 to vector<2x128xf32>
      %c0_311 = arith.constant 0 : index
      %c0_312 = arith.constant 0 : index
      %762 = vector.load %arg10[%c0_311, %c0_312] : memref<2x128xf32, #tpu.memory_space<vmem>>, vector<2x128xf32>
      tpu.vector_store %arg10[%c0_311, %c0_312], %761 {strides = array<i32>} : memref<2x128xf32, #tpu.memory_space<vmem>>, vector<2x128xf32>,
    } else {
    }
    %c0 = arith.constant 0 : index
    %c0_1 = arith.constant 0 : index
    %c0_2 = arith.constant 0 : index
    %3 = vector.load %arg3[%c0, %c0_1, %c0_2] : memref<2x128x384xbf16, #tpu.memory_space<vmem>>, vector<1x128x384xbf16>
    %4 = vector.shape_cast %3 : vector<1x128x384xbf16> to vector<128x384xbf16>
    %c1 = arith.constant 1 : index
    %c0_3 = arith.constant 0 : index
    %c0_4 = arith.constant 0 : index
    %5 = vector.load %arg3[%c1, %c0_3, %c0_4] : memref<2x128x384xbf16, #tpu.memory_space<vmem>>, vector<1x128x384xbf16>
    %6 = vector.shape_cast %5 : vector<1x128x384xbf16> to vector<128x384xbf16>
    %c0_5 = arith.constant 0 : index
    %c0_6 = arith.constant 0 : index
    %c0_7 = arith.constant 0 : index
    %7 = vector.load %arg4[%c0_5, %c0_6, %c0_7] : memref<2x1x384xf32, #tpu.memory_space<vmem>>, vector<1x1x384xf32>
    %8 = vector.shape_cast %7 : vector<1x1x384xf32> to vector<1x384xf32>
    %9 = vector.shape_cast %8 : vector<1x384xf32> to vector<1x384xf32>
    %10 = vector.broadcast %9 : vector<1x384xf32> to vector<2x384xf32>
    %c1_8 = arith.constant 1 : index
    %c0_9 = arith.constant 0 : index
    %c0_10 = arith.constant 0 : index
    %11 = vector.load %arg4[%c1_8, %c0_9, %c0_10] : memref<2x1x384xf32, #tpu.memory_space<vmem>>, vector<1x1x384xf32>
    %12 = vector.shape_cast %11 : vector<1x1x384xf32> to vector<1x384xf32>
    %13 = vector.shape_cast %12 : vector<1x384xf32> to vector<1x384xf32>
    %14 = vector.broadcast %13 : vector<1x384xf32> to vector<2x384xf32>
    %c0_11 = arith.constant 0 : index
    %c0_12 = arith.constant 0 : index
    %c0_13 = arith.constant 0 : index
    %15 = vector.load %arg5[%c0_11, %c0_12, %c0_13] : memref<2x1x384xf32, #tpu.memory_space<vmem>>, vector<1x1x384xf32>
    %16 = vector.shape_cast %15 : vector<1x1x384xf32> to vector<1x384xf32>
    %17 = vector.shape_cast %16 : vector<1x384xf32> to vector<1x384xf32>
    %18 = vector.broadcast %17 : vector<1x384xf32> to vector<2x384xf32>
    %c1_14 = arith.constant 1 : index
    %c0_15 = arith.constant 0 : index
    %c0_16 = arith.constant 0 : index
    %19 = vector.load %arg5[%c1_14, %c0_15, %c0_16] : memref<2x1x384xf32, #tpu.memory_space<vmem>>, vector<1x1x384xf32>
    %20 = vector.shape_cast %19 : vector<1x1x384xf32> to vector<1x384xf32>
    %21 = vector.shape_cast %20 : vector<1x384xf32> to vector<1x384xf32>
    %22 = vector.broadcast %21 : vector<1x384xf32> to vector<2x384xf32>
    %c0_i32_17 = arith.constant 0 : i32
    %c7_i32 = arith.constant 7 : i32
    %23 = arith.subi %c7_i32, %c0_i32_17 : i32
    %c0_18 = arith.constant 0 : index
    %c0_19 = arith.constant 0 : index
    %24 = vector.load %arg9[%c0_18, %c0_19] : memref<2x128xf32, #tpu.memory_space<vmem>>, vector<2x128xf32>
    %c0_20 = arith.constant 0 : index
    %c0_21 = arith.constant 0 : index
    %25 = vector.load %arg10[%c0_20, %c0_21] : memref<2x128xf32, #tpu.memory_space<vmem>>, vector<2x128xf32>
    %c0_22 = arith.constant 0 : index
    %26 = arith.index_cast %c0_i32_17 : i32 to index
    %c0_23 = arith.constant 0 : index
    %c0_24 = arith.constant 0 : index
    %27 = vector.load %arg1[%c0_22, %26, %c0_23, %c0_24] : memref<1x8x2x384xbf16, #tpu.memory_space<vmem>>, vector<1x1x2x384xbf16>
    %28 = vector.shape_cast %27 : vector<1x1x2x384xbf16> to vector<2x384xbf16>
    %29 = arith.extf %28 : vector<2x384xbf16> to vector<2x384xf32>
    %30 = arith.addf %29, %10 : vector<2x384xf32>
    %c0_25 = arith.constant 0 : index
    %31 = arith.index_cast %23 : i32 to index
    %c0_26 = arith.constant 0 : index
    %c0_27 = arith.constant 0 : index
    %32 = vector.load %arg2[%c0_25, %31, %c0_26, %c0_27] : memref<1x8x2x384xbf16, #tpu.memory_space<vmem>>, vector<1x1x2x384xbf16>
    %33 = vector.shape_cast %32 : vector<1x1x2x384xbf16> to vector<2x384xbf16>
    %34 = arith.extf %33 : vector<2x384xbf16> to vector<2x384xf32>
    %35 = arith.addf %34, %14 : vector<2x384xf32>
    %36 = arith.truncf %24 : vector<2x128xf32> to vector<2x128xbf16>
    %cst = arith.constant dense<0.000000e+00> : vector<2x384xf32>
    %37 = tpu.matmul %36, %4, %cst {dimension_numbers = #tpu.dot_dimension_numbers<[1], [0], [0], [1], [0, 0, 1, 1], [], []>} : vector<2x128xbf16>, vector<128x384xbf16>, vector<2x384xf32> -> vector<2x384xf32>
    %38 = arith.addf %37, %18 : vector<2x384xf32>
    %39 = arith.truncf %25 : vector<2x128xf32> to vector<2x128xbf16>
    %cst_28 = arith.constant dense<0.000000e+00> : vector<2x384xf32>
    %40 = tpu.matmul %39, %6, %cst_28 {dimension_numbers = #tpu.dot_dimension_numbers<[1], [0], [0], [1], [0, 0, 1, 1], [], []>} : vector<2x128xbf16>, vector<128x384xbf16>, vector<2x384xf32> -> vector<2x384xf32>
    %41 = arith.addf %40, %22 : vector<2x384xf32>
    %42 = vector.extract_strided_slice %30 {offsets = [0, 0], sizes = [2, 128], strides = [1, 1]} : vector<2x384xf32> to vector<2x128xf32>
    %43 = vector.extract_strided_slice %38 {offsets = [0, 0], sizes = [2, 128], strides = [1, 1]} : vector<2x384xf32> to vector<2x128xf32>
    %44 = arith.addf %42, %43 : vector<2x128xf32>
    %cst_29 = arith.constant 5.000000e-01 : f32
    %45 = vector.broadcast %cst_29 : f32 to vector<2x128xf32>
    %46 = arith.mulf %45, %44 : vector<2x128xf32>
    %47 = math.tanh %46 : vector<2x128xf32>
    %cst_30 = arith.constant 1.000000e+00 : f32
    %48 = vector.broadcast %cst_30 : f32 to vector<2x128xf32>
    %49 = arith.addf %48, %47 : vector<2x128xf32>
    %cst_31 = arith.constant 5.000000e-01 : f32
    %50 = vector.broadcast %cst_31 : f32 to vector<2x128xf32>
    %51 = arith.mulf %50, %49 : vector<2x128xf32>
    %52 = vector.extract_strided_slice %30 {offsets = [0, 128], sizes = [2, 128], strides = [1, 1]} : vector<2x384xf32> to vector<2x128xf32>
    %53 = vector.extract_strided_slice %38 {offsets = [0, 128], sizes = [2, 128], strides = [1, 1]} : vector<2x384xf32> to vector<2x128xf32>
    %54 = arith.addf %52, %53 : vector<2x128xf32>
    %cst_32 = arith.constant 5.000000e-01 : f32
    %55 = vector.broadcast %cst_32 : f32 to vector<2x128xf32>
    %56 = arith.mulf %55, %54 : vector<2x128xf32>
    %57 = math.tanh %56 : vector<2x128xf32>
    %cst_33 = arith.constant 1.000000e+00 : f32
    %58 = vector.broadcast %cst_33 : f32 to vector<2x128xf32>
    %59 = arith.addf %58, %57 : vector<2x128xf32>
    %cst_34 = arith.constant 5.000000e-01 : f32
    %60 = vector.broadcast %cst_34 : f32 to vector<2x128xf32>
    %61 = arith.mulf %60, %59 : vector<2x128xf32>
    %62 = vector.extract_strided_slice %30 {offsets = [0, 256], sizes = [2, 128], strides = [1, 1]} : vector<2x384xf32> to vector<2x128xf32>
    %63 = vector.extract_strided_slice %38 {offsets = [0, 256], sizes = [2, 128], strides = [1, 1]} : vector<2x384xf32> to vector<2x128xf32>
    %64 = arith.mulf %51, %63 : vector<2x128xf32>
    %65 = arith.addf %62, %64 : vector<2x128xf32>
    %66 = math.tanh %65 : vector<2x128xf32>
    %cst_35 = arith.constant 1.000000e+00 : f32
    %67 = vector.broadcast %cst_35 : f32 to vector<2x128xf32>
    %68 = arith.subf %67, %61 : vector<2x128xf32>
    %69 = arith.mulf %68, %66 : vector<2x128xf32>
    %70 = arith.mulf %61, %24 : vector<2x128xf32>
    %71 = arith.addf %69, %70 : vector<2x128xf32>
    %72 = vector.extract_strided_slice %35 {offsets = [0, 0], sizes = [2, 128], strides = [1, 1]} : vector<2x384xf32> to vector<2x128xf32>
    %73 = vector.extract_strided_slice %41 {offsets = [0, 0], sizes = [2, 128], strides = [1, 1]} : vector<2x384xf32> to vector<2x128xf32>
    %74 = arith.addf %72, %73 : vector<2x128xf32>
    %cst_36 = arith.constant 5.000000e-01 : f32
    %75 = vector.broadcast %cst_36 : f32 to vector<2x128xf32>
    %76 = arith.mulf %75, %74 : vector<2x128xf32>
    %77 = math.tanh %76 : vector<2x128xf32>
    %cst_37 = arith.constant 1.000000e+00 : f32
    %78 = vector.broadcast %cst_37 : f32 to vector<2x128xf32>
    %79 = arith.addf %78, %77 : vector<2x128xf32>
    %cst_38 = arith.constant 5.000000e-01 : f32
    %80 = vector.broadcast %cst_38 : f32 to vector<2x128xf32>
    %81 = arith.mulf %80, %79 : vector<2x128xf32>
    %82 = vector.extract_strided_slice %35 {offsets = [0, 128], sizes = [2, 128], strides = [1, 1]} : vector<2x384xf32> to vector<2x128xf32>
    %83 = vector.extract_strided_slice %41 {offsets = [0, 128], sizes = [2, 128], strides = [1, 1]} : vector<2x384xf32> to vector<2x128xf32>
    %84 = arith.addf %82, %83 : vector<2x128xf32>
    %cst_39 = arith.constant 5.000000e-01 : f32
    %85 = vector.broadcast %cst_39 : f32 to vector<2x128xf32>
    %86 = arith.mulf %85, %84 : vector<2x128xf32>
    %87 = math.tanh %86 : vector<2x128xf32>
    %cst_40 = arith.constant 1.000000e+00 : f32
    %88 = vector.broadcast %cst_40 : f32 to vector<2x128xf32>
    %89 = arith.addf %88, %87 : vector<2x128xf32>
    %cst_41 = arith.constant 5.000000e-01 : f32
    %90 = vector.broadcast %cst_41 : f32 to vector<2x128xf32>
    %91 = arith.mulf %90, %89 : vector<2x128xf32>
    %92 = vector.extract_strided_slice %35 {offsets = [0, 256], sizes = [2, 128], strides = [1, 1]} : vector<2x384xf32> to vector<2x128xf32>
    %93 = vector.extract_strided_slice %41 {offsets = [0, 256], sizes = [2, 128], strides = [1, 1]} : vector<2x384xf32> to vector<2x128xf32>
    %94 = arith.mulf %81, %93 : vector<2x128xf32>
    %95 = arith.addf %92, %94 : vector<2x128xf32>
    %96 = math.tanh %95 : vector<2x128xf32>
    %cst_42 = arith.constant 1.000000e+00 : f32
    %97 = vector.broadcast %cst_42 : f32 to vector<2x128xf32>
    %98 = arith.subf %97, %91 : vector<2x128xf32>
    %99 = arith.mulf %98, %96 : vector<2x128xf32>
    %100 = arith.mulf %91, %25 : vector<2x128xf32>
    %101 = arith.addf %99, %100 : vector<2x128xf32>
    %c0_43 = arith.constant 0 : index
    %c0_44 = arith.constant 0 : index
    %102 = vector.load %arg9[%c0_43, %c0_44] : memref<2x128xf32, #tpu.memory_space<vmem>>, vector<2x128xf32>
    tpu.vector_store %arg9[%c0_43, %c0_44], %71 {strides = array<i32>} : memref<2x128xf32, #tpu.memory_space<vmem>>, vector<2x128xf32>,
    %c0_45 = arith.constant 0 : index
    %c0_46 = arith.constant 0 : index
    %103 = vector.load %arg10[%c0_45, %c0_46] : memref<2x128xf32, #tpu.memory_space<vmem>>, vector<2x128xf32>
    tpu.vector_store %arg10[%c0_45, %c0_46], %101 {strides = array<i32>} : memref<2x128xf32, #tpu.memory_space<vmem>>, vector<2x128xf32>,
    %104 = arith.truncf %71 : vector<2x128xf32> to vector<2x128xbf16>
    %105 = arith.index_cast %c0_i32_17 : i32 to index
    %c0_47 = arith.constant 0 : index
    %c0_48 = arith.constant 0 : index
    %106 = vector.load %arg6[%105, %c0_47, %c0_48] : memref<8x2x128xbf16, #tpu.memory_space<vmem>>, vector<1x2x128xbf16>
    %107 = vector.shape_cast %106 : vector<1x2x128xbf16> to vector<2x128xbf16>
    %108 = vector.shape_cast %104 : vector<2x128xbf16> to vector<1x2x128xbf16>
    tpu.vector_store %arg6[%105, %c0_47, %c0_48], %108 {strides = array<i32>} : memref<8x2x128xbf16, #tpu.memory_space<vmem>>, vector<1x2x128xbf16>,
    %109 = arith.truncf %101 : vector<2x128xf32> to vector<2x128xbf16>
    %110 = arith.index_cast %23 : i32 to index
    %c0_49 = arith.constant 0 : index
    %c0_50 = arith.constant 0 : index
    %111 = vector.load %arg7[%110, %c0_49, %c0_50] : memref<8x2x128xbf16, #tpu.memory_space<vmem>>, vector<1x2x128xbf16>
    %112 = vector.shape_cast %111 : vector<1x2x128xbf16> to vector<2x128xbf16>
    %113 = vector.shape_cast %109 : vector<2x128xbf16> to vector<1x2x128xbf16>
    tpu.vector_store %arg7[%110, %c0_49, %c0_50], %113 {strides = array<i32>} : memref<8x2x128xbf16, #tpu.memory_space<vmem>>, vector<1x2x128xbf16>,
    %c1_i32 = arith.constant 1 : i32
    %c7_i32_51 = arith.constant 7 : i32
    %114 = arith.subi %c7_i32_51, %c1_i32 : i32
    %c0_52 = arith.constant 0 : index
    %c0_53 = arith.constant 0 : index
    %115 = vector.load %arg9[%c0_52, %c0_53] : memref<2x128xf32, #tpu.memory_space<vmem>>, vector<2x128xf32>
    %c0_54 = arith.constant 0 : index
    %c0_55 = arith.constant 0 : index
    %116 = vector.load %arg10[%c0_54, %c0_55] : memref<2x128xf32, #tpu.memory_space<vmem>>, vector<2x128xf32>
    %c0_56 = arith.constant 0 : index
    %117 = arith.index_cast %c1_i32 : i32 to index
    %c0_57 = arith.constant 0 : index
    %c0_58 = arith.constant 0 : index
    %118 = vector.load %arg1[%c0_56, %117, %c0_57, %c0_58] : memref<1x8x2x384xbf16, #tpu.memory_space<vmem>>, vector<1x1x2x384xbf16>
    %119 = vector.shape_cast %118 : vector<1x1x2x384xbf16> to vector<2x384xbf16>
    %120 = arith.extf %119 : vector<2x384xbf16> to vector<2x384xf32>
    %121 = arith.addf %120, %10 : vector<2x384xf32>
    %c0_59 = arith.constant 0 : index
    %122 = arith.index_cast %114 : i32 to index
    %c0_60 = arith.constant 0 : index
    %c0_61 = arith.constant 0 : index
    %123 = vector.load %arg2[%c0_59, %122, %c0_60, %c0_61] : memref<1x8x2x384xbf16, #tpu.memory_space<vmem>>, vector<1x1x2x384xbf16>
    %124 = vector.shape_cast %123 : vector<1x1x2x384xbf16> to vector<2x384xbf16>
    %125 = arith.extf %124 : vector<2x384xbf16> to vector<2x384xf32>
    %126 = arith.addf %125, %14 : vector<2x384xf32>
    %127 = arith.truncf %115 : vector<2x128xf32> to vector<2x128xbf16>
    %cst_62 = arith.constant dense<0.000000e+00> : vector<2x384xf32>
    %128 = tpu.matmul %127, %4, %cst_62 {dimension_numbers = #tpu.dot_dimension_numbers<[1], [0], [0], [1], [0, 0, 1, 1], [], []>} : vector<2x128xbf16>, vector<128x384xbf16>, vector<2x384xf32> -> vector<2x384xf32>
    %129 = arith.addf %128, %18 : vector<2x384xf32>
    %130 = arith.truncf %116 : vector<2x128xf32> to vector<2x128xbf16>
    %cst_63 = arith.constant dense<0.000000e+00> : vector<2x384xf32>
    %131 = tpu.matmul %130, %6, %cst_63 {dimension_numbers = #tpu.dot_dimension_numbers<[1], [0], [0], [1], [0, 0, 1, 1], [], []>} : vector<2x128xbf16>, vector<128x384xbf16>, vector<2x384xf32> -> vector<2x384xf32>
    %132 = arith.addf %131, %22 : vector<2x384xf32>
    %133 = vector.extract_strided_slice %121 {offsets = [0, 0], sizes = [2, 128], strides = [1, 1]} : vector<2x384xf32> to vector<2x128xf32>
    %134 = vector.extract_strided_slice %129 {offsets = [0, 0], sizes = [2, 128], strides = [1, 1]} : vector<2x384xf32> to vector<2x128xf32>
    %135 = arith.addf %133, %134 : vector<2x128xf32>
    %cst_64 = arith.constant 5.000000e-01 : f32
    %136 = vector.broadcast %cst_64 : f32 to vector<2x128xf32>
    %137 = arith.mulf %136, %135 : vector<2x128xf32>
    %138 = math.tanh %137 : vector<2x128xf32>
    %cst_65 = arith.constant 1.000000e+00 : f32
    %139 = vector.broadcast %cst_65 : f32 to vector<2x128xf32>
    %140 = arith.addf %139, %138 : vector<2x128xf32>
    %cst_66 = arith.constant 5.000000e-01 : f32
    %141 = vector.broadcast %cst_66 : f32 to vector<2x128xf32>
    %142 = arith.mulf %141, %140 : vector<2x128xf32>
    %143 = vector.extract_strided_slice %121 {offsets = [0, 128], sizes = [2, 128], strides = [1, 1]} : vector<2x384xf32> to vector<2x128xf32>
    %144 = vector.extract_strided_slice %129 {offsets = [0, 128], sizes = [2, 128], strides = [1, 1]} : vector<2x384xf32> to vector<2x128xf32>
    %145 = arith.addf %143, %144 : vector<2x128xf32>
    %cst_67 = arith.constant 5.000000e-01 : f32
    %146 = vector.broadcast %cst_67 : f32 to vector<2x128xf32>
    %147 = arith.mulf %146, %145 : vector<2x128xf32>
    %148 = math.tanh %147 : vector<2x128xf32>
    %cst_68 = arith.constant 1.000000e+00 : f32
    %149 = vector.broadcast %cst_68 : f32 to vector<2x128xf32>
    %150 = arith.addf %149, %148 : vector<2x128xf32>
    %cst_69 = arith.constant 5.000000e-01 : f32
    %151 = vector.broadcast %cst_69 : f32 to vector<2x128xf32>
    %152 = arith.mulf %151, %150 : vector<2x128xf32>
    %153 = vector.extract_strided_slice %121 {offsets = [0, 256], sizes = [2, 128], strides = [1, 1]} : vector<2x384xf32> to vector<2x128xf32>
    %154 = vector.extract_strided_slice %129 {offsets = [0, 256], sizes = [2, 128], strides = [1, 1]} : vector<2x384xf32> to vector<2x128xf32>
    %155 = arith.mulf %142, %154 : vector<2x128xf32>
    %156 = arith.addf %153, %155 : vector<2x128xf32>
    %157 = math.tanh %156 : vector<2x128xf32>
    %cst_70 = arith.constant 1.000000e+00 : f32
    %158 = vector.broadcast %cst_70 : f32 to vector<2x128xf32>
    %159 = arith.subf %158, %152 : vector<2x128xf32>
    %160 = arith.mulf %159, %157 : vector<2x128xf32>
    %161 = arith.mulf %152, %115 : vector<2x128xf32>
    %162 = arith.addf %160, %161 : vector<2x128xf32>
    %163 = vector.extract_strided_slice %126 {offsets = [0, 0], sizes = [2, 128], strides = [1, 1]} : vector<2x384xf32> to vector<2x128xf32>
    %164 = vector.extract_strided_slice %132 {offsets = [0, 0], sizes = [2, 128], strides = [1, 1]} : vector<2x384xf32> to vector<2x128xf32>
    %165 = arith.addf %163, %164 : vector<2x128xf32>
    %cst_71 = arith.constant 5.000000e-01 : f32
    %166 = vector.broadcast %cst_71 : f32 to vector<2x128xf32>
    %167 = arith.mulf %166, %165 : vector<2x128xf32>
    %168 = math.tanh %167 : vector<2x128xf32>
    %cst_72 = arith.constant 1.000000e+00 : f32
    %169 = vector.broadcast %cst_72 : f32 to vector<2x128xf32>
    %170 = arith.addf %169, %168 : vector<2x128xf32>
    %cst_73 = arith.constant 5.000000e-01 : f32
    %171 = vector.broadcast %cst_73 : f32 to vector<2x128xf32>
    %172 = arith.mulf %171, %170 : vector<2x128xf32>
    %173 = vector.extract_strided_slice %126 {offsets = [0, 128], sizes = [2, 128], strides = [1, 1]} : vector<2x384xf32> to vector<2x128xf32>
    %174 = vector.extract_strided_slice %132 {offsets = [0, 128], sizes = [2, 128], strides = [1, 1]} : vector<2x384xf32> to vector<2x128xf32>
    %175 = arith.addf %173, %174 : vector<2x128xf32>
    %cst_74 = arith.constant 5.000000e-01 : f32
    %176 = vector.broadcast %cst_74 : f32 to vector<2x128xf32>
    %177 = arith.mulf %176, %175 : vector<2x128xf32>
    %178 = math.tanh %177 : vector<2x128xf32>
    %cst_75 = arith.constant 1.000000e+00 : f32
    %179 = vector.broadcast %cst_75 : f32 to vector<2x128xf32>
    %180 = arith.addf %179, %178 : vector<2x128xf32>
    %cst_76 = arith.constant 5.000000e-01 : f32
    %181 = vector.broadcast %cst_76 : f32 to vector<2x128xf32>
    %182 = arith.mulf %181, %180 : vector<2x128xf32>
    %183 = vector.extract_strided_slice %126 {offsets = [0, 256], sizes = [2, 128], strides = [1, 1]} : vector<2x384xf32> to vector<2x128xf32>
    %184 = vector.extract_strided_slice %132 {offsets = [0, 256], sizes = [2, 128], strides = [1, 1]} : vector<2x384xf32> to vector<2x128xf32>
    %185 = arith.mulf %172, %184 : vector<2x128xf32>
    %186 = arith.addf %183, %185 : vector<2x128xf32>
    %187 = math.tanh %186 : vector<2x128xf32>
    %cst_77 = arith.constant 1.000000e+00 : f32
    %188 = vector.broadcast %cst_77 : f32 to vector<2x128xf32>
    %189 = arith.subf %188, %182 : vector<2x128xf32>
    %190 = arith.mulf %189, %187 : vector<2x128xf32>
    %191 = arith.mulf %182, %116 : vector<2x128xf32>
    %192 = arith.addf %190, %191 : vector<2x128xf32>
    %c0_78 = arith.constant 0 : index
    %c0_79 = arith.constant 0 : index
    %193 = vector.load %arg9[%c0_78, %c0_79] : memref<2x128xf32, #tpu.memory_space<vmem>>, vector<2x128xf32>
    tpu.vector_store %arg9[%c0_78, %c0_79], %162 {strides = array<i32>} : memref<2x128xf32, #tpu.memory_space<vmem>>, vector<2x128xf32>,
    %c0_80 = arith.constant 0 : index
    %c0_81 = arith.constant 0 : index
    %194 = vector.load %arg10[%c0_80, %c0_81] : memref<2x128xf32, #tpu.memory_space<vmem>>, vector<2x128xf32>
    tpu.vector_store %arg10[%c0_80, %c0_81], %192 {strides = array<i32>} : memref<2x128xf32, #tpu.memory_space<vmem>>, vector<2x128xf32>,
    %195 = arith.truncf %162 : vector<2x128xf32> to vector<2x128xbf16>
    %196 = arith.index_cast %c1_i32 : i32 to index
    %c0_82 = arith.constant 0 : index
    %c0_83 = arith.constant 0 : index
    %197 = vector.load %arg6[%196, %c0_82, %c0_83] : memref<8x2x128xbf16, #tpu.memory_space<vmem>>, vector<1x2x128xbf16>
    %198 = vector.shape_cast %197 : vector<1x2x128xbf16> to vector<2x128xbf16>
    %199 = vector.shape_cast %195 : vector<2x128xbf16> to vector<1x2x128xbf16>
    tpu.vector_store %arg6[%196, %c0_82, %c0_83], %199 {strides = array<i32>} : memref<8x2x128xbf16, #tpu.memory_space<vmem>>, vector<1x2x128xbf16>,
    %200 = arith.truncf %192 : vector<2x128xf32> to vector<2x128xbf16>
    %201 = arith.index_cast %114 : i32 to index
    %c0_84 = arith.constant 0 : index
    %c0_85 = arith.constant 0 : index
    %202 = vector.load %arg7[%201, %c0_84, %c0_85] : memref<8x2x128xbf16, #tpu.memory_space<vmem>>, vector<1x2x128xbf16>
    %203 = vector.shape_cast %202 : vector<1x2x128xbf16> to vector<2x128xbf16>
    %204 = vector.shape_cast %200 : vector<2x128xbf16> to vector<1x2x128xbf16>
    tpu.vector_store %arg7[%201, %c0_84, %c0_85], %204 {strides = array<i32>} : memref<8x2x128xbf16, #tpu.memory_space<vmem>>, vector<1x2x128xbf16>,
    %c2_i32 = arith.constant 2 : i32
    %c7_i32_86 = arith.constant 7 : i32
    %205 = arith.subi %c7_i32_86, %c2_i32 : i32
    %c0_87 = arith.constant 0 : index
    %c0_88 = arith.constant 0 : index
    %206 = vector.load %arg9[%c0_87, %c0_88] : memref<2x128xf32, #tpu.memory_space<vmem>>, vector<2x128xf32>
    %c0_89 = arith.constant 0 : index
    %c0_90 = arith.constant 0 : index
    %207 = vector.load %arg10[%c0_89, %c0_90] : memref<2x128xf32, #tpu.memory_space<vmem>>, vector<2x128xf32>
    %c0_91 = arith.constant 0 : index
    %208 = arith.index_cast %c2_i32 : i32 to index
    %c0_92 = arith.constant 0 : index
    %c0_93 = arith.constant 0 : index
    %209 = vector.load %arg1[%c0_91, %208, %c0_92, %c0_93] : memref<1x8x2x384xbf16, #tpu.memory_space<vmem>>, vector<1x1x2x384xbf16>
    %210 = vector.shape_cast %209 : vector<1x1x2x384xbf16> to vector<2x384xbf16>
    %211 = arith.extf %210 : vector<2x384xbf16> to vector<2x384xf32>
    %212 = arith.addf %211, %10 : vector<2x384xf32>
    %c0_94 = arith.constant 0 : index
    %213 = arith.index_cast %205 : i32 to index
    %c0_95 = arith.constant 0 : index
    %c0_96 = arith.constant 0 : index
    %214 = vector.load %arg2[%c0_94, %213, %c0_95, %c0_96] : memref<1x8x2x384xbf16, #tpu.memory_space<vmem>>, vector<1x1x2x384xbf16>
    %215 = vector.shape_cast %214 : vector<1x1x2x384xbf16> to vector<2x384xbf16>
    %216 = arith.extf %215 : vector<2x384xbf16> to vector<2x384xf32>
    %217 = arith.addf %216, %14 : vector<2x384xf32>
    %218 = arith.truncf %206 : vector<2x128xf32> to vector<2x128xbf16>
    %cst_97 = arith.constant dense<0.000000e+00> : vector<2x384xf32>
    %219 = tpu.matmul %218, %4, %cst_97 {dimension_numbers = #tpu.dot_dimension_numbers<[1], [0], [0], [1], [0, 0, 1, 1], [], []>} : vector<2x128xbf16>, vector<128x384xbf16>, vector<2x384xf32> -> vector<2x384xf32>
    %220 = arith.addf %219, %18 : vector<2x384xf32>
    %221 = arith.truncf %207 : vector<2x128xf32> to vector<2x128xbf16>
    %cst_98 = arith.constant dense<0.000000e+00> : vector<2x384xf32>
    %222 = tpu.matmul %221, %6, %cst_98 {dimension_numbers = #tpu.dot_dimension_numbers<[1], [0], [0], [1], [0, 0, 1, 1], [], []>} : vector<2x128xbf16>, vector<128x384xbf16>, vector<2x384xf32> -> vector<2x384xf32>
    %223 = arith.addf %222, %22 : vector<2x384xf32>
    %224 = vector.extract_strided_slice %212 {offsets = [0, 0], sizes = [2, 128], strides = [1, 1]} : vector<2x384xf32> to vector<2x128xf32>
    %225 = vector.extract_strided_slice %220 {offsets = [0, 0], sizes = [2, 128], strides = [1, 1]} : vector<2x384xf32> to vector<2x128xf32>
    %226 = arith.addf %224, %225 : vector<2x128xf32>
    %cst_99 = arith.constant 5.000000e-01 : f32
    %227 = vector.broadcast %cst_99 : f32 to vector<2x128xf32>
    %228 = arith.mulf %227, %226 : vector<2x128xf32>
    %229 = math.tanh %228 : vector<2x128xf32>
    %cst_100 = arith.constant 1.000000e+00 : f32
    %230 = vector.broadcast %cst_100 : f32 to vector<2x128xf32>
    %231 = arith.addf %230, %229 : vector<2x128xf32>
    %cst_101 = arith.constant 5.000000e-01 : f32
    %232 = vector.broadcast %cst_101 : f32 to vector<2x128xf32>
    %233 = arith.mulf %232, %231 : vector<2x128xf32>
    %234 = vector.extract_strided_slice %212 {offsets = [0, 128], sizes = [2, 128], strides = [1, 1]} : vector<2x384xf32> to vector<2x128xf32>
    %235 = vector.extract_strided_slice %220 {offsets = [0, 128], sizes = [2, 128], strides = [1, 1]} : vector<2x384xf32> to vector<2x128xf32>
    %236 = arith.addf %234, %235 : vector<2x128xf32>
    %cst_102 = arith.constant 5.000000e-01 : f32
    %237 = vector.broadcast %cst_102 : f32 to vector<2x128xf32>
    %238 = arith.mulf %237, %236 : vector<2x128xf32>
    %239 = math.tanh %238 : vector<2x128xf32>
    %cst_103 = arith.constant 1.000000e+00 : f32
    %240 = vector.broadcast %cst_103 : f32 to vector<2x128xf32>
    %241 = arith.addf %240, %239 : vector<2x128xf32>
    %cst_104 = arith.constant 5.000000e-01 : f32
    %242 = vector.broadcast %cst_104 : f32 to vector<2x128xf32>
    %243 = arith.mulf %242, %241 : vector<2x128xf32>
    %244 = vector.extract_strided_slice %212 {offsets = [0, 256], sizes = [2, 128], strides = [1, 1]} : vector<2x384xf32> to vector<2x128xf32>
    %245 = vector.extract_strided_slice %220 {offsets = [0, 256], sizes = [2, 128], strides = [1, 1]} : vector<2x384xf32> to vector<2x128xf32>
    %246 = arith.mulf %233, %245 : vector<2x128xf32>
    %247 = arith.addf %244, %246 : vector<2x128xf32>
    %248 = math.tanh %247 : vector<2x128xf32>
    %cst_105 = arith.constant 1.000000e+00 : f32
    %249 = vector.broadcast %cst_105 : f32 to vector<2x128xf32>
    %250 = arith.subf %249, %243 : vector<2x128xf32>
    %251 = arith.mulf %250, %248 : vector<2x128xf32>
    %252 = arith.mulf %243, %206 : vector<2x128xf32>
    %253 = arith.addf %251, %252 : vector<2x128xf32>
    %254 = vector.extract_strided_slice %217 {offsets = [0, 0], sizes = [2, 128], strides = [1, 1]} : vector<2x384xf32> to vector<2x128xf32>
    %255 = vector.extract_strided_slice %223 {offsets = [0, 0], sizes = [2, 128], strides = [1, 1]} : vector<2x384xf32> to vector<2x128xf32>
    %256 = arith.addf %254, %255 : vector<2x128xf32>
    %cst_106 = arith.constant 5.000000e-01 : f32
    %257 = vector.broadcast %cst_106 : f32 to vector<2x128xf32>
    %258 = arith.mulf %257, %256 : vector<2x128xf32>
    %259 = math.tanh %258 : vector<2x128xf32>
    %cst_107 = arith.constant 1.000000e+00 : f32
    %260 = vector.broadcast %cst_107 : f32 to vector<2x128xf32>
    %261 = arith.addf %260, %259 : vector<2x128xf32>
    %cst_108 = arith.constant 5.000000e-01 : f32
    %262 = vector.broadcast %cst_108 : f32 to vector<2x128xf32>
    %263 = arith.mulf %262, %261 : vector<2x128xf32>
    %264 = vector.extract_strided_slice %217 {offsets = [0, 128], sizes = [2, 128], strides = [1, 1]} : vector<2x384xf32> to vector<2x128xf32>
    %265 = vector.extract_strided_slice %223 {offsets = [0, 128], sizes = [2, 128], strides = [1, 1]} : vector<2x384xf32> to vector<2x128xf32>
    %266 = arith.addf %264, %265 : vector<2x128xf32>
    %cst_109 = arith.constant 5.000000e-01 : f32
    %267 = vector.broadcast %cst_109 : f32 to vector<2x128xf32>
    %268 = arith.mulf %267, %266 : vector<2x128xf32>
    %269 = math.tanh %268 : vector<2x128xf32>
    %cst_110 = arith.constant 1.000000e+00 : f32
    %270 = vector.broadcast %cst_110 : f32 to vector<2x128xf32>
    %271 = arith.addf %270, %269 : vector<2x128xf32>
    %cst_111 = arith.constant 5.000000e-01 : f32
    %272 = vector.broadcast %cst_111 : f32 to vector<2x128xf32>
    %273 = arith.mulf %272, %271 : vector<2x128xf32>
    %274 = vector.extract_strided_slice %217 {offsets = [0, 256], sizes = [2, 128], strides = [1, 1]} : vector<2x384xf32> to vector<2x128xf32>
    %275 = vector.extract_strided_slice %223 {offsets = [0, 256], sizes = [2, 128], strides = [1, 1]} : vector<2x384xf32> to vector<2x128xf32>
    %276 = arith.mulf %263, %275 : vector<2x128xf32>
    %277 = arith.addf %274, %276 : vector<2x128xf32>
    %278 = math.tanh %277 : vector<2x128xf32>
    %cst_112 = arith.constant 1.000000e+00 : f32
    %279 = vector.broadcast %cst_112 : f32 to vector<2x128xf32>
    %280 = arith.subf %279, %273 : vector<2x128xf32>
    %281 = arith.mulf %280, %278 : vector<2x128xf32>
    %282 = arith.mulf %273, %207 : vector<2x128xf32>
    %283 = arith.addf %281, %282 : vector<2x128xf32>
    %c0_113 = arith.constant 0 : index
    %c0_114 = arith.constant 0 : index
    %284 = vector.load %arg9[%c0_113, %c0_114] : memref<2x128xf32, #tpu.memory_space<vmem>>, vector<2x128xf32>
    tpu.vector_store %arg9[%c0_113, %c0_114], %253 {strides = array<i32>} : memref<2x128xf32, #tpu.memory_space<vmem>>, vector<2x128xf32>,
    %c0_115 = arith.constant 0 : index
    %c0_116 = arith.constant 0 : index
    %285 = vector.load %arg10[%c0_115, %c0_116] : memref<2x128xf32, #tpu.memory_space<vmem>>, vector<2x128xf32>
    tpu.vector_store %arg10[%c0_115, %c0_116], %283 {strides = array<i32>} : memref<2x128xf32, #tpu.memory_space<vmem>>, vector<2x128xf32>,
    %286 = arith.truncf %253 : vector<2x128xf32> to vector<2x128xbf16>
    %287 = arith.index_cast %c2_i32 : i32 to index
    %c0_117 = arith.constant 0 : index
    %c0_118 = arith.constant 0 : index
    %288 = vector.load %arg6[%287, %c0_117, %c0_118] : memref<8x2x128xbf16, #tpu.memory_space<vmem>>, vector<1x2x128xbf16>
    %289 = vector.shape_cast %288 : vector<1x2x128xbf16> to vector<2x128xbf16>
    %290 = vector.shape_cast %286 : vector<2x128xbf16> to vector<1x2x128xbf16>
    tpu.vector_store %arg6[%287, %c0_117, %c0_118], %290 {strides = array<i32>} : memref<8x2x128xbf16, #tpu.memory_space<vmem>>, vector<1x2x128xbf16>,
    %291 = arith.truncf %283 : vector<2x128xf32> to vector<2x128xbf16>
    %292 = arith.index_cast %205 : i32 to index
    %c0_119 = arith.constant 0 : index
    %c0_120 = arith.constant 0 : index
    %293 = vector.load %arg7[%292, %c0_119, %c0_120] : memref<8x2x128xbf16, #tpu.memory_space<vmem>>, vector<1x2x128xbf16>
    %294 = vector.shape_cast %293 : vector<1x2x128xbf16> to vector<2x128xbf16>
    %295 = vector.shape_cast %291 : vector<2x128xbf16> to vector<1x2x128xbf16>
    tpu.vector_store %arg7[%292, %c0_119, %c0_120], %295 {strides = array<i32>} : memref<8x2x128xbf16, #tpu.memory_space<vmem>>, vector<1x2x128xbf16>,
    %c3_i32 = arith.constant 3 : i32
    %c7_i32_121 = arith.constant 7 : i32
    %296 = arith.subi %c7_i32_121, %c3_i32 : i32
    %c0_122 = arith.constant 0 : index
    %c0_123 = arith.constant 0 : index
    %297 = vector.load %arg9[%c0_122, %c0_123] : memref<2x128xf32, #tpu.memory_space<vmem>>, vector<2x128xf32>
    %c0_124 = arith.constant 0 : index
    %c0_125 = arith.constant 0 : index
    %298 = vector.load %arg10[%c0_124, %c0_125] : memref<2x128xf32, #tpu.memory_space<vmem>>, vector<2x128xf32>
    %c0_126 = arith.constant 0 : index
    %299 = arith.index_cast %c3_i32 : i32 to index
    %c0_127 = arith.constant 0 : index
    %c0_128 = arith.constant 0 : index
    %300 = vector.load %arg1[%c0_126, %299, %c0_127, %c0_128] : memref<1x8x2x384xbf16, #tpu.memory_space<vmem>>, vector<1x1x2x384xbf16>
    %301 = vector.shape_cast %300 : vector<1x1x2x384xbf16> to vector<2x384xbf16>
    %302 = arith.extf %301 : vector<2x384xbf16> to vector<2x384xf32>
    %303 = arith.addf %302, %10 : vector<2x384xf32>
    %c0_129 = arith.constant 0 : index
    %304 = arith.index_cast %296 : i32 to index
    %c0_130 = arith.constant 0 : index
    %c0_131 = arith.constant 0 : index
    %305 = vector.load %arg2[%c0_129, %304, %c0_130, %c0_131] : memref<1x8x2x384xbf16, #tpu.memory_space<vmem>>, vector<1x1x2x384xbf16>
    %306 = vector.shape_cast %305 : vector<1x1x2x384xbf16> to vector<2x384xbf16>
    %307 = arith.extf %306 : vector<2x384xbf16> to vector<2x384xf32>
    %308 = arith.addf %307, %14 : vector<2x384xf32>
    %309 = arith.truncf %297 : vector<2x128xf32> to vector<2x128xbf16>
    %cst_132 = arith.constant dense<0.000000e+00> : vector<2x384xf32>
    %310 = tpu.matmul %309, %4, %cst_132 {dimension_numbers = #tpu.dot_dimension_numbers<[1], [0], [0], [1], [0, 0, 1, 1], [], []>} : vector<2x128xbf16>, vector<128x384xbf16>, vector<2x384xf32> -> vector<2x384xf32>
    %311 = arith.addf %310, %18 : vector<2x384xf32>
    %312 = arith.truncf %298 : vector<2x128xf32> to vector<2x128xbf16>
    %cst_133 = arith.constant dense<0.000000e+00> : vector<2x384xf32>
    %313 = tpu.matmul %312, %6, %cst_133 {dimension_numbers = #tpu.dot_dimension_numbers<[1], [0], [0], [1], [0, 0, 1, 1], [], []>} : vector<2x128xbf16>, vector<128x384xbf16>, vector<2x384xf32> -> vector<2x384xf32>
    %314 = arith.addf %313, %22 : vector<2x384xf32>
    %315 = vector.extract_strided_slice %303 {offsets = [0, 0], sizes = [2, 128], strides = [1, 1]} : vector<2x384xf32> to vector<2x128xf32>
    %316 = vector.extract_strided_slice %311 {offsets = [0, 0], sizes = [2, 128], strides = [1, 1]} : vector<2x384xf32> to vector<2x128xf32>
    %317 = arith.addf %315, %316 : vector<2x128xf32>
    %cst_134 = arith.constant 5.000000e-01 : f32
    %318 = vector.broadcast %cst_134 : f32 to vector<2x128xf32>
    %319 = arith.mulf %318, %317 : vector<2x128xf32>
    %320 = math.tanh %319 : vector<2x128xf32>
    %cst_135 = arith.constant 1.000000e+00 : f32
    %321 = vector.broadcast %cst_135 : f32 to vector<2x128xf32>
    %322 = arith.addf %321, %320 : vector<2x128xf32>
    %cst_136 = arith.constant 5.000000e-01 : f32
    %323 = vector.broadcast %cst_136 : f32 to vector<2x128xf32>
    %324 = arith.mulf %323, %322 : vector<2x128xf32>
    %325 = vector.extract_strided_slice %303 {offsets = [0, 128], sizes = [2, 128], strides = [1, 1]} : vector<2x384xf32> to vector<2x128xf32>
    %326 = vector.extract_strided_slice %311 {offsets = [0, 128], sizes = [2, 128], strides = [1, 1]} : vector<2x384xf32> to vector<2x128xf32>
    %327 = arith.addf %325, %326 : vector<2x128xf32>
    %cst_137 = arith.constant 5.000000e-01 : f32
    %328 = vector.broadcast %cst_137 : f32 to vector<2x128xf32>
    %329 = arith.mulf %328, %327 : vector<2x128xf32>
    %330 = math.tanh %329 : vector<2x128xf32>
    %cst_138 = arith.constant 1.000000e+00 : f32
    %331 = vector.broadcast %cst_138 : f32 to vector<2x128xf32>
    %332 = arith.addf %331, %330 : vector<2x128xf32>
    %cst_139 = arith.constant 5.000000e-01 : f32
    %333 = vector.broadcast %cst_139 : f32 to vector<2x128xf32>
    %334 = arith.mulf %333, %332 : vector<2x128xf32>
    %335 = vector.extract_strided_slice %303 {offsets = [0, 256], sizes = [2, 128], strides = [1, 1]} : vector<2x384xf32> to vector<2x128xf32>
    %336 = vector.extract_strided_slice %311 {offsets = [0, 256], sizes = [2, 128], strides = [1, 1]} : vector<2x384xf32> to vector<2x128xf32>
    %337 = arith.mulf %324, %336 : vector<2x128xf32>
    %338 = arith.addf %335, %337 : vector<2x128xf32>
    %339 = math.tanh %338 : vector<2x128xf32>
    %cst_140 = arith.constant 1.000000e+00 : f32
    %340 = vector.broadcast %cst_140 : f32 to vector<2x128xf32>
    %341 = arith.subf %340, %334 : vector<2x128xf32>
    %342 = arith.mulf %341, %339 : vector<2x128xf32>
    %343 = arith.mulf %334, %297 : vector<2x128xf32>
    %344 = arith.addf %342, %343 : vector<2x128xf32>
    %345 = vector.extract_strided_slice %308 {offsets = [0, 0], sizes = [2, 128], strides = [1, 1]} : vector<2x384xf32> to vector<2x128xf32>
    %346 = vector.extract_strided_slice %314 {offsets = [0, 0], sizes = [2, 128], strides = [1, 1]} : vector<2x384xf32> to vector<2x128xf32>
    %347 = arith.addf %345, %346 : vector<2x128xf32>
    %cst_141 = arith.constant 5.000000e-01 : f32
    %348 = vector.broadcast %cst_141 : f32 to vector<2x128xf32>
    %349 = arith.mulf %348, %347 : vector<2x128xf32>
    %350 = math.tanh %349 : vector<2x128xf32>
    %cst_142 = arith.constant 1.000000e+00 : f32
    %351 = vector.broadcast %cst_142 : f32 to vector<2x128xf32>
    %352 = arith.addf %351, %350 : vector<2x128xf32>
    %cst_143 = arith.constant 5.000000e-01 : f32
    %353 = vector.broadcast %cst_143 : f32 to vector<2x128xf32>
    %354 = arith.mulf %353, %352 : vector<2x128xf32>
    %355 = vector.extract_strided_slice %308 {offsets = [0, 128], sizes = [2, 128], strides = [1, 1]} : vector<2x384xf32> to vector<2x128xf32>
    %356 = vector.extract_strided_slice %314 {offsets = [0, 128], sizes = [2, 128], strides = [1, 1]} : vector<2x384xf32> to vector<2x128xf32>
    %357 = arith.addf %355, %356 : vector<2x128xf32>
    %cst_144 = arith.constant 5.000000e-01 : f32
    %358 = vector.broadcast %cst_144 : f32 to vector<2x128xf32>
    %359 = arith.mulf %358, %357 : vector<2x128xf32>
    %360 = math.tanh %359 : vector<2x128xf32>
    %cst_145 = arith.constant 1.000000e+00 : f32
    %361 = vector.broadcast %cst_145 : f32 to vector<2x128xf32>
    %362 = arith.addf %361, %360 : vector<2x128xf32>
    %cst_146 = arith.constant 5.000000e-01 : f32
    %363 = vector.broadcast %cst_146 : f32 to vector<2x128xf32>
    %364 = arith.mulf %363, %362 : vector<2x128xf32>
    %365 = vector.extract_strided_slice %308 {offsets = [0, 256], sizes = [2, 128], strides = [1, 1]} : vector<2x384xf32> to vector<2x128xf32>
    %366 = vector.extract_strided_slice %314 {offsets = [0, 256], sizes = [2, 128], strides = [1, 1]} : vector<2x384xf32> to vector<2x128xf32>
    %367 = arith.mulf %354, %366 : vector<2x128xf32>
    %368 = arith.addf %365, %367 : vector<2x128xf32>
    %369 = math.tanh %368 : vector<2x128xf32>
    %cst_147 = arith.constant 1.000000e+00 : f32
    %370 = vector.broadcast %cst_147 : f32 to vector<2x128xf32>
    %371 = arith.subf %370, %364 : vector<2x128xf32>
    %372 = arith.mulf %371, %369 : vector<2x128xf32>
    %373 = arith.mulf %364, %298 : vector<2x128xf32>
    %374 = arith.addf %372, %373 : vector<2x128xf32>
    %c0_148 = arith.constant 0 : index
    %c0_149 = arith.constant 0 : index
    %375 = vector.load %arg9[%c0_148, %c0_149] : memref<2x128xf32, #tpu.memory_space<vmem>>, vector<2x128xf32>
    tpu.vector_store %arg9[%c0_148, %c0_149], %344 {strides = array<i32>} : memref<2x128xf32, #tpu.memory_space<vmem>>, vector<2x128xf32>,
    %c0_150 = arith.constant 0 : index
    %c0_151 = arith.constant 0 : index
    %376 = vector.load %arg10[%c0_150, %c0_151] : memref<2x128xf32, #tpu.memory_space<vmem>>, vector<2x128xf32>
    tpu.vector_store %arg10[%c0_150, %c0_151], %374 {strides = array<i32>} : memref<2x128xf32, #tpu.memory_space<vmem>>, vector<2x128xf32>,
    %377 = arith.truncf %344 : vector<2x128xf32> to vector<2x128xbf16>
    %378 = arith.index_cast %c3_i32 : i32 to index
    %c0_152 = arith.constant 0 : index
    %c0_153 = arith.constant 0 : index
    %379 = vector.load %arg6[%378, %c0_152, %c0_153] : memref<8x2x128xbf16, #tpu.memory_space<vmem>>, vector<1x2x128xbf16>
    %380 = vector.shape_cast %379 : vector<1x2x128xbf16> to vector<2x128xbf16>
    %381 = vector.shape_cast %377 : vector<2x128xbf16> to vector<1x2x128xbf16>
    tpu.vector_store %arg6[%378, %c0_152, %c0_153], %381 {strides = array<i32>} : memref<8x2x128xbf16, #tpu.memory_space<vmem>>, vector<1x2x128xbf16>,
    %382 = arith.truncf %374 : vector<2x128xf32> to vector<2x128xbf16>
    %383 = arith.index_cast %296 : i32 to index
    %c0_154 = arith.constant 0 : index
    %c0_155 = arith.constant 0 : index
    %384 = vector.load %arg7[%383, %c0_154, %c0_155] : memref<8x2x128xbf16, #tpu.memory_space<vmem>>, vector<1x2x128xbf16>
    %385 = vector.shape_cast %384 : vector<1x2x128xbf16> to vector<2x128xbf16>
    %386 = vector.shape_cast %382 : vector<2x128xbf16> to vector<1x2x128xbf16>
    tpu.vector_store %arg7[%383, %c0_154, %c0_155], %386 {strides = array<i32>} : memref<8x2x128xbf16, #tpu.memory_space<vmem>>, vector<1x2x128xbf16>,
    %c4_i32 = arith.constant 4 : i32
    %c7_i32_156 = arith.constant 7 : i32
    %387 = arith.subi %c7_i32_156, %c4_i32 : i32
    %c0_157 = arith.constant 0 : index
    %c0_158 = arith.constant 0 : index
    %388 = vector.load %arg9[%c0_157, %c0_158] : memref<2x128xf32, #tpu.memory_space<vmem>>, vector<2x128xf32>
    %c0_159 = arith.constant 0 : index
    %c0_160 = arith.constant 0 : index
    %389 = vector.load %arg10[%c0_159, %c0_160] : memref<2x128xf32, #tpu.memory_space<vmem>>, vector<2x128xf32>
    %c0_161 = arith.constant 0 : index
    %390 = arith.index_cast %c4_i32 : i32 to index
    %c0_162 = arith.constant 0 : index
    %c0_163 = arith.constant 0 : index
    %391 = vector.load %arg1[%c0_161, %390, %c0_162, %c0_163] : memref<1x8x2x384xbf16, #tpu.memory_space<vmem>>, vector<1x1x2x384xbf16>
    %392 = vector.shape_cast %391 : vector<1x1x2x384xbf16> to vector<2x384xbf16>
    %393 = arith.extf %392 : vector<2x384xbf16> to vector<2x384xf32>
    %394 = arith.addf %393, %10 : vector<2x384xf32>
    %c0_164 = arith.constant 0 : index
    %395 = arith.index_cast %387 : i32 to index
    %c0_165 = arith.constant 0 : index
    %c0_166 = arith.constant 0 : index
    %396 = vector.load %arg2[%c0_164, %395, %c0_165, %c0_166] : memref<1x8x2x384xbf16, #tpu.memory_space<vmem>>, vector<1x1x2x384xbf16>
    %397 = vector.shape_cast %396 : vector<1x1x2x384xbf16> to vector<2x384xbf16>
    %398 = arith.extf %397 : vector<2x384xbf16> to vector<2x384xf32>
    %399 = arith.addf %398, %14 : vector<2x384xf32>
    %400 = arith.truncf %388 : vector<2x128xf32> to vector<2x128xbf16>
    %cst_167 = arith.constant dense<0.000000e+00> : vector<2x384xf32>
    %401 = tpu.matmul %400, %4, %cst_167 {dimension_numbers = #tpu.dot_dimension_numbers<[1], [0], [0], [1], [0, 0, 1, 1], [], []>} : vector<2x128xbf16>, vector<128x384xbf16>, vector<2x384xf32> -> vector<2x384xf32>
    %402 = arith.addf %401, %18 : vector<2x384xf32>
    %403 = arith.truncf %389 : vector<2x128xf32> to vector<2x128xbf16>
    %cst_168 = arith.constant dense<0.000000e+00> : vector<2x384xf32>
    %404 = tpu.matmul %403, %6, %cst_168 {dimension_numbers = #tpu.dot_dimension_numbers<[1], [0], [0], [1], [0, 0, 1, 1], [], []>} : vector<2x128xbf16>, vector<128x384xbf16>, vector<2x384xf32> -> vector<2x384xf32>
    %405 = arith.addf %404, %22 : vector<2x384xf32>
    %406 = vector.extract_strided_slice %394 {offsets = [0, 0], sizes = [2, 128], strides = [1, 1]} : vector<2x384xf32> to vector<2x128xf32>
    %407 = vector.extract_strided_slice %402 {offsets = [0, 0], sizes = [2, 128], strides = [1, 1]} : vector<2x384xf32> to vector<2x128xf32>
    %408 = arith.addf %406, %407 : vector<2x128xf32>
    %cst_169 = arith.constant 5.000000e-01 : f32
    %409 = vector.broadcast %cst_169 : f32 to vector<2x128xf32>
    %410 = arith.mulf %409, %408 : vector<2x128xf32>
    %411 = math.tanh %410 : vector<2x128xf32>
    %cst_170 = arith.constant 1.000000e+00 : f32
    %412 = vector.broadcast %cst_170 : f32 to vector<2x128xf32>
    %413 = arith.addf %412, %411 : vector<2x128xf32>
    %cst_171 = arith.constant 5.000000e-01 : f32
    %414 = vector.broadcast %cst_171 : f32 to vector<2x128xf32>
    %415 = arith.mulf %414, %413 : vector<2x128xf32>
    %416 = vector.extract_strided_slice %394 {offsets = [0, 128], sizes = [2, 128], strides = [1, 1]} : vector<2x384xf32> to vector<2x128xf32>
    %417 = vector.extract_strided_slice %402 {offsets = [0, 128], sizes = [2, 128], strides = [1, 1]} : vector<2x384xf32> to vector<2x128xf32>
    %418 = arith.addf %416, %417 : vector<2x128xf32>
    %cst_172 = arith.constant 5.000000e-01 : f32
    %419 = vector.broadcast %cst_172 : f32 to vector<2x128xf32>
    %420 = arith.mulf %419, %418 : vector<2x128xf32>
    %421 = math.tanh %420 : vector<2x128xf32>
    %cst_173 = arith.constant 1.000000e+00 : f32
    %422 = vector.broadcast %cst_173 : f32 to vector<2x128xf32>
    %423 = arith.addf %422, %421 : vector<2x128xf32>
    %cst_174 = arith.constant 5.000000e-01 : f32
    %424 = vector.broadcast %cst_174 : f32 to vector<2x128xf32>
    %425 = arith.mulf %424, %423 : vector<2x128xf32>
    %426 = vector.extract_strided_slice %394 {offsets = [0, 256], sizes = [2, 128], strides = [1, 1]} : vector<2x384xf32> to vector<2x128xf32>
    %427 = vector.extract_strided_slice %402 {offsets = [0, 256], sizes = [2, 128], strides = [1, 1]} : vector<2x384xf32> to vector<2x128xf32>
    %428 = arith.mulf %415, %427 : vector<2x128xf32>
    %429 = arith.addf %426, %428 : vector<2x128xf32>
    %430 = math.tanh %429 : vector<2x128xf32>
    %cst_175 = arith.constant 1.000000e+00 : f32
    %431 = vector.broadcast %cst_175 : f32 to vector<2x128xf32>
    %432 = arith.subf %431, %425 : vector<2x128xf32>
    %433 = arith.mulf %432, %430 : vector<2x128xf32>
    %434 = arith.mulf %425, %388 : vector<2x128xf32>
    %435 = arith.addf %433, %434 : vector<2x128xf32>
    %436 = vector.extract_strided_slice %399 {offsets = [0, 0], sizes = [2, 128], strides = [1, 1]} : vector<2x384xf32> to vector<2x128xf32>
    %437 = vector.extract_strided_slice %405 {offsets = [0, 0], sizes = [2, 128], strides = [1, 1]} : vector<2x384xf32> to vector<2x128xf32>
    %438 = arith.addf %436, %437 : vector<2x128xf32>
    %cst_176 = arith.constant 5.000000e-01 : f32
    %439 = vector.broadcast %cst_176 : f32 to vector<2x128xf32>
    %440 = arith.mulf %439, %438 : vector<2x128xf32>
    %441 = math.tanh %440 : vector<2x128xf32>
    %cst_177 = arith.constant 1.000000e+00 : f32
    %442 = vector.broadcast %cst_177 : f32 to vector<2x128xf32>
    %443 = arith.addf %442, %441 : vector<2x128xf32>
    %cst_178 = arith.constant 5.000000e-01 : f32
    %444 = vector.broadcast %cst_178 : f32 to vector<2x128xf32>
    %445 = arith.mulf %444, %443 : vector<2x128xf32>
    %446 = vector.extract_strided_slice %399 {offsets = [0, 128], sizes = [2, 128], strides = [1, 1]} : vector<2x384xf32> to vector<2x128xf32>
    %447 = vector.extract_strided_slice %405 {offsets = [0, 128], sizes = [2, 128], strides = [1, 1]} : vector<2x384xf32> to vector<2x128xf32>
    %448 = arith.addf %446, %447 : vector<2x128xf32>
    %cst_179 = arith.constant 5.000000e-01 : f32
    %449 = vector.broadcast %cst_179 : f32 to vector<2x128xf32>
    %450 = arith.mulf %449, %448 : vector<2x128xf32>
    %451 = math.tanh %450 : vector<2x128xf32>
    %cst_180 = arith.constant 1.000000e+00 : f32
    %452 = vector.broadcast %cst_180 : f32 to vector<2x128xf32>
    %453 = arith.addf %452, %451 : vector<2x128xf32>
    %cst_181 = arith.constant 5.000000e-01 : f32
    %454 = vector.broadcast %cst_181 : f32 to vector<2x128xf32>
    %455 = arith.mulf %454, %453 : vector<2x128xf32>
    %456 = vector.extract_strided_slice %399 {offsets = [0, 256], sizes = [2, 128], strides = [1, 1]} : vector<2x384xf32> to vector<2x128xf32>
    %457 = vector.extract_strided_slice %405 {offsets = [0, 256], sizes = [2, 128], strides = [1, 1]} : vector<2x384xf32> to vector<2x128xf32>
    %458 = arith.mulf %445, %457 : vector<2x128xf32>
    %459 = arith.addf %456, %458 : vector<2x128xf32>
    %460 = math.tanh %459 : vector<2x128xf32>
    %cst_182 = arith.constant 1.000000e+00 : f32
    %461 = vector.broadcast %cst_182 : f32 to vector<2x128xf32>
    %462 = arith.subf %461, %455 : vector<2x128xf32>
    %463 = arith.mulf %462, %460 : vector<2x128xf32>
    %464 = arith.mulf %455, %389 : vector<2x128xf32>
    %465 = arith.addf %463, %464 : vector<2x128xf32>
    %c0_183 = arith.constant 0 : index
    %c0_184 = arith.constant 0 : index
    %466 = vector.load %arg9[%c0_183, %c0_184] : memref<2x128xf32, #tpu.memory_space<vmem>>, vector<2x128xf32>
    tpu.vector_store %arg9[%c0_183, %c0_184], %435 {strides = array<i32>} : memref<2x128xf32, #tpu.memory_space<vmem>>, vector<2x128xf32>,
    %c0_185 = arith.constant 0 : index
    %c0_186 = arith.constant 0 : index
    %467 = vector.load %arg10[%c0_185, %c0_186] : memref<2x128xf32, #tpu.memory_space<vmem>>, vector<2x128xf32>
    tpu.vector_store %arg10[%c0_185, %c0_186], %465 {strides = array<i32>} : memref<2x128xf32, #tpu.memory_space<vmem>>, vector<2x128xf32>,
    %468 = arith.truncf %435 : vector<2x128xf32> to vector<2x128xbf16>
    %469 = arith.index_cast %c4_i32 : i32 to index
    %c0_187 = arith.constant 0 : index
    %c0_188 = arith.constant 0 : index
    %470 = vector.load %arg6[%469, %c0_187, %c0_188] : memref<8x2x128xbf16, #tpu.memory_space<vmem>>, vector<1x2x128xbf16>
    %471 = vector.shape_cast %470 : vector<1x2x128xbf16> to vector<2x128xbf16>
    %472 = vector.shape_cast %468 : vector<2x128xbf16> to vector<1x2x128xbf16>
    tpu.vector_store %arg6[%469, %c0_187, %c0_188], %472 {strides = array<i32>} : memref<8x2x128xbf16, #tpu.memory_space<vmem>>, vector<1x2x128xbf16>,
    %473 = arith.truncf %465 : vector<2x128xf32> to vector<2x128xbf16>
    %474 = arith.index_cast %387 : i32 to index
    %c0_189 = arith.constant 0 : index
    %c0_190 = arith.constant 0 : index
    %475 = vector.load %arg7[%474, %c0_189, %c0_190] : memref<8x2x128xbf16, #tpu.memory_space<vmem>>, vector<1x2x128xbf16>
    %476 = vector.shape_cast %475 : vector<1x2x128xbf16> to vector<2x128xbf16>
    %477 = vector.shape_cast %473 : vector<2x128xbf16> to vector<1x2x128xbf16>
    tpu.vector_store %arg7[%474, %c0_189, %c0_190], %477 {strides = array<i32>} : memref<8x2x128xbf16, #tpu.memory_space<vmem>>, vector<1x2x128xbf16>,
    %c5_i32 = arith.constant 5 : i32
    %c7_i32_191 = arith.constant 7 : i32
    %478 = arith.subi %c7_i32_191, %c5_i32 : i32
    %c0_192 = arith.constant 0 : index
    %c0_193 = arith.constant 0 : index
    %479 = vector.load %arg9[%c0_192, %c0_193] : memref<2x128xf32, #tpu.memory_space<vmem>>, vector<2x128xf32>
    %c0_194 = arith.constant 0 : index
    %c0_195 = arith.constant 0 : index
    %480 = vector.load %arg10[%c0_194, %c0_195] : memref<2x128xf32, #tpu.memory_space<vmem>>, vector<2x128xf32>
    %c0_196 = arith.constant 0 : index
    %481 = arith.index_cast %c5_i32 : i32 to index
    %c0_197 = arith.constant 0 : index
    %c0_198 = arith.constant 0 : index
    %482 = vector.load %arg1[%c0_196, %481, %c0_197, %c0_198] : memref<1x8x2x384xbf16, #tpu.memory_space<vmem>>, vector<1x1x2x384xbf16>
    %483 = vector.shape_cast %482 : vector<1x1x2x384xbf16> to vector<2x384xbf16>
    %484 = arith.extf %483 : vector<2x384xbf16> to vector<2x384xf32>
    %485 = arith.addf %484, %10 : vector<2x384xf32>
    %c0_199 = arith.constant 0 : index
    %486 = arith.index_cast %478 : i32 to index
    %c0_200 = arith.constant 0 : index
    %c0_201 = arith.constant 0 : index
    %487 = vector.load %arg2[%c0_199, %486, %c0_200, %c0_201] : memref<1x8x2x384xbf16, #tpu.memory_space<vmem>>, vector<1x1x2x384xbf16>
    %488 = vector.shape_cast %487 : vector<1x1x2x384xbf16> to vector<2x384xbf16>
    %489 = arith.extf %488 : vector<2x384xbf16> to vector<2x384xf32>
    %490 = arith.addf %489, %14 : vector<2x384xf32>
    %491 = arith.truncf %479 : vector<2x128xf32> to vector<2x128xbf16>
    %cst_202 = arith.constant dense<0.000000e+00> : vector<2x384xf32>
    %492 = tpu.matmul %491, %4, %cst_202 {dimension_numbers = #tpu.dot_dimension_numbers<[1], [0], [0], [1], [0, 0, 1, 1], [], []>} : vector<2x128xbf16>, vector<128x384xbf16>, vector<2x384xf32> -> vector<2x384xf32>
    %493 = arith.addf %492, %18 : vector<2x384xf32>
    %494 = arith.truncf %480 : vector<2x128xf32> to vector<2x128xbf16>
    %cst_203 = arith.constant dense<0.000000e+00> : vector<2x384xf32>
    %495 = tpu.matmul %494, %6, %cst_203 {dimension_numbers = #tpu.dot_dimension_numbers<[1], [0], [0], [1], [0, 0, 1, 1], [], []>} : vector<2x128xbf16>, vector<128x384xbf16>, vector<2x384xf32> -> vector<2x384xf32>
    %496 = arith.addf %495, %22 : vector<2x384xf32>
    %497 = vector.extract_strided_slice %485 {offsets = [0, 0], sizes = [2, 128], strides = [1, 1]} : vector<2x384xf32> to vector<2x128xf32>
    %498 = vector.extract_strided_slice %493 {offsets = [0, 0], sizes = [2, 128], strides = [1, 1]} : vector<2x384xf32> to vector<2x128xf32>
    %499 = arith.addf %497, %498 : vector<2x128xf32>
    %cst_204 = arith.constant 5.000000e-01 : f32
    %500 = vector.broadcast %cst_204 : f32 to vector<2x128xf32>
    %501 = arith.mulf %500, %499 : vector<2x128xf32>
    %502 = math.tanh %501 : vector<2x128xf32>
    %cst_205 = arith.constant 1.000000e+00 : f32
    %503 = vector.broadcast %cst_205 : f32 to vector<2x128xf32>
    %504 = arith.addf %503, %502 : vector<2x128xf32>
    %cst_206 = arith.constant 5.000000e-01 : f32
    %505 = vector.broadcast %cst_206 : f32 to vector<2x128xf32>
    %506 = arith.mulf %505, %504 : vector<2x128xf32>
    %507 = vector.extract_strided_slice %485 {offsets = [0, 128], sizes = [2, 128], strides = [1, 1]} : vector<2x384xf32> to vector<2x128xf32>
    %508 = vector.extract_strided_slice %493 {offsets = [0, 128], sizes = [2, 128], strides = [1, 1]} : vector<2x384xf32> to vector<2x128xf32>
    %509 = arith.addf %507, %508 : vector<2x128xf32>
    %cst_207 = arith.constant 5.000000e-01 : f32
    %510 = vector.broadcast %cst_207 : f32 to vector<2x128xf32>
    %511 = arith.mulf %510, %509 : vector<2x128xf32>
    %512 = math.tanh %511 : vector<2x128xf32>
    %cst_208 = arith.constant 1.000000e+00 : f32
    %513 = vector.broadcast %cst_208 : f32 to vector<2x128xf32>
    %514 = arith.addf %513, %512 : vector<2x128xf32>
    %cst_209 = arith.constant 5.000000e-01 : f32
    %515 = vector.broadcast %cst_209 : f32 to vector<2x128xf32>
    %516 = arith.mulf %515, %514 : vector<2x128xf32>
    %517 = vector.extract_strided_slice %485 {offsets = [0, 256], sizes = [2, 128], strides = [1, 1]} : vector<2x384xf32> to vector<2x128xf32>
    %518 = vector.extract_strided_slice %493 {offsets = [0, 256], sizes = [2, 128], strides = [1, 1]} : vector<2x384xf32> to vector<2x128xf32>
    %519 = arith.mulf %506, %518 : vector<2x128xf32>
    %520 = arith.addf %517, %519 : vector<2x128xf32>
    %521 = math.tanh %520 : vector<2x128xf32>
    %cst_210 = arith.constant 1.000000e+00 : f32
    %522 = vector.broadcast %cst_210 : f32 to vector<2x128xf32>
    %523 = arith.subf %522, %516 : vector<2x128xf32>
    %524 = arith.mulf %523, %521 : vector<2x128xf32>
    %525 = arith.mulf %516, %479 : vector<2x128xf32>
    %526 = arith.addf %524, %525 : vector<2x128xf32>
    %527 = vector.extract_strided_slice %490 {offsets = [0, 0], sizes = [2, 128], strides = [1, 1]} : vector<2x384xf32> to vector<2x128xf32>
    %528 = vector.extract_strided_slice %496 {offsets = [0, 0], sizes = [2, 128], strides = [1, 1]} : vector<2x384xf32> to vector<2x128xf32>
    %529 = arith.addf %527, %528 : vector<2x128xf32>
    %cst_211 = arith.constant 5.000000e-01 : f32
    %530 = vector.broadcast %cst_211 : f32 to vector<2x128xf32>
    %531 = arith.mulf %530, %529 : vector<2x128xf32>
    %532 = math.tanh %531 : vector<2x128xf32>
    %cst_212 = arith.constant 1.000000e+00 : f32
    %533 = vector.broadcast %cst_212 : f32 to vector<2x128xf32>
    %534 = arith.addf %533, %532 : vector<2x128xf32>
    %cst_213 = arith.constant 5.000000e-01 : f32
    %535 = vector.broadcast %cst_213 : f32 to vector<2x128xf32>
    %536 = arith.mulf %535, %534 : vector<2x128xf32>
    %537 = vector.extract_strided_slice %490 {offsets = [0, 128], sizes = [2, 128], strides = [1, 1]} : vector<2x384xf32> to vector<2x128xf32>
    %538 = vector.extract_strided_slice %496 {offsets = [0, 128], sizes = [2, 128], strides = [1, 1]} : vector<2x384xf32> to vector<2x128xf32>
    %539 = arith.addf %537, %538 : vector<2x128xf32>
    %cst_214 = arith.constant 5.000000e-01 : f32
    %540 = vector.broadcast %cst_214 : f32 to vector<2x128xf32>
    %541 = arith.mulf %540, %539 : vector<2x128xf32>
    %542 = math.tanh %541 : vector<2x128xf32>
    %cst_215 = arith.constant 1.000000e+00 : f32
    %543 = vector.broadcast %cst_215 : f32 to vector<2x128xf32>
    %544 = arith.addf %543, %542 : vector<2x128xf32>
    %cst_216 = arith.constant 5.000000e-01 : f32
    %545 = vector.broadcast %cst_216 : f32 to vector<2x128xf32>
    %546 = arith.mulf %545, %544 : vector<2x128xf32>
    %547 = vector.extract_strided_slice %490 {offsets = [0, 256], sizes = [2, 128], strides = [1, 1]} : vector<2x384xf32> to vector<2x128xf32>
    %548 = vector.extract_strided_slice %496 {offsets = [0, 256], sizes = [2, 128], strides = [1, 1]} : vector<2x384xf32> to vector<2x128xf32>
    %549 = arith.mulf %536, %548 : vector<2x128xf32>
    %550 = arith.addf %547, %549 : vector<2x128xf32>
    %551 = math.tanh %550 : vector<2x128xf32>
    %cst_217 = arith.constant 1.000000e+00 : f32
    %552 = vector.broadcast %cst_217 : f32 to vector<2x128xf32>
    %553 = arith.subf %552, %546 : vector<2x128xf32>
    %554 = arith.mulf %553, %551 : vector<2x128xf32>
    %555 = arith.mulf %546, %480 : vector<2x128xf32>
    %556 = arith.addf %554, %555 : vector<2x128xf32>
    %c0_218 = arith.constant 0 : index
    %c0_219 = arith.constant 0 : index
    %557 = vector.load %arg9[%c0_218, %c0_219] : memref<2x128xf32, #tpu.memory_space<vmem>>, vector<2x128xf32>
    tpu.vector_store %arg9[%c0_218, %c0_219], %526 {strides = array<i32>} : memref<2x128xf32, #tpu.memory_space<vmem>>, vector<2x128xf32>,
    %c0_220 = arith.constant 0 : index
    %c0_221 = arith.constant 0 : index
    %558 = vector.load %arg10[%c0_220, %c0_221] : memref<2x128xf32, #tpu.memory_space<vmem>>, vector<2x128xf32>
    tpu.vector_store %arg10[%c0_220, %c0_221], %556 {strides = array<i32>} : memref<2x128xf32, #tpu.memory_space<vmem>>, vector<2x128xf32>,
    %559 = arith.truncf %526 : vector<2x128xf32> to vector<2x128xbf16>
    %560 = arith.index_cast %c5_i32 : i32 to index
    %c0_222 = arith.constant 0 : index
    %c0_223 = arith.constant 0 : index
    %561 = vector.load %arg6[%560, %c0_222, %c0_223] : memref<8x2x128xbf16, #tpu.memory_space<vmem>>, vector<1x2x128xbf16>
    %562 = vector.shape_cast %561 : vector<1x2x128xbf16> to vector<2x128xbf16>
    %563 = vector.shape_cast %559 : vector<2x128xbf16> to vector<1x2x128xbf16>
    tpu.vector_store %arg6[%560, %c0_222, %c0_223], %563 {strides = array<i32>} : memref<8x2x128xbf16, #tpu.memory_space<vmem>>, vector<1x2x128xbf16>,
    %564 = arith.truncf %556 : vector<2x128xf32> to vector<2x128xbf16>
    %565 = arith.index_cast %478 : i32 to index
    %c0_224 = arith.constant 0 : index
    %c0_225 = arith.constant 0 : index
    %566 = vector.load %arg7[%565, %c0_224, %c0_225] : memref<8x2x128xbf16, #tpu.memory_space<vmem>>, vector<1x2x128xbf16>
    %567 = vector.shape_cast %566 : vector<1x2x128xbf16> to vector<2x128xbf16>
    %568 = vector.shape_cast %564 : vector<2x128xbf16> to vector<1x2x128xbf16>
    tpu.vector_store %arg7[%565, %c0_224, %c0_225], %568 {strides = array<i32>} : memref<8x2x128xbf16, #tpu.memory_space<vmem>>, vector<1x2x128xbf16>,
    %c6_i32 = arith.constant 6 : i32
    %c7_i32_226 = arith.constant 7 : i32
    %569 = arith.subi %c7_i32_226, %c6_i32 : i32
    %c0_227 = arith.constant 0 : index
    %c0_228 = arith.constant 0 : index
    %570 = vector.load %arg9[%c0_227, %c0_228] : memref<2x128xf32, #tpu.memory_space<vmem>>, vector<2x128xf32>
    %c0_229 = arith.constant 0 : index
    %c0_230 = arith.constant 0 : index
    %571 = vector.load %arg10[%c0_229, %c0_230] : memref<2x128xf32, #tpu.memory_space<vmem>>, vector<2x128xf32>
    %c0_231 = arith.constant 0 : index
    %572 = arith.index_cast %c6_i32 : i32 to index
    %c0_232 = arith.constant 0 : index
    %c0_233 = arith.constant 0 : index
    %573 = vector.load %arg1[%c0_231, %572, %c0_232, %c0_233] : memref<1x8x2x384xbf16, #tpu.memory_space<vmem>>, vector<1x1x2x384xbf16>
    %574 = vector.shape_cast %573 : vector<1x1x2x384xbf16> to vector<2x384xbf16>
    %575 = arith.extf %574 : vector<2x384xbf16> to vector<2x384xf32>
    %576 = arith.addf %575, %10 : vector<2x384xf32>
    %c0_234 = arith.constant 0 : index
    %577 = arith.index_cast %569 : i32 to index
    %c0_235 = arith.constant 0 : index
    %c0_236 = arith.constant 0 : index
    %578 = vector.load %arg2[%c0_234, %577, %c0_235, %c0_236] : memref<1x8x2x384xbf16, #tpu.memory_space<vmem>>, vector<1x1x2x384xbf16>
    %579 = vector.shape_cast %578 : vector<1x1x2x384xbf16> to vector<2x384xbf16>
    %580 = arith.extf %579 : vector<2x384xbf16> to vector<2x384xf32>
    %581 = arith.addf %580, %14 : vector<2x384xf32>
    %582 = arith.truncf %570 : vector<2x128xf32> to vector<2x128xbf16>
    %cst_237 = arith.constant dense<0.000000e+00> : vector<2x384xf32>
    %583 = tpu.matmul %582, %4, %cst_237 {dimension_numbers = #tpu.dot_dimension_numbers<[1], [0], [0], [1], [0, 0, 1, 1], [], []>} : vector<2x128xbf16>, vector<128x384xbf16>, vector<2x384xf32> -> vector<2x384xf32>
    %584 = arith.addf %583, %18 : vector<2x384xf32>
    %585 = arith.truncf %571 : vector<2x128xf32> to vector<2x128xbf16>
    %cst_238 = arith.constant dense<0.000000e+00> : vector<2x384xf32>
    %586 = tpu.matmul %585, %6, %cst_238 {dimension_numbers = #tpu.dot_dimension_numbers<[1], [0], [0], [1], [0, 0, 1, 1], [], []>} : vector<2x128xbf16>, vector<128x384xbf16>, vector<2x384xf32> -> vector<2x384xf32>
    %587 = arith.addf %586, %22 : vector<2x384xf32>
    %588 = vector.extract_strided_slice %576 {offsets = [0, 0], sizes = [2, 128], strides = [1, 1]} : vector<2x384xf32> to vector<2x128xf32>
    %589 = vector.extract_strided_slice %584 {offsets = [0, 0], sizes = [2, 128], strides = [1, 1]} : vector<2x384xf32> to vector<2x128xf32>
    %590 = arith.addf %588, %589 : vector<2x128xf32>
    %cst_239 = arith.constant 5.000000e-01 : f32
    %591 = vector.broadcast %cst_239 : f32 to vector<2x128xf32>
    %592 = arith.mulf %591, %590 : vector<2x128xf32>
    %593 = math.tanh %592 : vector<2x128xf32>
    %cst_240 = arith.constant 1.000000e+00 : f32
    %594 = vector.broadcast %cst_240 : f32 to vector<2x128xf32>
    %595 = arith.addf %594, %593 : vector<2x128xf32>
    %cst_241 = arith.constant 5.000000e-01 : f32
    %596 = vector.broadcast %cst_241 : f32 to vector<2x128xf32>
    %597 = arith.mulf %596, %595 : vector<2x128xf32>
    %598 = vector.extract_strided_slice %576 {offsets = [0, 128], sizes = [2, 128], strides = [1, 1]} : vector<2x384xf32> to vector<2x128xf32>
    %599 = vector.extract_strided_slice %584 {offsets = [0, 128], sizes = [2, 128], strides = [1, 1]} : vector<2x384xf32> to vector<2x128xf32>
    %600 = arith.addf %598, %599 : vector<2x128xf32>
    %cst_242 = arith.constant 5.000000e-01 : f32
    %601 = vector.broadcast %cst_242 : f32 to vector<2x128xf32>
    %602 = arith.mulf %601, %600 : vector<2x128xf32>
    %603 = math.tanh %602 : vector<2x128xf32>
    %cst_243 = arith.constant 1.000000e+00 : f32
    %604 = vector.broadcast %cst_243 : f32 to vector<2x128xf32>
    %605 = arith.addf %604, %603 : vector<2x128xf32>
    %cst_244 = arith.constant 5.000000e-01 : f32
    %606 = vector.broadcast %cst_244 : f32 to vector<2x128xf32>
    %607 = arith.mulf %606, %605 : vector<2x128xf32>
    %608 = vector.extract_strided_slice %576 {offsets = [0, 256], sizes = [2, 128], strides = [1, 1]} : vector<2x384xf32> to vector<2x128xf32>
    %609 = vector.extract_strided_slice %584 {offsets = [0, 256], sizes = [2, 128], strides = [1, 1]} : vector<2x384xf32> to vector<2x128xf32>
    %610 = arith.mulf %597, %609 : vector<2x128xf32>
    %611 = arith.addf %608, %610 : vector<2x128xf32>
    %612 = math.tanh %611 : vector<2x128xf32>
    %cst_245 = arith.constant 1.000000e+00 : f32
    %613 = vector.broadcast %cst_245 : f32 to vector<2x128xf32>
    %614 = arith.subf %613, %607 : vector<2x128xf32>
    %615 = arith.mulf %614, %612 : vector<2x128xf32>
    %616 = arith.mulf %607, %570 : vector<2x128xf32>
    %617 = arith.addf %615, %616 : vector<2x128xf32>
    %618 = vector.extract_strided_slice %581 {offsets = [0, 0], sizes = [2, 128], strides = [1, 1]} : vector<2x384xf32> to vector<2x128xf32>
    %619 = vector.extract_strided_slice %587 {offsets = [0, 0], sizes = [2, 128], strides = [1, 1]} : vector<2x384xf32> to vector<2x128xf32>
    %620 = arith.addf %618, %619 : vector<2x128xf32>
    %cst_246 = arith.constant 5.000000e-01 : f32
    %621 = vector.broadcast %cst_246 : f32 to vector<2x128xf32>
    %622 = arith.mulf %621, %620 : vector<2x128xf32>
    %623 = math.tanh %622 : vector<2x128xf32>
    %cst_247 = arith.constant 1.000000e+00 : f32
    %624 = vector.broadcast %cst_247 : f32 to vector<2x128xf32>
    %625 = arith.addf %624, %623 : vector<2x128xf32>
    %cst_248 = arith.constant 5.000000e-01 : f32
    %626 = vector.broadcast %cst_248 : f32 to vector<2x128xf32>
    %627 = arith.mulf %626, %625 : vector<2x128xf32>
    %628 = vector.extract_strided_slice %581 {offsets = [0, 128], sizes = [2, 128], strides = [1, 1]} : vector<2x384xf32> to vector<2x128xf32>
    %629 = vector.extract_strided_slice %587 {offsets = [0, 128], sizes = [2, 128], strides = [1, 1]} : vector<2x384xf32> to vector<2x128xf32>
    %630 = arith.addf %628, %629 : vector<2x128xf32>
    %cst_249 = arith.constant 5.000000e-01 : f32
    %631 = vector.broadcast %cst_249 : f32 to vector<2x128xf32>
    %632 = arith.mulf %631, %630 : vector<2x128xf32>
    %633 = math.tanh %632 : vector<2x128xf32>
    %cst_250 = arith.constant 1.000000e+00 : f32
    %634 = vector.broadcast %cst_250 : f32 to vector<2x128xf32>
    %635 = arith.addf %634, %633 : vector<2x128xf32>
    %cst_251 = arith.constant 5.000000e-01 : f32
    %636 = vector.broadcast %cst_251 : f32 to vector<2x128xf32>
    %637 = arith.mulf %636, %635 : vector<2x128xf32>
    %638 = vector.extract_strided_slice %581 {offsets = [0, 256], sizes = [2, 128], strides = [1, 1]} : vector<2x384xf32> to vector<2x128xf32>
    %639 = vector.extract_strided_slice %587 {offsets = [0, 256], sizes = [2, 128], strides = [1, 1]} : vector<2x384xf32> to vector<2x128xf32>
    %640 = arith.mulf %627, %639 : vector<2x128xf32>
    %641 = arith.addf %638, %640 : vector<2x128xf32>
    %642 = math.tanh %641 : vector<2x128xf32>
    %cst_252 = arith.constant 1.000000e+00 : f32
    %643 = vector.broadcast %cst_252 : f32 to vector<2x128xf32>
    %644 = arith.subf %643, %637 : vector<2x128xf32>
    %645 = arith.mulf %644, %642 : vector<2x128xf32>
    %646 = arith.mulf %637, %571 : vector<2x128xf32>
    %647 = arith.addf %645, %646 : vector<2x128xf32>
    %c0_253 = arith.constant 0 : index
    %c0_254 = arith.constant 0 : index
    %648 = vector.load %arg9[%c0_253, %c0_254] : memref<2x128xf32, #tpu.memory_space<vmem>>, vector<2x128xf32>
    tpu.vector_store %arg9[%c0_253, %c0_254], %617 {strides = array<i32>} : memref<2x128xf32, #tpu.memory_space<vmem>>, vector<2x128xf32>,
    %c0_255 = arith.constant 0 : index
    %c0_256 = arith.constant 0 : index
    %649 = vector.load %arg10[%c0_255, %c0_256] : memref<2x128xf32, #tpu.memory_space<vmem>>, vector<2x128xf32>
    tpu.vector_store %arg10[%c0_255, %c0_256], %647 {strides = array<i32>} : memref<2x128xf32, #tpu.memory_space<vmem>>, vector<2x128xf32>,
    %650 = arith.truncf %617 : vector<2x128xf32> to vector<2x128xbf16>
    %651 = arith.index_cast %c6_i32 : i32 to index
    %c0_257 = arith.constant 0 : index
    %c0_258 = arith.constant 0 : index
    %652 = vector.load %arg6[%651, %c0_257, %c0_258] : memref<8x2x128xbf16, #tpu.memory_space<vmem>>, vector<1x2x128xbf16>
    %653 = vector.shape_cast %652 : vector<1x2x128xbf16> to vector<2x128xbf16>
    %654 = vector.shape_cast %650 : vector<2x128xbf16> to vector<1x2x128xbf16>
    tpu.vector_store %arg6[%651, %c0_257, %c0_258], %654 {strides = array<i32>} : memref<8x2x128xbf16, #tpu.memory_space<vmem>>, vector<1x2x128xbf16>,
    %655 = arith.truncf %647 : vector<2x128xf32> to vector<2x128xbf16>
    %656 = arith.index_cast %569 : i32 to index
    %c0_259 = arith.constant 0 : index
    %c0_260 = arith.constant 0 : index
    %657 = vector.load %arg7[%656, %c0_259, %c0_260] : memref<8x2x128xbf16, #tpu.memory_space<vmem>>, vector<1x2x128xbf16>
    %658 = vector.shape_cast %657 : vector<1x2x128xbf16> to vector<2x128xbf16>
    %659 = vector.shape_cast %655 : vector<2x128xbf16> to vector<1x2x128xbf16>
    tpu.vector_store %arg7[%656, %c0_259, %c0_260], %659 {strides = array<i32>} : memref<8x2x128xbf16, #tpu.memory_space<vmem>>, vector<1x2x128xbf16>,
    %c7_i32_261 = arith.constant 7 : i32
    %c7_i32_262 = arith.constant 7 : i32
    %660 = arith.subi %c7_i32_262, %c7_i32_261 : i32
    %c0_263 = arith.constant 0 : index
    %c0_264 = arith.constant 0 : index
    %661 = vector.load %arg9[%c0_263, %c0_264] : memref<2x128xf32, #tpu.memory_space<vmem>>, vector<2x128xf32>
    %c0_265 = arith.constant 0 : index
    %c0_266 = arith.constant 0 : index
    %662 = vector.load %arg10[%c0_265, %c0_266] : memref<2x128xf32, #tpu.memory_space<vmem>>, vector<2x128xf32>
    %c0_267 = arith.constant 0 : index
    %663 = arith.index_cast %c7_i32_261 : i32 to index
    %c0_268 = arith.constant 0 : index
    %c0_269 = arith.constant 0 : index
    %664 = vector.load %arg1[%c0_267, %663, %c0_268, %c0_269] : memref<1x8x2x384xbf16, #tpu.memory_space<vmem>>, vector<1x1x2x384xbf16>
    %665 = vector.shape_cast %664 : vector<1x1x2x384xbf16> to vector<2x384xbf16>
    %666 = arith.extf %665 : vector<2x384xbf16> to vector<2x384xf32>
    %667 = arith.addf %666, %10 : vector<2x384xf32>
    %c0_270 = arith.constant 0 : index
    %668 = arith.index_cast %660 : i32 to index
    %c0_271 = arith.constant 0 : index
    %c0_272 = arith.constant 0 : index
    %669 = vector.load %arg2[%c0_270, %668, %c0_271, %c0_272] : memref<1x8x2x384xbf16, #tpu.memory_space<vmem>>, vector<1x1x2x384xbf16>
    %670 = vector.shape_cast %669 : vector<1x1x2x384xbf16> to vector<2x384xbf16>
    %671 = arith.extf %670 : vector<2x384xbf16> to vector<2x384xf32>
    %672 = arith.addf %671, %14 : vector<2x384xf32>
    %673 = arith.truncf %661 : vector<2x128xf32> to vector<2x128xbf16>
    %cst_273 = arith.constant dense<0.000000e+00> : vector<2x384xf32>
    %674 = tpu.matmul %673, %4, %cst_273 {dimension_numbers = #tpu.dot_dimension_numbers<[1], [0], [0], [1], [0, 0, 1, 1], [], []>} : vector<2x128xbf16>, vector<128x384xbf16>, vector<2x384xf32> -> vector<2x384xf32>
    %675 = arith.addf %674, %18 : vector<2x384xf32>
    %676 = arith.truncf %662 : vector<2x128xf32> to vector<2x128xbf16>
    %cst_274 = arith.constant dense<0.000000e+00> : vector<2x384xf32>
    %677 = tpu.matmul %676, %6, %cst_274 {dimension_numbers = #tpu.dot_dimension_numbers<[1], [0], [0], [1], [0, 0, 1, 1], [], []>} : vector<2x128xbf16>, vector<128x384xbf16>, vector<2x384xf32> -> vector<2x384xf32>
    %678 = arith.addf %677, %22 : vector<2x384xf32>
    %679 = vector.extract_strided_slice %667 {offsets = [0, 0], sizes = [2, 128], strides = [1, 1]} : vector<2x384xf32> to vector<2x128xf32>
    %680 = vector.extract_strided_slice %675 {offsets = [0, 0], sizes = [2, 128], strides = [1, 1]} : vector<2x384xf32> to vector<2x128xf32>
    %681 = arith.addf %679, %680 : vector<2x128xf32>
    %cst_275 = arith.constant 5.000000e-01 : f32
    %682 = vector.broadcast %cst_275 : f32 to vector<2x128xf32>
    %683 = arith.mulf %682, %681 : vector<2x128xf32>
    %684 = math.tanh %683 : vector<2x128xf32>
    %cst_276 = arith.constant 1.000000e+00 : f32
    %685 = vector.broadcast %cst_276 : f32 to vector<2x128xf32>
    %686 = arith.addf %685, %684 : vector<2x128xf32>
    %cst_277 = arith.constant 5.000000e-01 : f32
    %687 = vector.broadcast %cst_277 : f32 to vector<2x128xf32>
    %688 = arith.mulf %687, %686 : vector<2x128xf32>
    %689 = vector.extract_strided_slice %667 {offsets = [0, 128], sizes = [2, 128], strides = [1, 1]} : vector<2x384xf32> to vector<2x128xf32>
    %690 = vector.extract_strided_slice %675 {offsets = [0, 128], sizes = [2, 128], strides = [1, 1]} : vector<2x384xf32> to vector<2x128xf32>
    %691 = arith.addf %689, %690 : vector<2x128xf32>
    %cst_278 = arith.constant 5.000000e-01 : f32
    %692 = vector.broadcast %cst_278 : f32 to vector<2x128xf32>
    %693 = arith.mulf %692, %691 : vector<2x128xf32>
    %694 = math.tanh %693 : vector<2x128xf32>
    %cst_279 = arith.constant 1.000000e+00 : f32
    %695 = vector.broadcast %cst_279 : f32 to vector<2x128xf32>
    %696 = arith.addf %695, %694 : vector<2x128xf32>
    %cst_280 = arith.constant 5.000000e-01 : f32
    %697 = vector.broadcast %cst_280 : f32 to vector<2x128xf32>
    %698 = arith.mulf %697, %696 : vector<2x128xf32>
    %699 = vector.extract_strided_slice %667 {offsets = [0, 256], sizes = [2, 128], strides = [1, 1]} : vector<2x384xf32> to vector<2x128xf32>
    %700 = vector.extract_strided_slice %675 {offsets = [0, 256], sizes = [2, 128], strides = [1, 1]} : vector<2x384xf32> to vector<2x128xf32>
    %701 = arith.mulf %688, %700 : vector<2x128xf32>
    %702 = arith.addf %699, %701 : vector<2x128xf32>
    %703 = math.tanh %702 : vector<2x128xf32>
    %cst_281 = arith.constant 1.000000e+00 : f32
    %704 = vector.broadcast %cst_281 : f32 to vector<2x128xf32>
    %705 = arith.subf %704, %698 : vector<2x128xf32>
    %706 = arith.mulf %705, %703 : vector<2x128xf32>
    %707 = arith.mulf %698, %661 : vector<2x128xf32>
    %708 = arith.addf %706, %707 : vector<2x128xf32>
    %709 = vector.extract_strided_slice %672 {offsets = [0, 0], sizes = [2, 128], strides = [1, 1]} : vector<2x384xf32> to vector<2x128xf32>
    %710 = vector.extract_strided_slice %678 {offsets = [0, 0], sizes = [2, 128], strides = [1, 1]} : vector<2x384xf32> to vector<2x128xf32>
    %711 = arith.addf %709, %710 : vector<2x128xf32>
    %cst_282 = arith.constant 5.000000e-01 : f32
    %712 = vector.broadcast %cst_282 : f32 to vector<2x128xf32>
    %713 = arith.mulf %712, %711 : vector<2x128xf32>
    %714 = math.tanh %713 : vector<2x128xf32>
    %cst_283 = arith.constant 1.000000e+00 : f32
    %715 = vector.broadcast %cst_283 : f32 to vector<2x128xf32>
    %716 = arith.addf %715, %714 : vector<2x128xf32>
    %cst_284 = arith.constant 5.000000e-01 : f32
    %717 = vector.broadcast %cst_284 : f32 to vector<2x128xf32>
    %718 = arith.mulf %717, %716 : vector<2x128xf32>
    %719 = vector.extract_strided_slice %672 {offsets = [0, 128], sizes = [2, 128], strides = [1, 1]} : vector<2x384xf32> to vector<2x128xf32>
    %720 = vector.extract_strided_slice %678 {offsets = [0, 128], sizes = [2, 128], strides = [1, 1]} : vector<2x384xf32> to vector<2x128xf32>
    %721 = arith.addf %719, %720 : vector<2x128xf32>
    %cst_285 = arith.constant 5.000000e-01 : f32
    %722 = vector.broadcast %cst_285 : f32 to vector<2x128xf32>
    %723 = arith.mulf %722, %721 : vector<2x128xf32>
    %724 = math.tanh %723 : vector<2x128xf32>
    %cst_286 = arith.constant 1.000000e+00 : f32
    %725 = vector.broadcast %cst_286 : f32 to vector<2x128xf32>
    %726 = arith.addf %725, %724 : vector<2x128xf32>
    %cst_287 = arith.constant 5.000000e-01 : f32
    %727 = vector.broadcast %cst_287 : f32 to vector<2x128xf32>
    %728 = arith.mulf %727, %726 : vector<2x128xf32>
    %729 = vector.extract_strided_slice %672 {offsets = [0, 256], sizes = [2, 128], strides = [1, 1]} : vector<2x384xf32> to vector<2x128xf32>
    %730 = vector.extract_strided_slice %678 {offsets = [0, 256], sizes = [2, 128], strides = [1, 1]} : vector<2x384xf32> to vector<2x128xf32>
    %731 = arith.mulf %718, %730 : vector<2x128xf32>
    %732 = arith.addf %729, %731 : vector<2x128xf32>
    %733 = math.tanh %732 : vector<2x128xf32>
    %cst_288 = arith.constant 1.000000e+00 : f32
    %734 = vector.broadcast %cst_288 : f32 to vector<2x128xf32>
    %735 = arith.subf %734, %728 : vector<2x128xf32>
    %736 = arith.mulf %735, %733 : vector<2x128xf32>
    %737 = arith.mulf %728, %662 : vector<2x128xf32>
    %738 = arith.addf %736, %737 : vector<2x128xf32>
    %c0_289 = arith.constant 0 : index
    %c0_290 = arith.constant 0 : index
    %739 = vector.load %arg9[%c0_289, %c0_290] : memref<2x128xf32, #tpu.memory_space<vmem>>, vector<2x128xf32>
    tpu.vector_store %arg9[%c0_289, %c0_290], %708 {strides = array<i32>} : memref<2x128xf32, #tpu.memory_space<vmem>>, vector<2x128xf32>,
    %c0_291 = arith.constant 0 : index
    %c0_292 = arith.constant 0 : index
    %740 = vector.load %arg10[%c0_291, %c0_292] : memref<2x128xf32, #tpu.memory_space<vmem>>, vector<2x128xf32>
    tpu.vector_store %arg10[%c0_291, %c0_292], %738 {strides = array<i32>} : memref<2x128xf32, #tpu.memory_space<vmem>>, vector<2x128xf32>,
    %741 = arith.truncf %708 : vector<2x128xf32> to vector<2x128xbf16>
    %742 = arith.index_cast %c7_i32_261 : i32 to index
    %c0_293 = arith.constant 0 : index
    %c0_294 = arith.constant 0 : index
    %743 = vector.load %arg6[%742, %c0_293, %c0_294] : memref<8x2x128xbf16, #tpu.memory_space<vmem>>, vector<1x2x128xbf16>
    %744 = vector.shape_cast %743 : vector<1x2x128xbf16> to vector<2x128xbf16>
    %745 = vector.shape_cast %741 : vector<2x128xbf16> to vector<1x2x128xbf16>
    tpu.vector_store %arg6[%742, %c0_293, %c0_294], %745 {strides = array<i32>} : memref<8x2x128xbf16, #tpu.memory_space<vmem>>, vector<1x2x128xbf16>,
    %746 = arith.truncf %738 : vector<2x128xf32> to vector<2x128xbf16>
    %747 = arith.index_cast %660 : i32 to index
    %c0_295 = arith.constant 0 : index
    %c0_296 = arith.constant 0 : index
    %748 = vector.load %arg7[%747, %c0_295, %c0_296] : memref<8x2x128xbf16, #tpu.memory_space<vmem>>, vector<1x2x128xbf16>
    %749 = vector.shape_cast %748 : vector<1x2x128xbf16> to vector<2x128xbf16>
    %750 = vector.shape_cast %746 : vector<2x128xbf16> to vector<1x2x128xbf16>
    tpu.vector_store %arg7[%747, %c0_295, %c0_296], %750 {strides = array<i32>} : memref<8x2x128xbf16, #tpu.memory_space<vmem>>, vector<1x2x128xbf16>,
    %c8_i32 = arith.constant 8 : i32
    %c0_297 = arith.constant 0 : index
    %c0_298 = arith.constant 0 : index
    %751 = vector.load %arg9[%c0_297, %c0_298] : memref<2x128xf32, #tpu.memory_space<vmem>>, vector<2x128xf32>
    %c0_299 = arith.constant 0 : index
    %c0_300 = arith.constant 0 : index
    %c0_301 = arith.constant 0 : index
    %752 = vector.load %arg8[%c0_299, %c0_300, %c0_301] : memref<2x2x128xf32, #tpu.memory_space<vmem>>, vector<1x2x128xf32>
    %753 = vector.shape_cast %752 : vector<1x2x128xf32> to vector<2x128xf32>
    %754 = vector.shape_cast %751 : vector<2x128xf32> to vector<1x2x128xf32>
    tpu.vector_store %arg8[%c0_299, %c0_300, %c0_301], %754 {strides = array<i32>} : memref<2x2x128xf32, #tpu.memory_space<vmem>>, vector<1x2x128xf32>,
    %c0_302 = arith.constant 0 : index
    %c0_303 = arith.constant 0 : index
    %755 = vector.load %arg10[%c0_302, %c0_303] : memref<2x128xf32, #tpu.memory_space<vmem>>, vector<2x128xf32>
    %c1_304 = arith.constant 1 : index
    %c0_305 = arith.constant 0 : index
    %c0_306 = arith.constant 0 : index
    %756 = vector.load %arg8[%c1_304, %c0_305, %c0_306] : memref<2x2x128xf32, #tpu.memory_space<vmem>>, vector<1x2x128xf32>
    %757 = vector.shape_cast %756 : vector<1x2x128xf32> to vector<2x128xf32>
    %758 = vector.shape_cast %755 : vector<2x128xf32> to vector<1x2x128xf32>
    tpu.vector_store %arg8[%c1_304, %c0_305, %c0_306], %758 {strides = array<i32>} : memref<2x2x128xf32, #tpu.memory_space<vmem>>, vector<1x2x128xf32>,
    return
  }
  func.func @transform_0(%arg0: i32) -> (i32, i32, i32, i32) {
    %c0_i32 = arith.constant 0 : i32
    %c0_i32_0 = arith.constant 0 : i32
    %c0_i32_1 = arith.constant 0 : i32
    %c0_i32_2 = arith.constant 0 : i32
    return %c0_i32, %arg0, %c0_i32_0, %c0_i32_1 : i32, i32, i32, i32
  }
  func.func @transform_1(%arg0: i32) -> (i32, i32, i32, i32) {
    %c0_i32 = arith.constant 0 : i32
    %0 = arith.subi %c0_i32, %arg0 : i32
    %c1_i32 = arith.constant 1 : i32
    %c0_i32_0 = arith.constant 0 : i32
    %c0_i32_1 = arith.constant 0 : i32
    %c0_i32_2 = arith.constant 0 : i32
    return %c1_i32, %0, %c0_i32_0, %c0_i32_1 : i32, i32, i32, i32
  }
  func.func @transform_2(%arg0: i32) -> (i32, i32, i32) {
    %c0_i32 = arith.constant 0 : i32
    %c0_i32_0 = arith.constant 0 : i32
    %c0_i32_1 = arith.constant 0 : i32
    %c0_i32_2 = arith.constant 0 : i32
    return %c0_i32, %c0_i32_0, %c0_i32_1 : i32, i32, i32
  }
  func.func @transform_3(%arg0: i32) -> (i32, i32, i32) {
    %c0_i32 = arith.constant 0 : i32
    %c0_i32_0 = arith.constant 0 : i32
    %c0_i32_1 = arith.constant 0 : i32
    %c0_i32_2 = arith.constant 0 : i32
    return %c0_i32, %c0_i32_0, %c0_i32_1 : i32, i32, i32
  }
  func.func @transform_4(%arg0: i32) -> (i32, i32, i32) {
    %c0_i32 = arith.constant 0 : i32
    %c0_i32_0 = arith.constant 0 : i32
    %c0_i32_1 = arith.constant 0 : i32
    %c0_i32_2 = arith.constant 0 : i32
    return %c0_i32, %c0_i32_0, %c0_i32_1 : i32, i32, i32
  }
  func.func @transform_5(%arg0: i32) -> (i32, i32, i32) {
    %c0_i32 = arith.constant 0 : i32
    %c0_i32_0 = arith.constant 0 : i32
    %c0_i32_1 = arith.constant 0 : i32
    return %arg0, %c0_i32, %c0_i32_0 : i32, i32, i32
  }
  func.func @transform_6(%arg0: i32) -> (i32, i32, i32) {
    %c0_i32 = arith.constant 0 : i32
    %0 = arith.subi %c0_i32, %arg0 : i32
    %c0_i32_0 = arith.constant 0 : i32
    %c0_i32_1 = arith.constant 0 : i32
    %c0_i32_2 = arith.constant 0 : i32
    return %0, %c0_i32_0, %c0_i32_1 : i32, i32, i32
  }
  func.func @transform_7(%arg0: i32) -> (i32, i32, i32) {
    %c0_i32 = arith.constant 0 : i32
    %c0_i32_0 = arith.constant 0 : i32
    %c0_i32_1 = arith.constant 0 : i32
    %c0_i32_2 = arith.constant 0 : i32
    return %c0_i32, %c0_i32_0, %c0_i32_1 : i32, i32, i32
  }
}

module attributes {stable_mosaic.version = 11 : i64} {
  func.func @_bigru_kernel(%arg0: i32, %arg1: memref<1x8x2x384xbf16, #tpu.memory_space<vmem>>, %arg2: memref<1x8x2x384xbf16, #tpu.memory_space<vmem>>, %arg3: memref<2x128x384xbf16, #tpu.memory_space<vmem>>, %arg4: memref<2x1x384xf32, #tpu.memory_space<vmem>>, %arg5: memref<2x1x384xf32, #tpu.memory_space<vmem>>, %arg6: memref<8x2x128xbf16, #tpu.memory_space<vmem>>, %arg7: memref<8x2x128xbf16, #tpu.memory_space<vmem>>, %arg8: memref<2x2x128xf32, #tpu.memory_space<vmem>>, %arg9: memref<2x128xf32, #tpu.memory_space<vmem>>, %arg10: memref<2x128xf32, #tpu.memory_space<vmem>>) attributes {dimension_semantics = [#tpu.dimension_semantics<arbitrary>], iteration_bounds = array<i64: 1>, scalar_prefetch = 0 : i64, scratch_operands = 2 : i64, tpu.core_type = #tpu.core_type<tc>, window_params = [{transform_indices = @transform_0, window_bounds = array<i64: 1, 8, 2, 384>}, {transform_indices = @transform_1, window_bounds = array<i64: 1, 8, 2, 384>}, {pipeline_mode = #tpu.pipeline_mode<synchronous>, transform_indices = @transform_2, window_bounds = array<i64: 2, 128, 384>}, {pipeline_mode = #tpu.pipeline_mode<synchronous>, transform_indices = @transform_3, window_bounds = array<i64: 2, 1, 384>}, {pipeline_mode = #tpu.pipeline_mode<synchronous>, transform_indices = @transform_4, window_bounds = array<i64: 2, 1, 384>}, {transform_indices = @transform_5, window_bounds = array<i64: 8, 2, 128>}, {transform_indices = @transform_6, window_bounds = array<i64: 8, 2, 128>}, {pipeline_mode = #tpu.pipeline_mode<synchronous>, transform_indices = @transform_7, window_bounds = array<i64: 2, 2, 128>}]} {
    %c0_i32 = arith.constant 0 : i32
    %0 = arith.cmpi eq, %arg0, %c0_i32 : i32
    %1 = arith.extui %0 : i1 to i32
    %c0_i32_0 = arith.constant 0 : i32
    %2 = arith.cmpi ne, %1, %c0_i32_0 : i32
    scf.if %2 {
      %cst_307 = arith.constant 0.000000e+00 : f32
      %759 = vector.broadcast %cst_307 : f32 to vector<2x128xf32>
      %c0_308 = arith.constant 0 : index
      %c0_309 = arith.constant 0 : index
      %760 = vector.load %arg9[%c0_308, %c0_309] : memref<2x128xf32, #tpu.memory_space<vmem>>, vector<2x128xf32>
      tpu.vector_store %arg9[%c0_308, %c0_309], %759 {strides = array<i32>} : memref<2x128xf32, #tpu.memory_space<vmem>>, vector<2x128xf32>,
      %cst_310 = arith.constant 0.000000e+00 : f32
      %761 = vector.broadcast %cst_310 : f32 to vector<2x128xf32>
      %c0_311 = arith.constant 0 : index
      %c0_312 = arith.constant 0 : index
      %762 = vector.load %arg10[%c0_311, %c0_312] : memref<2x128xf32, #tpu.memory_space<vmem>>, vector<2x128xf32>
      tpu.vector_store %arg10[%c0_311, %c0_312], %761 {strides = array<i32>} : memref<2x128xf32, #tpu.memory_space<vmem>>, vector<2x128xf32>,
    } else {
    }
    %c0 = arith.constant 0 : index
    %c0_1 = arith.constant 0 : index
    %c0_2 = arith.constant 0 : index
    %3 = vector.load %arg3[%c0, %c0_1, %c0_2] : memref<2x128x384xbf16, #tpu.memory_space<vmem>>, vector<1x128x384xbf16>
    %4 = vector.shape_cast %3 : vector<1x128x384xbf16> to vector<128x384xbf16>
    %c1 = arith.constant 1 : index
    %c0_3 = arith.constant 0 : index
    %c0_4 = arith.constant 0 : index
    %5 = vector.load %arg3[%c1, %c0_3, %c0_4] : memref<2x128x384xbf16, #tpu.memory_space<vmem>>, vector<1x128x384xbf16>
    %6 = vector.shape_cast %5 : vector<1x128x384xbf16> to vector<128x384xbf16>
    %c0_5 = arith.constant 0 : index
    %c0_6 = arith.constant 0 : index
    %c0_7 = arith.constant 0 : index
    %7 = vector.load %arg4[%c0_5, %c0_6, %c0_7] : memref<2x1x384xf32, #tpu.memory_space<vmem>>, vector<1x1x384xf32>
    %8 = vector.shape_cast %7 : vector<1x1x384xf32> to vector<1x384xf32>
    %9 = vector.shape_cast %8 : vector<1x384xf32> to vector<1x384xf32>
    %10 = vector.broadcast %9 : vector<1x384xf32> to vector<2x384xf32>
    %c1_8 = arith.constant 1 : index
    %c0_9 = arith.constant 0 : index
    %c0_10 = arith.constant 0 : index
    %11 = vector.load %arg4[%c1_8, %c0_9, %c0_10] : memref<2x1x384xf32, #tpu.memory_space<vmem>>, vector<1x1x384xf32>
    %12 = vector.shape_cast %11 : vector<1x1x384xf32> to vector<1x384xf32>
    %13 = vector.shape_cast %12 : vector<1x384xf32> to vector<1x384xf32>
    %14 = vector.broadcast %13 : vector<1x384xf32> to vector<2x384xf32>
    %c0_11 = arith.constant 0 : index
    %c0_12 = arith.constant 0 : index
    %c0_13 = arith.constant 0 : index
    %15 = vector.load %arg5[%c0_11, %c0_12, %c0_13] : memref<2x1x384xf32, #tpu.memory_space<vmem>>, vector<1x1x384xf32>
    %16 = vector.shape_cast %15 : vector<1x1x384xf32> to vector<1x384xf32>
    %17 = vector.shape_cast %16 : vector<1x384xf32> to vector<1x384xf32>
    %18 = vector.broadcast %17 : vector<1x384xf32> to vector<2x384xf32>
    %c1_14 = arith.constant 1 : index
    %c0_15 = arith.constant 0 : index
    %c0_16 = arith.constant 0 : index
    %19 = vector.load %arg5[%c1_14, %c0_15, %c0_16] : memref<2x1x384xf32, #tpu.memory_space<vmem>>, vector<1x1x384xf32>
    %20 = vector.shape_cast %19 : vector<1x1x384xf32> to vector<1x384xf32>
    %21 = vector.shape_cast %20 : vector<1x384xf32> to vector<1x384xf32>
    %22 = vector.broadcast %21 : vector<1x384xf32> to vector<2x384xf32>
    %c0_i32_17 = arith.constant 0 : i32
    %c7_i32 = arith.constant 7 : i32
    %23 = arith.subi %c7_i32, %c0_i32_17 : i32
    %c0_18 = arith.constant 0 : index
    %c0_19 = arith.constant 0 : index
    %24 = vector.load %arg9[%c0_18, %c0_19] : memref<2x128xf32, #tpu.memory_space<vmem>>, vector<2x128xf32>
    %c0_20 = arith.constant 0 : index
    %c0_21 = arith.constant 0 : index
    %25 = vector.load %arg10[%c0_20, %c0_21] : memref<2x128xf32, #tpu.memory_space<vmem>>, vector<2x128xf32>
    %c0_22 = arith.constant 0 : index
    %26 = arith.index_cast %c0_i32_17 : i32 to index
    %c0_23 = arith.constant 0 : index
    %c0_24 = arith.constant 0 : index
    %27 = vector.load %arg1[%c0_22, %26, %c0_23, %c0_24] : memref<1x8x2x384xbf16, #tpu.memory_space<vmem>>, vector<1x1x2x384xbf16>
    %28 = vector.shape_cast %27 : vector<1x1x2x384xbf16> to vector<2x384xbf16>
    %29 = arith.extf %28 : vector<2x384xbf16> to vector<2x384xf32>
    %30 = arith.addf %29, %10 : vector<2x384xf32>
    %c0_25 = arith.constant 0 : index
    %31 = arith.index_cast %23 : i32 to index
    %c0_26 = arith.constant 0 : index
    %c0_27 = arith.constant 0 : index
    %32 = vector.load %arg2[%c0_25, %31, %c0_26, %c0_27] : memref<1x8x2x384xbf16, #tpu.memory_space<vmem>>, vector<1x1x2x384xbf16>
    %33 = vector.shape_cast %32 : vector<1x1x2x384xbf16> to vector<2x384xbf16>
    %34 = arith.extf %33 : vector<2x384xbf16> to vector<2x384xf32>
    %35 = arith.addf %34, %14 : vector<2x384xf32>
    %36 = arith.truncf %24 : vector<2x128xf32> to vector<2x128xbf16>
    %cst = arith.constant dense<0.000000e+00> : vector<2x384xf32>
    %37 = tpu.matmul %36, %4, %cst {dimension_numbers = #tpu.dot_dimension_numbers<[1], [0], [0], [1], [0, 0, 1, 1], [], []>} : vector<2x128xbf16>, vector<128x384xbf16>, vector<2x384xf32> -> vector<2x384xf32>
    %38 = arith.addf %37, %18 : vector<2x384xf32>
    %39 = arith.truncf %25 : vector<2x128xf32> to vector<2x128xbf16>
    %cst_28 = arith.constant dense<0.000000e+00> : vector<2x384xf32>
    %40 = tpu.matmul %39, %6, %cst_28 {dimension_numbers = #tpu.dot_dimension_numbers<[1], [0], [0], [1], [0, 0, 1, 1], [], []>} : vector<2x128xbf16>, vector<128x384xbf16>, vector<2x384xf32> -> vector<2x384xf32>
    %41 = arith.addf %40, %22 : vector<2x384xf32>
    %42 = vector.extract_strided_slice %30 {offsets = [0, 0], sizes = [2, 128], strides = [1, 1]} : vector<2x384xf32> to vector<2x128xf32>
    %43 = vector.extract_strided_slice %38 {offsets = [0, 0], sizes = [2, 128], strides = [1, 1]} : vector<2x384xf32> to vector<2x128xf32>
    %44 = arith.addf %42, %43 : vector<2x128xf32>
    %cst_29 = arith.constant 5.000000e-01 : f32
    %45 = vector.broadcast %cst_29 : f32 to vector<2x128xf32>
    %46 = arith.mulf %45, %44 : vector<2x128xf32>
    %47 = math.tanh %46 : vector<2x128xf32>
    %cst_30 = arith.constant 1.000000e+00 : f32
    %48 = vector.broadcast %cst_30 : f32 to vector<2x128xf32>
    %49 = arith.addf %48, %47 : vector<2x128xf32>
    %cst_31 = arith.constant 5.000000e-01 : f32
    %50 = vector.broadcast %cst_31 : f32 to vector<2x128xf32>
    %51 = arith.mulf %50, %49 : vector<2x128xf32>
    %52 = vector.extract_strided_slice %30 {offsets = [0, 128], sizes = [2, 128], strides = [1, 1]} : vector<2x384xf32> to vector<2x128xf32>
    %53 = vector.extract_strided_slice %38 {offsets = [0, 128], sizes = [2, 128], strides = [1, 1]} : vector<2x384xf32> to vector<2x128xf32>
    %54 = arith.addf %52, %53 : vector<2x128xf32>
    %cst_32 = arith.constant 5.000000e-01 : f32
    %55 = vector.broadcast %cst_32 : f32 to vector<2x128xf32>
    %56 = arith.mulf %55, %54 : vector<2x128xf32>
    %57 = math.tanh %56 : vector<2x128xf32>
    %cst_33 = arith.constant 1.000000e+00 : f32
    %58 = vector.broadcast %cst_33 : f32 to vector<2x128xf32>
    %59 = arith.addf %58, %57 : vector<2x128xf32>
    %cst_34 = arith.constant 5.000000e-01 : f32
    %60 = vector.broadcast %cst_34 : f32 to vector<2x128xf32>
    %61 = arith.mulf %60, %59 : vector<2x128xf32>
    %62 = vector.extract_strided_slice %30 {offsets = [0, 256], sizes = [2, 128], strides = [1, 1]} : vector<2x384xf32> to vector<2x128xf32>
    %63 = vector.extract_strided_slice %38 {offsets = [0, 256], sizes = [2, 128], strides = [1, 1]} : vector<2x384xf32> to vector<2x128xf32>
    %64 = arith.mulf %51, %63 : vector<2x128xf32>
    %65 = arith.addf %62, %64 : vector<2x128xf32>
    %66 = math.tanh %65 : vector<2x128xf32>
    %cst_35 = arith.constant 1.000000e+00 : f32
    %67 = vector.broadcast %cst_35 : f32 to vector<2x128xf32>
    %68 = arith.subf %67, %61 : vector<2x128xf32>
    %69 = arith.mulf %68, %66 : vector<2x128xf32>
    %70 = arith.mulf %61, %24 : vector<2x128xf32>
    %71 = arith.addf %69, %70 : vector<2x128xf32>
    %72 = vector.extract_strided_slice %35 {offsets = [0, 0], sizes = [2, 128], strides = [1, 1]} : vector<2x384xf32> to vector<2x128xf32>
    %73 = vector.extract_strided_slice %41 {offsets = [0, 0], sizes = [2, 128], strides = [1, 1]} : vector<2x384xf32> to vector<2x128xf32>
    %74 = arith.addf %72, %73 : vector<2x128xf32>
    %cst_36 = arith.constant 5.000000e-01 : f32
    %75 = vector.broadcast %cst_36 : f32 to vector<2x128xf32>
    %76 = arith.mulf %75, %74 : vector<2x128xf32>
    %77 = math.tanh %76 : vector<2x128xf32>
    %cst_37 = arith.constant 1.000000e+00 : f32
    %78 = vector.broadcast %cst_37 : f32 to vector<2x128xf32>
    %79 = arith.addf %78, %77 : vector<2x128xf32>
    %cst_38 = arith.constant 5.000000e-01 : f32
    %80 = vector.broadcast %cst_38 : f32 to vector<2x128xf32>
    %81 = arith.mulf %80, %79 : vector<2x128xf32>
    %82 = vector.extract_strided_slice %35 {offsets = [0, 128], sizes = [2, 128], strides = [1, 1]} : vector<2x384xf32> to vector<2x128xf32>
    %83 = vector.extract_strided_slice %41 {offsets = [0, 128], sizes = [2, 128], strides = [1, 1]} : vector<2x384xf32> to vector<2x128xf32>
    %84 = arith.addf %82, %83 : vector<2x128xf32>
    %cst_39 = arith.constant 5.000000e-01 : f32
    %85 = vector.broadcast %cst_39 : f32 to vector<2x128xf32>
    %86 = arith.mulf %85, %84 : vector<2x128xf32>
    %87 = math.tanh %86 : vector<2x128xf32>
    %cst_40 = arith.constant 1.000000e+00 : f32
    %88 = vector.broadcast %cst_40 : f32 to vector<2x128xf32>
    %89 = arith.addf %88, %87 : vector<2x128xf32>
    %cst_41 = arith.constant 5.000000e-01 : f32
    %90 = vector.broadcast %cst_41 : f32 to vector<2x128xf32>
    %91 = arith.mulf %90, %89 : vector<2x128xf32>
    %92 = vector.extract_strided_slice %35 {offsets = [0, 256], sizes = [2, 128], strides = [1, 1]} : vector<2x384xf32> to vector<2x128xf32>
    %93 = vector.extract_strided_slice %41 {offsets = [0, 256], sizes = [2, 128], strides = [1, 1]} : vector<2x384xf32> to vector<2x128xf32>
    %94 = arith.mulf %81, %93 : vector<2x128xf32>
    %95 = arith.addf %92, %94 : vector<2x128xf32>
    %96 = math.tanh %95 : vector<2x128xf32>
    %cst_42 = arith.constant 1.000000e+00 : f32
    %97 = vector.broadcast %cst_42 : f32 to vector<2x128xf32>
    %98 = arith.subf %97, %91 : vector<2x128xf32>
    %99 = arith.mulf %98, %96 : vector<2x128xf32>
    %100 = arith.mulf %91, %25 : vector<2x128xf32>
    %101 = arith.addf %99, %100 : vector<2x128xf32>
    %c0_43 = arith.constant 0 : index
    %c0_44 = arith.constant 0 : index
    %102 = vector.load %arg9[%c0_43, %c0_44] : memref<2x128xf32, #tpu.memory_space<vmem>>, vector<2x128xf32>
    tpu.vector_store %arg9[%c0_43, %c0_44], %71 {strides = array<i32>} : memref<2x128xf32, #tpu.memory_space<vmem>>, vector<2x128xf32>,
    %c0_45 = arith.constant 0 : index
    %c0_46 = arith.constant 0 : index
    %103 = vector.load %arg10[%c0_45, %c0_46] : memref<2x128xf32, #tpu.memory_space<vmem>>, vector<2x128xf32>
    tpu.vector_store %arg10[%c0_45, %c0_46], %101 {strides = array<i32>} : memref<2x128xf32, #tpu.memory_space<vmem>>, vector<2x128xf32>,
    %104 = arith.truncf %71 : vector<2x128xf32> to vector<2x128xbf16>
    %105 = arith.index_cast %c0_i32_17 : i32 to index
    %c0_47 = arith.constant 0 : index
    %c0_48 = arith.constant 0 : index
    %106 = vector.load %arg6[%105, %c0_47, %c0_48] : memref<8x2x128xbf16, #tpu.memory_space<vmem>>, vector<1x2x128xbf16>
    %107 = vector.shape_cast %106 : vector<1x2x128xbf16> to vector<2x128xbf16>
    %108 = vector.shape_cast %104 : vector<2x128xbf16> to vector<1x2x128xbf16>
    tpu.vector_store %arg6[%105, %c0_47, %c0_48], %108 {strides = array<i32>} : memref<8x2x128xbf16, #tpu.memory_space<vmem>>, vector<1x2x128xbf16>,
    %109 = arith.truncf %101 : vector<2x128xf32> to vector<2x128xbf16>
    %110 = arith.index_cast %23 : i32 to index
    %c0_49 = arith.constant 0 : index
    %c0_50 = arith.constant 0 : index
    %111 = vector.load %arg7[%110, %c0_49, %c0_50] : memref<8x2x128xbf16, #tpu.memory_space<vmem>>, vector<1x2x128xbf16>
    %112 = vector.shape_cast %111 : vector<1x2x128xbf16> to vector<2x128xbf16>
    %113 = vector.shape_cast %109 : vector<2x128xbf16> to vector<1x2x128xbf16>
    tpu.vector_store %arg7[%110, %c0_49, %c0_50], %113 {strides = array<i32>} : memref<8x2x128xbf16, #tpu.memory_space<vmem>>, vector<1x2x128xbf16>,
    %c1_i32 = arith.constant 1 : i32
    %c7_i32_51 = arith.constant 7 : i32
    %114 = arith.subi %c7_i32_51, %c1_i32 : i32
    %c0_52 = arith.constant 0 : index
    %c0_53 = arith.constant 0 : index
    %115 = vector.load %arg9[%c0_52, %c0_53] : memref<2x128xf32, #tpu.memory_space<vmem>>, vector<2x128xf32>
    %c0_54 = arith.constant 0 : index
    %c0_55 = arith.constant 0 : index
    %116 = vector.load %arg10[%c0_54, %c0_55] : memref<2x128xf32, #tpu.memory_space<vmem>>, vector<2x128xf32>
    %c0_56 = arith.constant 0 : index
    %117 = arith.index_cast %c1_i32 : i32 to index
    %c0_57 = arith.constant 0 : index
    %c0_58 = arith.constant 0 : index
    %118 = vector.load %arg1[%c0_56, %117, %c0_57, %c0_58] : memref<1x8x2x384xbf16, #tpu.memory_space<vmem>>, vector<1x1x2x384xbf16>
    %119 = vector.shape_cast %118 : vector<1x1x2x384xbf16> to vector<2x384xbf16>
    %120 = arith.extf %119 : vector<2x384xbf16> to vector<2x384xf32>
    %121 = arith.addf %120, %10 : vector<2x384xf32>
    %c0_59 = arith.constant 0 : index
    %122 = arith.index_cast %114 : i32 to index
    %c0_60 = arith.constant 0 : index
    %c0_61 = arith.constant 0 : index
    %123 = vector.load %arg2[%c0_59, %122, %c0_60, %c0_61] : memref<1x8x2x384xbf16, #tpu.memory_space<vmem>>, vector<1x1x2x384xbf16>
    %124 = vector.shape_cast %123 : vector<1x1x2x384xbf16> to vector<2x384xbf16>
    %125 = arith.extf %124 : vector<2x384xbf16> to vector<2x384xf32>
    %126 = arith.addf %125, %14 : vector<2x384xf32>
    %127 = arith.truncf %115 : vector<2x128xf32> to vector<2x128xbf16>
    %cst_62 = arith.constant dense<0.000000e+00> : vector<2x384xf32>
    %128 = tpu.matmul %127, %4, %cst_62 {dimension_numbers = #tpu.dot_dimension_numbers<[1], [0], [0], [1], [0, 0, 1, 1], [], []>} : vector<2x128xbf16>, vector<128x384xbf16>, vector<2x384xf32> -> vector<2x384xf32>
    %129 = arith.addf %128, %18 : vector<2x384xf32>
    %130 = arith.truncf %116 : vector<2x128xf32> to vector<2x128xbf16>
    %cst_63 = arith.constant dense<0.000000e+00> : vector<2x384xf32>
    %131 = tpu.matmul %130, %6, %cst_63 {dimension_numbers = #tpu.dot_dimension_numbers<[1], [0], [0], [1], [0, 0, 1, 1], [], []>} : vector<2x128xbf16>, vector<128x384xbf16>, vector<2x384xf32> -> vector<2x384xf32>
    %132 = arith.addf %131, %22 : vector<2x384xf32>
    %133 = vector.extract_strided_slice %121 {offsets = [0, 0], sizes = [2, 128], strides = [1, 1]} : vector<2x384xf32> to vector<2x128xf32>
    %134 = vector.extract_strided_slice %129 {offsets = [0, 0], sizes = [2, 128], strides = [1, 1]} : vector<2x384xf32> to vector<2x128xf32>
    %135 = arith.addf %133, %134 : vector<2x128xf32>
    %cst_64 = arith.constant 5.000000e-01 : f32
    %136 = vector.broadcast %cst_64 : f32 to vector<2x128xf32>
    %137 = arith.mulf %136, %135 : vector<2x128xf32>
    %138 = math.tanh %137 : vector<2x128xf32>
    %cst_65 = arith.constant 1.000000e+00 : f32
    %139 = vector.broadcast %cst_65 : f32 to vector<2x128xf32>
    %140 = arith.addf %139, %138 : vector<2x128xf32>
    %cst_66 = arith.constant 5.000000e-01 : f32
    %141 = vector.broadcast %cst_66 : f32 to vector<2x128xf32>
    %142 = arith.mulf %141, %140 : vector<2x128xf32>
    %143 = vector.extract_strided_slice %121 {offsets = [0, 128], sizes = [2, 128], strides = [1, 1]} : vector<2x384xf32> to vector<2x128xf32>
    %144 = vector.extract_strided_slice %129 {offsets = [0, 128], sizes = [2, 128], strides = [1, 1]} : vector<2x384xf32> to vector<2x128xf32>
    %145 = arith.addf %143, %144 : vector<2x128xf32>
    %cst_67 = arith.constant 5.000000e-01 : f32
    %146 = vector.broadcast %cst_67 : f32 to vector<2x128xf32>
    %147 = arith.mulf %146, %145 : vector<2x128xf32>
    %148 = math.tanh %147 : vector<2x128xf32>
    %cst_68 = arith.constant 1.000000e+00 : f32
    %149 = vector.broadcast %cst_68 : f32 to vector<2x128xf32>
    %150 = arith.addf %149, %148 : vector<2x128xf32>
    %cst_69 = arith.constant 5.000000e-01 : f32
    %151 = vector.broadcast %cst_69 : f32 to vector<2x128xf32>
    %152 = arith.mulf %151, %150 : vector<2x128xf32>
    %153 = vector.extract_strided_slice %121 {offsets = [0, 256], sizes = [2, 128], strides = [1, 1]} : vector<2x384xf32> to vector<2x128xf32>
    %154 = vector.extract_strided_slice %129 {offsets = [0, 256], sizes = [2, 128], strides = [1, 1]} : vector<2x384xf32> to vector<2x128xf32>
    %155 = arith.mulf %142, %154 : vector<2x128xf32>
    %156 = arith.addf %153, %155 : vector<2x128xf32>
    %157 = math.tanh %156 : vector<2x128xf32>
    %cst_70 = arith.constant 1.000000e+00 : f32
    %158 = vector.broadcast %cst_70 : f32 to vector<2x128xf32>
    %159 = arith.subf %158, %152 : vector<2x128xf32>
    %160 = arith.mulf %159, %157 : vector<2x128xf32>
    %161 = arith.mulf %152, %115 : vector<2x128xf32>
    %162 = arith.addf %160, %161 : vector<2x128xf32>
    %163 = vector.extract_strided_slice %126 {offsets = [0, 0], sizes = [2, 128], strides = [1, 1]} : vector<2x384xf32> to vector<2x128xf32>
    %164 = vector.extract_strided_slice %132 {offsets = [0, 0], sizes = [2, 128], strides = [1, 1]} : vector<2x384xf32> to vector<2x128xf32>
    %165 = arith.addf %163, %164 : vector<2x128xf32>
    %cst_71 = arith.constant 5.000000e-01 : f32
    %166 = vector.broadcast %cst_71 : f32 to vector<2x128xf32>
    %167 = arith.mulf %166, %165 : vector<2x128xf32>
    %168 = math.tanh %167 : vector<2x128xf32>
    %cst_72 = arith.constant 1.000000e+00 : f32
    %169 = vector.broadcast %cst_72 : f32 to vector<2x128xf32>
    %170 = arith.addf %169, %168 : vector<2x128xf32>
    %cst_73 = arith.constant 5.000000e-01 : f32
    %171 = vector.broadcast %cst_73 : f32 to vector<2x128xf32>
    %172 = arith.mulf %171, %170 : vector<2x128xf32>
    %173 = vector.extract_strided_slice %126 {offsets = [0, 128], sizes = [2, 128], strides = [1, 1]} : vector<2x384xf32> to vector<2x128xf32>
    %174 = vector.extract_strided_slice %132 {offsets = [0, 128], sizes = [2, 128], strides = [1, 1]} : vector<2x384xf32> to vector<2x128xf32>
    %175 = arith.addf %173, %174 : vector<2x128xf32>
    %cst_74 = arith.constant 5.000000e-01 : f32
    %176 = vector.broadcast %cst_74 : f32 to vector<2x128xf32>
    %177 = arith.mulf %176, %175 : vector<2x128xf32>
    %178 = math.tanh %177 : vector<2x128xf32>
    %cst_75 = arith.constant 1.000000e+00 : f32
    %179 = vector.broadcast %cst_75 : f32 to vector<2x128xf32>
    %180 = arith.addf %179, %178 : vector<2x128xf32>
    %cst_76 = arith.constant 5.000000e-01 : f32
    %181 = vector.broadcast %cst_76 : f32 to vector<2x128xf32>
    %182 = arith.mulf %181, %180 : vector<2x128xf32>
    %183 = vector.extract_strided_slice %126 {offsets = [0, 256], sizes = [2, 128], strides = [1, 1]} : vector<2x384xf32> to vector<2x128xf32>
    %184 = vector.extract_strided_slice %132 {offsets = [0, 256], sizes = [2, 128], strides = [1, 1]} : vector<2x384xf32> to vector<2x128xf32>
    %185 = arith.mulf %172, %184 : vector<2x128xf32>
    %186 = arith.addf %183, %185 : vector<2x128xf32>
    %187 = math.tanh %186 : vector<2x128xf32>
    %cst_77 = arith.constant 1.000000e+00 : f32
    %188 = vector.broadcast %cst_77 : f32 to vector<2x128xf32>
    %189 = arith.subf %188, %182 : vector<2x128xf32>
    %190 = arith.mulf %189, %187 : vector<2x128xf32>
    %191 = arith.mulf %182, %116 : vector<2x128xf32>
    %192 = arith.addf %190, %191 : vector<2x128xf32>
    %c0_78 = arith.constant 0 : index
    %c0_79 = arith.constant 0 : index
    %193 = vector.load %arg9[%c0_78, %c0_79] : memref<2x128xf32, #tpu.memory_space<vmem>>, vector<2x128xf32>
    tpu.vector_store %arg9[%c0_78, %c0_79], %162 {strides = array<i32>} : memref<2x128xf32, #tpu.memory_space<vmem>>, vector<2x128xf32>,
    %c0_80 = arith.constant 0 : index
    %c0_81 = arith.constant 0 : index
    %194 = vector.load %arg10[%c0_80, %c0_81] : memref<2x128xf32, #tpu.memory_space<vmem>>, vector<2x128xf32>
    tpu.vector_store %arg10[%c0_80, %c0_81], %192 {strides = array<i32>} : memref<2x128xf32, #tpu.memory_space<vmem>>, vector<2x128xf32>,
    %195 = arith.truncf %162 : vector<2x128xf32> to vector<2x128xbf16>
    %196 = arith.index_cast %c1_i32 : i32 to index
    %c0_82 = arith.constant 0 : index
    %c0_83 = arith.constant 0 : index
    %197 = vector.load %arg6[%196, %c0_82, %c0_83] : memref<8x2x128xbf16, #tpu.memory_space<vmem>>, vector<1x2x128xbf16>
    %198 = vector.shape_cast %197 : vector<1x2x128xbf16> to vector<2x128xbf16>
    %199 = vector.shape_cast %195 : vector<2x128xbf16> to vector<1x2x128xbf16>
    tpu.vector_store %arg6[%196, %c0_82, %c0_83], %199 {strides = array<i32>} : memref<8x2x128xbf16, #tpu.memory_space<vmem>>, vector<1x2x128xbf16>,
    %200 = arith.truncf %192 : vector<2x128xf32> to vector<2x128xbf16>
    %201 = arith.index_cast %114 : i32 to index
    %c0_84 = arith.constant 0 : index
    %c0_85 = arith.constant 0 : index
    %202 = vector.load %arg7[%201, %c0_84, %c0_85] : memref<8x2x128xbf16, #tpu.memory_space<vmem>>, vector<1x2x128xbf16>
    %203 = vector.shape_cast %202 : vector<1x2x128xbf16> to vector<2x128xbf16>
    %204 = vector.shape_cast %200 : vector<2x128xbf16> to vector<1x2x128xbf16>
    tpu.vector_store %arg7[%201, %c0_84, %c0_85], %204 {strides = array<i32>} : memref<8x2x128xbf16, #tpu.memory_space<vmem>>, vector<1x2x128xbf16>,
    %c2_i32 = arith.constant 2 : i32
    %c7_i32_86 = arith.constant 7 : i32
    %205 = arith.subi %c7_i32_86, %c2_i32 : i32
    %c0_87 = arith.constant 0 : index
    %c0_88 = arith.constant 0 : index
    %206 = vector.load %arg9[%c0_87, %c0_88] : memref<2x128xf32, #tpu.memory_space<vmem>>, vector<2x128xf32>
    %c0_89 = arith.constant 0 : index
    %c0_90 = arith.constant 0 : index
    %207 = vector.load %arg10[%c0_89, %c0_90] : memref<2x128xf32, #tpu.memory_space<vmem>>, vector<2x128xf32>
    %c0_91 = arith.constant 0 : index
    %208 = arith.index_cast %c2_i32 : i32 to index
    %c0_92 = arith.constant 0 : index
    %c0_93 = arith.constant 0 : index
    %209 = vector.load %arg1[%c0_91, %208, %c0_92, %c0_93] : memref<1x8x2x384xbf16, #tpu.memory_space<vmem>>, vector<1x1x2x384xbf16>
    %210 = vector.shape_cast %209 : vector<1x1x2x384xbf16> to vector<2x384xbf16>
    %211 = arith.extf %210 : vector<2x384xbf16> to vector<2x384xf32>
    %212 = arith.addf %211, %10 : vector<2x384xf32>
    %c0_94 = arith.constant 0 : index
    %213 = arith.index_cast %205 : i32 to index
    %c0_95 = arith.constant 0 : index
    %c0_96 = arith.constant 0 : index
    %214 = vector.load %arg2[%c0_94, %213, %c0_95, %c0_96] : memref<1x8x2x384xbf16, #tpu.memory_space<vmem>>, vector<1x1x2x384xbf16>
    %215 = vector.shape_cast %214 : vector<1x1x2x384xbf16> to vector<2x384xbf16>
    %216 = arith.extf %215 : vector<2x384xbf16> to vector<2x384xf32>
    %217 = arith.addf %216, %14 : vector<2x384xf32>
    %218 = arith.truncf %206 : vector<2x128xf32> to vector<2x128xbf16>
    %cst_97 = arith.constant dense<0.000000e+00> : vector<2x384xf32>
    %219 = tpu.matmul %218, %4, %cst_97 {dimension_numbers = #tpu.dot_dimension_numbers<[1], [0], [0], [1], [0, 0, 1, 1], [], []>} : vector<2x128xbf16>, vector<128x384xbf16>, vector<2x384xf32> -> vector<2x384xf32>
    %220 = arith.addf %219, %18 : vector<2x384xf32>
    %221 = arith.truncf %207 : vector<2x128xf32> to vector<2x128xbf16>
    %cst_98 = arith.constant dense<0.000000e+00> : vector<2x384xf32>
    %222 = tpu.matmul %221, %6, %cst_98 {dimension_numbers = #tpu.dot_dimension_numbers<[1], [0], [0], [1], [0, 0, 1, 1], [], []>} : vector<2x128xbf16>, vector<128x384xbf16>, vector<2x384xf32> -> vector<2x384xf32>
    %223 = arith.addf %222, %22 : vector<2x384xf32>
    %224 = vector.extract_strided_slice %212 {offsets = [0, 0], sizes = [2, 128], strides = [1, 1]} : vector<2x384xf32> to vector<2x128xf32>
    %225 = vector.extract_strided_slice %220 {offsets = [0, 0], sizes = [2, 128], strides = [1, 1]} : vector<2x384xf32> to vector<2x128xf32>
    %226 = arith.addf %224, %225 : vector<2x128xf32>
    %cst_99 = arith.constant 5.000000e-01 : f32
    %227 = vector.broadcast %cst_99 : f32 to vector<2x128xf32>
    %228 = arith.mulf %227, %226 : vector<2x128xf32>
    %229 = math.tanh %228 : vector<2x128xf32>
    %cst_100 = arith.constant 1.000000e+00 : f32
    %230 = vector.broadcast %cst_100 : f32 to vector<2x128xf32>
    %231 = arith.addf %230, %229 : vector<2x128xf32>
    %cst_101 = arith.constant 5.000000e-01 : f32
    %232 = vector.broadcast %cst_101 : f32 to vector<2x128xf32>
    %233 = arith.mulf %232, %231 : vector<2x128xf32>
    %234 = vector.extract_strided_slice %212 {offsets = [0, 128], sizes = [2, 128], strides = [1, 1]} : vector<2x384xf32> to vector<2x128xf32>
    %235 = vector.extract_strided_slice %220 {offsets = [0, 128], sizes = [2, 128], strides = [1, 1]} : vector<2x384xf32> to vector<2x128xf32>
    %236 = arith.addf %234, %235 : vector<2x128xf32>
    %cst_102 = arith.constant 5.000000e-01 : f32
    %237 = vector.broadcast %cst_102 : f32 to vector<2x128xf32>
    %238 = arith.mulf %237, %236 : vector<2x128xf32>
    %239 = math.tanh %238 : vector<2x128xf32>
    %cst_103 = arith.constant 1.000000e+00 : f32
    %240 = vector.broadcast %cst_103 : f32 to vector<2x128xf32>
    %241 = arith.addf %240, %239 : vector<2x128xf32>
    %cst_104 = arith.constant 5.000000e-01 : f32
    %242 = vector.broadcast %cst_104 : f32 to vector<2x128xf32>
    %243 = arith.mulf %242, %241 : vector<2x128xf32>
    %244 = vector.extract_strided_slice %212 {offsets = [0, 256], sizes = [2, 128], strides = [1, 1]} : vector<2x384xf32> to vector<2x128xf32>
    %245 = vector.extract_strided_slice %220 {offsets = [0, 256], sizes = [2, 128], strides = [1, 1]} : vector<2x384xf32> to vector<2x128xf32>
    %246 = arith.mulf %233, %245 : vector<2x128xf32>
    %247 = arith.addf %244, %246 : vector<2x128xf32>
    %248 = math.tanh %247 : vector<2x128xf32>
    %cst_105 = arith.constant 1.000000e+00 : f32
    %249 = vector.broadcast %cst_105 : f32 to vector<2x128xf32>
    %250 = arith.subf %249, %243 : vector<2x128xf32>
    %251 = arith.mulf %250, %248 : vector<2x128xf32>
    %252 = arith.mulf %243, %206 : vector<2x128xf32>
    %253 = arith.addf %251, %252 : vector<2x128xf32>
    %254 = vector.extract_strided_slice %217 {offsets = [0, 0], sizes = [2, 128], strides = [1, 1]} : vector<2x384xf32> to vector<2x128xf32>
    %255 = vector.extract_strided_slice %223 {offsets = [0, 0], sizes = [2, 128], strides = [1, 1]} : vector<2x384xf32> to vector<2x128xf32>
    %256 = arith.addf %254, %255 : vector<2x128xf32>
    %cst_106 = arith.constant 5.000000e-01 : f32
    %257 = vector.broadcast %cst_106 : f32 to vector<2x128xf32>
    %258 = arith.mulf %257, %256 : vector<2x128xf32>
    %259 = math.tanh %258 : vector<2x128xf32>
    %cst_107 = arith.constant 1.000000e+00 : f32
    %260 = vector.broadcast %cst_107 : f32 to vector<2x128xf32>
    %261 = arith.addf %260, %259 : vector<2x128xf32>
    %cst_108 = arith.constant 5.000000e-01 : f32
    %262 = vector.broadcast %cst_108 : f32 to vector<2x128xf32>
    %263 = arith.mulf %262, %261 : vector<2x128xf32>
    %264 = vector.extract_strided_slice %217 {offsets = [0, 128], sizes = [2, 128], strides = [1, 1]} : vector<2x384xf32> to vector<2x128xf32>
    %265 = vector.extract_strided_slice %223 {offsets = [0, 128], sizes = [2, 128], strides = [1, 1]} : vector<2x384xf32> to vector<2x128xf32>
    %266 = arith.addf %264, %265 : vector<2x128xf32>
    %cst_109 = arith.constant 5.000000e-01 : f32
    %267 = vector.broadcast %cst_109 : f32 to vector<2x128xf32>
    %268 = arith.mulf %267, %266 : vector<2x128xf32>
    %269 = math.tanh %268 : vector<2x128xf32>
    %cst_110 = arith.constant 1.000000e+00 : f32
    %270 = vector.broadcast %cst_110 : f32 to vector<2x128xf32>
    %271 = arith.addf %270, %269 : vector<2x128xf32>
    %cst_111 = arith.constant 5.000000e-01 : f32
    %272 = vector.broadcast %cst_111 : f32 to vector<2x128xf32>
    %273 = arith.mulf %272, %271 : vector<2x128xf32>
    %274 = vector.extract_strided_slice %217 {offsets = [0, 256], sizes = [2, 128], strides = [1, 1]} : vector<2x384xf32> to vector<2x128xf32>
    %275 = vector.extract_strided_slice %223 {offsets = [0, 256], sizes = [2, 128], strides = [1, 1]} : vector<2x384xf32> to vector<2x128xf32>
    %276 = arith.mulf %263, %275 : vector<2x128xf32>
    %277 = arith.addf %274, %276 : vector<2x128xf32>
    %278 = math.tanh %277 : vector<2x128xf32>
    %cst_112 = arith.constant 1.000000e+00 : f32
    %279 = vector.broadcast %cst_112 : f32 to vector<2x128xf32>
    %280 = arith.subf %279, %273 : vector<2x128xf32>
    %281 = arith.mulf %280, %278 : vector<2x128xf32>
    %282 = arith.mulf %273, %207 : vector<2x128xf32>
    %283 = arith.addf %281, %282 : vector<2x128xf32>
    %c0_113 = arith.constant 0 : index
    %c0_114 = arith.constant 0 : index
    %284 = vector.load %arg9[%c0_113, %c0_114] : memref<2x128xf32, #tpu.memory_space<vmem>>, vector<2x128xf32>
    tpu.vector_store %arg9[%c0_113, %c0_114], %253 {strides = array<i32>} : memref<2x128xf32, #tpu.memory_space<vmem>>, vector<2x128xf32>,
    %c0_115 = arith.constant 0 : index
    %c0_116 = arith.constant 0 : index
    %285 = vector.load %arg10[%c0_115, %c0_116] : memref<2x128xf32, #tpu.memory_space<vmem>>, vector<2x128xf32>
    tpu.vector_store %arg10[%c0_115, %c0_116], %283 {strides = array<i32>} : memref<2x128xf32, #tpu.memory_space<vmem>>, vector<2x128xf32>,
    %286 = arith.truncf %253 : vector<2x128xf32> to vector<2x128xbf16>
    %287 = arith.index_cast %c2_i32 : i32 to index
    %c0_117 = arith.constant 0 : index
    %c0_118 = arith.constant 0 : index
    %288 = vector.load %arg6[%287, %c0_117, %c0_118] : memref<8x2x128xbf16, #tpu.memory_space<vmem>>, vector<1x2x128xbf16>
    %289 = vector.shape_cast %288 : vector<1x2x128xbf16> to vector<2x128xbf16>
    %290 = vector.shape_cast %286 : vector<2x128xbf16> to vector<1x2x128xbf16>
    tpu.vector_store %arg6[%287, %c0_117, %c0_118], %290 {strides = array<i32>} : memref<8x2x128xbf16, #tpu.memory_space<vmem>>, vector<1x2x128xbf16>,
    %291 = arith.truncf %283 : vector<2x128xf32> to vector<2x128xbf16>
    %292 = arith.index_cast %205 : i32 to index
    %c0_119 = arith.constant 0 : index
    %c0_120 = arith.constant 0 : index
    %293 = vector.load %arg7[%292, %c0_119, %c0_120] : memref<8x2x128xbf16, #tpu.memory_space<vmem>>, vector<1x2x128xbf16>
    %294 = vector.shape_cast %293 : vector<1x2x128xbf16> to vector<2x128xbf16>
    %295 = vector.shape_cast %291 : vector<2x128xbf16> to vector<1x2x128xbf16>
    tpu.vector_store %arg7[%292, %c0_119, %c0_120], %295 {strides = array<i32>} : memref<8x2x128xbf16, #tpu.memory_space<vmem>>, vector<1x2x128xbf16>,
    %c3_i32 = arith.constant 3 : i32
    %c7_i32_121 = arith.constant 7 : i32
    %296 = arith.subi %c7_i32_121, %c3_i32 : i32
    %c0_122 = arith.constant 0 : index
    %c0_123 = arith.constant 0 : index
    %297 = vector.load %arg9[%c0_122, %c0_123] : memref<2x128xf32, #tpu.memory_space<vmem>>, vector<2x128xf32>
    %c0_124 = arith.constant 0 : index
    %c0_125 = arith.constant 0 : index
    %298 = vector.load %arg10[%c0_124, %c0_125] : memref<2x128xf32, #tpu.memory_space<vmem>>, vector<2x128xf32>
    %c0_126 = arith.constant 0 : index
    %299 = arith.index_cast %c3_i32 : i32 to index
    %c0_127 = arith.constant 0 : index
    %c0_128 = arith.constant 0 : index
    %300 = vector.load %arg1[%c0_126, %299, %c0_127, %c0_128] : memref<1x8x2x384xbf16, #tpu.memory_space<vmem>>, vector<1x1x2x384xbf16>
    %301 = vector.shape_cast %300 : vector<1x1x2x384xbf16> to vector<2x384xbf16>
    %302 = arith.extf %301 : vector<2x384xbf16> to vector<2x384xf32>
    %303 = arith.addf %302, %10 : vector<2x384xf32>
    %c0_129 = arith.constant 0 : index
    %304 = arith.index_cast %296 : i32 to index
    %c0_130 = arith.constant 0 : index
    %c0_131 = arith.constant 0 : index
    %305 = vector.load %arg2[%c0_129, %304, %c0_130, %c0_131] : memref<1x8x2x384xbf16, #tpu.memory_space<vmem>>, vector<1x1x2x384xbf16>
    %306 = vector.shape_cast %305 : vector<1x1x2x384xbf16> to vector<2x384xbf16>
    %307 = arith.extf %306 : vector<2x384xbf16> to vector<2x384xf32>
    %308 = arith.addf %307, %14 : vector<2x384xf32>
    %309 = arith.truncf %297 : vector<2x128xf32> to vector<2x128xbf16>
    %cst_132 = arith.constant dense<0.000000e+00> : vector<2x384xf32>
    %310 = tpu.matmul %309, %4, %cst_132 {dimension_numbers = #tpu.dot_dimension_numbers<[1], [0], [0], [1], [0, 0, 1, 1], [], []>} : vector<2x128xbf16>, vector<128x384xbf16>, vector<2x384xf32> -> vector<2x384xf32>
    %311 = arith.addf %310, %18 : vector<2x384xf32>
    %312 = arith.truncf %298 : vector<2x128xf32> to vector<2x128xbf16>
    %cst_133 = arith.constant dense<0.000000e+00> : vector<2x384xf32>
    %313 = tpu.matmul %312, %6, %cst_133 {dimension_numbers = #tpu.dot_dimension_numbers<[1], [0], [0], [1], [0, 0, 1, 1], [], []>} : vector<2x128xbf16>, vector<128x384xbf16>, vector<2x384xf32> -> vector<2x384xf32>
    %314 = arith.addf %313, %22 : vector<2x384xf32>
    %315 = vector.extract_strided_slice %303 {offsets = [0, 0], sizes = [2, 128], strides = [1, 1]} : vector<2x384xf32> to vector<2x128xf32>
    %316 = vector.extract_strided_slice %311 {offsets = [0, 0], sizes = [2, 128], strides = [1, 1]} : vector<2x384xf32> to vector<2x128xf32>
    %317 = arith.addf %315, %316 : vector<2x128xf32>
    %cst_134 = arith.constant 5.000000e-01 : f32
    %318 = vector.broadcast %cst_134 : f32 to vector<2x128xf32>
    %319 = arith.mulf %318, %317 : vector<2x128xf32>
    %320 = math.tanh %319 : vector<2x128xf32>
    %cst_135 = arith.constant 1.000000e+00 : f32
    %321 = vector.broadcast %cst_135 : f32 to vector<2x128xf32>
    %322 = arith.addf %321, %320 : vector<2x128xf32>
    %cst_136 = arith.constant 5.000000e-01 : f32
    %323 = vector.broadcast %cst_136 : f32 to vector<2x128xf32>
    %324 = arith.mulf %323, %322 : vector<2x128xf32>
    %325 = vector.extract_strided_slice %303 {offsets = [0, 128], sizes = [2, 128], strides = [1, 1]} : vector<2x384xf32> to vector<2x128xf32>
    %326 = vector.extract_strided_slice %311 {offsets = [0, 128], sizes = [2, 128], strides = [1, 1]} : vector<2x384xf32> to vector<2x128xf32>
    %327 = arith.addf %325, %326 : vector<2x128xf32>
    %cst_137 = arith.constant 5.000000e-01 : f32
    %328 = vector.broadcast %cst_137 : f32 to vector<2x128xf32>
    %329 = arith.mulf %328, %327 : vector<2x128xf32>
    %330 = math.tanh %329 : vector<2x128xf32>
    %cst_138 = arith.constant 1.000000e+00 : f32
    %331 = vector.broadcast %cst_138 : f32 to vector<2x128xf32>
    %332 = arith.addf %331, %330 : vector<2x128xf32>
    %cst_139 = arith.constant 5.000000e-01 : f32
    %333 = vector.broadcast %cst_139 : f32 to vector<2x128xf32>
    %334 = arith.mulf %333, %332 : vector<2x128xf32>
    %335 = vector.extract_strided_slice %303 {offsets = [0, 256], sizes = [2, 128], strides = [1, 1]} : vector<2x384xf32> to vector<2x128xf32>
    %336 = vector.extract_strided_slice %311 {offsets = [0, 256], sizes = [2, 128], strides = [1, 1]} : vector<2x384xf32> to vector<2x128xf32>
    %337 = arith.mulf %324, %336 : vector<2x128xf32>
    %338 = arith.addf %335, %337 : vector<2x128xf32>
    %339 = math.tanh %338 : vector<2x128xf32>
    %cst_140 = arith.constant 1.000000e+00 : f32
    %340 = vector.broadcast %cst_140 : f32 to vector<2x128xf32>
    %341 = arith.subf %340, %334 : vector<2x128xf32>
    %342 = arith.mulf %341, %339 : vector<2x128xf32>
    %343 = arith.mulf %334, %297 : vector<2x128xf32>
    %344 = arith.addf %342, %343 : vector<2x128xf32>
    %345 = vector.extract_strided_slice %308 {offsets = [0, 0], sizes = [2, 128], strides = [1, 1]} : vector<2x384xf32> to vector<2x128xf32>
    %346 = vector.extract_strided_slice %314 {offsets = [0, 0], sizes = [2, 128], strides = [1, 1]} : vector<2x384xf32> to vector<2x128xf32>
    %347 = arith.addf %345, %346 : vector<2x128xf32>
    %cst_141 = arith.constant 5.000000e-01 : f32
    %348 = vector.broadcast %cst_141 : f32 to vector<2x128xf32>
    %349 = arith.mulf %348, %347 : vector<2x128xf32>
    %350 = math.tanh %349 : vector<2x128xf32>
    %cst_142 = arith.constant 1.000000e+00 : f32
    %351 = vector.broadcast %cst_142 : f32 to vector<2x128xf32>
    %352 = arith.addf %351, %350 : vector<2x128xf32>
    %cst_143 = arith.constant 5.000000e-01 : f32
    %353 = vector.broadcast %cst_143 : f32 to vector<2x128xf32>
    %354 = arith.mulf %353, %352 : vector<2x128xf32>
    %355 = vector.extract_strided_slice %308 {offsets = [0, 128], sizes = [2, 128], strides = [1, 1]} : vector<2x384xf32> to vector<2x128xf32>
    %356 = vector.extract_strided_slice %314 {offsets = [0, 128], sizes = [2, 128], strides = [1, 1]} : vector<2x384xf32> to vector<2x128xf32>
    %357 = arith.addf %355, %356 : vector<2x128xf32>
    %cst_144 = arith.constant 5.000000e-01 : f32
    %358 = vector.broadcast %cst_144 : f32 to vector<2x128xf32>
    %359 = arith.mulf %358, %357 : vector<2x128xf32>
    %360 = math.tanh %359 : vector<2x128xf32>
    %cst_145 = arith.constant 1.000000e+00 : f32
    %361 = vector.broadcast %cst_145 : f32 to vector<2x128xf32>
    %362 = arith.addf %361, %360 : vector<2x128xf32>
    %cst_146 = arith.constant 5.000000e-01 : f32
    %363 = vector.broadcast %cst_146 : f32 to vector<2x128xf32>
    %364 = arith.mulf %363, %362 : vector<2x128xf32>
    %365 = vector.extract_strided_slice %308 {offsets = [0, 256], sizes = [2, 128], strides = [1, 1]} : vector<2x384xf32> to vector<2x128xf32>
    %366 = vector.extract_strided_slice %314 {offsets = [0, 256], sizes = [2, 128], strides = [1, 1]} : vector<2x384xf32> to vector<2x128xf32>
    %367 = arith.mulf %354, %366 : vector<2x128xf32>
    %368 = arith.addf %365, %367 : vector<2x128xf32>
    %369 = math.tanh %368 : vector<2x128xf32>
    %cst_147 = arith.constant 1.000000e+00 : f32
    %370 = vector.broadcast %cst_147 : f32 to vector<2x128xf32>
    %371 = arith.subf %370, %364 : vector<2x128xf32>
    %372 = arith.mulf %371, %369 : vector<2x128xf32>
    %373 = arith.mulf %364, %298 : vector<2x128xf32>
    %374 = arith.addf %372, %373 : vector<2x128xf32>
    %c0_148 = arith.constant 0 : index
    %c0_149 = arith.constant 0 : index
    %375 = vector.load %arg9[%c0_148, %c0_149] : memref<2x128xf32, #tpu.memory_space<vmem>>, vector<2x128xf32>
    tpu.vector_store %arg9[%c0_148, %c0_149], %344 {strides = array<i32>} : memref<2x128xf32, #tpu.memory_space<vmem>>, vector<2x128xf32>,
    %c0_150 = arith.constant 0 : index
    %c0_151 = arith.constant 0 : index
    %376 = vector.load %arg10[%c0_150, %c0_151] : memref<2x128xf32, #tpu.memory_space<vmem>>, vector<2x128xf32>
    tpu.vector_store %arg10[%c0_150, %c0_151], %374 {strides = array<i32>} : memref<2x128xf32, #tpu.memory_space<vmem>>, vector<2x128xf32>,
    %377 = arith.truncf %344 : vector<2x128xf32> to vector<2x128xbf16>
    %378 = arith.index_cast %c3_i32 : i32 to index
    %c0_152 = arith.constant 0 : index
    %c0_153 = arith.constant 0 : index
    %379 = vector.load %arg6[%378, %c0_152, %c0_153] : memref<8x2x128xbf16, #tpu.memory_space<vmem>>, vector<1x2x128xbf16>
    %380 = vector.shape_cast %379 : vector<1x2x128xbf16> to vector<2x128xbf16>
    %381 = vector.shape_cast %377 : vector<2x128xbf16> to vector<1x2x128xbf16>
    tpu.vector_store %arg6[%378, %c0_152, %c0_153], %381 {strides = array<i32>} : memref<8x2x128xbf16, #tpu.memory_space<vmem>>, vector<1x2x128xbf16>,
    %382 = arith.truncf %374 : vector<2x128xf32> to vector<2x128xbf16>
    %383 = arith.index_cast %296 : i32 to index
    %c0_154 = arith.constant 0 : index
    %c0_155 = arith.constant 0 : index
    %384 = vector.load %arg7[%383, %c0_154, %c0_155] : memref<8x2x128xbf16, #tpu.memory_space<vmem>>, vector<1x2x128xbf16>
    %385 = vector.shape_cast %384 : vector<1x2x128xbf16> to vector<2x128xbf16>
    %386 = vector.shape_cast %382 : vector<2x128xbf16> to vector<1x2x128xbf16>
    tpu.vector_store %arg7[%383, %c0_154, %c0_155], %386 {strides = array<i32>} : memref<8x2x128xbf16, #tpu.memory_space<vmem>>, vector<1x2x128xbf16>,
    %c4_i32 = arith.constant 4 : i32
    %c7_i32_156 = arith.constant 7 : i32
    %387 = arith.subi %c7_i32_156, %c4_i32 : i32
    %c0_157 = arith.constant 0 : index
    %c0_158 = arith.constant 0 : index
    %388 = vector.load %arg9[%c0_157, %c0_158] : memref<2x128xf32, #tpu.memory_space<vmem>>, vector<2x128xf32>
    %c0_159 = arith.constant 0 : index
    %c0_160 = arith.constant 0 : index
    %389 = vector.load %arg10[%c0_159, %c0_160] : memref<2x128xf32, #tpu.memory_space<vmem>>, vector<2x128xf32>
    %c0_161 = arith.constant 0 : index
    %390 = arith.index_cast %c4_i32 : i32 to index
    %c0_162 = arith.constant 0 : index
    %c0_163 = arith.constant 0 : index
    %391 = vector.load %arg1[%c0_161, %390, %c0_162, %c0_163] : memref<1x8x2x384xbf16, #tpu.memory_space<vmem>>, vector<1x1x2x384xbf16>
    %392 = vector.shape_cast %391 : vector<1x1x2x384xbf16> to vector<2x384xbf16>
    %393 = arith.extf %392 : vector<2x384xbf16> to vector<2x384xf32>
    %394 = arith.addf %393, %10 : vector<2x384xf32>
    %c0_164 = arith.constant 0 : index
    %395 = arith.index_cast %387 : i32 to index
    %c0_165 = arith.constant 0 : index
    %c0_166 = arith.constant 0 : index
    %396 = vector.load %arg2[%c0_164, %395, %c0_165, %c0_166] : memref<1x8x2x384xbf16, #tpu.memory_space<vmem>>, vector<1x1x2x384xbf16>
    %397 = vector.shape_cast %396 : vector<1x1x2x384xbf16> to vector<2x384xbf16>
    %398 = arith.extf %397 : vector<2x384xbf16> to vector<2x384xf32>
    %399 = arith.addf %398, %14 : vector<2x384xf32>
    %400 = arith.truncf %388 : vector<2x128xf32> to vector<2x128xbf16>
    %cst_167 = arith.constant dense<0.000000e+00> : vector<2x384xf32>
    %401 = tpu.matmul %400, %4, %cst_167 {dimension_numbers = #tpu.dot_dimension_numbers<[1], [0], [0], [1], [0, 0, 1, 1], [], []>} : vector<2x128xbf16>, vector<128x384xbf16>, vector<2x384xf32> -> vector<2x384xf32>
    %402 = arith.addf %401, %18 : vector<2x384xf32>
    %403 = arith.truncf %389 : vector<2x128xf32> to vector<2x128xbf16>
    %cst_168 = arith.constant dense<0.000000e+00> : vector<2x384xf32>
    %404 = tpu.matmul %403, %6, %cst_168 {dimension_numbers = #tpu.dot_dimension_numbers<[1], [0], [0], [1], [0, 0, 1, 1], [], []>} : vector<2x128xbf16>, vector<128x384xbf16>, vector<2x384xf32> -> vector<2x384xf32>
    %405 = arith.addf %404, %22 : vector<2x384xf32>
    %406 = vector.extract_strided_slice %394 {offsets = [0, 0], sizes = [2, 128], strides = [1, 1]} : vector<2x384xf32> to vector<2x128xf32>
    %407 = vector.extract_strided_slice %402 {offsets = [0, 0], sizes = [2, 128], strides = [1, 1]} : vector<2x384xf32> to vector<2x128xf32>
    %408 = arith.addf %406, %407 : vector<2x128xf32>
    %cst_169 = arith.constant 5.000000e-01 : f32
    %409 = vector.broadcast %cst_169 : f32 to vector<2x128xf32>
    %410 = arith.mulf %409, %408 : vector<2x128xf32>
    %411 = math.tanh %410 : vector<2x128xf32>
    %cst_170 = arith.constant 1.000000e+00 : f32
    %412 = vector.broadcast %cst_170 : f32 to vector<2x128xf32>
    %413 = arith.addf %412, %411 : vector<2x128xf32>
    %cst_171 = arith.constant 5.000000e-01 : f32
    %414 = vector.broadcast %cst_171 : f32 to vector<2x128xf32>
    %415 = arith.mulf %414, %413 : vector<2x128xf32>
    %416 = vector.extract_strided_slice %394 {offsets = [0, 128], sizes = [2, 128], strides = [1, 1]} : vector<2x384xf32> to vector<2x128xf32>
    %417 = vector.extract_strided_slice %402 {offsets = [0, 128], sizes = [2, 128], strides = [1, 1]} : vector<2x384xf32> to vector<2x128xf32>
    %418 = arith.addf %416, %417 : vector<2x128xf32>
    %cst_172 = arith.constant 5.000000e-01 : f32
    %419 = vector.broadcast %cst_172 : f32 to vector<2x128xf32>
    %420 = arith.mulf %419, %418 : vector<2x128xf32>
    %421 = math.tanh %420 : vector<2x128xf32>
    %cst_173 = arith.constant 1.000000e+00 : f32
    %422 = vector.broadcast %cst_173 : f32 to vector<2x128xf32>
    %423 = arith.addf %422, %421 : vector<2x128xf32>
    %cst_174 = arith.constant 5.000000e-01 : f32
    %424 = vector.broadcast %cst_174 : f32 to vector<2x128xf32>
    %425 = arith.mulf %424, %423 : vector<2x128xf32>
    %426 = vector.extract_strided_slice %394 {offsets = [0, 256], sizes = [2, 128], strides = [1, 1]} : vector<2x384xf32> to vector<2x128xf32>
    %427 = vector.extract_strided_slice %402 {offsets = [0, 256], sizes = [2, 128], strides = [1, 1]} : vector<2x384xf32> to vector<2x128xf32>
    %428 = arith.mulf %415, %427 : vector<2x128xf32>
    %429 = arith.addf %426, %428 : vector<2x128xf32>
    %430 = math.tanh %429 : vector<2x128xf32>
    %cst_175 = arith.constant 1.000000e+00 : f32
    %431 = vector.broadcast %cst_175 : f32 to vector<2x128xf32>
    %432 = arith.subf %431, %425 : vector<2x128xf32>
    %433 = arith.mulf %432, %430 : vector<2x128xf32>
    %434 = arith.mulf %425, %388 : vector<2x128xf32>
    %435 = arith.addf %433, %434 : vector<2x128xf32>
    %436 = vector.extract_strided_slice %399 {offsets = [0, 0], sizes = [2, 128], strides = [1, 1]} : vector<2x384xf32> to vector<2x128xf32>
    %437 = vector.extract_strided_slice %405 {offsets = [0, 0], sizes = [2, 128], strides = [1, 1]} : vector<2x384xf32> to vector<2x128xf32>
    %438 = arith.addf %436, %437 : vector<2x128xf32>
    %cst_176 = arith.constant 5.000000e-01 : f32
    %439 = vector.broadcast %cst_176 : f32 to vector<2x128xf32>
    %440 = arith.mulf %439, %438 : vector<2x128xf32>
    %441 = math.tanh %440 : vector<2x128xf32>
    %cst_177 = arith.constant 1.000000e+00 : f32
    %442 = vector.broadcast %cst_177 : f32 to vector<2x128xf32>
    %443 = arith.addf %442, %441 : vector<2x128xf32>
    %cst_178 = arith.constant 5.000000e-01 : f32
    %444 = vector.broadcast %cst_178 : f32 to vector<2x128xf32>
    %445 = arith.mulf %444, %443 : vector<2x128xf32>
    %446 = vector.extract_strided_slice %399 {offsets = [0, 128], sizes = [2, 128], strides = [1, 1]} : vector<2x384xf32> to vector<2x128xf32>
    %447 = vector.extract_strided_slice %405 {offsets = [0, 128], sizes = [2, 128], strides = [1, 1]} : vector<2x384xf32> to vector<2x128xf32>
    %448 = arith.addf %446, %447 : vector<2x128xf32>
    %cst_179 = arith.constant 5.000000e-01 : f32
    %449 = vector.broadcast %cst_179 : f32 to vector<2x128xf32>
    %450 = arith.mulf %449, %448 : vector<2x128xf32>
    %451 = math.tanh %450 : vector<2x128xf32>
    %cst_180 = arith.constant 1.000000e+00 : f32
    %452 = vector.broadcast %cst_180 : f32 to vector<2x128xf32>
    %453 = arith.addf %452, %451 : vector<2x128xf32>
    %cst_181 = arith.constant 5.000000e-01 : f32
    %454 = vector.broadcast %cst_181 : f32 to vector<2x128xf32>
    %455 = arith.mulf %454, %453 : vector<2x128xf32>
    %456 = vector.extract_strided_slice %399 {offsets = [0, 256], sizes = [2, 128], strides = [1, 1]} : vector<2x384xf32> to vector<2x128xf32>
    %457 = vector.extract_strided_slice %405 {offsets = [0, 256], sizes = [2, 128], strides = [1, 1]} : vector<2x384xf32> to vector<2x128xf32>
    %458 = arith.mulf %445, %457 : vector<2x128xf32>
    %459 = arith.addf %456, %458 : vector<2x128xf32>
    %460 = math.tanh %459 : vector<2x128xf32>
    %cst_182 = arith.constant 1.000000e+00 : f32
    %461 = vector.broadcast %cst_182 : f32 to vector<2x128xf32>
    %462 = arith.subf %461, %455 : vector<2x128xf32>
    %463 = arith.mulf %462, %460 : vector<2x128xf32>
    %464 = arith.mulf %455, %389 : vector<2x128xf32>
    %465 = arith.addf %463, %464 : vector<2x128xf32>
    %c0_183 = arith.constant 0 : index
    %c0_184 = arith.constant 0 : index
    %466 = vector.load %arg9[%c0_183, %c0_184] : memref<2x128xf32, #tpu.memory_space<vmem>>, vector<2x128xf32>
    tpu.vector_store %arg9[%c0_183, %c0_184], %435 {strides = array<i32>} : memref<2x128xf32, #tpu.memory_space<vmem>>, vector<2x128xf32>,
    %c0_185 = arith.constant 0 : index
    %c0_186 = arith.constant 0 : index
    %467 = vector.load %arg10[%c0_185, %c0_186] : memref<2x128xf32, #tpu.memory_space<vmem>>, vector<2x128xf32>
    tpu.vector_store %arg10[%c0_185, %c0_186], %465 {strides = array<i32>} : memref<2x128xf32, #tpu.memory_space<vmem>>, vector<2x128xf32>,
    %468 = arith.truncf %435 : vector<2x128xf32> to vector<2x128xbf16>
    %469 = arith.index_cast %c4_i32 : i32 to index
    %c0_187 = arith.constant 0 : index
    %c0_188 = arith.constant 0 : index
    %470 = vector.load %arg6[%469, %c0_187, %c0_188] : memref<8x2x128xbf16, #tpu.memory_space<vmem>>, vector<1x2x128xbf16>
    %471 = vector.shape_cast %470 : vector<1x2x128xbf16> to vector<2x128xbf16>
    %472 = vector.shape_cast %468 : vector<2x128xbf16> to vector<1x2x128xbf16>
    tpu.vector_store %arg6[%469, %c0_187, %c0_188], %472 {strides = array<i32>} : memref<8x2x128xbf16, #tpu.memory_space<vmem>>, vector<1x2x128xbf16>,
    %473 = arith.truncf %465 : vector<2x128xf32> to vector<2x128xbf16>
    %474 = arith.index_cast %387 : i32 to index
    %c0_189 = arith.constant 0 : index
    %c0_190 = arith.constant 0 : index
    %475 = vector.load %arg7[%474, %c0_189, %c0_190] : memref<8x2x128xbf16, #tpu.memory_space<vmem>>, vector<1x2x128xbf16>
    %476 = vector.shape_cast %475 : vector<1x2x128xbf16> to vector<2x128xbf16>
    %477 = vector.shape_cast %473 : vector<2x128xbf16> to vector<1x2x128xbf16>
    tpu.vector_store %arg7[%474, %c0_189, %c0_190], %477 {strides = array<i32>} : memref<8x2x128xbf16, #tpu.memory_space<vmem>>, vector<1x2x128xbf16>,
    %c5_i32 = arith.constant 5 : i32
    %c7_i32_191 = arith.constant 7 : i32
    %478 = arith.subi %c7_i32_191, %c5_i32 : i32
    %c0_192 = arith.constant 0 : index
    %c0_193 = arith.constant 0 : index
    %479 = vector.load %arg9[%c0_192, %c0_193] : memref<2x128xf32, #tpu.memory_space<vmem>>, vector<2x128xf32>
    %c0_194 = arith.constant 0 : index
    %c0_195 = arith.constant 0 : index
    %480 = vector.load %arg10[%c0_194, %c0_195] : memref<2x128xf32, #tpu.memory_space<vmem>>, vector<2x128xf32>
    %c0_196 = arith.constant 0 : index
    %481 = arith.index_cast %c5_i32 : i32 to index
    %c0_197 = arith.constant 0 : index
    %c0_198 = arith.constant 0 : index
    %482 = vector.load %arg1[%c0_196, %481, %c0_197, %c0_198] : memref<1x8x2x384xbf16, #tpu.memory_space<vmem>>, vector<1x1x2x384xbf16>
    %483 = vector.shape_cast %482 : vector<1x1x2x384xbf16> to vector<2x384xbf16>
    %484 = arith.extf %483 : vector<2x384xbf16> to vector<2x384xf32>
    %485 = arith.addf %484, %10 : vector<2x384xf32>
    %c0_199 = arith.constant 0 : index
    %486 = arith.index_cast %478 : i32 to index
    %c0_200 = arith.constant 0 : index
    %c0_201 = arith.constant 0 : index
    %487 = vector.load %arg2[%c0_199, %486, %c0_200, %c0_201] : memref<1x8x2x384xbf16, #tpu.memory_space<vmem>>, vector<1x1x2x384xbf16>
    %488 = vector.shape_cast %487 : vector<1x1x2x384xbf16> to vector<2x384xbf16>
    %489 = arith.extf %488 : vector<2x384xbf16> to vector<2x384xf32>
    %490 = arith.addf %489, %14 : vector<2x384xf32>
    %491 = arith.truncf %479 : vector<2x128xf32> to vector<2x128xbf16>
    %cst_202 = arith.constant dense<0.000000e+00> : vector<2x384xf32>
    %492 = tpu.matmul %491, %4, %cst_202 {dimension_numbers = #tpu.dot_dimension_numbers<[1], [0], [0], [1], [0, 0, 1, 1], [], []>} : vector<2x128xbf16>, vector<128x384xbf16>, vector<2x384xf32> -> vector<2x384xf32>
    %493 = arith.addf %492, %18 : vector<2x384xf32>
    %494 = arith.truncf %480 : vector<2x128xf32> to vector<2x128xbf16>
    %cst_203 = arith.constant dense<0.000000e+00> : vector<2x384xf32>
    %495 = tpu.matmul %494, %6, %cst_203 {dimension_numbers = #tpu.dot_dimension_numbers<[1], [0], [0], [1], [0, 0, 1, 1], [], []>} : vector<2x128xbf16>, vector<128x384xbf16>, vector<2x384xf32> -> vector<2x384xf32>
    %496 = arith.addf %495, %22 : vector<2x384xf32>
    %497 = vector.extract_strided_slice %485 {offsets = [0, 0], sizes = [2, 128], strides = [1, 1]} : vector<2x384xf32> to vector<2x128xf32>
    %498 = vector.extract_strided_slice %493 {offsets = [0, 0], sizes = [2, 128], strides = [1, 1]} : vector<2x384xf32> to vector<2x128xf32>
    %499 = arith.addf %497, %498 : vector<2x128xf32>
    %cst_204 = arith.constant 5.000000e-01 : f32
    %500 = vector.broadcast %cst_204 : f32 to vector<2x128xf32>
    %501 = arith.mulf %500, %499 : vector<2x128xf32>
    %502 = math.tanh %501 : vector<2x128xf32>
    %cst_205 = arith.constant 1.000000e+00 : f32
    %503 = vector.broadcast %cst_205 : f32 to vector<2x128xf32>
    %504 = arith.addf %503, %502 : vector<2x128xf32>
    %cst_206 = arith.constant 5.000000e-01 : f32
    %505 = vector.broadcast %cst_206 : f32 to vector<2x128xf32>
    %506 = arith.mulf %505, %504 : vector<2x128xf32>
    %507 = vector.extract_strided_slice %485 {offsets = [0, 128], sizes = [2, 128], strides = [1, 1]} : vector<2x384xf32> to vector<2x128xf32>
    %508 = vector.extract_strided_slice %493 {offsets = [0, 128], sizes = [2, 128], strides = [1, 1]} : vector<2x384xf32> to vector<2x128xf32>
    %509 = arith.addf %507, %508 : vector<2x128xf32>
    %cst_207 = arith.constant 5.000000e-01 : f32
    %510 = vector.broadcast %cst_207 : f32 to vector<2x128xf32>
    %511 = arith.mulf %510, %509 : vector<2x128xf32>
    %512 = math.tanh %511 : vector<2x128xf32>
    %cst_208 = arith.constant 1.000000e+00 : f32
    %513 = vector.broadcast %cst_208 : f32 to vector<2x128xf32>
    %514 = arith.addf %513, %512 : vector<2x128xf32>
    %cst_209 = arith.constant 5.000000e-01 : f32
    %515 = vector.broadcast %cst_209 : f32 to vector<2x128xf32>
    %516 = arith.mulf %515, %514 : vector<2x128xf32>
    %517 = vector.extract_strided_slice %485 {offsets = [0, 256], sizes = [2, 128], strides = [1, 1]} : vector<2x384xf32> to vector<2x128xf32>
    %518 = vector.extract_strided_slice %493 {offsets = [0, 256], sizes = [2, 128], strides = [1, 1]} : vector<2x384xf32> to vector<2x128xf32>
    %519 = arith.mulf %506, %518 : vector<2x128xf32>
    %520 = arith.addf %517, %519 : vector<2x128xf32>
    %521 = math.tanh %520 : vector<2x128xf32>
    %cst_210 = arith.constant 1.000000e+00 : f32
    %522 = vector.broadcast %cst_210 : f32 to vector<2x128xf32>
    %523 = arith.subf %522, %516 : vector<2x128xf32>
    %524 = arith.mulf %523, %521 : vector<2x128xf32>
    %525 = arith.mulf %516, %479 : vector<2x128xf32>
    %526 = arith.addf %524, %525 : vector<2x128xf32>
    %527 = vector.extract_strided_slice %490 {offsets = [0, 0], sizes = [2, 128], strides = [1, 1]} : vector<2x384xf32> to vector<2x128xf32>
    %528 = vector.extract_strided_slice %496 {offsets = [0, 0], sizes = [2, 128], strides = [1, 1]} : vector<2x384xf32> to vector<2x128xf32>
    %529 = arith.addf %527, %528 : vector<2x128xf32>
    %cst_211 = arith.constant 5.000000e-01 : f32
    %530 = vector.broadcast %cst_211 : f32 to vector<2x128xf32>
    %531 = arith.mulf %530, %529 : vector<2x128xf32>
    %532 = math.tanh %531 : vector<2x128xf32>
    %cst_212 = arith.constant 1.000000e+00 : f32
    %533 = vector.broadcast %cst_212 : f32 to vector<2x128xf32>
    %534 = arith.addf %533, %532 : vector<2x128xf32>
    %cst_213 = arith.constant 5.000000e-01 : f32
    %535 = vector.broadcast %cst_213 : f32 to vector<2x128xf32>
    %536 = arith.mulf %535, %534 : vector<2x128xf32>
    %537 = vector.extract_strided_slice %490 {offsets = [0, 128], sizes = [2, 128], strides = [1, 1]} : vector<2x384xf32> to vector<2x128xf32>
    %538 = vector.extract_strided_slice %496 {offsets = [0, 128], sizes = [2, 128], strides = [1, 1]} : vector<2x384xf32> to vector<2x128xf32>
    %539 = arith.addf %537, %538 : vector<2x128xf32>
    %cst_214 = arith.constant 5.000000e-01 : f32
    %540 = vector.broadcast %cst_214 : f32 to vector<2x128xf32>
    %541 = arith.mulf %540, %539 : vector<2x128xf32>
    %542 = math.tanh %541 : vector<2x128xf32>
    %cst_215 = arith.constant 1.000000e+00 : f32
    %543 = vector.broadcast %cst_215 : f32 to vector<2x128xf32>
    %544 = arith.addf %543, %542 : vector<2x128xf32>
    %cst_216 = arith.constant 5.000000e-01 : f32
    %545 = vector.broadcast %cst_216 : f32 to vector<2x128xf32>
    %546 = arith.mulf %545, %544 : vector<2x128xf32>
    %547 = vector.extract_strided_slice %490 {offsets = [0, 256], sizes = [2, 128], strides = [1, 1]} : vector<2x384xf32> to vector<2x128xf32>
    %548 = vector.extract_strided_slice %496 {offsets = [0, 256], sizes = [2, 128], strides = [1, 1]} : vector<2x384xf32> to vector<2x128xf32>
    %549 = arith.mulf %536, %548 : vector<2x128xf32>
    %550 = arith.addf %547, %549 : vector<2x128xf32>
    %551 = math.tanh %550 : vector<2x128xf32>
    %cst_217 = arith.constant 1.000000e+00 : f32
    %552 = vector.broadcast %cst_217 : f32 to vector<2x128xf32>
    %553 = arith.subf %552, %546 : vector<2x128xf32>
    %554 = arith.mulf %553, %551 : vector<2x128xf32>
    %555 = arith.mulf %546, %480 : vector<2x128xf32>
    %556 = arith.addf %554, %555 : vector<2x128xf32>
    %c0_218 = arith.constant 0 : index
    %c0_219 = arith.constant 0 : index
    %557 = vector.load %arg9[%c0_218, %c0_219] : memref<2x128xf32, #tpu.memory_space<vmem>>, vector<2x128xf32>
    tpu.vector_store %arg9[%c0_218, %c0_219], %526 {strides = array<i32>} : memref<2x128xf32, #tpu.memory_space<vmem>>, vector<2x128xf32>,
    %c0_220 = arith.constant 0 : index
    %c0_221 = arith.constant 0 : index
    %558 = vector.load %arg10[%c0_220, %c0_221] : memref<2x128xf32, #tpu.memory_space<vmem>>, vector<2x128xf32>
    tpu.vector_store %arg10[%c0_220, %c0_221], %556 {strides = array<i32>} : memref<2x128xf32, #tpu.memory_space<vmem>>, vector<2x128xf32>,
    %559 = arith.truncf %526 : vector<2x128xf32> to vector<2x128xbf16>
    %560 = arith.index_cast %c5_i32 : i32 to index
    %c0_222 = arith.constant 0 : index
    %c0_223 = arith.constant 0 : index
    %561 = vector.load %arg6[%560, %c0_222, %c0_223] : memref<8x2x128xbf16, #tpu.memory_space<vmem>>, vector<1x2x128xbf16>
    %562 = vector.shape_cast %561 : vector<1x2x128xbf16> to vector<2x128xbf16>
    %563 = vector.shape_cast %559 : vector<2x128xbf16> to vector<1x2x128xbf16>
    tpu.vector_store %arg6[%560, %c0_222, %c0_223], %563 {strides = array<i32>} : memref<8x2x128xbf16, #tpu.memory_space<vmem>>, vector<1x2x128xbf16>,
    %564 = arith.truncf %556 : vector<2x128xf32> to vector<2x128xbf16>
    %565 = arith.index_cast %478 : i32 to index
    %c0_224 = arith.constant 0 : index
    %c0_225 = arith.constant 0 : index
    %566 = vector.load %arg7[%565, %c0_224, %c0_225] : memref<8x2x128xbf16, #tpu.memory_space<vmem>>, vector<1x2x128xbf16>
    %567 = vector.shape_cast %566 : vector<1x2x128xbf16> to vector<2x128xbf16>
    %568 = vector.shape_cast %564 : vector<2x128xbf16> to vector<1x2x128xbf16>
    tpu.vector_store %arg7[%565, %c0_224, %c0_225], %568 {strides = array<i32>} : memref<8x2x128xbf16, #tpu.memory_space<vmem>>, vector<1x2x128xbf16>,
    %c6_i32 = arith.constant 6 : i32
    %c7_i32_226 = arith.constant 7 : i32
    %569 = arith.subi %c7_i32_226, %c6_i32 : i32
    %c0_227 = arith.constant 0 : index
    %c0_228 = arith.constant 0 : index
    %570 = vector.load %arg9[%c0_227, %c0_228] : memref<2x128xf32, #tpu.memory_space<vmem>>, vector<2x128xf32>
    %c0_229 = arith.constant 0 : index
    %c0_230 = arith.constant 0 : index
    %571 = vector.load %arg10[%c0_229, %c0_230] : memref<2x128xf32, #tpu.memory_space<vmem>>, vector<2x128xf32>
    %c0_231 = arith.constant 0 : index
    %572 = arith.index_cast %c6_i32 : i32 to index
    %c0_232 = arith.constant 0 : index
    %c0_233 = arith.constant 0 : index
    %573 = vector.load %arg1[%c0_231, %572, %c0_232, %c0_233] : memref<1x8x2x384xbf16, #tpu.memory_space<vmem>>, vector<1x1x2x384xbf16>
    %574 = vector.shape_cast %573 : vector<1x1x2x384xbf16> to vector<2x384xbf16>
    %575 = arith.extf %574 : vector<2x384xbf16> to vector<2x384xf32>
    %576 = arith.addf %575, %10 : vector<2x384xf32>
    %c0_234 = arith.constant 0 : index
    %577 = arith.index_cast %569 : i32 to index
    %c0_235 = arith.constant 0 : index
    %c0_236 = arith.constant 0 : index
    %578 = vector.load %arg2[%c0_234, %577, %c0_235, %c0_236] : memref<1x8x2x384xbf16, #tpu.memory_space<vmem>>, vector<1x1x2x384xbf16>
    %579 = vector.shape_cast %578 : vector<1x1x2x384xbf16> to vector<2x384xbf16>
    %580 = arith.extf %579 : vector<2x384xbf16> to vector<2x384xf32>
    %581 = arith.addf %580, %14 : vector<2x384xf32>
    %582 = arith.truncf %570 : vector<2x128xf32> to vector<2x128xbf16>
    %cst_237 = arith.constant dense<0.000000e+00> : vector<2x384xf32>
    %583 = tpu.matmul %582, %4, %cst_237 {dimension_numbers = #tpu.dot_dimension_numbers<[1], [0], [0], [1], [0, 0, 1, 1], [], []>} : vector<2x128xbf16>, vector<128x384xbf16>, vector<2x384xf32> -> vector<2x384xf32>
    %584 = arith.addf %583, %18 : vector<2x384xf32>
    %585 = arith.truncf %571 : vector<2x128xf32> to vector<2x128xbf16>
    %cst_238 = arith.constant dense<0.000000e+00> : vector<2x384xf32>
    %586 = tpu.matmul %585, %6, %cst_238 {dimension_numbers = #tpu.dot_dimension_numbers<[1], [0], [0], [1], [0, 0, 1, 1], [], []>} : vector<2x128xbf16>, vector<128x384xbf16>, vector<2x384xf32> -> vector<2x384xf32>
    %587 = arith.addf %586, %22 : vector<2x384xf32>
    %588 = vector.extract_strided_slice %576 {offsets = [0, 0], sizes = [2, 128], strides = [1, 1]} : vector<2x384xf32> to vector<2x128xf32>
    %589 = vector.extract_strided_slice %584 {offsets = [0, 0], sizes = [2, 128], strides = [1, 1]} : vector<2x384xf32> to vector<2x128xf32>
    %590 = arith.addf %588, %589 : vector<2x128xf32>
    %cst_239 = arith.constant 5.000000e-01 : f32
    %591 = vector.broadcast %cst_239 : f32 to vector<2x128xf32>
    %592 = arith.mulf %591, %590 : vector<2x128xf32>
    %593 = math.tanh %592 : vector<2x128xf32>
    %cst_240 = arith.constant 1.000000e+00 : f32
    %594 = vector.broadcast %cst_240 : f32 to vector<2x128xf32>
    %595 = arith.addf %594, %593 : vector<2x128xf32>
    %cst_241 = arith.constant 5.000000e-01 : f32
    %596 = vector.broadcast %cst_241 : f32 to vector<2x128xf32>
    %597 = arith.mulf %596, %595 : vector<2x128xf32>
    %598 = vector.extract_strided_slice %576 {offsets = [0, 128], sizes = [2, 128], strides = [1, 1]} : vector<2x384xf32> to vector<2x128xf32>
    %599 = vector.extract_strided_slice %584 {offsets = [0, 128], sizes = [2, 128], strides = [1, 1]} : vector<2x384xf32> to vector<2x128xf32>
    %600 = arith.addf %598, %599 : vector<2x128xf32>
    %cst_242 = arith.constant 5.000000e-01 : f32
    %601 = vector.broadcast %cst_242 : f32 to vector<2x128xf32>
    %602 = arith.mulf %601, %600 : vector<2x128xf32>
    %603 = math.tanh %602 : vector<2x128xf32>
    %cst_243 = arith.constant 1.000000e+00 : f32
    %604 = vector.broadcast %cst_243 : f32 to vector<2x128xf32>
    %605 = arith.addf %604, %603 : vector<2x128xf32>
    %cst_244 = arith.constant 5.000000e-01 : f32
    %606 = vector.broadcast %cst_244 : f32 to vector<2x128xf32>
    %607 = arith.mulf %606, %605 : vector<2x128xf32>
    %608 = vector.extract_strided_slice %576 {offsets = [0, 256], sizes = [2, 128], strides = [1, 1]} : vector<2x384xf32> to vector<2x128xf32>
    %609 = vector.extract_strided_slice %584 {offsets = [0, 256], sizes = [2, 128], strides = [1, 1]} : vector<2x384xf32> to vector<2x128xf32>
    %610 = arith.mulf %597, %609 : vector<2x128xf32>
    %611 = arith.addf %608, %610 : vector<2x128xf32>
    %612 = math.tanh %611 : vector<2x128xf32>
    %cst_245 = arith.constant 1.000000e+00 : f32
    %613 = vector.broadcast %cst_245 : f32 to vector<2x128xf32>
    %614 = arith.subf %613, %607 : vector<2x128xf32>
    %615 = arith.mulf %614, %612 : vector<2x128xf32>
    %616 = arith.mulf %607, %570 : vector<2x128xf32>
    %617 = arith.addf %615, %616 : vector<2x128xf32>
    %618 = vector.extract_strided_slice %581 {offsets = [0, 0], sizes = [2, 128], strides = [1, 1]} : vector<2x384xf32> to vector<2x128xf32>
    %619 = vector.extract_strided_slice %587 {offsets = [0, 0], sizes = [2, 128], strides = [1, 1]} : vector<2x384xf32> to vector<2x128xf32>
    %620 = arith.addf %618, %619 : vector<2x128xf32>
    %cst_246 = arith.constant 5.000000e-01 : f32
    %621 = vector.broadcast %cst_246 : f32 to vector<2x128xf32>
    %622 = arith.mulf %621, %620 : vector<2x128xf32>
    %623 = math.tanh %622 : vector<2x128xf32>
    %cst_247 = arith.constant 1.000000e+00 : f32
    %624 = vector.broadcast %cst_247 : f32 to vector<2x128xf32>
    %625 = arith.addf %624, %623 : vector<2x128xf32>
    %cst_248 = arith.constant 5.000000e-01 : f32
    %626 = vector.broadcast %cst_248 : f32 to vector<2x128xf32>
    %627 = arith.mulf %626, %625 : vector<2x128xf32>
    %628 = vector.extract_strided_slice %581 {offsets = [0, 128], sizes = [2, 128], strides = [1, 1]} : vector<2x384xf32> to vector<2x128xf32>
    %629 = vector.extract_strided_slice %587 {offsets = [0, 128], sizes = [2, 128], strides = [1, 1]} : vector<2x384xf32> to vector<2x128xf32>
    %630 = arith.addf %628, %629 : vector<2x128xf32>
    %cst_249 = arith.constant 5.000000e-01 : f32
    %631 = vector.broadcast %cst_249 : f32 to vector<2x128xf32>
    %632 = arith.mulf %631, %630 : vector<2x128xf32>
    %633 = math.tanh %632 : vector<2x128xf32>
    %cst_250 = arith.constant 1.000000e+00 : f32
    %634 = vector.broadcast %cst_250 : f32 to vector<2x128xf32>
    %635 = arith.addf %634, %633 : vector<2x128xf32>
    %cst_251 = arith.constant 5.000000e-01 : f32
    %636 = vector.broadcast %cst_251 : f32 to vector<2x128xf32>
    %637 = arith.mulf %636, %635 : vector<2x128xf32>
    %638 = vector.extract_strided_slice %581 {offsets = [0, 256], sizes = [2, 128], strides = [1, 1]} : vector<2x384xf32> to vector<2x128xf32>
    %639 = vector.extract_strided_slice %587 {offsets = [0, 256], sizes = [2, 128], strides = [1, 1]} : vector<2x384xf32> to vector<2x128xf32>
    %640 = arith.mulf %627, %639 : vector<2x128xf32>
    %641 = arith.addf %638, %640 : vector<2x128xf32>
    %642 = math.tanh %641 : vector<2x128xf32>
    %cst_252 = arith.constant 1.000000e+00 : f32
    %643 = vector.broadcast %cst_252 : f32 to vector<2x128xf32>
    %644 = arith.subf %643, %637 : vector<2x128xf32>
    %645 = arith.mulf %644, %642 : vector<2x128xf32>
    %646 = arith.mulf %637, %571 : vector<2x128xf32>
    %647 = arith.addf %645, %646 : vector<2x128xf32>
    %c0_253 = arith.constant 0 : index
    %c0_254 = arith.constant 0 : index
    %648 = vector.load %arg9[%c0_253, %c0_254] : memref<2x128xf32, #tpu.memory_space<vmem>>, vector<2x128xf32>
    tpu.vector_store %arg9[%c0_253, %c0_254], %617 {strides = array<i32>} : memref<2x128xf32, #tpu.memory_space<vmem>>, vector<2x128xf32>,
    %c0_255 = arith.constant 0 : index
    %c0_256 = arith.constant 0 : index
    %649 = vector.load %arg10[%c0_255, %c0_256] : memref<2x128xf32, #tpu.memory_space<vmem>>, vector<2x128xf32>
    tpu.vector_store %arg10[%c0_255, %c0_256], %647 {strides = array<i32>} : memref<2x128xf32, #tpu.memory_space<vmem>>, vector<2x128xf32>,
    %650 = arith.truncf %617 : vector<2x128xf32> to vector<2x128xbf16>
    %651 = arith.index_cast %c6_i32 : i32 to index
    %c0_257 = arith.constant 0 : index
    %c0_258 = arith.constant 0 : index
    %652 = vector.load %arg6[%651, %c0_257, %c0_258] : memref<8x2x128xbf16, #tpu.memory_space<vmem>>, vector<1x2x128xbf16>
    %653 = vector.shape_cast %652 : vector<1x2x128xbf16> to vector<2x128xbf16>
    %654 = vector.shape_cast %650 : vector<2x128xbf16> to vector<1x2x128xbf16>
    tpu.vector_store %arg6[%651, %c0_257, %c0_258], %654 {strides = array<i32>} : memref<8x2x128xbf16, #tpu.memory_space<vmem>>, vector<1x2x128xbf16>,
    %655 = arith.truncf %647 : vector<2x128xf32> to vector<2x128xbf16>
    %656 = arith.index_cast %569 : i32 to index
    %c0_259 = arith.constant 0 : index
    %c0_260 = arith.constant 0 : index
    %657 = vector.load %arg7[%656, %c0_259, %c0_260] : memref<8x2x128xbf16, #tpu.memory_space<vmem>>, vector<1x2x128xbf16>
    %658 = vector.shape_cast %657 : vector<1x2x128xbf16> to vector<2x128xbf16>
    %659 = vector.shape_cast %655 : vector<2x128xbf16> to vector<1x2x128xbf16>
    tpu.vector_store %arg7[%656, %c0_259, %c0_260], %659 {strides = array<i32>} : memref<8x2x128xbf16, #tpu.memory_space<vmem>>, vector<1x2x128xbf16>,
    %c7_i32_261 = arith.constant 7 : i32
    %c7_i32_262 = arith.constant 7 : i32
    %660 = arith.subi %c7_i32_262, %c7_i32_261 : i32
    %c0_263 = arith.constant 0 : index
    %c0_264 = arith.constant 0 : index
    %661 = vector.load %arg9[%c0_263, %c0_264] : memref<2x128xf32, #tpu.memory_space<vmem>>, vector<2x128xf32>
    %c0_265 = arith.constant 0 : index
    %c0_266 = arith.constant 0 : index
    %662 = vector.load %arg10[%c0_265, %c0_266] : memref<2x128xf32, #tpu.memory_space<vmem>>, vector<2x128xf32>
    %c0_267 = arith.constant 0 : index
    %663 = arith.index_cast %c7_i32_261 : i32 to index
    %c0_268 = arith.constant 0 : index
    %c0_269 = arith.constant 0 : index
    %664 = vector.load %arg1[%c0_267, %663, %c0_268, %c0_269] : memref<1x8x2x384xbf16, #tpu.memory_space<vmem>>, vector<1x1x2x384xbf16>
    %665 = vector.shape_cast %664 : vector<1x1x2x384xbf16> to vector<2x384xbf16>
    %666 = arith.extf %665 : vector<2x384xbf16> to vector<2x384xf32>
    %667 = arith.addf %666, %10 : vector<2x384xf32>
    %c0_270 = arith.constant 0 : index
    %668 = arith.index_cast %660 : i32 to index
    %c0_271 = arith.constant 0 : index
    %c0_272 = arith.constant 0 : index
    %669 = vector.load %arg2[%c0_270, %668, %c0_271, %c0_272] : memref<1x8x2x384xbf16, #tpu.memory_space<vmem>>, vector<1x1x2x384xbf16>
    %670 = vector.shape_cast %669 : vector<1x1x2x384xbf16> to vector<2x384xbf16>
    %671 = arith.extf %670 : vector<2x384xbf16> to vector<2x384xf32>
    %672 = arith.addf %671, %14 : vector<2x384xf32>
    %673 = arith.truncf %661 : vector<2x128xf32> to vector<2x128xbf16>
    %cst_273 = arith.constant dense<0.000000e+00> : vector<2x384xf32>
    %674 = tpu.matmul %673, %4, %cst_273 {dimension_numbers = #tpu.dot_dimension_numbers<[1], [0], [0], [1], [0, 0, 1, 1], [], []>} : vector<2x128xbf16>, vector<128x384xbf16>, vector<2x384xf32> -> vector<2x384xf32>
    %675 = arith.addf %674, %18 : vector<2x384xf32>
    %676 = arith.truncf %662 : vector<2x128xf32> to vector<2x128xbf16>
    %cst_274 = arith.constant dense<0.000000e+00> : vector<2x384xf32>
    %677 = tpu.matmul %676, %6, %cst_274 {dimension_numbers = #tpu.dot_dimension_numbers<[1], [0], [0], [1], [0, 0, 1, 1], [], []>} : vector<2x128xbf16>, vector<128x384xbf16>, vector<2x384xf32> -> vector<2x384xf32>
    %678 = arith.addf %677, %22 : vector<2x384xf32>
    %679 = vector.extract_strided_slice %667 {offsets = [0, 0], sizes = [2, 128], strides = [1, 1]} : vector<2x384xf32> to vector<2x128xf32>
    %680 = vector.extract_strided_slice %675 {offsets = [0, 0], sizes = [2, 128], strides = [1, 1]} : vector<2x384xf32> to vector<2x128xf32>
    %681 = arith.addf %679, %680 : vector<2x128xf32>
    %cst_275 = arith.constant 5.000000e-01 : f32
    %682 = vector.broadcast %cst_275 : f32 to vector<2x128xf32>
    %683 = arith.mulf %682, %681 : vector<2x128xf32>
    %684 = math.tanh %683 : vector<2x128xf32>
    %cst_276 = arith.constant 1.000000e+00 : f32
    %685 = vector.broadcast %cst_276 : f32 to vector<2x128xf32>
    %686 = arith.addf %685, %684 : vector<2x128xf32>
    %cst_277 = arith.constant 5.000000e-01 : f32
    %687 = vector.broadcast %cst_277 : f32 to vector<2x128xf32>
    %688 = arith.mulf %687, %686 : vector<2x128xf32>
    %689 = vector.extract_strided_slice %667 {offsets = [0, 128], sizes = [2, 128], strides = [1, 1]} : vector<2x384xf32> to vector<2x128xf32>
    %690 = vector.extract_strided_slice %675 {offsets = [0, 128], sizes = [2, 128], strides = [1, 1]} : vector<2x384xf32> to vector<2x128xf32>
    %691 = arith.addf %689, %690 : vector<2x128xf32>
    %cst_278 = arith.constant 5.000000e-01 : f32
    %692 = vector.broadcast %cst_278 : f32 to vector<2x128xf32>
    %693 = arith.mulf %692, %691 : vector<2x128xf32>
    %694 = math.tanh %693 : vector<2x128xf32>
    %cst_279 = arith.constant 1.000000e+00 : f32
    %695 = vector.broadcast %cst_279 : f32 to vector<2x128xf32>
    %696 = arith.addf %695, %694 : vector<2x128xf32>
    %cst_280 = arith.constant 5.000000e-01 : f32
    %697 = vector.broadcast %cst_280 : f32 to vector<2x128xf32>
    %698 = arith.mulf %697, %696 : vector<2x128xf32>
    %699 = vector.extract_strided_slice %667 {offsets = [0, 256], sizes = [2, 128], strides = [1, 1]} : vector<2x384xf32> to vector<2x128xf32>
    %700 = vector.extract_strided_slice %675 {offsets = [0, 256], sizes = [2, 128], strides = [1, 1]} : vector<2x384xf32> to vector<2x128xf32>
    %701 = arith.mulf %688, %700 : vector<2x128xf32>
    %702 = arith.addf %699, %701 : vector<2x128xf32>
    %703 = math.tanh %702 : vector<2x128xf32>
    %cst_281 = arith.constant 1.000000e+00 : f32
    %704 = vector.broadcast %cst_281 : f32 to vector<2x128xf32>
    %705 = arith.subf %704, %698 : vector<2x128xf32>
    %706 = arith.mulf %705, %703 : vector<2x128xf32>
    %707 = arith.mulf %698, %661 : vector<2x128xf32>
    %708 = arith.addf %706, %707 : vector<2x128xf32>
    %709 = vector.extract_strided_slice %672 {offsets = [0, 0], sizes = [2, 128], strides = [1, 1]} : vector<2x384xf32> to vector<2x128xf32>
    %710 = vector.extract_strided_slice %678 {offsets = [0, 0], sizes = [2, 128], strides = [1, 1]} : vector<2x384xf32> to vector<2x128xf32>
    %711 = arith.addf %709, %710 : vector<2x128xf32>
    %cst_282 = arith.constant 5.000000e-01 : f32
    %712 = vector.broadcast %cst_282 : f32 to vector<2x128xf32>
    %713 = arith.mulf %712, %711 : vector<2x128xf32>
    %714 = math.tanh %713 : vector<2x128xf32>
    %cst_283 = arith.constant 1.000000e+00 : f32
    %715 = vector.broadcast %cst_283 : f32 to vector<2x128xf32>
    %716 = arith.addf %715, %714 : vector<2x128xf32>
    %cst_284 = arith.constant 5.000000e-01 : f32
    %717 = vector.broadcast %cst_284 : f32 to vector<2x128xf32>
    %718 = arith.mulf %717, %716 : vector<2x128xf32>
    %719 = vector.extract_strided_slice %672 {offsets = [0, 128], sizes = [2, 128], strides = [1, 1]} : vector<2x384xf32> to vector<2x128xf32>
    %720 = vector.extract_strided_slice %678 {offsets = [0, 128], sizes = [2, 128], strides = [1, 1]} : vector<2x384xf32> to vector<2x128xf32>
    %721 = arith.addf %719, %720 : vector<2x128xf32>
    %cst_285 = arith.constant 5.000000e-01 : f32
    %722 = vector.broadcast %cst_285 : f32 to vector<2x128xf32>
    %723 = arith.mulf %722, %721 : vector<2x128xf32>
    %724 = math.tanh %723 : vector<2x128xf32>
    %cst_286 = arith.constant 1.000000e+00 : f32
    %725 = vector.broadcast %cst_286 : f32 to vector<2x128xf32>
    %726 = arith.addf %725, %724 : vector<2x128xf32>
    %cst_287 = arith.constant 5.000000e-01 : f32
    %727 = vector.broadcast %cst_287 : f32 to vector<2x128xf32>
    %728 = arith.mulf %727, %726 : vector<2x128xf32>
    %729 = vector.extract_strided_slice %672 {offsets = [0, 256], sizes = [2, 128], strides = [1, 1]} : vector<2x384xf32> to vector<2x128xf32>
    %730 = vector.extract_strided_slice %678 {offsets = [0, 256], sizes = [2, 128], strides = [1, 1]} : vector<2x384xf32> to vector<2x128xf32>
    %731 = arith.mulf %718, %730 : vector<2x128xf32>
    %732 = arith.addf %729, %731 : vector<2x128xf32>
    %733 = math.tanh %732 : vector<2x128xf32>
    %cst_288 = arith.constant 1.000000e+00 : f32
    %734 = vector.broadcast %cst_288 : f32 to vector<2x128xf32>
    %735 = arith.subf %734, %728 : vector<2x128xf32>
    %736 = arith.mulf %735, %733 : vector<2x128xf32>
    %737 = arith.mulf %728, %662 : vector<2x128xf32>
    %738 = arith.addf %736, %737 : vector<2x128xf32>
    %c0_289 = arith.constant 0 : index
    %c0_290 = arith.constant 0 : index
    %739 = vector.load %arg9[%c0_289, %c0_290] : memref<2x128xf32, #tpu.memory_space<vmem>>, vector<2x128xf32>
    tpu.vector_store %arg9[%c0_289, %c0_290], %708 {strides = array<i32>} : memref<2x128xf32, #tpu.memory_space<vmem>>, vector<2x128xf32>,
    %c0_291 = arith.constant 0 : index
    %c0_292 = arith.constant 0 : index
    %740 = vector.load %arg10[%c0_291, %c0_292] : memref<2x128xf32, #tpu.memory_space<vmem>>, vector<2x128xf32>
    tpu.vector_store %arg10[%c0_291, %c0_292], %738 {strides = array<i32>} : memref<2x128xf32, #tpu.memory_space<vmem>>, vector<2x128xf32>,
    %741 = arith.truncf %708 : vector<2x128xf32> to vector<2x128xbf16>
    %742 = arith.index_cast %c7_i32_261 : i32 to index
    %c0_293 = arith.constant 0 : index
    %c0_294 = arith.constant 0 : index
    %743 = vector.load %arg6[%742, %c0_293, %c0_294] : memref<8x2x128xbf16, #tpu.memory_space<vmem>>, vector<1x2x128xbf16>
    %744 = vector.shape_cast %743 : vector<1x2x128xbf16> to vector<2x128xbf16>
    %745 = vector.shape_cast %741 : vector<2x128xbf16> to vector<1x2x128xbf16>
    tpu.vector_store %arg6[%742, %c0_293, %c0_294], %745 {strides = array<i32>} : memref<8x2x128xbf16, #tpu.memory_space<vmem>>, vector<1x2x128xbf16>,
    %746 = arith.truncf %738 : vector<2x128xf32> to vector<2x128xbf16>
    %747 = arith.index_cast %660 : i32 to index
    %c0_295 = arith.constant 0 : index
    %c0_296 = arith.constant 0 : index
    %748 = vector.load %arg7[%747, %c0_295, %c0_296] : memref<8x2x128xbf16, #tpu.memory_space<vmem>>, vector<1x2x128xbf16>
    %749 = vector.shape_cast %748 : vector<1x2x128xbf16> to vector<2x128xbf16>
    %750 = vector.shape_cast %746 : vector<2x128xbf16> to vector<1x2x128xbf16>
    tpu.vector_store %arg7[%747, %c0_295, %c0_296], %750 {strides = array<i32>} : memref<8x2x128xbf16, #tpu.memory_space<vmem>>, vector<1x2x128xbf16>,
    %c8_i32 = arith.constant 8 : i32
    %c0_297 = arith.constant 0 : index
    %c0_298 = arith.constant 0 : index
    %751 = vector.load %arg9[%c0_297, %c0_298] : memref<2x128xf32, #tpu.memory_space<vmem>>, vector<2x128xf32>
    %c0_299 = arith.constant 0 : index
    %c0_300 = arith.constant 0 : index
    %c0_301 = arith.constant 0 : index
    %752 = vector.load %arg8[%c0_299, %c0_300, %c0_301] : memref<2x2x128xf32, #tpu.memory_space<vmem>>, vector<1x2x128xf32>
    %753 = vector.shape_cast %752 : vector<1x2x128xf32> to vector<2x128xf32>
    %754 = vector.shape_cast %751 : vector<2x128xf32> to vector<1x2x128xf32>
    tpu.vector_store %arg8[%c0_299, %c0_300, %c0_301], %754 {strides = array<i32>} : memref<2x2x128xf32, #tpu.memory_space<vmem>>, vector<1x2x128xf32>,
    %c0_302 = arith.constant 0 : index
    %c0_303 = arith.constant 0 : index
    %755 = vector.load %arg10[%c0_302, %c0_303] : memref<2x128xf32, #tpu.memory_space<vmem>>, vector<2x128xf32>
    %c1_304 = arith.constant 1 : index
    %c0_305 = arith.constant 0 : index
    %c0_306 = arith.constant 0 : index
    %756 = vector.load %arg8[%c1_304, %c0_305, %c0_306] : memref<2x2x128xf32, #tpu.memory_space<vmem>>, vector<1x2x128xf32>
    %757 = vector.shape_cast %756 : vector<1x2x128xf32> to vector<2x128xf32>
    %758 = vector.shape_cast %755 : vector<2x128xf32> to vector<1x2x128xf32>
    tpu.vector_store %arg8[%c1_304, %c0_305, %c0_306], %758 {strides = array<i32>} : memref<2x2x128xf32, #tpu.memory_space<vmem>>, vector<1x2x128xf32>,
    return
  }
  func.func @transform_0(%arg0: i32) -> (i32, i32, i32, i32) {
    %c0_i32 = arith.constant 0 : i32
    %c0_i32_0 = arith.constant 0 : i32
    %c0_i32_1 = arith.constant 0 : i32
    %c0_i32_2 = arith.constant 0 : i32
    return %c0_i32, %arg0, %c0_i32_0, %c0_i32_1 : i32, i32, i32, i32
  }
  func.func @transform_1(%arg0: i32) -> (i32, i32, i32, i32) {
    %c0_i32 = arith.constant 0 : i32
    %0 = arith.subi %c0_i32, %arg0 : i32
    %c1_i32 = arith.constant 1 : i32
    %c0_i32_0 = arith.constant 0 : i32
    %c0_i32_1 = arith.constant 0 : i32
    %c0_i32_2 = arith.constant 0 : i32
    return %c1_i32, %0, %c0_i32_0, %c0_i32_1 : i32, i32, i32, i32
  }
  func.func @transform_2(%arg0: i32) -> (i32, i32, i32) {
    %c0_i32 = arith.constant 0 : i32
    %c0_i32_0 = arith.constant 0 : i32
    %c0_i32_1 = arith.constant 0 : i32
    %c0_i32_2 = arith.constant 0 : i32
    return %c0_i32, %c0_i32_0, %c0_i32_1 : i32, i32, i32
  }
  func.func @transform_3(%arg0: i32) -> (i32, i32, i32) {
    %c0_i32 = arith.constant 0 : i32
    %c0_i32_0 = arith.constant 0 : i32
    %c0_i32_1 = arith.constant 0 : i32
    %c0_i32_2 = arith.constant 0 : i32
    return %c0_i32, %c0_i32_0, %c0_i32_1 : i32, i32, i32
  }
  func.func @transform_4(%arg0: i32) -> (i32, i32, i32) {
    %c0_i32 = arith.constant 0 : i32
    %c0_i32_0 = arith.constant 0 : i32
    %c0_i32_1 = arith.constant 0 : i32
    %c0_i32_2 = arith.constant 0 : i32
    return %c0_i32, %c0_i32_0, %c0_i32_1 : i32, i32, i32
  }
  func.func @transform_5(%arg0: i32) -> (i32, i32, i32) {
    %c0_i32 = arith.constant 0 : i32
    %c0_i32_0 = arith.constant 0 : i32
    %c0_i32_1 = arith.constant 0 : i32
    return %arg0, %c0_i32, %c0_i32_0 : i32, i32, i32
  }
  func.func @transform_6(%arg0: i32) -> (i32, i32, i32) {
    %c0_i32 = arith.constant 0 : i32
    %0 = arith.subi %c0_i32, %arg0 : i32
    %c0_i32_0 = arith.constant 0 : i32
    %c0_i32_1 = arith.constant 0 : i32
    %c0_i32_2 = arith.constant 0 : i32
    return %0, %c0_i32_0, %c0_i32_1 : i32, i32, i32
  }
  func.func @transform_7(%arg0: i32) -> (i32, i32, i32) {
    %c0_i32 = arith.constant 0 : i32
    %c0_i32_0 = arith.constant 0 : i32
    %c0_i32_1 = arith.constant 0 : i32
    %c0_i32_2 = arith.constant 0 : i32
    return %c0_i32, %c0_i32_0, %c0_i32_1 : i32, i32, i32
  }
}

</mosaic_0001>

<llo_original>
// kernel: encoder_forward.3
$region0: #{encoder_forward.3}
  #allocation0 [shape = 'u32[]', space=smem, size = 0x4, offset = 0x4, fixed_abs, tag = 'smem constant byte address 0x4 - core index']
  #allocation1 [shape = 'u32[72,128]{1,0:T(1,128)}', space=vmem, size = 0x9000, scoped, tag = 'internal scratch']
  #allocation2 [shape = 'f32[2,128]{1,0:T(2,128)}', space=vmem, size = 0x400, scoped, tag = 'scratch operand']
  #allocation3 [shape = 'f32[2,128]{1,0:T(2,128)}', space=vmem, size = 0x400, scoped, tag = 'scratch operand']
  %s0 = inlined_call_operand.vmem [shape: bf16[2,8,2,384], index: 0, kind: input, shape index: {}, may-alias: {0,1}]
  %s1 = inlined_call_operand.vmem [shape: bf16[2,8,2,384], index: 1, kind: input, shape index: {}, may-alias: {0,1}]
  %s2 = inlined_call_operand.vmem [shape: bf16[2,128,384], index: 2, kind: input, shape index: {}]
  %s3 = inlined_call_operand.vmem [shape: f32[2,1,384], index: 3, kind: input, shape index: {}]
  %s4 = inlined_call_operand.vmem [shape: f32[2,1,384], index: 4, kind: input, shape index: {}]
  %s5 = inlined_call_operand.vmem [shape: bf16[8,2,128], index: 5, kind: output, shape index: {0}]
  %s6 = inlined_call_operand.vmem [shape: bf16[8,2,128], index: 6, kind: output, shape index: {1}]
  %s7 = inlined_call_operand.vmem [shape: f32[2,2,128], index: 7, kind: output, shape index: {2}]
  %8 = xla_tuple %s5, %s6, %s7
  %s9 = sld [smem:[#allocation0]]
  $region50: #{encoder_forward.3} parent=0
    _
  %s11 = ssub.s32 1, %s9
  %s12 = scalar_select 0, %s11, %s9
  // Predicated region
  $region2: #{encoder_forward.3} parent=0 // pred_check
    _
  $region3: #{encoder_forward.3} parent=0 // pred_check_branch
    %14 = sbr.rel (0) target = $region5
  $region4: #{encoder_forward.3} parent=0 // pred_region
    _
  $region5: #{encoder_forward.3} parent=0 // pred_fallthru
    _
  // Predicated region
  $region6: #{encoder_forward.3} parent=0 // pred_check
    _
  $region7: #{encoder_forward.3} parent=0 // pred_check_branch
    %16 = sbr.rel (0) target = $region9
  $region8: #{encoder_forward.3} parent=0 // pred_region
    %s17 = ssub.s32 0, 0
    %s18 = smul.u32 8, %s17
    %p19 = scmp.lt.s32.totalorder %s18, 7
    %s20 = scalar_select %p19, %s18, 7
    %s21 = smul.addr %s20, 3
    %s22 = sadd.s32 %s21, 24
    %s23 = scalar_lea.vmem %s1, %s22
    %s24 = ssub.s32 0, 0
    %s25 = smul.u32 8, %s24
  $region9: #{encoder_forward.3} parent=0 // pred_fallthru
    _
  // Predicated region
  $region10: #{encoder_forward.3} parent=0 // pred_check
    _
  $region11: #{encoder_forward.3} parent=0 // pred_check_branch
    %27 = sbr.rel (0) target = $region13
  $region12: #{encoder_forward.3} parent=0 // pred_region
    _
  $region13: #{encoder_forward.3} parent=0 // pred_fallthru
    _
  // Predicated region
  $region14: #{encoder_forward.3} parent=0 // pred_check
    _
  $region15: #{encoder_forward.3} parent=0 // pred_check_branch
    %29 = sbr.rel (0) target = $region17
  $region16: #{encoder_forward.3} parent=0 // pred_region
    _
  $region17: #{encoder_forward.3} parent=0 // pred_fallthru
    _
  // Predicated region
  $region18: #{encoder_forward.3} parent=0 // pred_check
    _
  $region19: #{encoder_forward.3} parent=0 // pred_check_branch
    %31 = sbr.rel (0) target = $region21
  $region20: #{encoder_forward.3} parent=0 // pred_region
    _
  $region21: #{encoder_forward.3} parent=0 // pred_fallthru
    _
  %s32 = ssub.s32 0, 0
  %s33 = smul.u32 8, %s32
  %p34 = scmp.lt.s32.totalorder %s33, 7
  %s35 = scalar_select %p34, %s33, 7
  %s36 = smul.addr %s35, 3
  %s37 = sadd.s32 %s36, 24
  %s38 = scalar_lea.vmem %s1, %s37
  %s39 = ssub.s32 0, 0
  %s40 = smul.u32 8, %s39
  %p41 = scmp.lt.s32.totalorder %s40, 7
  %s42 = scalar_select %p41, %s40, 7
  %s43 = scalar_lea.vmem %s6, %s42
  %s44 = ssub.s32 0, 0
  %s45 = smul.u32 8, %s44
  %p46 = scmp.lt.s32.totalorder %s45, 7
  %s47 = scalar_select %p46, %s45, 7
  %s48 = smul.addr %s47, 3
  %s49 = sadd.s32 %s48, 24
  %s50 = scalar_lea.vmem %s1, %s49
  %s51 = ssub.s32 0, 0
  %s52 = smul.u32 8, %s51
  %s53 = ssub.s32 0, 0
  %s54 = smul.u32 8, %s53
  %p55 = scmp.lt.s32.totalorder %s54, 7
  %s56 = scalar_select %p55, %s54, 7
  %s57 = scalar_lea.vmem %s6, %s56
  %s58 = ssub.s32 0, 0
  %s59 = smul.u32 8, %s58
  %p60 = scmp.eq.s32.totalorder 0, 0
  // Predicated region
  $region22: #{encoder_forward.3} parent=0 // pred_check
    %p61 = pneg %p60
  $region23: #{encoder_forward.3} parent=0 // pred_check_branch
    %63 = sbr.rel (%p61) target = $region25
  $region24: #{encoder_forward.3} parent=0 // pred_region
    %64 = vst [vmem:[#allocation2] sm:$0x3] 0.0
    %65 = vst [vmem:[#allocation3] sm:$0x3] 0.0
  $region25: #{encoder_forward.3} parent=0 // pred_fallthru
    _
  %v66 = vld [vmem:[%s2] sm:$0xff]
  %v67 = vld [vmem:[%s2 + $0x8] sm:$0xf]
  %v68 = vld [vmem:[%s2 + $0xc] sm:$0xff]
  %v69 = vld [vmem:[%s2 + $0x14] sm:$0xf]
  %v70 = vld [vmem:[%s2 + $0x18] sm:$0xff]
  %v71 = vld [vmem:[%s2 + $0x20] sm:$0xf]
  %v72 = vld [vmem:[%s2 + $0x24] sm:$0xff]
  %v73 = vld [vmem:[%s2 + $0x2c] sm:$0xf]
  %v74 = vld [vmem:[%s2 + $0x30] sm:$0xff]
  %v75 = vld [vmem:[%s2 + $0x38] sm:$0xf]
  %v76 = vld [vmem:[%s2 + $0x3c] sm:$0xff]
  %v77 = vld [vmem:[%s2 + $0x44] sm:$0xf]
  %v78 = vld [vmem:[%s2 + $0x48] sm:$0xff]
  %v79 = vld [vmem:[%s2 + $0x50] sm:$0xf]
  %v80 = vld [vmem:[%s2 + $0x54] sm:$0xff]
  %v81 = vld [vmem:[%s2 + $0x5c] sm:$0xf]
  %v82 = vld [vmem:[%s2 + $0x60] sm:$0xff]
  %v83 = vld [vmem:[%s2 + $0x68] sm:$0xf]
  %v84 = vld [vmem:[%s2 + $0x6c] sm:$0xff]
  %v85 = vld [vmem:[%s2 + $0x74] sm:$0xf]
  %v86 = vld [vmem:[%s2 + $0x78] sm:$0xff]
  %v87 = vld [vmem:[%s2 + $0x80] sm:$0xf]
  %v88 = vld [vmem:[%s2 + $0x84] sm:$0xff]
  %v89 = vld [vmem:[%s2 + $0x8c] sm:$0xf]
  %v90 = vld [vmem:[%s2 + $0x90] sm:$0xff]
  %v91 = vld [vmem:[%s2 + $0x98] sm:$0xf]
  %v92 = vld [vmem:[%s2 + $0x9c] sm:$0xff]
  %v93 = vld [vmem:[%s2 + $0xa4] sm:$0xf]
  %v94 = vld [vmem:[%s2 + $0xa8] sm:$0xff]
  %v95 = vld [vmem:[%s2 + $0xb0] sm:$0xf]
  %v96 = vld [vmem:[%s2 + $0xb4] sm:$0xff]
  %v97 = vld [vmem:[%s2 + $0xbc] sm:$0xf]
  %s98 = scalar_lea.vmem %s2, 192
  %v99 = vld [vmem:[%s98] sm:$0xff]
  %v100 = vld [vmem:[%s98 + $0x8] sm:$0xf]
  %v101 = vld [vmem:[%s98 + $0xc] sm:$0xff]
  %v102 = vld [vmem:[%s98 + $0x14] sm:$0xf]
  %v103 = vld [vmem:[%s98 + $0x18] sm:$0xff]
  %v104 = vld [vmem:[%s98 + $0x20] sm:$0xf]
  %v105 = vld [vmem:[%s98 + $0x24] sm:$0xff]
  %v106 = vld [vmem:[%s98 + $0x2c] sm:$0xf]
  %v107 = vld [vmem:[%s98 + $0x30] sm:$0xff]
  %v108 = vld [vmem:[%s98 + $0x38] sm:$0xf]
  %v109 = vld [vmem:[%s98 + $0x3c] sm:$0xff]
  %v110 = vld [vmem:[%s98 + $0x44] sm:$0xf]
  %v111 = vld [vmem:[%s98 + $0x48] sm:$0xff]
  %v112 = vld [vmem:[%s98 + $0x50] sm:$0xf]
  %v113 = vld [vmem:[%s98 + $0x54] sm:$0xff]
  %v114 = vld [vmem:[%s98 + $0x5c] sm:$0xf]
  %v115 = vld [vmem:[%s98 + $0x60] sm:$0xff]
  %v116 = vld [vmem:[%s98 + $0x68] sm:$0xf]
  %v117 = vld [vmem:[%s98 + $0x6c] sm:$0xff]
  %v118 = vld [vmem:[%s98 + $0x74] sm:$0xf]
  %v119 = vld [vmem:[%s98 + $0x78] sm:$0xff]
  %v120 = vld [vmem:[%s98 + $0x80] sm:$0xf]
  %v121 = vld [vmem:[%s98 + $0x84] sm:$0xff]
  %v122 = vld [vmem:[%s98 + $0x8c] sm:$0xf]
  %v123 = vld [vmem:[%s98 + $0x90] sm:$0xff]
  %v124 = vld [vmem:[%s98 + $0x98] sm:$0xf]
  %v125 = vld [vmem:[%s98 + $0x9c] sm:$0xff]
  %v126 = vld [vmem:[%s98 + $0xa4] sm:$0xf]
  %v127 = vld [vmem:[%s98 + $0xa8] sm:$0xff]
  %v128 = vld [vmem:[%s98 + $0xb0] sm:$0xf]
  %v129 = vld [vmem:[%s98 + $0xb4] sm:$0xff]
  %v130 = vld [vmem:[%s98 + $0xbc] sm:$0xf]
  %v131 = vld [vmem:[%s3] sm:$0x7]
  %v133 = vperm.slane %v131, 0
  %v134 = vperm.slane %v131, 1
  %v135 = vperm.slane %v131, 2
  %s136 = scalar_lea.vmem %s3, 3
  %v137 = vld [vmem:[%s136] sm:$0x7]
  %v139 = vperm.slane %v137, 0
  %v140 = vperm.slane %v137, 1
  %v141 = vperm.slane %v137, 2
  %v142 = vld [vmem:[%s4] sm:$0x7]
  %v144 = vperm.slane %v142, 0
  %v145 = vperm.slane %v142, 1
  %v146 = vperm.slane %v142, 2
  %s150 = scalar_lea.vmem %s4, 3
  %v151 = vld [vmem:[%s150] sm:$0x7]
  %v153 = vperm.slane %v151, 0
  %v154 = vperm.slane %v151, 1
  %v155 = vperm.slane %v151, 2
  %v159 = vld [vmem:[#allocation2] sm:$0x3]
  %v160 = vld [vmem:[#allocation3] sm:$0x3]
  %v161 = vld [vmem:[%s0] sm:$0x7]
  %v162 = vunpack.c.l.bf16 %v161
  %v163 = vrot.slane %v134, 6
  %v164 = vrot.slane %v135, 4
  %vm165 = vcmask 1041408
  %v166 = vsel %vm165, %v133, %v163
  %vm167 = vcmask 1043456
  %v168 = vsel %vm167, %v166, %v164
  %v170 = vadd.f32 %v162, %v168
  %s171 = scalar_lea.vmem %s50, 21
  %v172 = vld [vmem:[%s171] sm:$0x7]
  %v173 = vunpack.c.l.bf16 %v172
  %v174 = vrot.slane %v140, 6
  %v175 = vrot.slane %v141, 4
  %v176 = vsel %vm165, %v139, %v174
  %v177 = vsel %vm167, %v176, %v175
  %v179 = vadd.f32 %v173, %v177
  %v180 = vpack.c.bf16 %v159, %v159
  %v213 = vunpack.c.l.b16 %v66
  %v214 = vunpack.c.h.b16 %v66
  %v215 = vunpack.c.l.b16 %v67
  %v216 = vunpack.c.l.b16 %v68
  %v217 = vunpack.c.h.b16 %v68
  %v218 = vunpack.c.l.b16 %v69
  %v219 = vunpack.c.l.b16 %v70
  %v220 = vunpack.c.h.b16 %v70
  %v221 = vunpack.c.l.b16 %v71
  %v222 = vunpack.c.l.b16 %v72
  %v223 = vunpack.c.h.b16 %v72
  %v224 = vunpack.c.l.b16 %v73
  %v225 = vunpack.c.l.b16 %v74
  %v226 = vunpack.c.h.b16 %v74
  %v227 = vunpack.c.l.b16 %v75
  %v228 = vunpack.c.l.b16 %v76
  %v229 = vunpack.c.h.b16 %v76
  %v230 = vunpack.c.l.b16 %v77
  %v231 = vunpack.c.l.b16 %v78
  %v232 = vunpack.c.h.b16 %v78
  %v233 = vunpack.c.l.b16 %v79
  %v234 = vunpack.c.l.b16 %v80
  %v235 = vunpack.c.h.b16 %v80
  %v236 = vunpack.c.l.b16 %v81
  %v237 = vunpack.c.l.b16 %v82
  %v238 = vunpack.c.h.b16 %v82
  %v239 = vunpack.c.l.b16 %v83
  %v240 = vunpack.c.l.b16 %v84
  %v241 = vunpack.c.h.b16 %v84
  %v242 = vunpack.c.l.b16 %v85
  %v243 = vunpack.c.l.b16 %v86
  %v244 = vunpack.c.h.b16 %v86
  %v245 = vunpack.c.l.b16 %v87
  %v246 = vunpack.c.l.b16 %v88
  %v247 = vunpack.c.h.b16 %v88
  %v248 = vunpack.c.l.b16 %v89
  %v249 = vunpack.c.l.b16 %v90
  %v250 = vunpack.c.h.b16 %v90
  %v251 = vunpack.c.l.b16 %v91
  %v252 = vunpack.c.l.b16 %v92
  %v253 = vunpack.c.h.b16 %v92
  %v254 = vunpack.c.l.b16 %v93
  %v255 = vunpack.c.l.b16 %v94
  %v256 = vunpack.c.h.b16 %v94
  %v257 = vunpack.c.l.b16 %v95
  %v258 = vunpack.c.l.b16 %v96
  %v259 = vunpack.c.h.b16 %v96
  %v260 = vunpack.c.l.b16 %v97
  %v261 = vpack.c.b16 %v216, %v213
  %v262 = vpack.c.b16 %v217, %v214
  %v263 = vpack.c.b16 %v218, %v215
  %v264 = vpack.c.b16 %v222, %v219
  %v265 = vpack.c.b16 %v223, %v220
  %v266 = vpack.c.b16 %v224, %v221
  %v267 = vpack.c.b16 %v228, %v225
  %v268 = vpack.c.b16 %v229, %v226
  %v269 = vpack.c.b16 %v230, %v227
  %v270 = vpack.c.b16 %v234, %v231
  %v271 = vpack.c.b16 %v235, %v232
  %v272 = vpack.c.b16 %v236, %v233
  %v273 = vpack.c.b16 %v240, %v237
  %v274 = vpack.c.b16 %v241, %v238
  %v275 = vpack.c.b16 %v242, %v239
  %v276 = vpack.c.b16 %v246, %v243
  %v277 = vpack.c.b16 %v247, %v244
  %v278 = vpack.c.b16 %v248, %v245
  %v279 = vpack.c.b16 %v252, %v249
  %v280 = vpack.c.b16 %v253, %v250
  %v281 = vpack.c.b16 %v254, %v251
  %v282 = vpack.c.b16 %v258, %v255
  %v283 = vpack.c.b16 %v259, %v256
  %v284 = vpack.c.b16 %v260, %v257
  %309 = vmatpush.bf16.msra.mxu0 %v282
  %310 = vmatpush.bf16.msra.mxu0 %v279
  %311 = vmatpush.bf16.msra.mxu0 %v276
  %312 = vmatpush.bf16.msra.mxu0 %v273
  %313 = vmatpush.bf16.msra.mxu0 %v270
  %314 = vmatpush.bf16.msra.mxu0 %v267
  %315 = vmatpush.bf16.msra.mxu0 %v264
  %316 = vmatpush.bf16.msra.mxu0 %v261
  %317 = vmatmul.bf16.gmra.mxu0 %v180
  %v318 = vpop.f32.mrf.mxu0
  %v319 = vadd.f32 %v144, %v318
  %v320 = vpop.f32.mrf.mxu0
  %321 = vdwg.mxu0
  %322 = vmatpush.bf16.msra.mxu0 %v283
  %323 = vmatpush.bf16.msra.mxu0 %v280
  %324 = vmatpush.bf16.msra.mxu0 %v277
  %325 = vmatpush.bf16.msra.mxu0 %v274
  %326 = vmatpush.bf16.msra.mxu0 %v271
  %327 = vmatpush.bf16.msra.mxu0 %v268
  %328 = vmatpush.bf16.msra.mxu0 %v265
  %329 = vmatpush.bf16.msra.mxu0 %v262
  %330 = vmatmul.bf16.gmra.mxu0 %v180
  %v331 = vpop.f32.mrf.mxu0
  %v332 = vadd.f32 %v145, %v331
  %v333 = vpop.f32.mrf.mxu0
  %334 = vdwg.mxu0
  %335 = vmatpush.bf16.msra.mxu0 %v284
  %336 = vmatpush.bf16.msra.mxu0 %v281
  %337 = vmatpush.bf16.msra.mxu0 %v278
  %338 = vmatpush.bf16.msra.mxu0 %v275
  %339 = vmatpush.bf16.msra.mxu0 %v272
  %340 = vmatpush.bf16.msra.mxu0 %v269
  %341 = vmatpush.bf16.msra.mxu0 %v266
  %342 = vmatpush.bf16.msra.mxu0 %v263
  %343 = vmatmul.bf16.gmra.mxu0 %v180
  %v344 = vpop.f32.mrf.mxu0
  %v345 = vadd.f32 %v146, %v344
  %v346 = vpop.f32.mrf.mxu0
  %347 = vdwg.mxu0
  %v348 = vpack.c.bf16 %v160, %v160
  %v381 = vunpack.c.l.b16 %v99
  %v382 = vunpack.c.h.b16 %v99
  %v383 = vunpack.c.l.b16 %v100
  %v384 = vunpack.c.l.b16 %v101
  %v385 = vunpack.c.h.b16 %v101
  %v386 = vunpack.c.l.b16 %v102
  %v387 = vunpack.c.l.b16 %v103
  %v388 = vunpack.c.h.b16 %v103
  %v389 = vunpack.c.l.b16 %v104
  %v390 = vunpack.c.l.b16 %v105
  %v391 = vunpack.c.h.b16 %v105
  %v392 = vunpack.c.l.b16 %v106
  %v393 = vunpack.c.l.b16 %v107
  %v394 = vunpack.c.h.b16 %v107
  %v395 = vunpack.c.l.b16 %v108
  %v396 = vunpack.c.l.b16 %v109
  %v397 = vunpack.c.h.b16 %v109
  %v398 = vunpack.c.l.b16 %v110
  %v399 = vunpack.c.l.b16 %v111
  %v400 = vunpack.c.h.b16 %v111
  %v401 = vunpack.c.l.b16 %v112
  %v402 = vunpack.c.l.b16 %v113
  %v403 = vunpack.c.h.b16 %v113
  %v404 = vunpack.c.l.b16 %v114
  %v405 = vunpack.c.l.b16 %v115
  %v406 = vunpack.c.h.b16 %v115
  %v407 = vunpack.c.l.b16 %v116
  %v408 = vunpack.c.l.b16 %v117
  %v409 = vunpack.c.h.b16 %v117
  %v410 = vunpack.c.l.b16 %v118
  %v411 = vunpack.c.l.b16 %v119
  %v412 = vunpack.c.h.b16 %v119
  %v413 = vunpack.c.l.b16 %v120
  %v414 = vunpack.c.l.b16 %v121
  %v415 = vunpack.c.h.b16 %v121
  %v416 = vunpack.c.l.b16 %v122
  %v417 = vunpack.c.l.b16 %v123
  %v418 = vunpack.c.h.b16 %v123
  %v419 = vunpack.c.l.b16 %v124
  %v420 = vunpack.c.l.b16 %v125
  %v421 = vunpack.c.h.b16 %v125
  %v422 = vunpack.c.l.b16 %v126
  %v423 = vunpack.c.l.b16 %v127
  %v424 = vunpack.c.h.b16 %v127
  %v425 = vunpack.c.l.b16 %v128
  %v426 = vunpack.c.l.b16 %v129
  %v427 = vunpack.c.h.b16 %v129
  %v428 = vunpack.c.l.b16 %v130
  %v429 = vpack.c.b16 %v384, %v381
  %v430 = vpack.c.b16 %v385, %v382
  %v431 = vpack.c.b16 %v386, %v383
  %v432 = vpack.c.b16 %v390, %v387
  %v433 = vpack.c.b16 %v391, %v388
  %v434 = vpack.c.b16 %v392, %v389
  %v435 = vpack.c.b16 %v396, %v393
  %v436 = vpack.c.b16 %v397, %v394
  %v437 = vpack.c.b16 %v398, %v395
  %v438 = vpack.c.b16 %v402, %v399
  %v439 = vpack.c.b16 %v403, %v400
  %v440 = vpack.c.b16 %v404, %v401
  %v441 = vpack.c.b16 %v408, %v405
  %v442 = vpack.c.b16 %v409, %v406
  %v443 = vpack.c.b16 %v410, %v407
  %v444 = vpack.c.b16 %v414, %v411
  %v445 = vpack.c.b16 %v415, %v412
  %v446 = vpack.c.b16 %v416, %v413
  %v447 = vpack.c.b16 %v420, %v417
  %v448 = vpack.c.b16 %v421, %v418
  %v449 = vpack.c.b16 %v422, %v419
  %v450 = vpack.c.b16 %v426, %v423
  %v451 = vpack.c.b16 %v427, %v424
  %v452 = vpack.c.b16 %v428, %v425
  %477 = vmatpush.bf16.msra.mxu0 %v450
  %478 = vmatpush.bf16.msra.mxu0 %v447
  %479 = vmatpush.bf16.msra.mxu0 %v444
  %480 = vmatpush.bf16.msra.mxu0 %v441
  %481 = vmatpush.bf16.msra.mxu0 %v438
  %482 = vmatpush.bf16.msra.mxu0 %v435
  %483 = vmatpush.bf16.msra.mxu0 %v432
  %484 = vmatpush.bf16.msra.mxu0 %v429
  %485 = vmatmul.bf16.gmra.mxu0 %v348
  %v486 = vpop.f32.mrf.mxu0
  %v487 = vadd.f32 %v153, %v486
  %v488 = vpop.f32.mrf.mxu0
  %489 = vdwg.mxu0
  %490 = vmatpush.bf16.msra.mxu0 %v451
  %491 = vmatpush.bf16.msra.mxu0 %v448
  %492 = vmatpush.bf16.msra.mxu0 %v445
  %493 = vmatpush.bf16.msra.mxu0 %v442
  %494 = vmatpush.bf16.msra.mxu0 %v439
  %495 = vmatpush.bf16.msra.mxu0 %v436
  %496 = vmatpush.bf16.msra.mxu0 %v433
  %497 = vmatpush.bf16.msra.mxu0 %v430
  %498 = vmatmul.bf16.gmra.mxu0 %v348
  %v499 = vpop.f32.mrf.mxu0
  %v500 = vadd.f32 %v154, %v499
  %v501 = vpop.f32.mrf.mxu0
  %502 = vdwg.mxu0
  %503 = vmatpush.bf16.msra.mxu0 %v452
  %504 = vmatpush.bf16.msra.mxu0 %v449
  %505 = vmatpush.bf16.msra.mxu0 %v446
  %506 = vmatpush.bf16.msra.mxu0 %v443
  %507 = vmatpush.bf16.msra.mxu0 %v440
  %508 = vmatpush.bf16.msra.mxu0 %v437
  %509 = vmatpush.bf16.msra.mxu0 %v434
  %510 = vmatpush.bf16.msra.mxu0 %v431
  %511 = vmatmul.bf16.gmra.mxu0 %v348
  %v512 = vpop.f32.mrf.mxu0
  %v513 = vadd.f32 %v155, %v512
  %v514 = vpop.f32.mrf.mxu0
  %515 = vdwg.mxu0
  %v516 = vadd.f32 %v170, %v319
  %v517 = vmul.f32 %v516, 0.5
  %v518 = vtanh.pop %v517
  %v519 = vadd.f32 %v518, 1.0
  %v520 = vmul.f32 %v519, 0.5
  %v522 = vrot.slane %v170, 2
  %v524 = vadd.f32 %v522, %v332
  %v525 = vmul.f32 %v524, 0.5
  %v526 = vtanh.pop %v525
  %v527 = vadd.f32 %v526, 1.0
  %v528 = vmul.f32 %v527, 0.5
  %v529 = vmul.f32 %v520, %v345
  %v530 = vrot.slane %v170, 4
  %v532 = vadd.f32 %v530, %v529
  %v533 = vtanh.pop %v532
  %v534 = vsub.f32 1.0, %v528
  %v535 = vmul.f32 %v534, %v533
  %v536 = vmul.f32 %v528, %v159
  %v537 = vadd.f32 %v535, %v536
  %v538 = vadd.f32 %v179, %v487
  %v539 = vmul.f32 %v538, 0.5
  %v540 = vtanh.pop %v539
  %v541 = vadd.f32 %v540, 1.0
  %v542 = vmul.f32 %v541, 0.5
  %v544 = vrot.slane %v179, 2
  %v546 = vadd.f32 %v544, %v500
  %v547 = vmul.f32 %v546, 0.5
  %v548 = vtanh.pop %v547
  %v549 = vadd.f32 %v548, 1.0
  %v550 = vmul.f32 %v549, 0.5
  %v551 = vmul.f32 %v542, %v513
  %v552 = vrot.slane %v179, 4
  %v554 = vadd.f32 %v552, %v551
  %v555 = vtanh.pop %v554
  %v556 = vsub.f32 1.0, %v550
  %v557 = vmul.f32 %v556, %v555
  %v558 = vmul.f32 %v550, %v160
  %v559 = vadd.f32 %v557, %v558
  %560 = vst [vmem:[#allocation2] sm:$0x3] %v537
  %561 = vst [vmem:[#allocation3] sm:$0x3] %v559
  %v562 = vpack.c.bf16 %v537, %v537
  %563 = vst [vmem:[%s5] sm:$0x1] %v562
  %v564 = vpack.c.bf16 %v559, %v559
  %s565 = scalar_lea.vmem %s57, 7
  %566 = vst [vmem:[%s565] sm:$0x1] %v564
  %v567 = vld [vmem:[#allocation2] sm:$0x3]
  %v568 = vld [vmem:[#allocation3] sm:$0x3]
  %s569 = scalar_lea.vmem %s0, 3
  %v570 = vld [vmem:[%s569] sm:$0x7]
  %v571 = vunpack.c.l.bf16 %v570
  %v572 = vadd.f32 %v571, %v168
  %s573 = scalar_lea.vmem %s50, 18
  %v574 = vld [vmem:[%s573] sm:$0x7]
  %v575 = vunpack.c.l.bf16 %v574
  %v576 = vadd.f32 %v575, %v177
  %v577 = vpack.c.bf16 %v567, %v567
  %578 = vmatpush.bf16.msra.mxu0 %v282
  %579 = vmatpush.bf16.msra.mxu0 %v279
  %580 = vmatpush.bf16.msra.mxu0 %v276
  %581 = vmatpush.bf16.msra.mxu0 %v273
  %582 = vmatpush.bf16.msra.mxu0 %v270
  %583 = vmatpush.bf16.msra.mxu0 %v267
  %584 = vmatpush.bf16.msra.mxu0 %v264
  %585 = vmatpush.bf16.msra.mxu0 %v261
  %586 = vmatmul.bf16.gmra.mxu0 %v577
  %v587 = vpop.f32.mrf.mxu0
  %v588 = vadd.f32 %v144, %v587
  %v589 = vpop.f32.mrf.mxu0
  %590 = vdwg.mxu0
  %591 = vmatpush.bf16.msra.mxu0 %v283
  %592 = vmatpush.bf16.msra.mxu0 %v280
  %593 = vmatpush.bf16.msra.mxu0 %v277
  %594 = vmatpush.bf16.msra.mxu0 %v274
  %595 = vmatpush.bf16.msra.mxu0 %v271
  %596 = vmatpush.bf16.msra.mxu0 %v268
  %597 = vmatpush.bf16.msra.mxu0 %v265
  %598 = vmatpush.bf16.msra.mxu0 %v262
  %599 = vmatmul.bf16.gmra.mxu0 %v577
  %v600 = vpop.f32.mrf.mxu0
  %v601 = vadd.f32 %v145, %v600
  %v602 = vpop.f32.mrf.mxu0
  %603 = vdwg.mxu0
  %604 = vmatpush.bf16.msra.mxu0 %v284
  %605 = vmatpush.bf16.msra.mxu0 %v281
  %606 = vmatpush.bf16.msra.mxu0 %v278
  %607 = vmatpush.bf16.msra.mxu0 %v275
  %608 = vmatpush.bf16.msra.mxu0 %v272
  %609 = vmatpush.bf16.msra.mxu0 %v269
  %610 = vmatpush.bf16.msra.mxu0 %v266
  %611 = vmatpush.bf16.msra.mxu0 %v263
  %612 = vmatmul.bf16.gmra.mxu0 %v577
  %v613 = vpop.f32.mrf.mxu0
  %v614 = vadd.f32 %v146, %v613
  %v615 = vpop.f32.mrf.mxu0
  %616 = vdwg.mxu0
  %v617 = vpack.c.bf16 %v568, %v568
  %618 = vmatpush.bf16.msra.mxu0 %v450
  %619 = vmatpush.bf16.msra.mxu0 %v447
  %620 = vmatpush.bf16.msra.mxu0 %v444
  %621 = vmatpush.bf16.msra.mxu0 %v441
  %622 = vmatpush.bf16.msra.mxu0 %v438
  %623 = vmatpush.bf16.msra.mxu0 %v435
  %624 = vmatpush.bf16.msra.mxu0 %v432
  %625 = vmatpush.bf16.msra.mxu0 %v429
  %626 = vmatmul.bf16.gmra.mxu0 %v617
  %v627 = vpop.f32.mrf.mxu0
  %v628 = vadd.f32 %v153, %v627
  %v629 = vpop.f32.mrf.mxu0
  %630 = vdwg.mxu0
  %631 = vmatpush.bf16.msra.mxu0 %v451
  %632 = vmatpush.bf16.msra.mxu0 %v448
  %633 = vmatpush.bf16.msra.mxu0 %v445
  %634 = vmatpush.bf16.msra.mxu0 %v442
  %635 = vmatpush.bf16.msra.mxu0 %v439
  %636 = vmatpush.bf16.msra.mxu0 %v436
  %637 = vmatpush.bf16.msra.mxu0 %v433
  %638 = vmatpush.bf16.msra.mxu0 %v430
  %639 = vmatmul.bf16.gmra.mxu0 %v617
  %v640 = vpop.f32.mrf.mxu0
  %v641 = vadd.f32 %v154, %v640
  %v642 = vpop.f32.mrf.mxu0
  %643 = vdwg.mxu0
  %644 = vmatpush.bf16.msra.mxu0 %v452
  %645 = vmatpush.bf16.msra.mxu0 %v449
  %646 = vmatpush.bf16.msra.mxu0 %v446
  %647 = vmatpush.bf16.msra.mxu0 %v443
  %648 = vmatpush.bf16.msra.mxu0 %v440
  %649 = vmatpush.bf16.msra.mxu0 %v437
  %650 = vmatpush.bf16.msra.mxu0 %v434
  %651 = vmatpush.bf16.msra.mxu0 %v431
  %652 = vmatmul.bf16.gmra.mxu0 %v617
  %v653 = vpop.f32.mrf.mxu0
  %v654 = vadd.f32 %v155, %v653
  %v655 = vpop.f32.mrf.mxu0
  %656 = vdwg.mxu0
  %v657 = vadd.f32 %v572, %v588
  %v658 = vmul.f32 %v657, 0.5
  %v659 = vtanh.pop %v658
  %v660 = vadd.f32 %v659, 1.0
  %v661 = vmul.f32 %v660, 0.5
  %v663 = vrot.slane %v572, 2
  %v665 = vadd.f32 %v663, %v601
  %v666 = vmul.f32 %v665, 0.5
  %v667 = vtanh.pop %v666
  %v668 = vadd.f32 %v667, 1.0
  %v669 = vmul.f32 %v668, 0.5
  %v670 = vmul.f32 %v661, %v614
  %v671 = vrot.slane %v572, 4
  %v673 = vadd.f32 %v671, %v670
  %v674 = vtanh.pop %v673
  %v675 = vsub.f32 1.0, %v669
  %v676 = vmul.f32 %v675, %v674
  %v677 = vmul.f32 %v669, %v567
  %v678 = vadd.f32 %v676, %v677
  %v679 = vadd.f32 %v576, %v628
  %v680 = vmul.f32 %v679, 0.5
  %v681 = vtanh.pop %v680
  %v682 = vadd.f32 %v681, 1.0
  %v683 = vmul.f32 %v682, 0.5
  %v685 = vrot.slane %v576, 2
  %v687 = vadd.f32 %v685, %v641
  %v688 = vmul.f32 %v687, 0.5
  %v689 = vtanh.pop %v688
  %v690 = vadd.f32 %v689, 1.0
  %v691 = vmul.f32 %v690, 0.5
  %v692 = vmul.f32 %v683, %v654
  %v693 = vrot.slane %v576, 4
  %v695 = vadd.f32 %v693, %v692
  %v696 = vtanh.pop %v695
  %v697 = vsub.f32 1.0, %v691
  %v698 = vmul.f32 %v697, %v696
  %v699 = vmul.f32 %v691, %v568
  %v700 = vadd.f32 %v698, %v699
  %701 = vst [vmem:[#allocation2] sm:$0x3] %v678
  %702 = vst [vmem:[#allocation3] sm:$0x3] %v700
  %v703 = vpack.c.bf16 %v678, %v678
  %s704 = scalar_lea.vmem %s5, 1
  %705 = vst [vmem:[%s704] sm:$0x1] %v703
  %v706 = vpack.c.bf16 %v700, %v700
  %s707 = scalar_lea.vmem %s57, 6
  %708 = vst [vmem:[%s707] sm:$0x1] %v706
  %v709 = vld [vmem:[#allocation2] sm:$0x3]
  %v710 = vld [vmem:[#allocation3] sm:$0x3]
  %s711 = scalar_lea.vmem %s0, 6
  %v712 = vld [vmem:[%s711] sm:$0x7]
  %v713 = vunpack.c.l.bf16 %v712
  %v714 = vadd.f32 %v713, %v168
  %s715 = scalar_lea.vmem %s50, 15
  %v716 = vld [vmem:[%s715] sm:$0x7]
  %v717 = vunpack.c.l.bf16 %v716
  %v718 = vadd.f32 %v717, %v177
  %v719 = vpack.c.bf16 %v709, %v709
  %720 = vmatpush.bf16.msra.mxu0 %v282
  %721 = vmatpush.bf16.msra.mxu0 %v279
  %722 = vmatpush.bf16.msra.mxu0 %v276
  %723 = vmatpush.bf16.msra.mxu0 %v273
  %724 = vmatpush.bf16.msra.mxu0 %v270
  %725 = vmatpush.bf16.msra.mxu0 %v267
  %726 = vmatpush.bf16.msra.mxu0 %v264
  %727 = vmatpush.bf16.msra.mxu0 %v261
  %728 = vmatmul.bf16.gmra.mxu0 %v719
  %v729 = vpop.f32.mrf.mxu0
  %v730 = vadd.f32 %v144, %v729
  %v731 = vpop.f32.mrf.mxu0
  %732 = vdwg.mxu0
  %733 = vmatpush.bf16.msra.mxu0 %v283
  %734 = vmatpush.bf16.msra.mxu0 %v280
  %735 = vmatpush.bf16.msra.mxu0 %v277
  %736 = vmatpush.bf16.msra.mxu0 %v274
  %737 = vmatpush.bf16.msra.mxu0 %v271
  %738 = vmatpush.bf16.msra.mxu0 %v268
  %739 = vmatpush.bf16.msra.mxu0 %v265
  %740 = vmatpush.bf16.msra.mxu0 %v262
  %741 = vmatmul.bf16.gmra.mxu0 %v719
  %v742 = vpop.f32.mrf.mxu0
  %v743 = vadd.f32 %v145, %v742
  %v744 = vpop.f32.mrf.mxu0
  %745 = vdwg.mxu0
  %746 = vmatpush.bf16.msra.mxu0 %v284
  %747 = vmatpush.bf16.msra.mxu0 %v281
  %748 = vmatpush.bf16.msra.mxu0 %v278
  %749 = vmatpush.bf16.msra.mxu0 %v275
  %750 = vmatpush.bf16.msra.mxu0 %v272
  %751 = vmatpush.bf16.msra.mxu0 %v269
  %752 = vmatpush.bf16.msra.mxu0 %v266
  %753 = vmatpush.bf16.msra.mxu0 %v263
  %754 = vmatmul.bf16.gmra.mxu0 %v719
  %v755 = vpop.f32.mrf.mxu0
  %v756 = vadd.f32 %v146, %v755
  %v757 = vpop.f32.mrf.mxu0
  %758 = vdwg.mxu0
  %v759 = vpack.c.bf16 %v710, %v710
  %760 = vmatpush.bf16.msra.mxu0 %v450
  %761 = vmatpush.bf16.msra.mxu0 %v447
  %762 = vmatpush.bf16.msra.mxu0 %v444
  %763 = vmatpush.bf16.msra.mxu0 %v441
  %764 = vmatpush.bf16.msra.mxu0 %v438
  %765 = vmatpush.bf16.msra.mxu0 %v435
  %766 = vmatpush.bf16.msra.mxu0 %v432
  %767 = vmatpush.bf16.msra.mxu0 %v429
  %768 = vmatmul.bf16.gmra.mxu0 %v759
  %v769 = vpop.f32.mrf.mxu0
  %v770 = vadd.f32 %v153, %v769
  %v771 = vpop.f32.mrf.mxu0
  %772 = vdwg.mxu0
  %773 = vmatpush.bf16.msra.mxu0 %v451
  %774 = vmatpush.bf16.msra.mxu0 %v448
  %775 = vmatpush.bf16.msra.mxu0 %v445
  %776 = vmatpush.bf16.msra.mxu0 %v442
  %777 = vmatpush.bf16.msra.mxu0 %v439
  %778 = vmatpush.bf16.msra.mxu0 %v436
  %779 = vmatpush.bf16.msra.mxu0 %v433
  %780 = vmatpush.bf16.msra.mxu0 %v430
  %781 = vmatmul.bf16.gmra.mxu0 %v759
  %v782 = vpop.f32.mrf.mxu0
  %v783 = vadd.f32 %v154, %v782
  %v784 = vpop.f32.mrf.mxu0
  %785 = vdwg.mxu0
  %786 = vmatpush.bf16.msra.mxu0 %v452
  %787 = vmatpush.bf16.msra.mxu0 %v449
  %788 = vmatpush.bf16.msra.mxu0 %v446
  %789 = vmatpush.bf16.msra.mxu0 %v443
  %790 = vmatpush.bf16.msra.mxu0 %v440
  %791 = vmatpush.bf16.msra.mxu0 %v437
  %792 = vmatpush.bf16.msra.mxu0 %v434
  %793 = vmatpush.bf16.msra.mxu0 %v431
  %794 = vmatmul.bf16.gmra.mxu0 %v759
  %v795 = vpop.f32.mrf.mxu0
  %v796 = vadd.f32 %v155, %v795
  %v797 = vpop.f32.mrf.mxu0
  %798 = vdwg.mxu0
  %v799 = vadd.f32 %v714, %v730
  %v800 = vmul.f32 %v799, 0.5
  %v801 = vtanh.pop %v800
  %v802 = vadd.f32 %v801, 1.0
  %v803 = vmul.f32 %v802, 0.5
  %v805 = vrot.slane %v714, 2
  %v807 = vadd.f32 %v805, %v743
  %v808 = vmul.f32 %v807, 0.5
  %v809 = vtanh.pop %v808
  %v810 = vadd.f32 %v809, 1.0
  %v811 = vmul.f32 %v810, 0.5
  %v812 = vmul.f32 %v803, %v756
  %v813 = vrot.slane %v714, 4
  %v815 = vadd.f32 %v813, %v812
  %v816 = vtanh.pop %v815
  %v817 = vsub.f32 1.0, %v811
  %v818 = vmul.f32 %v817, %v816
  %v819 = vmul.f32 %v811, %v709
  %v820 = vadd.f32 %v818, %v819
  %v821 = vadd.f32 %v718, %v770
  %v822 = vmul.f32 %v821, 0.5
  %v823 = vtanh.pop %v822
  %v824 = vadd.f32 %v823, 1.0
  %v825 = vmul.f32 %v824, 0.5
  %v827 = vrot.slane %v718, 2
  %v829 = vadd.f32 %v827, %v783
  %v830 = vmul.f32 %v829, 0.5
  %v831 = vtanh.pop %v830
  %v832 = vadd.f32 %v831, 1.0
  %v833 = vmul.f32 %v832, 0.5
  %v834 = vmul.f32 %v825, %v796
  %v835 = vrot.slane %v718, 4
  %v837 = vadd.f32 %v835, %v834
  %v838 = vtanh.pop %v837
  %v839 = vsub.f32 1.0, %v833
  %v840 = vmul.f32 %v839, %v838
  %v841 = vmul.f32 %v833, %v710
  %v842 = vadd.f32 %v840, %v841
  %843 = vst [vmem:[#allocation2] sm:$0x3] %v820
  %844 = vst [vmem:[#allocation3] sm:$0x3] %v842
  %v845 = vpack.c.bf16 %v820, %v820
  %s846 = scalar_lea.vmem %s5, 2
  %847 = vst [vmem:[%s846] sm:$0x1] %v845
  %v848 = vpack.c.bf16 %v842, %v842
  %s849 = scalar_lea.vmem %s57, 5
  %850 = vst [vmem:[%s849] sm:$0x1] %v848
  %v851 = vld [vmem:[#allocation2] sm:$0x3]
  %v852 = vld [vmem:[#allocation3] sm:$0x3]
  %s853 = scalar_lea.vmem %s0, 9
  %v854 = vld [vmem:[%s853] sm:$0x7]
  %v855 = vunpack.c.l.bf16 %v854
  %v856 = vadd.f32 %v855, %v168
  %s857 = scalar_lea.vmem %s50, 12
  %v858 = vld [vmem:[%s857] sm:$0x7]
  %v859 = vunpack.c.l.bf16 %v858
  %v860 = vadd.f32 %v859, %v177
  %v861 = vpack.c.bf16 %v851, %v851
  %862 = vmatpush.bf16.msra.mxu0 %v282
  %863 = vmatpush.bf16.msra.mxu0 %v279
  %864 = vmatpush.bf16.msra.mxu0 %v276
  %865 = vmatpush.bf16.msra.mxu0 %v273
  %866 = vmatpush.bf16.msra.mxu0 %v270
  %867 = vmatpush.bf16.msra.mxu0 %v267
  %868 = vmatpush.bf16.msra.mxu0 %v264
  %869 = vmatpush.bf16.msra.mxu0 %v261
  %870 = vmatmul.bf16.gmra.mxu0 %v861
  %v871 = vpop.f32.mrf.mxu0
  %v872 = vadd.f32 %v144, %v871
  %v873 = vpop.f32.mrf.mxu0
  %874 = vdwg.mxu0
  %875 = vmatpush.bf16.msra.mxu0 %v283
  %876 = vmatpush.bf16.msra.mxu0 %v280
  %877 = vmatpush.bf16.msra.mxu0 %v277
  %878 = vmatpush.bf16.msra.mxu0 %v274
  %879 = vmatpush.bf16.msra.mxu0 %v271
  %880 = vmatpush.bf16.msra.mxu0 %v268
  %881 = vmatpush.bf16.msra.mxu0 %v265
  %882 = vmatpush.bf16.msra.mxu0 %v262
  %883 = vmatmul.bf16.gmra.mxu0 %v861
  %v884 = vpop.f32.mrf.mxu0
  %v885 = vadd.f32 %v145, %v884
  %v886 = vpop.f32.mrf.mxu0
  %887 = vdwg.mxu0
  %888 = vmatpush.bf16.msra.mxu0 %v284
  %889 = vmatpush.bf16.msra.mxu0 %v281
  %890 = vmatpush.bf16.msra.mxu0 %v278
  %891 = vmatpush.bf16.msra.mxu0 %v275
  %892 = vmatpush.bf16.msra.mxu0 %v272
  %893 = vmatpush.bf16.msra.mxu0 %v269
  %894 = vmatpush.bf16.msra.mxu0 %v266
  %895 = vmatpush.bf16.msra.mxu0 %v263
  %896 = vmatmul.bf16.gmra.mxu0 %v861
  %v897 = vpop.f32.mrf.mxu0
  %v898 = vadd.f32 %v146, %v897
  %v899 = vpop.f32.mrf.mxu0
  %900 = vdwg.mxu0
  %v901 = vpack.c.bf16 %v852, %v852
  %902 = vmatpush.bf16.msra.mxu0 %v450
  %903 = vmatpush.bf16.msra.mxu0 %v447
  %904 = vmatpush.bf16.msra.mxu0 %v444
  %905 = vmatpush.bf16.msra.mxu0 %v441
  %906 = vmatpush.bf16.msra.mxu0 %v438
  %907 = vmatpush.bf16.msra.mxu0 %v435
  %908 = vmatpush.bf16.msra.mxu0 %v432
  %909 = vmatpush.bf16.msra.mxu0 %v429
  %910 = vmatmul.bf16.gmra.mxu0 %v901
  %v911 = vpop.f32.mrf.mxu0
  %v912 = vadd.f32 %v153, %v911
  %v913 = vpop.f32.mrf.mxu0
  %914 = vdwg.mxu0
  %915 = vmatpush.bf16.msra.mxu0 %v451
  %916 = vmatpush.bf16.msra.mxu0 %v448
  %917 = vmatpush.bf16.msra.mxu0 %v445
  %918 = vmatpush.bf16.msra.mxu0 %v442
  %919 = vmatpush.bf16.msra.mxu0 %v439
  %920 = vmatpush.bf16.msra.mxu0 %v436
  %921 = vmatpush.bf16.msra.mxu0 %v433
  %922 = vmatpush.bf16.msra.mxu0 %v430
  %923 = vmatmul.bf16.gmra.mxu0 %v901
  %v924 = vpop.f32.mrf.mxu0
  %v925 = vadd.f32 %v154, %v924
  %v926 = vpop.f32.mrf.mxu0
  %927 = vdwg.mxu0
  %928 = vmatpush.bf16.msra.mxu0 %v452
  %929 = vmatpush.bf16.msra.mxu0 %v449
  %930 = vmatpush.bf16.msra.mxu0 %v446
  %931 = vmatpush.bf16.msra.mxu0 %v443
  %932 = vmatpush.bf16.msra.mxu0 %v440
  %933 = vmatpush.bf16.msra.mxu0 %v437
  %934 = vmatpush.bf16.msra.mxu0 %v434
  %935 = vmatpush.bf16.msra.mxu0 %v431
  %936 = vmatmul.bf16.gmra.mxu0 %v901
  %v937 = vpop.f32.mrf.mxu0
  %v938 = vadd.f32 %v155, %v937
  %v939 = vpop.f32.mrf.mxu0
  %940 = vdwg.mxu0
  %v941 = vadd.f32 %v856, %v872
  %v942 = vmul.f32 %v941, 0.5
  %v943 = vtanh.pop %v942
  %v944 = vadd.f32 %v943, 1.0
  %v945 = vmul.f32 %v944, 0.5
  %v947 = vrot.slane %v856, 2
  %v949 = vadd.f32 %v947, %v885
  %v950 = vmul.f32 %v949, 0.5
  %v951 = vtanh.pop %v950
  %v952 = vadd.f32 %v951, 1.0
  %v953 = vmul.f32 %v952, 0.5
  %v954 = vmul.f32 %v945, %v898
  %v955 = vrot.slane %v856, 4
  %v957 = vadd.f32 %v955, %v954
  %v958 = vtanh.pop %v957
  %v959 = vsub.f32 1.0, %v953
  %v960 = vmul.f32 %v959, %v958
  %v961 = vmul.f32 %v953, %v851
  %v962 = vadd.f32 %v960, %v961
  %v963 = vadd.f32 %v860, %v912
  %v964 = vmul.f32 %v963, 0.5
  %v965 = vtanh.pop %v964
  %v966 = vadd.f32 %v965, 1.0
  %v967 = vmul.f32 %v966, 0.5
  %v969 = vrot.slane %v860, 2
  %v971 = vadd.f32 %v969, %v925
  %v972 = vmul.f32 %v971, 0.5
  %v973 = vtanh.pop %v972
  %v974 = vadd.f32 %v973, 1.0
  %v975 = vmul.f32 %v974, 0.5
  %v976 = vmul.f32 %v967, %v938
  %v977 = vrot.slane %v860, 4
  %v979 = vadd.f32 %v977, %v976
  %v980 = vtanh.pop %v979
  %v981 = vsub.f32 1.0, %v975
  %v982 = vmul.f32 %v981, %v980
  %v983 = vmul.f32 %v975, %v852
  %v984 = vadd.f32 %v982, %v983
  %985 = vst [vmem:[#allocation2] sm:$0x3] %v962
  %986 = vst [vmem:[#allocation3] sm:$0x3] %v984
  %v987 = vpack.c.bf16 %v962, %v962
  %s988 = scalar_lea.vmem %s5, 3
  %989 = vst [vmem:[%s988] sm:$0x1] %v987
  %v990 = vpack.c.bf16 %v984, %v984
  %s991 = scalar_lea.vmem %s57, 4
  %992 = vst [vmem:[%s991] sm:$0x1] %v990
  %v993 = vld [vmem:[#allocation2] sm:$0x3]
  %v994 = vld [vmem:[#allocation3] sm:$0x3]
  %s995 = scalar_lea.vmem %s0, 12
  %v996 = vld [vmem:[%s995] sm:$0x7]
  %v997 = vunpack.c.l.bf16 %v996
  %v998 = vadd.f32 %v997, %v168
  %s999 = scalar_lea.vmem %s50, 9
  %v1000 = vld [vmem:[%s999] sm:$0x7]
  %v1001 = vunpack.c.l.bf16 %v1000
  %v1002 = vadd.f32 %v1001, %v177
  %v1003 = vpack.c.bf16 %v993, %v993
  %1004 = vmatpush.bf16.msra.mxu0 %v282
  %1005 = vmatpush.bf16.msra.mxu0 %v279
  %1006 = vmatpush.bf16.msra.mxu0 %v276
  %1007 = vmatpush.bf16.msra.mxu0 %v273
  %1008 = vmatpush.bf16.msra.mxu0 %v270
  %1009 = vmatpush.bf16.msra.mxu0 %v267
  %1010 = vmatpush.bf16.msra.mxu0 %v264
  %1011 = vmatpush.bf16.msra.mxu0 %v261
  %1012 = vmatmul.bf16.gmra.mxu0 %v1003
  %v1013 = vpop.f32.mrf.mxu0
  %v1014 = vadd.f32 %v144, %v1013
  %v1015 = vpop.f32.mrf.mxu0
  %1016 = vdwg.mxu0
  %1017 = vmatpush.bf16.msra.mxu0 %v283
  %1018 = vmatpush.bf16.msra.mxu0 %v280
  %1019 = vmatpush.bf16.msra.mxu0 %v277
  %1020 = vmatpush.bf16.msra.mxu0 %v274
  %1021 = vmatpush.bf16.msra.mxu0 %v271
  %1022 = vmatpush.bf16.msra.mxu0 %v268
  %1023 = vmatpush.bf16.msra.mxu0 %v265
  %1024 = vmatpush.bf16.msra.mxu0 %v262
  %1025 = vmatmul.bf16.gmra.mxu0 %v1003
  %v1026 = vpop.f32.mrf.mxu0
  %v1027 = vadd.f32 %v145, %v1026
  %v1028 = vpop.f32.mrf.mxu0
  %1029 = vdwg.mxu0
  %1030 = vmatpush.bf16.msra.mxu0 %v284
  %1031 = vmatpush.bf16.msra.mxu0 %v281
  %1032 = vmatpush.bf16.msra.mxu0 %v278
  %1033 = vmatpush.bf16.msra.mxu0 %v275
  %1034 = vmatpush.bf16.msra.mxu0 %v272
  %1035 = vmatpush.bf16.msra.mxu0 %v269
  %1036 = vmatpush.bf16.msra.mxu0 %v266
  %1037 = vmatpush.bf16.msra.mxu0 %v263
  %1038 = vmatmul.bf16.gmra.mxu0 %v1003
  %v1039 = vpop.f32.mrf.mxu0
  %v1040 = vadd.f32 %v146, %v1039
  %v1041 = vpop.f32.mrf.mxu0
  %1042 = vdwg.mxu0
  %v1043 = vpack.c.bf16 %v994, %v994
  %1044 = vmatpush.bf16.msra.mxu0 %v450
  %1045 = vmatpush.bf16.msra.mxu0 %v447
  %1046 = vmatpush.bf16.msra.mxu0 %v444
  %1047 = vmatpush.bf16.msra.mxu0 %v441
  %1048 = vmatpush.bf16.msra.mxu0 %v438
  %1049 = vmatpush.bf16.msra.mxu0 %v435
  %1050 = vmatpush.bf16.msra.mxu0 %v432
  %1051 = vmatpush.bf16.msra.mxu0 %v429
  %1052 = vmatmul.bf16.gmra.mxu0 %v1043
  %v1053 = vpop.f32.mrf.mxu0
  %v1054 = vadd.f32 %v153, %v1053
  %v1055 = vpop.f32.mrf.mxu0
  %1056 = vdwg.mxu0
  %1057 = vmatpush.bf16.msra.mxu0 %v451
  %1058 = vmatpush.bf16.msra.mxu0 %v448
  %1059 = vmatpush.bf16.msra.mxu0 %v445
  %1060 = vmatpush.bf16.msra.mxu0 %v442
  %1061 = vmatpush.bf16.msra.mxu0 %v439
  %1062 = vmatpush.bf16.msra.mxu0 %v436
  %1063 = vmatpush.bf16.msra.mxu0 %v433
  %1064 = vmatpush.bf16.msra.mxu0 %v430
  %1065 = vmatmul.bf16.gmra.mxu0 %v1043
  %v1066 = vpop.f32.mrf.mxu0
  %v1067 = vadd.f32 %v154, %v1066
  %v1068 = vpop.f32.mrf.mxu0
  %1069 = vdwg.mxu0
  %1070 = vmatpush.bf16.msra.mxu0 %v452
  %1071 = vmatpush.bf16.msra.mxu0 %v449
  %1072 = vmatpush.bf16.msra.mxu0 %v446
  %1073 = vmatpush.bf16.msra.mxu0 %v443
  %1074 = vmatpush.bf16.msra.mxu0 %v440
  %1075 = vmatpush.bf16.msra.mxu0 %v437
  %1076 = vmatpush.bf16.msra.mxu0 %v434
  %1077 = vmatpush.bf16.msra.mxu0 %v431
  %1078 = vmatmul.bf16.gmra.mxu0 %v1043
  %v1079 = vpop.f32.mrf.mxu0
  %v1080 = vadd.f32 %v155, %v1079
  %v1081 = vpop.f32.mrf.mxu0
  %1082 = vdwg.mxu0
  %v1083 = vadd.f32 %v998, %v1014
  %v1084 = vmul.f32 %v1083, 0.5
  %v1085 = vtanh.pop %v1084
  %v1086 = vadd.f32 %v1085, 1.0
  %v1087 = vmul.f32 %v1086, 0.5
  %v1089 = vrot.slane %v998, 2
  %v1091 = vadd.f32 %v1089, %v1027
  %v1092 = vmul.f32 %v1091, 0.5
  %v1093 = vtanh.pop %v1092
  %v1094 = vadd.f32 %v1093, 1.0
  %v1095 = vmul.f32 %v1094, 0.5
  %v1096 = vmul.f32 %v1087, %v1040
  %v1097 = vrot.slane %v998, 4
  %v1099 = vadd.f32 %v1097, %v1096
  %v1100 = vtanh.pop %v1099
  %v1101 = vsub.f32 1.0, %v1095
  %v1102 = vmul.f32 %v1101, %v1100
  %v1103 = vmul.f32 %v1095, %v993
  %v1104 = vadd.f32 %v1102, %v1103
  %v1105 = vadd.f32 %v1002, %v1054
  %v1106 = vmul.f32 %v1105, 0.5
  %v1107 = vtanh.pop %v1106
  %v1108 = vadd.f32 %v1107, 1.0
  %v1109 = vmul.f32 %v1108, 0.5
  %v1111 = vrot.slane %v1002, 2
  %v1113 = vadd.f32 %v1111, %v1067
  %v1114 = vmul.f32 %v1113, 0.5
  %v1115 = vtanh.pop %v1114
  %v1116 = vadd.f32 %v1115, 1.0
  %v1117 = vmul.f32 %v1116, 0.5
  %v1118 = vmul.f32 %v1109, %v1080
  %v1119 = vrot.slane %v1002, 4
  %v1121 = vadd.f32 %v1119, %v1118
  %v1122 = vtanh.pop %v1121
  %v1123 = vsub.f32 1.0, %v1117
  %v1124 = vmul.f32 %v1123, %v1122
  %v1125 = vmul.f32 %v1117, %v994
  %v1126 = vadd.f32 %v1124, %v1125
  %1127 = vst [vmem:[#allocation2] sm:$0x3] %v1104
  %1128 = vst [vmem:[#allocation3] sm:$0x3] %v1126
  %v1129 = vpack.c.bf16 %v1104, %v1104
  %s1130 = scalar_lea.vmem %s5, 4
  %1131 = vst [vmem:[%s1130] sm:$0x1] %v1129
  %v1132 = vpack.c.bf16 %v1126, %v1126
  %s1133 = scalar_lea.vmem %s57, 3
  %1134 = vst [vmem:[%s1133] sm:$0x1] %v1132
  %v1135 = vld [vmem:[#allocation2] sm:$0x3]
  %v1136 = vld [vmem:[#allocation3] sm:$0x3]
  %s1137 = scalar_lea.vmem %s0, 15
  %v1138 = vld [vmem:[%s1137] sm:$0x7]
  %v1139 = vunpack.c.l.bf16 %v1138
  %v1140 = vadd.f32 %v1139, %v168
  %s1141 = scalar_lea.vmem %s50, 6
  %v1142 = vld [vmem:[%s1141] sm:$0x7]
  %v1143 = vunpack.c.l.bf16 %v1142
  %v1144 = vadd.f32 %v1143, %v177
  %v1145 = vpack.c.bf16 %v1135, %v1135
  %1146 = vmatpush.bf16.msra.mxu0 %v282
  %1147 = vmatpush.bf16.msra.mxu0 %v279
  %1148 = vmatpush.bf16.msra.mxu0 %v276
  %1149 = vmatpush.bf16.msra.mxu0 %v273
  %1150 = vmatpush.bf16.msra.mxu0 %v270
  %1151 = vmatpush.bf16.msra.mxu0 %v267
  %1152 = vmatpush.bf16.msra.mxu0 %v264
  %1153 = vmatpush.bf16.msra.mxu0 %v261
  %1154 = vmatmul.bf16.gmra.mxu0 %v1145
  %v1155 = vpop.f32.mrf.mxu0
  %v1156 = vadd.f32 %v144, %v1155
  %v1157 = vpop.f32.mrf.mxu0
  %1158 = vdwg.mxu0
  %1159 = vmatpush.bf16.msra.mxu0 %v283
  %1160 = vmatpush.bf16.msra.mxu0 %v280
  %1161 = vmatpush.bf16.msra.mxu0 %v277
  %1162 = vmatpush.bf16.msra.mxu0 %v274
  %1163 = vmatpush.bf16.msra.mxu0 %v271
  %1164 = vmatpush.bf16.msra.mxu0 %v268
  %1165 = vmatpush.bf16.msra.mxu0 %v265
  %1166 = vmatpush.bf16.msra.mxu0 %v262
  %1167 = vmatmul.bf16.gmra.mxu0 %v1145
  %v1168 = vpop.f32.mrf.mxu0
  %v1169 = vadd.f32 %v145, %v1168
  %v1170 = vpop.f32.mrf.mxu0
  %1171 = vdwg.mxu0
  %1172 = vmatpush.bf16.msra.mxu0 %v284
  %1173 = vmatpush.bf16.msra.mxu0 %v281
  %1174 = vmatpush.bf16.msra.mxu0 %v278
  %1175 = vmatpush.bf16.msra.mxu0 %v275
  %1176 = vmatpush.bf16.msra.mxu0 %v272
  %1177 = vmatpush.bf16.msra.mxu0 %v269
  %1178 = vmatpush.bf16.msra.mxu0 %v266
  %1179 = vmatpush.bf16.msra.mxu0 %v263
  %1180 = vmatmul.bf16.gmra.mxu0 %v1145
  %v1181 = vpop.f32.mrf.mxu0
  %v1182 = vadd.f32 %v146, %v1181
  %v1183 = vpop.f32.mrf.mxu0
  %1184 = vdwg.mxu0
  %v1185 = vpack.c.bf16 %v1136, %v1136
  %1186 = vmatpush.bf16.msra.mxu0 %v450
  %1187 = vmatpush.bf16.msra.mxu0 %v447
  %1188 = vmatpush.bf16.msra.mxu0 %v444
  %1189 = vmatpush.bf16.msra.mxu0 %v441
  %1190 = vmatpush.bf16.msra.mxu0 %v438
  %1191 = vmatpush.bf16.msra.mxu0 %v435
  %1192 = vmatpush.bf16.msra.mxu0 %v432
  %1193 = vmatpush.bf16.msra.mxu0 %v429
  %1194 = vmatmul.bf16.gmra.mxu0 %v1185
  %v1195 = vpop.f32.mrf.mxu0
  %v1196 = vadd.f32 %v153, %v1195
  %v1197 = vpop.f32.mrf.mxu0
  %1198 = vdwg.mxu0
  %1199 = vmatpush.bf16.msra.mxu0 %v451
  %1200 = vmatpush.bf16.msra.mxu0 %v448
  %1201 = vmatpush.bf16.msra.mxu0 %v445
  %1202 = vmatpush.bf16.msra.mxu0 %v442
  %1203 = vmatpush.bf16.msra.mxu0 %v439
  %1204 = vmatpush.bf16.msra.mxu0 %v436
  %1205 = vmatpush.bf16.msra.mxu0 %v433
  %1206 = vmatpush.bf16.msra.mxu0 %v430
  %1207 = vmatmul.bf16.gmra.mxu0 %v1185
  %v1208 = vpop.f32.mrf.mxu0
  %v1209 = vadd.f32 %v154, %v1208
  %v1210 = vpop.f32.mrf.mxu0
  %1211 = vdwg.mxu0
  %1212 = vmatpush.bf16.msra.mxu0 %v452
  %1213 = vmatpush.bf16.msra.mxu0 %v449
  %1214 = vmatpush.bf16.msra.mxu0 %v446
  %1215 = vmatpush.bf16.msra.mxu0 %v443
  %1216 = vmatpush.bf16.msra.mxu0 %v440
  %1217 = vmatpush.bf16.msra.mxu0 %v437
  %1218 = vmatpush.bf16.msra.mxu0 %v434
  %1219 = vmatpush.bf16.msra.mxu0 %v431
  %1220 = vmatmul.bf16.gmra.mxu0 %v1185
  %v1221 = vpop.f32.mrf.mxu0
  %v1222 = vadd.f32 %v155, %v1221
  %v1223 = vpop.f32.mrf.mxu0
  %1224 = vdwg.mxu0
  %v1225 = vadd.f32 %v1140, %v1156
  %v1226 = vmul.f32 %v1225, 0.5
  %v1227 = vtanh.pop %v1226
  %v1228 = vadd.f32 %v1227, 1.0
  %v1229 = vmul.f32 %v1228, 0.5
  %v1231 = vrot.slane %v1140, 2
  %v1233 = vadd.f32 %v1231, %v1169
  %v1234 = vmul.f32 %v1233, 0.5
  %v1235 = vtanh.pop %v1234
  %v1236 = vadd.f32 %v1235, 1.0
  %v1237 = vmul.f32 %v1236, 0.5
  %v1238 = vmul.f32 %v1229, %v1182
  %v1239 = vrot.slane %v1140, 4
  %v1241 = vadd.f32 %v1239, %v1238
  %v1242 = vtanh.pop %v1241
  %v1243 = vsub.f32 1.0, %v1237
  %v1244 = vmul.f32 %v1243, %v1242
  %v1245 = vmul.f32 %v1237, %v1135
  %v1246 = vadd.f32 %v1244, %v1245
  %v1247 = vadd.f32 %v1144, %v1196
  %v1248 = vmul.f32 %v1247, 0.5
  %v1249 = vtanh.pop %v1248
  %v1250 = vadd.f32 %v1249, 1.0
  %v1251 = vmul.f32 %v1250, 0.5
  %v1253 = vrot.slane %v1144, 2
  %v1255 = vadd.f32 %v1253, %v1209
  %v1256 = vmul.f32 %v1255, 0.5
  %v1257 = vtanh.pop %v1256
  %v1258 = vadd.f32 %v1257, 1.0
  %v1259 = vmul.f32 %v1258, 0.5
  %v1260 = vmul.f32 %v1251, %v1222
  %v1261 = vrot.slane %v1144, 4
  %v1263 = vadd.f32 %v1261, %v1260
  %v1264 = vtanh.pop %v1263
  %v1265 = vsub.f32 1.0, %v1259
  %v1266 = vmul.f32 %v1265, %v1264
  %v1267 = vmul.f32 %v1259, %v1136
  %v1268 = vadd.f32 %v1266, %v1267
  %1269 = vst [vmem:[#allocation2] sm:$0x3] %v1246
  %1270 = vst [vmem:[#allocation3] sm:$0x3] %v1268
  %v1271 = vpack.c.bf16 %v1246, %v1246
  %s1272 = scalar_lea.vmem %s5, 5
  %1273 = vst [vmem:[%s1272] sm:$0x1] %v1271
  %v1274 = vpack.c.bf16 %v1268, %v1268
  %s1275 = scalar_lea.vmem %s57, 2
  %1276 = vst [vmem:[%s1275] sm:$0x1] %v1274
  %v1277 = vld [vmem:[#allocation2] sm:$0x3]
  %v1278 = vld [vmem:[#allocation3] sm:$0x3]
  %s1279 = scalar_lea.vmem %s0, 18
  %v1280 = vld [vmem:[%s1279] sm:$0x7]
  %v1281 = vunpack.c.l.bf16 %v1280
  %v1282 = vadd.f32 %v1281, %v168
  %s1283 = scalar_lea.vmem %s50, 3
  %v1284 = vld [vmem:[%s1283] sm:$0x7]
  %v1285 = vunpack.c.l.bf16 %v1284
  %v1286 = vadd.f32 %v1285, %v177
  %v1287 = vpack.c.bf16 %v1277, %v1277
  %1288 = vmatpush.bf16.msra.mxu0 %v282
  %1289 = vmatpush.bf16.msra.mxu0 %v279
  %1290 = vmatpush.bf16.msra.mxu0 %v276
  %1291 = vmatpush.bf16.msra.mxu0 %v273
  %1292 = vmatpush.bf16.msra.mxu0 %v270
  %1293 = vmatpush.bf16.msra.mxu0 %v267
  %1294 = vmatpush.bf16.msra.mxu0 %v264
  %1295 = vmatpush.bf16.msra.mxu0 %v261
  %1296 = vmatmul.bf16.gmra.mxu0 %v1287
  %v1297 = vpop.f32.mrf.mxu0
  %v1298 = vadd.f32 %v144, %v1297
  %v1299 = vpop.f32.mrf.mxu0
  %1300 = vdwg.mxu0
  %1301 = vmatpush.bf16.msra.mxu0 %v283
  %1302 = vmatpush.bf16.msra.mxu0 %v280
  %1303 = vmatpush.bf16.msra.mxu0 %v277
  %1304 = vmatpush.bf16.msra.mxu0 %v274
  %1305 = vmatpush.bf16.msra.mxu0 %v271
  %1306 = vmatpush.bf16.msra.mxu0 %v268
  %1307 = vmatpush.bf16.msra.mxu0 %v265
  %1308 = vmatpush.bf16.msra.mxu0 %v262
  %1309 = vmatmul.bf16.gmra.mxu0 %v1287
  %v1310 = vpop.f32.mrf.mxu0
  %v1311 = vadd.f32 %v145, %v1310
  %v1312 = vpop.f32.mrf.mxu0
  %1313 = vdwg.mxu0
  %1314 = vmatpush.bf16.msra.mxu0 %v284
  %1315 = vmatpush.bf16.msra.mxu0 %v281
  %1316 = vmatpush.bf16.msra.mxu0 %v278
  %1317 = vmatpush.bf16.msra.mxu0 %v275
  %1318 = vmatpush.bf16.msra.mxu0 %v272
  %1319 = vmatpush.bf16.msra.mxu0 %v269
  %1320 = vmatpush.bf16.msra.mxu0 %v266
  %1321 = vmatpush.bf16.msra.mxu0 %v263
  %1322 = vmatmul.bf16.gmra.mxu0 %v1287
  %v1323 = vpop.f32.mrf.mxu0
  %v1324 = vadd.f32 %v146, %v1323
  %v1325 = vpop.f32.mrf.mxu0
  %1326 = vdwg.mxu0
  %v1327 = vpack.c.bf16 %v1278, %v1278
  %1328 = vmatpush.bf16.msra.mxu0 %v450
  %1329 = vmatpush.bf16.msra.mxu0 %v447
  %1330 = vmatpush.bf16.msra.mxu0 %v444
  %1331 = vmatpush.bf16.msra.mxu0 %v441
  %1332 = vmatpush.bf16.msra.mxu0 %v438
  %1333 = vmatpush.bf16.msra.mxu0 %v435
  %1334 = vmatpush.bf16.msra.mxu0 %v432
  %1335 = vmatpush.bf16.msra.mxu0 %v429
  %1336 = vmatmul.bf16.gmra.mxu0 %v1327
  %v1337 = vpop.f32.mrf.mxu0
  %v1338 = vadd.f32 %v153, %v1337
  %v1339 = vpop.f32.mrf.mxu0
  %1340 = vdwg.mxu0
  %1341 = vmatpush.bf16.msra.mxu0 %v451
  %1342 = vmatpush.bf16.msra.mxu0 %v448
  %1343 = vmatpush.bf16.msra.mxu0 %v445
  %1344 = vmatpush.bf16.msra.mxu0 %v442
  %1345 = vmatpush.bf16.msra.mxu0 %v439
  %1346 = vmatpush.bf16.msra.mxu0 %v436
  %1347 = vmatpush.bf16.msra.mxu0 %v433
  %1348 = vmatpush.bf16.msra.mxu0 %v430
  %1349 = vmatmul.bf16.gmra.mxu0 %v1327
  %v1350 = vpop.f32.mrf.mxu0
  %v1351 = vadd.f32 %v154, %v1350
  %v1352 = vpop.f32.mrf.mxu0
  %1353 = vdwg.mxu0
  %1354 = vmatpush.bf16.msra.mxu0 %v452
  %1355 = vmatpush.bf16.msra.mxu0 %v449
  %1356 = vmatpush.bf16.msra.mxu0 %v446
  %1357 = vmatpush.bf16.msra.mxu0 %v443
  %1358 = vmatpush.bf16.msra.mxu0 %v440
  %1359 = vmatpush.bf16.msra.mxu0 %v437
  %1360 = vmatpush.bf16.msra.mxu0 %v434
  %1361 = vmatpush.bf16.msra.mxu0 %v431
  %1362 = vmatmul.bf16.gmra.mxu0 %v1327
  %v1363 = vpop.f32.mrf.mxu0
  %v1364 = vadd.f32 %v155, %v1363
  %v1365 = vpop.f32.mrf.mxu0
  %1366 = vdwg.mxu0
  %v1367 = vadd.f32 %v1282, %v1298
  %v1368 = vmul.f32 %v1367, 0.5
  %v1369 = vtanh.pop %v1368
  %v1370 = vadd.f32 %v1369, 1.0
  %v1371 = vmul.f32 %v1370, 0.5
  %v1373 = vrot.slane %v1282, 2
  %v1375 = vadd.f32 %v1373, %v1311
  %v1376 = vmul.f32 %v1375, 0.5
  %v1377 = vtanh.pop %v1376
  %v1378 = vadd.f32 %v1377, 1.0
  %v1379 = vmul.f32 %v1378, 0.5
  %v1380 = vmul.f32 %v1371, %v1324
  %v1381 = vrot.slane %v1282, 4
  %v1383 = vadd.f32 %v1381, %v1380
  %v1384 = vtanh.pop %v1383
  %v1385 = vsub.f32 1.0, %v1379
  %v1386 = vmul.f32 %v1385, %v1384
  %v1387 = vmul.f32 %v1379, %v1277
  %v1388 = vadd.f32 %v1386, %v1387
  %v1389 = vadd.f32 %v1286, %v1338
  %v1390 = vmul.f32 %v1389, 0.5
  %v1391 = vtanh.pop %v1390
  %v1392 = vadd.f32 %v1391, 1.0
  %v1393 = vmul.f32 %v1392, 0.5
  %v1395 = vrot.slane %v1286, 2
  %v1397 = vadd.f32 %v1395, %v1351
  %v1398 = vmul.f32 %v1397, 0.5
  %v1399 = vtanh.pop %v1398
  %v1400 = vadd.f32 %v1399, 1.0
  %v1401 = vmul.f32 %v1400, 0.5
  %v1402 = vmul.f32 %v1393, %v1364
  %v1403 = vrot.slane %v1286, 4
  %v1405 = vadd.f32 %v1403, %v1402
  %v1406 = vtanh.pop %v1405
  %v1407 = vsub.f32 1.0, %v1401
  %v1408 = vmul.f32 %v1407, %v1406
  %v1409 = vmul.f32 %v1401, %v1278
  %v1410 = vadd.f32 %v1408, %v1409
  %1411 = vst [vmem:[#allocation2] sm:$0x3] %v1388
  %1412 = vst [vmem:[#allocation3] sm:$0x3] %v1410
  %v1413 = vpack.c.bf16 %v1388, %v1388
  %s1414 = scalar_lea.vmem %s5, 6
  %1415 = vst [vmem:[%s1414] sm:$0x1] %v1413
  %v1416 = vpack.c.bf16 %v1410, %v1410
  %s1417 = scalar_lea.vmem %s57, 1
  %1418 = vst [vmem:[%s1417] sm:$0x1] %v1416
  %v1419 = vld [vmem:[#allocation2] sm:$0x3]
  %v1420 = vld [vmem:[#allocation3] sm:$0x3]
  %s1421 = scalar_lea.vmem %s0, 21
  %v1422 = vld [vmem:[%s1421] sm:$0x7]
  %v1423 = vunpack.c.l.bf16 %v1422
  %v1424 = vadd.f32 %v1423, %v168
  %v1425 = vld [vmem:[%s50] sm:$0x7]
  %v1426 = vunpack.c.l.bf16 %v1425
  %v1427 = vadd.f32 %v1426, %v177
  %v1428 = vpack.c.bf16 %v1419, %v1419
  %1429 = vmatpush.bf16.msra.mxu0 %v282
  %1430 = vmatpush.bf16.msra.mxu0 %v279
  %1431 = vmatpush.bf16.msra.mxu0 %v276
  %1432 = vmatpush.bf16.msra.mxu0 %v273
  %1433 = vmatpush.bf16.msra.mxu0 %v270
  %1434 = vmatpush.bf16.msra.mxu0 %v267
  %1435 = vmatpush.bf16.msra.mxu0 %v264
  %1436 = vmatpush.bf16.msra.mxu0 %v261
  %1437 = vmatmul.bf16.gmra.mxu0 %v1428
  %v1438 = vpop.f32.mrf.mxu0
  %v1439 = vadd.f32 %v144, %v1438
  %v1440 = vpop.f32.mrf.mxu0
  %1441 = vdwg.mxu0
  %1442 = vmatpush.bf16.msra.mxu0 %v283
  %1443 = vmatpush.bf16.msra.mxu0 %v280
  %1444 = vmatpush.bf16.msra.mxu0 %v277
  %1445 = vmatpush.bf16.msra.mxu0 %v274
  %1446 = vmatpush.bf16.msra.mxu0 %v271
  %1447 = vmatpush.bf16.msra.mxu0 %v268
  %1448 = vmatpush.bf16.msra.mxu0 %v265
  %1449 = vmatpush.bf16.msra.mxu0 %v262
  %1450 = vmatmul.bf16.gmra.mxu0 %v1428
  %v1451 = vpop.f32.mrf.mxu0
  %v1452 = vadd.f32 %v145, %v1451
  %v1453 = vpop.f32.mrf.mxu0
  %1454 = vdwg.mxu0
  %1455 = vmatpush.bf16.msra.mxu0 %v284
  %1456 = vmatpush.bf16.msra.mxu0 %v281
  %1457 = vmatpush.bf16.msra.mxu0 %v278
  %1458 = vmatpush.bf16.msra.mxu0 %v275
  %1459 = vmatpush.bf16.msra.mxu0 %v272
  %1460 = vmatpush.bf16.msra.mxu0 %v269
  %1461 = vmatpush.bf16.msra.mxu0 %v266
  %1462 = vmatpush.bf16.msra.mxu0 %v263
  %1463 = vmatmul.bf16.gmra.mxu0 %v1428
  %v1464 = vpop.f32.mrf.mxu0
  %v1465 = vadd.f32 %v146, %v1464
  %v1466 = vpop.f32.mrf.mxu0
  %1467 = vdwg.mxu0
  %v1468 = vpack.c.bf16 %v1420, %v1420
  %1469 = vmatpush.bf16.msra.mxu0 %v450
  %1470 = vmatpush.bf16.msra.mxu0 %v447
  %1471 = vmatpush.bf16.msra.mxu0 %v444
  %1472 = vmatpush.bf16.msra.mxu0 %v441
  %1473 = vmatpush.bf16.msra.mxu0 %v438
  %1474 = vmatpush.bf16.msra.mxu0 %v435
  %1475 = vmatpush.bf16.msra.mxu0 %v432
  %1476 = vmatpush.bf16.msra.mxu0 %v429
  %1477 = vmatmul.bf16.gmra.mxu0 %v1468
  %v1478 = vpop.f32.mrf.mxu0
  %v1479 = vadd.f32 %v153, %v1478
  %v1480 = vpop.f32.mrf.mxu0
  %1481 = vdwg.mxu0
  %1482 = vmatpush.bf16.msra.mxu0 %v451
  %1483 = vmatpush.bf16.msra.mxu0 %v448
  %1484 = vmatpush.bf16.msra.mxu0 %v445
  %1485 = vmatpush.bf16.msra.mxu0 %v442
  %1486 = vmatpush.bf16.msra.mxu0 %v439
  %1487 = vmatpush.bf16.msra.mxu0 %v436
  %1488 = vmatpush.bf16.msra.mxu0 %v433
  %1489 = vmatpush.bf16.msra.mxu0 %v430
  %1490 = vmatmul.bf16.gmra.mxu0 %v1468
  %v1491 = vpop.f32.mrf.mxu0
  %v1492 = vadd.f32 %v154, %v1491
  %v1493 = vpop.f32.mrf.mxu0
  %1494 = vdwg.mxu0
  %1495 = vmatpush.bf16.msra.mxu0 %v452
  %1496 = vmatpush.bf16.msra.mxu0 %v449
  %1497 = vmatpush.bf16.msra.mxu0 %v446
  %1498 = vmatpush.bf16.msra.mxu0 %v443
  %1499 = vmatpush.bf16.msra.mxu0 %v440
  %1500 = vmatpush.bf16.msra.mxu0 %v437
  %1501 = vmatpush.bf16.msra.mxu0 %v434
  %1502 = vmatpush.bf16.msra.mxu0 %v431
  %1503 = vmatmul.bf16.gmra.mxu0 %v1468
  %v1504 = vpop.f32.mrf.mxu0
  %v1505 = vadd.f32 %v155, %v1504
  %v1506 = vpop.f32.mrf.mxu0
  %1507 = vdwg.mxu0
  %v1508 = vadd.f32 %v1424, %v1439
  %v1509 = vmul.f32 %v1508, 0.5
  %v1510 = vtanh.pop %v1509
  %v1511 = vadd.f32 %v1510, 1.0
  %v1512 = vmul.f32 %v1511, 0.5
  %v1514 = vrot.slane %v1424, 2
  %v1516 = vadd.f32 %v1514, %v1452
  %v1517 = vmul.f32 %v1516, 0.5
  %v1518 = vtanh.pop %v1517
  %v1519 = vadd.f32 %v1518, 1.0
  %v1520 = vmul.f32 %v1519, 0.5
  %v1521 = vmul.f32 %v1512, %v1465
  %v1522 = vrot.slane %v1424, 4
  %v1524 = vadd.f32 %v1522, %v1521
  %v1525 = vtanh.pop %v1524
  %v1526 = vsub.f32 1.0, %v1520
  %v1527 = vmul.f32 %v1526, %v1525
  %v1528 = vmul.f32 %v1520, %v1419
  %v1529 = vadd.f32 %v1527, %v1528
  %v1530 = vadd.f32 %v1427, %v1479
  %v1531 = vmul.f32 %v1530, 0.5
  %v1532 = vtanh.pop %v1531
  %v1533 = vadd.f32 %v1532, 1.0
  %v1534 = vmul.f32 %v1533, 0.5
  %v1536 = vrot.slane %v1427, 2
  %v1538 = vadd.f32 %v1536, %v1492
  %v1539 = vmul.f32 %v1538, 0.5
  %v1540 = vtanh.pop %v1539
  %v1541 = vadd.f32 %v1540, 1.0
  %v1542 = vmul.f32 %v1541, 0.5
  %v1543 = vmul.f32 %v1534, %v1505
  %v1544 = vrot.slane %v1427, 4
  %v1546 = vadd.f32 %v1544, %v1543
  %v1547 = vtanh.pop %v1546
  %v1548 = vsub.f32 1.0, %v1542
  %v1549 = vmul.f32 %v1548, %v1547
  %v1550 = vmul.f32 %v1542, %v1420
  %v1551 = vadd.f32 %v1549, %v1550
  %1552 = vst [vmem:[#allocation2] sm:$0x3] %v1529
  %1553 = vst [vmem:[#allocation3] sm:$0x3] %v1551
  %v1554 = vpack.c.bf16 %v1529, %v1529
  %s1555 = scalar_lea.vmem %s5, 7
  %1556 = vst [vmem:[%s1555] sm:$0x1] %v1554
  %v1557 = vpack.c.bf16 %v1551, %v1551
  %1558 = vst [vmem:[%s57] sm:$0x1] %v1557
  %v1559 = vld [vmem:[#allocation2] sm:$0x3]
  %1560 = vst [vmem:[%s7] sm:$0x3] %v1559
  %v1561 = vld [vmem:[#allocation3] sm:$0x3]
  %s1562 = scalar_lea.vmem %s7, 2
  %1563 = vst [vmem:[%s1562] sm:$0x3] %v1561
  %s1564 = ssub.s32 0, 0
  %s1565 = smul.u32 8, %s1564
  %p1566 = scmp.lt.s32.totalorder %s1565, 7
  %s1567 = scalar_select %p1566, %s1565, 7
  %s1568 = scalar_lea.vmem %s6, %s1567
  // Predicated region
  $region26: #{encoder_forward.3} parent=0 // pred_check
    _
  $region27: #{encoder_forward.3} parent=0 // pred_check_branch
    %1570 = sbr.rel (0) target = $region29
  $region28: #{encoder_forward.3} parent=0 // pred_region
    _
  $region29: #{encoder_forward.3} parent=0 // pred_fallthru
    _
  // Predicated region
  $region30: #{encoder_forward.3} parent=0 // pred_check
    _
  $region31: #{encoder_forward.3} parent=0 // pred_check_branch
    %1572 = sbr.rel (0) target = $region33
  $region32: #{encoder_forward.3} parent=0 // pred_region
    %s1573 = ssub.s32 0, 0
    %s1574 = smul.u32 8, %s1573
  $region33: #{encoder_forward.3} parent=0 // pred_fallthru
    _
  // Predicated region
  $region34: #{encoder_forward.3} parent=0 // pred_check
    _
  $region35: #{encoder_forward.3} parent=0 // pred_check_branch
    %1576 = sbr.rel (0) target = $region37
  $region36: #{encoder_forward.3} parent=0 // pred_region
    _
  $region37: #{encoder_forward.3} parent=0 // pred_fallthru
    _
  // Predicated region
  $region38: #{encoder_forward.3} parent=0 // pred_check
    _
  $region39: #{encoder_forward.3} parent=0 // pred_check_branch
    %1578 = sbr.rel (0) target = $region41
  $region40: #{encoder_forward.3} parent=0 // pred_region
    _
  $region41: #{encoder_forward.3} parent=0 // pred_fallthru
    _
  // Predicated region
  $region42: #{encoder_forward.3} parent=0 // pred_check
    _
  $region43: #{encoder_forward.3} parent=0 // pred_check_branch
    %1580 = sbr.rel (0) target = $region45
  $region44: #{encoder_forward.3} parent=0 // pred_region
    %s1581 = ssub.s32 0, 0
    %s1582 = smul.u32 8, %s1581
    %p1583 = scmp.lt.s32.totalorder %s1582, 7
    %s1584 = scalar_select %p1583, %s1582, 7
    %s1585 = scalar_lea.vmem %s6, %s1584
  $region45: #{encoder_forward.3} parent=0 // pred_fallthru
    _
  // Predicated region
  $region46: #{encoder_forward.3} parent=0 // pred_check
    _
  $region47: #{encoder_forward.3} parent=0 // pred_check_branch
    %1587 = sbr.rel (0) target = $region49
  $region48: #{encoder_forward.3} parent=0 // pred_region
    _
  $region49: #{encoder_forward.3} parent=0 // pred_fallthru
    _

// kernel: encoder_forward.2
$region0: #{encoder_forward.2}
  #allocation0 [shape = 'u32[]', space=smem, size = 0x4, offset = 0x4, fixed_abs, tag = 'smem constant byte address 0x4 - core index']
  #allocation1 [shape = 'u32[72,128]{1,0:T(1,128)}', space=vmem, size = 0x9000, scoped, tag = 'internal scratch']
  #allocation2 [shape = 'f32[2,128]{1,0:T(2,128)}', space=vmem, size = 0x400, scoped, tag = 'scratch operand']
  #allocation3 [shape = 'f32[2,128]{1,0:T(2,128)}', space=vmem, size = 0x400, scoped, tag = 'scratch operand']
  %s0 = inlined_call_operand.vmem [shape: bf16[2,8,2,384], index: 0, kind: input, shape index: {}, may-alias: {0,1}]
  %s1 = inlined_call_operand.vmem [shape: bf16[2,8,2,384], index: 1, kind: input, shape index: {}, may-alias: {0,1}]
  %s2 = inlined_call_operand.hbm [shape: bf16[2,128,384], index: 2, kind: input, shape index: {}]
  %s3 = inlined_call_operand.vmem [shape: f32[2,1,384], index: 3, kind: input, shape index: {}]
  %s4 = inlined_call_operand.vmem [shape: f32[2,1,384], index: 4, kind: input, shape index: {}]
  %s5 = inlined_call_operand.vmem [shape: bf16[8,2,128], index: 5, kind: output, shape index: {0}]
  %s6 = inlined_call_operand.vmem [shape: bf16[8,2,128], index: 6, kind: output, shape index: {1}]
  %s7 = inlined_call_operand.vmem [shape: f32[2,2,128], index: 7, kind: output, shape index: {2}]
  %8 = xla_tuple %s5, %s6, %s7
  %s9 = sld [smem:[#allocation0]]
  $region54: #{encoder_forward.2} parent=0
    _
  %s11 = ssub.s32 1, %s9
  %s12 = scalar_select 0, %s11, %s9
  $region1: #{encoder_forward.2} parent=0
    #allocation4 [shape = 'u8[196608]{0}', space=vmem, size = 0x30000, scoped, tag = 'input window, operand 2, single buffered']
    #allocation5 [shape = 's32[1]{0}', space=sflag, size = 0x4, scoped, tag = 'scoped memory for encoder_forward.2']
    %13 = vsyncpa [#allocation5], 0
    // Predicated region
    $region2: #{encoder_forward.2} parent=1 // pred_check
      _
    $region3: #{encoder_forward.2} parent=1 // pred_check_branch
      %15 = sbr.rel (0) target = $region5
    $region4: #{encoder_forward.2} parent=1 // pred_region
      _
    $region5: #{encoder_forward.2} parent=1 // pred_fallthru
      _
    // Predicated region
    $region6: #{encoder_forward.2} parent=1 // pred_check
      _
    $region7: #{encoder_forward.2} parent=1 // pred_check_branch
      %17 = sbr.rel (0) target = $region9
    $region8: #{encoder_forward.2} parent=1 // pred_region
      %s18 = ssub.s32 0, 0
      %s19 = smul.u32 8, %s18
      %p20 = scmp.lt.s32.totalorder %s19, 7
      %s21 = scalar_select %p20, %s19, 7
      %s22 = smul.addr %s21, 3
      %s23 = sadd.s32 %s22, 24
      %s24 = scalar_lea.vmem %s1, %s23
      %s25 = ssub.s32 0, 0
      %s26 = smul.u32 8, %s25
    $region9: #{encoder_forward.2} parent=1 // pred_fallthru
      _
    // Predicated region
    $region10: #{encoder_forward.2} parent=1 // pred_check
      _
    $region11: #{encoder_forward.2} parent=1 // pred_check_branch
      %28 = sbr.rel (0) target = $region13
    $region12: #{encoder_forward.2} parent=1 // pred_region
      %30 = vsyncadd [#allocation5], 0
      %s31 = sshll.u32 %s2, 4
      %s32 = int_to_ptr.hbm [resolvable:$true] %s31
      %s33 = sshll.u32 [#allocation4], 4
      %s34 = int_to_ptr.vmem [resolvable:$true] %s33
      %39 = dma.hbm_to_vmem [thread:$0]  %s32, 6144, %s34, [#allocation5], 192, 192, 12
    $region13: #{encoder_forward.2} parent=1 // pred_fallthru
      _
    // Predicated region
    $region14: #{encoder_forward.2} parent=1 // pred_check
      _
    $region15: #{encoder_forward.2} parent=1 // pred_check_branch
      %41 = sbr.rel (0) target = $region17
    $region16: #{encoder_forward.2} parent=1 // pred_region
      _
    $region17: #{encoder_forward.2} parent=1 // pred_fallthru
      _
    // Predicated region
    $region18: #{encoder_forward.2} parent=1 // pred_check
      _
    $region19: #{encoder_forward.2} parent=1 // pred_check_branch
      %43 = sbr.rel (0) target = $region21
    $region20: #{encoder_forward.2} parent=1 // pred_region
      _
    $region21: #{encoder_forward.2} parent=1 // pred_fallthru
      _
    // Predicated region
    $region22: #{encoder_forward.2} parent=1 // pred_check
      _
    $region23: #{encoder_forward.2} parent=1 // pred_check_branch
      %45 = sbr.rel (0) target = $region25
    $region24: #{encoder_forward.2} parent=1 // pred_region
      %47 = dma.done [#allocation5], 6144
    $region25: #{encoder_forward.2} parent=1 // pred_fallthru
      _
    %s48 = ssub.s32 0, 0
    %s49 = smul.u32 8, %s48
    %p50 = scmp.lt.s32.totalorder %s49, 7
    %s51 = scalar_select %p50, %s49, 7
    %s52 = smul.addr %s51, 3
    %s53 = sadd.s32 %s52, 24
    %s54 = scalar_lea.vmem %s1, %s53
    %s55 = ssub.s32 0, 0
    %s56 = smul.u32 8, %s55
    %p57 = scmp.lt.s32.totalorder %s56, 7
    %s58 = scalar_select %p57, %s56, 7
    %s59 = scalar_lea.vmem %s6, %s58
    %s60 = ssub.s32 0, 0
    %s61 = smul.u32 8, %s60
    %p62 = scmp.lt.s32.totalorder %s61, 7
    %s63 = scalar_select %p62, %s61, 7
    %s64 = smul.addr %s63, 3
    %s65 = sadd.s32 %s64, 24
    %s66 = scalar_lea.vmem %s1, %s65
    %s67 = ssub.s32 0, 0
    %s68 = smul.u32 8, %s67
    %s69 = ssub.s32 0, 0
    %s70 = smul.u32 8, %s69
    %p71 = scmp.lt.s32.totalorder %s70, 7
    %s72 = scalar_select %p71, %s70, 7
    %s73 = scalar_lea.vmem %s6, %s72
    %s74 = ssub.s32 0, 0
    %s75 = smul.u32 8, %s74
    %p76 = scmp.eq.s32.totalorder 0, 0
    // Predicated region
    $region26: #{encoder_forward.2} parent=1 // pred_check
      %p77 = pneg %p76
    $region27: #{encoder_forward.2} parent=1 // pred_check_branch
      %79 = sbr.rel (%p77) target = $region29
    $region28: #{encoder_forward.2} parent=1 // pred_region
      %80 = vst [vmem:[#allocation2] sm:$0x3] 0.0
      %81 = vst [vmem:[#allocation3] sm:$0x3] 0.0
    $region29: #{encoder_forward.2} parent=1 // pred_fallthru
      _
    %v82 = vld [vmem:[#allocation4] sm:$0xff]
    %v83 = vld [vmem:[#allocation4 + $0x8] sm:$0xf]
    %v84 = vld [vmem:[#allocation4 + $0xc] sm:$0xff]
    %v85 = vld [vmem:[#allocation4 + $0x14] sm:$0xf]
    %v86 = vld [vmem:[#allocation4 + $0x18] sm:$0xff]
    %v87 = vld [vmem:[#allocation4 + $0x20] sm:$0xf]
    %v88 = vld [vmem:[#allocation4 + $0x24] sm:$0xff]
    %v89 = vld [vmem:[#allocation4 + $0x2c] sm:$0xf]
    %v90 = vld [vmem:[#allocation4 + $0x30] sm:$0xff]
    %v91 = vld [vmem:[#allocation4 + $0x38] sm:$0xf]
    %v92 = vld [vmem:[#allocation4 + $0x3c] sm:$0xff]
    %v93 = vld [vmem:[#allocation4 + $0x44] sm:$0xf]
    %v94 = vld [vmem:[#allocation4 + $0x48] sm:$0xff]
    %v95 = vld [vmem:[#allocation4 + $0x50] sm:$0xf]
    %v96 = vld [vmem:[#allocation4 + $0x54] sm:$0xff]
    %v97 = vld [vmem:[#allocation4 + $0x5c] sm:$0xf]
    %v98 = vld [vmem:[#allocation4 + $0x60] sm:$0xff]
    %v99 = vld [vmem:[#allocation4 + $0x68] sm:$0xf]
    %v100 = vld [vmem:[#allocation4 + $0x6c] sm:$0xff]
    %v101 = vld [vmem:[#allocation4 + $0x74] sm:$0xf]
    %v102 = vld [vmem:[#allocation4 + $0x78] sm:$0xff]
    %v103 = vld [vmem:[#allocation4 + $0x80] sm:$0xf]
    %v104 = vld [vmem:[#allocation4 + $0x84] sm:$0xff]
    %v105 = vld [vmem:[#allocation4 + $0x8c] sm:$0xf]
    %v106 = vld [vmem:[#allocation4 + $0x90] sm:$0xff]
    %v107 = vld [vmem:[#allocation4 + $0x98] sm:$0xf]
    %v108 = vld [vmem:[#allocation4 + $0x9c] sm:$0xff]
    %v109 = vld [vmem:[#allocation4 + $0xa4] sm:$0xf]
    %v110 = vld [vmem:[#allocation4 + $0xa8] sm:$0xff]
    %v111 = vld [vmem:[#allocation4 + $0xb0] sm:$0xf]
    %v112 = vld [vmem:[#allocation4 + $0xb4] sm:$0xff]
    %v113 = vld [vmem:[#allocation4 + $0xbc] sm:$0xf]
    %s114 = scalar_lea.vmem [#allocation4], 192
    %v115 = vld [vmem:[%s114] sm:$0xff]
    %v116 = vld [vmem:[%s114 + $0x8] sm:$0xf]
    %v117 = vld [vmem:[%s114 + $0xc] sm:$0xff]
    %v118 = vld [vmem:[%s114 + $0x14] sm:$0xf]
    %v119 = vld [vmem:[%s114 + $0x18] sm:$0xff]
    %v120 = vld [vmem:[%s114 + $0x20] sm:$0xf]
    %v121 = vld [vmem:[%s114 + $0x24] sm:$0xff]
    %v122 = vld [vmem:[%s114 + $0x2c] sm:$0xf]
    %v123 = vld [vmem:[%s114 + $0x30] sm:$0xff]
    %v124 = vld [vmem:[%s114 + $0x38] sm:$0xf]
    %v125 = vld [vmem:[%s114 + $0x3c] sm:$0xff]
    %v126 = vld [vmem:[%s114 + $0x44] sm:$0xf]
    %v127 = vld [vmem:[%s114 + $0x48] sm:$0xff]
    %v128 = vld [vmem:[%s114 + $0x50] sm:$0xf]
    %v129 = vld [vmem:[%s114 + $0x54] sm:$0xff]
    %v130 = vld [vmem:[%s114 + $0x5c] sm:$0xf]
    %v131 = vld [vmem:[%s114 + $0x60] sm:$0xff]
    %v132 = vld [vmem:[%s114 + $0x68] sm:$0xf]
    %v133 = vld [vmem:[%s114 + $0x6c] sm:$0xff]
    %v134 = vld [vmem:[%s114 + $0x74] sm:$0xf]
    %v135 = vld [vmem:[%s114 + $0x78] sm:$0xff]
    %v136 = vld [vmem:[%s114 + $0x80] sm:$0xf]
    %v137 = vld [vmem:[%s114 + $0x84] sm:$0xff]
    %v138 = vld [vmem:[%s114 + $0x8c] sm:$0xf]
    %v139 = vld [vmem:[%s114 + $0x90] sm:$0xff]
    %v140 = vld [vmem:[%s114 + $0x98] sm:$0xf]
    %v141 = vld [vmem:[%s114 + $0x9c] sm:$0xff]
    %v142 = vld [vmem:[%s114 + $0xa4] sm:$0xf]
    %v143 = vld [vmem:[%s114 + $0xa8] sm:$0xff]
    %v144 = vld [vmem:[%s114 + $0xb0] sm:$0xf]
    %v145 = vld [vmem:[%s114 + $0xb4] sm:$0xff]
    %v146 = vld [vmem:[%s114 + $0xbc] sm:$0xf]
    %v147 = vld [vmem:[%s3] sm:$0x7]
    %v149 = vperm.slane %v147, 0
    %v150 = vperm.slane %v147, 1
    %v151 = vperm.slane %v147, 2
    %s152 = scalar_lea.vmem %s3, 3
    %v153 = vld [vmem:[%s152] sm:$0x7]
    %v155 = vperm.slane %v153, 0
    %v156 = vperm.slane %v153, 1
    %v157 = vperm.slane %v153, 2
    %v158 = vld [vmem:[%s4] sm:$0x7]
    %v160 = vperm.slane %v158, 0
    %v161 = vperm.slane %v158, 1
    %v162 = vperm.slane %v158, 2
    %s166 = scalar_lea.vmem %s4, 3
    %v167 = vld [vmem:[%s166] sm:$0x7]
    %v169 = vperm.slane %v167, 0
    %v170 = vperm.slane %v167, 1
    %v171 = vperm.slane %v167, 2
    %v175 = vld [vmem:[#allocation2] sm:$0x3]
    %v176 = vld [vmem:[#allocation3] sm:$0x3]
    %v177 = vld [vmem:[%s0] sm:$0x7]
    %v178 = vunpack.c.l.bf16 %v177
    %v179 = vrot.slane %v150, 6
    %v180 = vrot.slane %v151, 4
    %vm181 = vcmask 1041408
    %v182 = vsel %vm181, %v149, %v179
    %vm183 = vcmask 1043456
    %v184 = vsel %vm183, %v182, %v180
    %v186 = vadd.f32 %v178, %v184
    %s187 = scalar_lea.vmem %s66, 21
    %v188 = vld [vmem:[%s187] sm:$0x7]
    %v189 = vunpack.c.l.bf16 %v188
    %v190 = vrot.slane %v156, 6
    %v191 = vrot.slane %v157, 4
    %v192 = vsel %vm181, %v155, %v190
    %v193 = vsel %vm183, %v192, %v191
    %v195 = vadd.f32 %v189, %v193
    %v196 = vpack.c.bf16 %v175, %v175
    %v229 = vunpack.c.l.b16 %v82
    %v230 = vunpack.c.h.b16 %v82
    %v231 = vunpack.c.l.b16 %v83
    %v232 = vunpack.c.l.b16 %v84
    %v233 = vunpack.c.h.b16 %v84
    %v234 = vunpack.c.l.b16 %v85
    %v235 = vunpack.c.l.b16 %v86
    %v236 = vunpack.c.h.b16 %v86
    %v237 = vunpack.c.l.b16 %v87
    %v238 = vunpack.c.l.b16 %v88
    %v239 = vunpack.c.h.b16 %v88
    %v240 = vunpack.c.l.b16 %v89
    %v241 = vunpack.c.l.b16 %v90
    %v242 = vunpack.c.h.b16 %v90
    %v243 = vunpack.c.l.b16 %v91
    %v244 = vunpack.c.l.b16 %v92
    %v245 = vunpack.c.h.b16 %v92
    %v246 = vunpack.c.l.b16 %v93
    %v247 = vunpack.c.l.b16 %v94
    %v248 = vunpack.c.h.b16 %v94
    %v249 = vunpack.c.l.b16 %v95
    %v250 = vunpack.c.l.b16 %v96
    %v251 = vunpack.c.h.b16 %v96
    %v252 = vunpack.c.l.b16 %v97
    %v253 = vunpack.c.l.b16 %v98
    %v254 = vunpack.c.h.b16 %v98
    %v255 = vunpack.c.l.b16 %v99
    %v256 = vunpack.c.l.b16 %v100
    %v257 = vunpack.c.h.b16 %v100
    %v258 = vunpack.c.l.b16 %v101
    %v259 = vunpack.c.l.b16 %v102
    %v260 = vunpack.c.h.b16 %v102
    %v261 = vunpack.c.l.b16 %v103
    %v262 = vunpack.c.l.b16 %v104
    %v263 = vunpack.c.h.b16 %v104
    %v264 = vunpack.c.l.b16 %v105
    %v265 = vunpack.c.l.b16 %v106
    %v266 = vunpack.c.h.b16 %v106
    %v267 = vunpack.c.l.b16 %v107
    %v268 = vunpack.c.l.b16 %v108
    %v269 = vunpack.c.h.b16 %v108
    %v270 = vunpack.c.l.b16 %v109
    %v271 = vunpack.c.l.b16 %v110
    %v272 = vunpack.c.h.b16 %v110
    %v273 = vunpack.c.l.b16 %v111
    %v274 = vunpack.c.l.b16 %v112
    %v275 = vunpack.c.h.b16 %v112
    %v276 = vunpack.c.l.b16 %v113
    %v277 = vpack.c.b16 %v232, %v229
    %v278 = vpack.c.b16 %v233, %v230
    %v279 = vpack.c.b16 %v234, %v231
    %v280 = vpack.c.b16 %v238, %v235
    %v281 = vpack.c.b16 %v239, %v236
    %v282 = vpack.c.b16 %v240, %v237
    %v283 = vpack.c.b16 %v244, %v241
    %v284 = vpack.c.b16 %v245, %v242
    %v285 = vpack.c.b16 %v246, %v243
    %v286 = vpack.c.b16 %v250, %v247
    %v287 = vpack.c.b16 %v251, %v248
    %v288 = vpack.c.b16 %v252, %v249
    %v289 = vpack.c.b16 %v256, %v253
    %v290 = vpack.c.b16 %v257, %v254
    %v291 = vpack.c.b16 %v258, %v255
    %v292 = vpack.c.b16 %v262, %v259
    %v293 = vpack.c.b16 %v263, %v260
    %v294 = vpack.c.b16 %v264, %v261
    %v295 = vpack.c.b16 %v268, %v265
    %v296 = vpack.c.b16 %v269, %v266
    %v297 = vpack.c.b16 %v270, %v267
    %v298 = vpack.c.b16 %v274, %v271
    %v299 = vpack.c.b16 %v275, %v272
    %v300 = vpack.c.b16 %v276, %v273
    %325 = vmatpush.bf16.msra.mxu0 %v298
    %326 = vmatpush.bf16.msra.mxu0 %v295
    %327 = vmatpush.bf16.msra.mxu0 %v292
    %328 = vmatpush.bf16.msra.mxu0 %v289
    %329 = vmatpush.bf16.msra.mxu0 %v286
    %330 = vmatpush.bf16.msra.mxu0 %v283
    %331 = vmatpush.bf16.msra.mxu0 %v280
    %332 = vmatpush.bf16.msra.mxu0 %v277
    %333 = vmatmul.bf16.gmra.mxu0 %v196
    %v334 = vpop.f32.mrf.mxu0
    %v335 = vadd.f32 %v160, %v334
    %v336 = vpop.f32.mrf.mxu0
    %337 = vdwg.mxu0
    %338 = vmatpush.bf16.msra.mxu0 %v299
    %339 = vmatpush.bf16.msra.mxu0 %v296
    %340 = vmatpush.bf16.msra.mxu0 %v293
    %341 = vmatpush.bf16.msra.mxu0 %v290
    %342 = vmatpush.bf16.msra.mxu0 %v287
    %343 = vmatpush.bf16.msra.mxu0 %v284
    %344 = vmatpush.bf16.msra.mxu0 %v281
    %345 = vmatpush.bf16.msra.mxu0 %v278
    %346 = vmatmul.bf16.gmra.mxu0 %v196
    %v347 = vpop.f32.mrf.mxu0
    %v348 = vadd.f32 %v161, %v347
    %v349 = vpop.f32.mrf.mxu0
    %350 = vdwg.mxu0
    %351 = vmatpush.bf16.msra.mxu0 %v300
    %352 = vmatpush.bf16.msra.mxu0 %v297
    %353 = vmatpush.bf16.msra.mxu0 %v294
    %354 = vmatpush.bf16.msra.mxu0 %v291
    %355 = vmatpush.bf16.msra.mxu0 %v288
    %356 = vmatpush.bf16.msra.mxu0 %v285
    %357 = vmatpush.bf16.msra.mxu0 %v282
    %358 = vmatpush.bf16.msra.mxu0 %v279
    %359 = vmatmul.bf16.gmra.mxu0 %v196
    %v360 = vpop.f32.mrf.mxu0
    %v361 = vadd.f32 %v162, %v360
    %v362 = vpop.f32.mrf.mxu0
    %363 = vdwg.mxu0
    %v364 = vpack.c.bf16 %v176, %v176
    %v397 = vunpack.c.l.b16 %v115
    %v398 = vunpack.c.h.b16 %v115
    %v399 = vunpack.c.l.b16 %v116
    %v400 = vunpack.c.l.b16 %v117
    %v401 = vunpack.c.h.b16 %v117
    %v402 = vunpack.c.l.b16 %v118
    %v403 = vunpack.c.l.b16 %v119
    %v404 = vunpack.c.h.b16 %v119
    %v405 = vunpack.c.l.b16 %v120
    %v406 = vunpack.c.l.b16 %v121
    %v407 = vunpack.c.h.b16 %v121
    %v408 = vunpack.c.l.b16 %v122
    %v409 = vunpack.c.l.b16 %v123
    %v410 = vunpack.c.h.b16 %v123
    %v411 = vunpack.c.l.b16 %v124
    %v412 = vunpack.c.l.b16 %v125
    %v413 = vunpack.c.h.b16 %v125
    %v414 = vunpack.c.l.b16 %v126
    %v415 = vunpack.c.l.b16 %v127
    %v416 = vunpack.c.h.b16 %v127
    %v417 = vunpack.c.l.b16 %v128
    %v418 = vunpack.c.l.b16 %v129
    %v419 = vunpack.c.h.b16 %v129
    %v420 = vunpack.c.l.b16 %v130
    %v421 = vunpack.c.l.b16 %v131
    %v422 = vunpack.c.h.b16 %v131
    %v423 = vunpack.c.l.b16 %v132
    %v424 = vunpack.c.l.b16 %v133
    %v425 = vunpack.c.h.b16 %v133
    %v426 = vunpack.c.l.b16 %v134
    %v427 = vunpack.c.l.b16 %v135
    %v428 = vunpack.c.h.b16 %v135
    %v429 = vunpack.c.l.b16 %v136
    %v430 = vunpack.c.l.b16 %v137
    %v431 = vunpack.c.h.b16 %v137
    %v432 = vunpack.c.l.b16 %v138
    %v433 = vunpack.c.l.b16 %v139
    %v434 = vunpack.c.h.b16 %v139
    %v435 = vunpack.c.l.b16 %v140
    %v436 = vunpack.c.l.b16 %v141
    %v437 = vunpack.c.h.b16 %v141
    %v438 = vunpack.c.l.b16 %v142
    %v439 = vunpack.c.l.b16 %v143
    %v440 = vunpack.c.h.b16 %v143
    %v441 = vunpack.c.l.b16 %v144
    %v442 = vunpack.c.l.b16 %v145
    %v443 = vunpack.c.h.b16 %v145
    %v444 = vunpack.c.l.b16 %v146
    %v445 = vpack.c.b16 %v400, %v397
    %v446 = vpack.c.b16 %v401, %v398
    %v447 = vpack.c.b16 %v402, %v399
    %v448 = vpack.c.b16 %v406, %v403
    %v449 = vpack.c.b16 %v407, %v404
    %v450 = vpack.c.b16 %v408, %v405
    %v451 = vpack.c.b16 %v412, %v409
    %v452 = vpack.c.b16 %v413, %v410
    %v453 = vpack.c.b16 %v414, %v411
    %v454 = vpack.c.b16 %v418, %v415
    %v455 = vpack.c.b16 %v419, %v416
    %v456 = vpack.c.b16 %v420, %v417
    %v457 = vpack.c.b16 %v424, %v421
    %v458 = vpack.c.b16 %v425, %v422
    %v459 = vpack.c.b16 %v426, %v423
    %v460 = vpack.c.b16 %v430, %v427
    %v461 = vpack.c.b16 %v431, %v428
    %v462 = vpack.c.b16 %v432, %v429
    %v463 = vpack.c.b16 %v436, %v433
    %v464 = vpack.c.b16 %v437, %v434
    %v465 = vpack.c.b16 %v438, %v435
    %v466 = vpack.c.b16 %v442, %v439
    %v467 = vpack.c.b16 %v443, %v440
    %v468 = vpack.c.b16 %v444, %v441
    %493 = vmatpush.bf16.msra.mxu0 %v466
    %494 = vmatpush.bf16.msra.mxu0 %v463
    %495 = vmatpush.bf16.msra.mxu0 %v460
    %496 = vmatpush.bf16.msra.mxu0 %v457
    %497 = vmatpush.bf16.msra.mxu0 %v454
    %498 = vmatpush.bf16.msra.mxu0 %v451
    %499 = vmatpush.bf16.msra.mxu0 %v448
    %500 = vmatpush.bf16.msra.mxu0 %v445
    %501 = vmatmul.bf16.gmra.mxu0 %v364
    %v502 = vpop.f32.mrf.mxu0
    %v503 = vadd.f32 %v169, %v502
    %v504 = vpop.f32.mrf.mxu0
    %505 = vdwg.mxu0
    %506 = vmatpush.bf16.msra.mxu0 %v467
    %507 = vmatpush.bf16.msra.mxu0 %v464
    %508 = vmatpush.bf16.msra.mxu0 %v461
    %509 = vmatpush.bf16.msra.mxu0 %v458
    %510 = vmatpush.bf16.msra.mxu0 %v455
    %511 = vmatpush.bf16.msra.mxu0 %v452
    %512 = vmatpush.bf16.msra.mxu0 %v449
    %513 = vmatpush.bf16.msra.mxu0 %v446
    %514 = vmatmul.bf16.gmra.mxu0 %v364
    %v515 = vpop.f32.mrf.mxu0
    %v516 = vadd.f32 %v170, %v515
    %v517 = vpop.f32.mrf.mxu0
    %518 = vdwg.mxu0
    %519 = vmatpush.bf16.msra.mxu0 %v468
    %520 = vmatpush.bf16.msra.mxu0 %v465
    %521 = vmatpush.bf16.msra.mxu0 %v462
    %522 = vmatpush.bf16.msra.mxu0 %v459
    %523 = vmatpush.bf16.msra.mxu0 %v456
    %524 = vmatpush.bf16.msra.mxu0 %v453
    %525 = vmatpush.bf16.msra.mxu0 %v450
    %526 = vmatpush.bf16.msra.mxu0 %v447
    %527 = vmatmul.bf16.gmra.mxu0 %v364
    %v528 = vpop.f32.mrf.mxu0
    %v529 = vadd.f32 %v171, %v528
    %v530 = vpop.f32.mrf.mxu0
    %531 = vdwg.mxu0
    %v532 = vadd.f32 %v186, %v335
    %v533 = vmul.f32 %v532, 0.5
    %v534 = vtanh.pop %v533
    %v535 = vadd.f32 %v534, 1.0
    %v536 = vmul.f32 %v535, 0.5
    %v538 = vrot.slane %v186, 2
    %v540 = vadd.f32 %v538, %v348
    %v541 = vmul.f32 %v540, 0.5
    %v542 = vtanh.pop %v541
    %v543 = vadd.f32 %v542, 1.0
    %v544 = vmul.f32 %v543, 0.5
    %v545 = vmul.f32 %v536, %v361
    %v546 = vrot.slane %v186, 4
    %v548 = vadd.f32 %v546, %v545
    %v549 = vtanh.pop %v548
    %v550 = vsub.f32 1.0, %v544
    %v551 = vmul.f32 %v550, %v549
    %v552 = vmul.f32 %v544, %v175
    %v553 = vadd.f32 %v551, %v552
    %v554 = vadd.f32 %v195, %v503
    %v555 = vmul.f32 %v554, 0.5
    %v556 = vtanh.pop %v555
    %v557 = vadd.f32 %v556, 1.0
    %v558 = vmul.f32 %v557, 0.5
    %v560 = vrot.slane %v195, 2
    %v562 = vadd.f32 %v560, %v516
    %v563 = vmul.f32 %v562, 0.5
    %v564 = vtanh.pop %v563
    %v565 = vadd.f32 %v564, 1.0
    %v566 = vmul.f32 %v565, 0.5
    %v567 = vmul.f32 %v558, %v529
    %v568 = vrot.slane %v195, 4
    %v570 = vadd.f32 %v568, %v567
    %v571 = vtanh.pop %v570
    %v572 = vsub.f32 1.0, %v566
    %v573 = vmul.f32 %v572, %v571
    %v574 = vmul.f32 %v566, %v176
    %v575 = vadd.f32 %v573, %v574
    %576 = vst [vmem:[#allocation2] sm:$0x3] %v553
    %577 = vst [vmem:[#allocation3] sm:$0x3] %v575
    %v578 = vpack.c.bf16 %v553, %v553
    %579 = vst [vmem:[%s5] sm:$0x1] %v578
    %v580 = vpack.c.bf16 %v575, %v575
    %s581 = scalar_lea.vmem %s73, 7
    %582 = vst [vmem:[%s581] sm:$0x1] %v580
    %v583 = vld [vmem:[#allocation2] sm:$0x3]
    %v584 = vld [vmem:[#allocation3] sm:$0x3]
    %s585 = scalar_lea.vmem %s0, 3
    %v586 = vld [vmem:[%s585] sm:$0x7]
    %v587 = vunpack.c.l.bf16 %v586
    %v588 = vadd.f32 %v587, %v184
    %s589 = scalar_lea.vmem %s66, 18
    %v590 = vld [vmem:[%s589] sm:$0x7]
    %v591 = vunpack.c.l.bf16 %v590
    %v592 = vadd.f32 %v591, %v193
    %v593 = vpack.c.bf16 %v583, %v583
    %594 = vmatpush.bf16.msra.mxu0 %v298
    %595 = vmatpush.bf16.msra.mxu0 %v295
    %596 = vmatpush.bf16.msra.mxu0 %v292
    %597 = vmatpush.bf16.msra.mxu0 %v289
    %598 = vmatpush.bf16.msra.mxu0 %v286
    %599 = vmatpush.bf16.msra.mxu0 %v283
    %600 = vmatpush.bf16.msra.mxu0 %v280
    %601 = vmatpush.bf16.msra.mxu0 %v277
    %602 = vmatmul.bf16.gmra.mxu0 %v593
    %v603 = vpop.f32.mrf.mxu0
    %v604 = vadd.f32 %v160, %v603
    %v605 = vpop.f32.mrf.mxu0
    %606 = vdwg.mxu0
    %607 = vmatpush.bf16.msra.mxu0 %v299
    %608 = vmatpush.bf16.msra.mxu0 %v296
    %609 = vmatpush.bf16.msra.mxu0 %v293
    %610 = vmatpush.bf16.msra.mxu0 %v290
    %611 = vmatpush.bf16.msra.mxu0 %v287
    %612 = vmatpush.bf16.msra.mxu0 %v284
    %613 = vmatpush.bf16.msra.mxu0 %v281
    %614 = vmatpush.bf16.msra.mxu0 %v278
    %615 = vmatmul.bf16.gmra.mxu0 %v593
    %v616 = vpop.f32.mrf.mxu0
    %v617 = vadd.f32 %v161, %v616
    %v618 = vpop.f32.mrf.mxu0
    %619 = vdwg.mxu0
    %620 = vmatpush.bf16.msra.mxu0 %v300
    %621 = vmatpush.bf16.msra.mxu0 %v297
    %622 = vmatpush.bf16.msra.mxu0 %v294
    %623 = vmatpush.bf16.msra.mxu0 %v291
    %624 = vmatpush.bf16.msra.mxu0 %v288
    %625 = vmatpush.bf16.msra.mxu0 %v285
    %626 = vmatpush.bf16.msra.mxu0 %v282
    %627 = vmatpush.bf16.msra.mxu0 %v279
    %628 = vmatmul.bf16.gmra.mxu0 %v593
    %v629 = vpop.f32.mrf.mxu0
    %v630 = vadd.f32 %v162, %v629
    %v631 = vpop.f32.mrf.mxu0
    %632 = vdwg.mxu0
    %v633 = vpack.c.bf16 %v584, %v584
    %634 = vmatpush.bf16.msra.mxu0 %v466
    %635 = vmatpush.bf16.msra.mxu0 %v463
    %636 = vmatpush.bf16.msra.mxu0 %v460
    %637 = vmatpush.bf16.msra.mxu0 %v457
    %638 = vmatpush.bf16.msra.mxu0 %v454
    %639 = vmatpush.bf16.msra.mxu0 %v451
    %640 = vmatpush.bf16.msra.mxu0 %v448
    %641 = vmatpush.bf16.msra.mxu0 %v445
    %642 = vmatmul.bf16.gmra.mxu0 %v633
    %v643 = vpop.f32.mrf.mxu0
    %v644 = vadd.f32 %v169, %v643
    %v645 = vpop.f32.mrf.mxu0
    %646 = vdwg.mxu0
    %647 = vmatpush.bf16.msra.mxu0 %v467
    %648 = vmatpush.bf16.msra.mxu0 %v464
    %649 = vmatpush.bf16.msra.mxu0 %v461
    %650 = vmatpush.bf16.msra.mxu0 %v458
    %651 = vmatpush.bf16.msra.mxu0 %v455
    %652 = vmatpush.bf16.msra.mxu0 %v452
    %653 = vmatpush.bf16.msra.mxu0 %v449
    %654 = vmatpush.bf16.msra.mxu0 %v446
    %655 = vmatmul.bf16.gmra.mxu0 %v633
    %v656 = vpop.f32.mrf.mxu0
    %v657 = vadd.f32 %v170, %v656
    %v658 = vpop.f32.mrf.mxu0
    %659 = vdwg.mxu0
    %660 = vmatpush.bf16.msra.mxu0 %v468
    %661 = vmatpush.bf16.msra.mxu0 %v465
    %662 = vmatpush.bf16.msra.mxu0 %v462
    %663 = vmatpush.bf16.msra.mxu0 %v459
    %664 = vmatpush.bf16.msra.mxu0 %v456
    %665 = vmatpush.bf16.msra.mxu0 %v453
    %666 = vmatpush.bf16.msra.mxu0 %v450
    %667 = vmatpush.bf16.msra.mxu0 %v447
    %668 = vmatmul.bf16.gmra.mxu0 %v633
    %v669 = vpop.f32.mrf.mxu0
    %v670 = vadd.f32 %v171, %v669
    %v671 = vpop.f32.mrf.mxu0
    %672 = vdwg.mxu0
    %v673 = vadd.f32 %v588, %v604
    %v674 = vmul.f32 %v673, 0.5
    %v675 = vtanh.pop %v674
    %v676 = vadd.f32 %v675, 1.0
    %v677 = vmul.f32 %v676, 0.5
    %v679 = vrot.slane %v588, 2
    %v681 = vadd.f32 %v679, %v617
    %v682 = vmul.f32 %v681, 0.5
    %v683 = vtanh.pop %v682
    %v684 = vadd.f32 %v683, 1.0
    %v685 = vmul.f32 %v684, 0.5
    %v686 = vmul.f32 %v677, %v630
    %v687 = vrot.slane %v588, 4
    %v689 = vadd.f32 %v687, %v686
    %v690 = vtanh.pop %v689
    %v691 = vsub.f32 1.0, %v685
    %v692 = vmul.f32 %v691, %v690
    %v693 = vmul.f32 %v685, %v583
    %v694 = vadd.f32 %v692, %v693
    %v695 = vadd.f32 %v592, %v644
    %v696 = vmul.f32 %v695, 0.5
    %v697 = vtanh.pop %v696
    %v698 = vadd.f32 %v697, 1.0
    %v699 = vmul.f32 %v698, 0.5
    %v701 = vrot.slane %v592, 2
    %v703 = vadd.f32 %v701, %v657
    %v704 = vmul.f32 %v703, 0.5
    %v705 = vtanh.pop %v704
    %v706 = vadd.f32 %v705, 1.0
    %v707 = vmul.f32 %v706, 0.5
    %v708 = vmul.f32 %v699, %v670
    %v709 = vrot.slane %v592, 4
    %v711 = vadd.f32 %v709, %v708
    %v712 = vtanh.pop %v711
    %v713 = vsub.f32 1.0, %v707
    %v714 = vmul.f32 %v713, %v712
    %v715 = vmul.f32 %v707, %v584
    %v716 = vadd.f32 %v714, %v715
    %717 = vst [vmem:[#allocation2] sm:$0x3] %v694
    %718 = vst [vmem:[#allocation3] sm:$0x3] %v716
    %v719 = vpack.c.bf16 %v694, %v694
    %s720 = scalar_lea.vmem %s5, 1
    %721 = vst [vmem:[%s720] sm:$0x1] %v719
    %v722 = vpack.c.bf16 %v716, %v716
    %s723 = scalar_lea.vmem %s73, 6
    %724 = vst [vmem:[%s723] sm:$0x1] %v722
    %v725 = vld [vmem:[#allocation2] sm:$0x3]
    %v726 = vld [vmem:[#allocation3] sm:$0x3]
    %s727 = scalar_lea.vmem %s0, 6
    %v728 = vld [vmem:[%s727] sm:$0x7]
    %v729 = vunpack.c.l.bf16 %v728
    %v730 = vadd.f32 %v729, %v184
    %s731 = scalar_lea.vmem %s66, 15
    %v732 = vld [vmem:[%s731] sm:$0x7]
    %v733 = vunpack.c.l.bf16 %v732
    %v734 = vadd.f32 %v733, %v193
    %v735 = vpack.c.bf16 %v725, %v725
    %736 = vmatpush.bf16.msra.mxu0 %v298
    %737 = vmatpush.bf16.msra.mxu0 %v295
    %738 = vmatpush.bf16.msra.mxu0 %v292
    %739 = vmatpush.bf16.msra.mxu0 %v289
    %740 = vmatpush.bf16.msra.mxu0 %v286
    %741 = vmatpush.bf16.msra.mxu0 %v283
    %742 = vmatpush.bf16.msra.mxu0 %v280
    %743 = vmatpush.bf16.msra.mxu0 %v277
    %744 = vmatmul.bf16.gmra.mxu0 %v735
    %v745 = vpop.f32.mrf.mxu0
    %v746 = vadd.f32 %v160, %v745
    %v747 = vpop.f32.mrf.mxu0
    %748 = vdwg.mxu0
    %749 = vmatpush.bf16.msra.mxu0 %v299
    %750 = vmatpush.bf16.msra.mxu0 %v296
    %751 = vmatpush.bf16.msra.mxu0 %v293
    %752 = vmatpush.bf16.msra.mxu0 %v290
    %753 = vmatpush.bf16.msra.mxu0 %v287
    %754 = vmatpush.bf16.msra.mxu0 %v284
    %755 = vmatpush.bf16.msra.mxu0 %v281
    %756 = vmatpush.bf16.msra.mxu0 %v278
    %757 = vmatmul.bf16.gmra.mxu0 %v735
    %v758 = vpop.f32.mrf.mxu0
    %v759 = vadd.f32 %v161, %v758
    %v760 = vpop.f32.mrf.mxu0
    %761 = vdwg.mxu0
    %762 = vmatpush.bf16.msra.mxu0 %v300
    %763 = vmatpush.bf16.msra.mxu0 %v297
    %764 = vmatpush.bf16.msra.mxu0 %v294
    %765 = vmatpush.bf16.msra.mxu0 %v291
    %766 = vmatpush.bf16.msra.mxu0 %v288
    %767 = vmatpush.bf16.msra.mxu0 %v285
    %768 = vmatpush.bf16.msra.mxu0 %v282
    %769 = vmatpush.bf16.msra.mxu0 %v279
    %770 = vmatmul.bf16.gmra.mxu0 %v735
    %v771 = vpop.f32.mrf.mxu0
    %v772 = vadd.f32 %v162, %v771
    %v773 = vpop.f32.mrf.mxu0
    %774 = vdwg.mxu0
    %v775 = vpack.c.bf16 %v726, %v726
    %776 = vmatpush.bf16.msra.mxu0 %v466
    %777 = vmatpush.bf16.msra.mxu0 %v463
    %778 = vmatpush.bf16.msra.mxu0 %v460
    %779 = vmatpush.bf16.msra.mxu0 %v457
    %780 = vmatpush.bf16.msra.mxu0 %v454
    %781 = vmatpush.bf16.msra.mxu0 %v451
    %782 = vmatpush.bf16.msra.mxu0 %v448
    %783 = vmatpush.bf16.msra.mxu0 %v445
    %784 = vmatmul.bf16.gmra.mxu0 %v775
    %v785 = vpop.f32.mrf.mxu0
    %v786 = vadd.f32 %v169, %v785
    %v787 = vpop.f32.mrf.mxu0
    %788 = vdwg.mxu0
    %789 = vmatpush.bf16.msra.mxu0 %v467
    %790 = vmatpush.bf16.msra.mxu0 %v464
    %791 = vmatpush.bf16.msra.mxu0 %v461
    %792 = vmatpush.bf16.msra.mxu0 %v458
    %793 = vmatpush.bf16.msra.mxu0 %v455
    %794 = vmatpush.bf16.msra.mxu0 %v452
    %795 = vmatpush.bf16.msra.mxu0 %v449
    %796 = vmatpush.bf16.msra.mxu0 %v446
    %797 = vmatmul.bf16.gmra.mxu0 %v775
    %v798 = vpop.f32.mrf.mxu0
    %v799 = vadd.f32 %v170, %v798
    %v800 = vpop.f32.mrf.mxu0
    %801 = vdwg.mxu0
    %802 = vmatpush.bf16.msra.mxu0 %v468
    %803 = vmatpush.bf16.msra.mxu0 %v465
    %804 = vmatpush.bf16.msra.mxu0 %v462
    %805 = vmatpush.bf16.msra.mxu0 %v459
    %806 = vmatpush.bf16.msra.mxu0 %v456
    %807 = vmatpush.bf16.msra.mxu0 %v453
    %808 = vmatpush.bf16.msra.mxu0 %v450
    %809 = vmatpush.bf16.msra.mxu0 %v447
    %810 = vmatmul.bf16.gmra.mxu0 %v775
    %v811 = vpop.f32.mrf.mxu0
    %v812 = vadd.f32 %v171, %v811
    %v813 = vpop.f32.mrf.mxu0
    %814 = vdwg.mxu0
    %v815 = vadd.f32 %v730, %v746
    %v816 = vmul.f32 %v815, 0.5
    %v817 = vtanh.pop %v816
    %v818 = vadd.f32 %v817, 1.0
    %v819 = vmul.f32 %v818, 0.5
    %v821 = vrot.slane %v730, 2
    %v823 = vadd.f32 %v821, %v759
    %v824 = vmul.f32 %v823, 0.5
    %v825 = vtanh.pop %v824
    %v826 = vadd.f32 %v825, 1.0
    %v827 = vmul.f32 %v826, 0.5
    %v828 = vmul.f32 %v819, %v772
    %v829 = vrot.slane %v730, 4
    %v831 = vadd.f32 %v829, %v828
    %v832 = vtanh.pop %v831
    %v833 = vsub.f32 1.0, %v827
    %v834 = vmul.f32 %v833, %v832
    %v835 = vmul.f32 %v827, %v725
    %v836 = vadd.f32 %v834, %v835
    %v837 = vadd.f32 %v734, %v786
    %v838 = vmul.f32 %v837, 0.5
    %v839 = vtanh.pop %v838
    %v840 = vadd.f32 %v839, 1.0
    %v841 = vmul.f32 %v840, 0.5
    %v843 = vrot.slane %v734, 2
    %v845 = vadd.f32 %v843, %v799
    %v846 = vmul.f32 %v845, 0.5
    %v847 = vtanh.pop %v846
    %v848 = vadd.f32 %v847, 1.0
    %v849 = vmul.f32 %v848, 0.5
    %v850 = vmul.f32 %v841, %v812
    %v851 = vrot.slane %v734, 4
    %v853 = vadd.f32 %v851, %v850
    %v854 = vtanh.pop %v853
    %v855 = vsub.f32 1.0, %v849
    %v856 = vmul.f32 %v855, %v854
    %v857 = vmul.f32 %v849, %v726
    %v858 = vadd.f32 %v856, %v857
    %859 = vst [vmem:[#allocation2] sm:$0x3] %v836
    %860 = vst [vmem:[#allocation3] sm:$0x3] %v858
    %v861 = vpack.c.bf16 %v836, %v836
    %s862 = scalar_lea.vmem %s5, 2
    %863 = vst [vmem:[%s862] sm:$0x1] %v861
    %v864 = vpack.c.bf16 %v858, %v858
    %s865 = scalar_lea.vmem %s73, 5
    %866 = vst [vmem:[%s865] sm:$0x1] %v864
    %v867 = vld [vmem:[#allocation2] sm:$0x3]
    %v868 = vld [vmem:[#allocation3] sm:$0x3]
    %s869 = scalar_lea.vmem %s0, 9
    %v870 = vld [vmem:[%s869] sm:$0x7]
    %v871 = vunpack.c.l.bf16 %v870
    %v872 = vadd.f32 %v871, %v184
    %s873 = scalar_lea.vmem %s66, 12
    %v874 = vld [vmem:[%s873] sm:$0x7]
    %v875 = vunpack.c.l.bf16 %v874
    %v876 = vadd.f32 %v875, %v193
    %v877 = vpack.c.bf16 %v867, %v867
    %878 = vmatpush.bf16.msra.mxu0 %v298
    %879 = vmatpush.bf16.msra.mxu0 %v295
    %880 = vmatpush.bf16.msra.mxu0 %v292
    %881 = vmatpush.bf16.msra.mxu0 %v289
    %882 = vmatpush.bf16.msra.mxu0 %v286
    %883 = vmatpush.bf16.msra.mxu0 %v283
    %884 = vmatpush.bf16.msra.mxu0 %v280
    %885 = vmatpush.bf16.msra.mxu0 %v277
    %886 = vmatmul.bf16.gmra.mxu0 %v877
    %v887 = vpop.f32.mrf.mxu0
    %v888 = vadd.f32 %v160, %v887
    %v889 = vpop.f32.mrf.mxu0
    %890 = vdwg.mxu0
    %891 = vmatpush.bf16.msra.mxu0 %v299
    %892 = vmatpush.bf16.msra.mxu0 %v296
    %893 = vmatpush.bf16.msra.mxu0 %v293
    %894 = vmatpush.bf16.msra.mxu0 %v290
    %895 = vmatpush.bf16.msra.mxu0 %v287
    %896 = vmatpush.bf16.msra.mxu0 %v284
    %897 = vmatpush.bf16.msra.mxu0 %v281
    %898 = vmatpush.bf16.msra.mxu0 %v278
    %899 = vmatmul.bf16.gmra.mxu0 %v877
    %v900 = vpop.f32.mrf.mxu0
    %v901 = vadd.f32 %v161, %v900
    %v902 = vpop.f32.mrf.mxu0
    %903 = vdwg.mxu0
    %904 = vmatpush.bf16.msra.mxu0 %v300
    %905 = vmatpush.bf16.msra.mxu0 %v297
    %906 = vmatpush.bf16.msra.mxu0 %v294
    %907 = vmatpush.bf16.msra.mxu0 %v291
    %908 = vmatpush.bf16.msra.mxu0 %v288
    %909 = vmatpush.bf16.msra.mxu0 %v285
    %910 = vmatpush.bf16.msra.mxu0 %v282
    %911 = vmatpush.bf16.msra.mxu0 %v279
    %912 = vmatmul.bf16.gmra.mxu0 %v877
    %v913 = vpop.f32.mrf.mxu0
    %v914 = vadd.f32 %v162, %v913
    %v915 = vpop.f32.mrf.mxu0
    %916 = vdwg.mxu0
    %v917 = vpack.c.bf16 %v868, %v868
    %918 = vmatpush.bf16.msra.mxu0 %v466
    %919 = vmatpush.bf16.msra.mxu0 %v463
    %920 = vmatpush.bf16.msra.mxu0 %v460
    %921 = vmatpush.bf16.msra.mxu0 %v457
    %922 = vmatpush.bf16.msra.mxu0 %v454
    %923 = vmatpush.bf16.msra.mxu0 %v451
    %924 = vmatpush.bf16.msra.mxu0 %v448
    %925 = vmatpush.bf16.msra.mxu0 %v445
    %926 = vmatmul.bf16.gmra.mxu0 %v917
    %v927 = vpop.f32.mrf.mxu0
    %v928 = vadd.f32 %v169, %v927
    %v929 = vpop.f32.mrf.mxu0
    %930 = vdwg.mxu0
    %931 = vmatpush.bf16.msra.mxu0 %v467
    %932 = vmatpush.bf16.msra.mxu0 %v464
    %933 = vmatpush.bf16.msra.mxu0 %v461
    %934 = vmatpush.bf16.msra.mxu0 %v458
    %935 = vmatpush.bf16.msra.mxu0 %v455
    %936 = vmatpush.bf16.msra.mxu0 %v452
    %937 = vmatpush.bf16.msra.mxu0 %v449
    %938 = vmatpush.bf16.msra.mxu0 %v446
    %939 = vmatmul.bf16.gmra.mxu0 %v917
    %v940 = vpop.f32.mrf.mxu0
    %v941 = vadd.f32 %v170, %v940
    %v942 = vpop.f32.mrf.mxu0
    %943 = vdwg.mxu0
    %944 = vmatpush.bf16.msra.mxu0 %v468
    %945 = vmatpush.bf16.msra.mxu0 %v465
    %946 = vmatpush.bf16.msra.mxu0 %v462
    %947 = vmatpush.bf16.msra.mxu0 %v459
    %948 = vmatpush.bf16.msra.mxu0 %v456
    %949 = vmatpush.bf16.msra.mxu0 %v453
    %950 = vmatpush.bf16.msra.mxu0 %v450
    %951 = vmatpush.bf16.msra.mxu0 %v447
    %952 = vmatmul.bf16.gmra.mxu0 %v917
    %v953 = vpop.f32.mrf.mxu0
    %v954 = vadd.f32 %v171, %v953
    %v955 = vpop.f32.mrf.mxu0
    %956 = vdwg.mxu0
    %v957 = vadd.f32 %v872, %v888
    %v958 = vmul.f32 %v957, 0.5
    %v959 = vtanh.pop %v958
    %v960 = vadd.f32 %v959, 1.0
    %v961 = vmul.f32 %v960, 0.5
    %v963 = vrot.slane %v872, 2
    %v965 = vadd.f32 %v963, %v901
    %v966 = vmul.f32 %v965, 0.5
    %v967 = vtanh.pop %v966
    %v968 = vadd.f32 %v967, 1.0
    %v969 = vmul.f32 %v968, 0.5
    %v970 = vmul.f32 %v961, %v914
    %v971 = vrot.slane %v872, 4
    %v973 = vadd.f32 %v971, %v970
    %v974 = vtanh.pop %v973
    %v975 = vsub.f32 1.0, %v969
    %v976 = vmul.f32 %v975, %v974
    %v977 = vmul.f32 %v969, %v867
    %v978 = vadd.f32 %v976, %v977
    %v979 = vadd.f32 %v876, %v928
    %v980 = vmul.f32 %v979, 0.5
    %v981 = vtanh.pop %v980
    %v982 = vadd.f32 %v981, 1.0
    %v983 = vmul.f32 %v982, 0.5
    %v985 = vrot.slane %v876, 2
    %v987 = vadd.f32 %v985, %v941
    %v988 = vmul.f32 %v987, 0.5
    %v989 = vtanh.pop %v988
    %v990 = vadd.f32 %v989, 1.0
    %v991 = vmul.f32 %v990, 0.5
    %v992 = vmul.f32 %v983, %v954
    %v993 = vrot.slane %v876, 4
    %v995 = vadd.f32 %v993, %v992
    %v996 = vtanh.pop %v995
    %v997 = vsub.f32 1.0, %v991
    %v998 = vmul.f32 %v997, %v996
    %v999 = vmul.f32 %v991, %v868
    %v1000 = vadd.f32 %v998, %v999
    %1001 = vst [vmem:[#allocation2] sm:$0x3] %v978
    %1002 = vst [vmem:[#allocation3] sm:$0x3] %v1000
    %v1003 = vpack.c.bf16 %v978, %v978
    %s1004 = scalar_lea.vmem %s5, 3
    %1005 = vst [vmem:[%s1004] sm:$0x1] %v1003
    %v1006 = vpack.c.bf16 %v1000, %v1000
    %s1007 = scalar_lea.vmem %s73, 4
    %1008 = vst [vmem:[%s1007] sm:$0x1] %v1006
    %v1009 = vld [vmem:[#allocation2] sm:$0x3]
    %v1010 = vld [vmem:[#allocation3] sm:$0x3]
    %s1011 = scalar_lea.vmem %s0, 12
    %v1012 = vld [vmem:[%s1011] sm:$0x7]
    %v1013 = vunpack.c.l.bf16 %v1012
    %v1014 = vadd.f32 %v1013, %v184
    %s1015 = scalar_lea.vmem %s66, 9
    %v1016 = vld [vmem:[%s1015] sm:$0x7]
    %v1017 = vunpack.c.l.bf16 %v1016
    %v1018 = vadd.f32 %v1017, %v193
    %v1019 = vpack.c.bf16 %v1009, %v1009
    %1020 = vmatpush.bf16.msra.mxu0 %v298
    %1021 = vmatpush.bf16.msra.mxu0 %v295
    %1022 = vmatpush.bf16.msra.mxu0 %v292
    %1023 = vmatpush.bf16.msra.mxu0 %v289
    %1024 = vmatpush.bf16.msra.mxu0 %v286
    %1025 = vmatpush.bf16.msra.mxu0 %v283
    %1026 = vmatpush.bf16.msra.mxu0 %v280
    %1027 = vmatpush.bf16.msra.mxu0 %v277
    %1028 = vmatmul.bf16.gmra.mxu0 %v1019
    %v1029 = vpop.f32.mrf.mxu0
    %v1030 = vadd.f32 %v160, %v1029
    %v1031 = vpop.f32.mrf.mxu0
    %1032 = vdwg.mxu0
    %1033 = vmatpush.bf16.msra.mxu0 %v299
    %1034 = vmatpush.bf16.msra.mxu0 %v296
    %1035 = vmatpush.bf16.msra.mxu0 %v293
    %1036 = vmatpush.bf16.msra.mxu0 %v290
    %1037 = vmatpush.bf16.msra.mxu0 %v287
    %1038 = vmatpush.bf16.msra.mxu0 %v284
    %1039 = vmatpush.bf16.msra.mxu0 %v281
    %1040 = vmatpush.bf16.msra.mxu0 %v278
    %1041 = vmatmul.bf16.gmra.mxu0 %v1019
    %v1042 = vpop.f32.mrf.mxu0
    %v1043 = vadd.f32 %v161, %v1042
    %v1044 = vpop.f32.mrf.mxu0
    %1045 = vdwg.mxu0
    %1046 = vmatpush.bf16.msra.mxu0 %v300
    %1047 = vmatpush.bf16.msra.mxu0 %v297
    %1048 = vmatpush.bf16.msra.mxu0 %v294
    %1049 = vmatpush.bf16.msra.mxu0 %v291
    %1050 = vmatpush.bf16.msra.mxu0 %v288
    %1051 = vmatpush.bf16.msra.mxu0 %v285
    %1052 = vmatpush.bf16.msra.mxu0 %v282
    %1053 = vmatpush.bf16.msra.mxu0 %v279
    %1054 = vmatmul.bf16.gmra.mxu0 %v1019
    %v1055 = vpop.f32.mrf.mxu0
    %v1056 = vadd.f32 %v162, %v1055
    %v1057 = vpop.f32.mrf.mxu0
    %1058 = vdwg.mxu0
    %v1059 = vpack.c.bf16 %v1010, %v1010
    %1060 = vmatpush.bf16.msra.mxu0 %v466
    %1061 = vmatpush.bf16.msra.mxu0 %v463
    %1062 = vmatpush.bf16.msra.mxu0 %v460
    %1063 = vmatpush.bf16.msra.mxu0 %v457
    %1064 = vmatpush.bf16.msra.mxu0 %v454
    %1065 = vmatpush.bf16.msra.mxu0 %v451
    %1066 = vmatpush.bf16.msra.mxu0 %v448
    %1067 = vmatpush.bf16.msra.mxu0 %v445
    %1068 = vmatmul.bf16.gmra.mxu0 %v1059
    %v1069 = vpop.f32.mrf.mxu0
    %v1070 = vadd.f32 %v169, %v1069
    %v1071 = vpop.f32.mrf.mxu0
    %1072 = vdwg.mxu0
    %1073 = vmatpush.bf16.msra.mxu0 %v467
    %1074 = vmatpush.bf16.msra.mxu0 %v464
    %1075 = vmatpush.bf16.msra.mxu0 %v461
    %1076 = vmatpush.bf16.msra.mxu0 %v458
    %1077 = vmatpush.bf16.msra.mxu0 %v455
    %1078 = vmatpush.bf16.msra.mxu0 %v452
    %1079 = vmatpush.bf16.msra.mxu0 %v449
    %1080 = vmatpush.bf16.msra.mxu0 %v446
    %1081 = vmatmul.bf16.gmra.mxu0 %v1059
    %v1082 = vpop.f32.mrf.mxu0
    %v1083 = vadd.f32 %v170, %v1082
    %v1084 = vpop.f32.mrf.mxu0
    %1085 = vdwg.mxu0
    %1086 = vmatpush.bf16.msra.mxu0 %v468
    %1087 = vmatpush.bf16.msra.mxu0 %v465
    %1088 = vmatpush.bf16.msra.mxu0 %v462
    %1089 = vmatpush.bf16.msra.mxu0 %v459
    %1090 = vmatpush.bf16.msra.mxu0 %v456
    %1091 = vmatpush.bf16.msra.mxu0 %v453
    %1092 = vmatpush.bf16.msra.mxu0 %v450
    %1093 = vmatpush.bf16.msra.mxu0 %v447
    %1094 = vmatmul.bf16.gmra.mxu0 %v1059
    %v1095 = vpop.f32.mrf.mxu0
    %v1096 = vadd.f32 %v171, %v1095
    %v1097 = vpop.f32.mrf.mxu0
    %1098 = vdwg.mxu0
    %v1099 = vadd.f32 %v1014, %v1030
    %v1100 = vmul.f32 %v1099, 0.5
    %v1101 = vtanh.pop %v1100
    %v1102 = vadd.f32 %v1101, 1.0
    %v1103 = vmul.f32 %v1102, 0.5
    %v1105 = vrot.slane %v1014, 2
    %v1107 = vadd.f32 %v1105, %v1043
    %v1108 = vmul.f32 %v1107, 0.5
    %v1109 = vtanh.pop %v1108
    %v1110 = vadd.f32 %v1109, 1.0
    %v1111 = vmul.f32 %v1110, 0.5
    %v1112 = vmul.f32 %v1103, %v1056
    %v1113 = vrot.slane %v1014, 4
    %v1115 = vadd.f32 %v1113, %v1112
    %v1116 = vtanh.pop %v1115
    %v1117 = vsub.f32 1.0, %v1111
    %v1118 = vmul.f32 %v1117, %v1116
    %v1119 = vmul.f32 %v1111, %v1009
    %v1120 = vadd.f32 %v1118, %v1119
    %v1121 = vadd.f32 %v1018, %v1070
    %v1122 = vmul.f32 %v1121, 0.5
    %v1123 = vtanh.pop %v1122
    %v1124 = vadd.f32 %v1123, 1.0
    %v1125 = vmul.f32 %v1124, 0.5
    %v1127 = vrot.slane %v1018, 2
    %v1129 = vadd.f32 %v1127, %v1083
    %v1130 = vmul.f32 %v1129, 0.5
    %v1131 = vtanh.pop %v1130
    %v1132 = vadd.f32 %v1131, 1.0
    %v1133 = vmul.f32 %v1132, 0.5
    %v1134 = vmul.f32 %v1125, %v1096
    %v1135 = vrot.slane %v1018, 4
    %v1137 = vadd.f32 %v1135, %v1134
    %v1138 = vtanh.pop %v1137
    %v1139 = vsub.f32 1.0, %v1133
    %v1140 = vmul.f32 %v1139, %v1138
    %v1141 = vmul.f32 %v1133, %v1010
    %v1142 = vadd.f32 %v1140, %v1141
    %1143 = vst [vmem:[#allocation2] sm:$0x3] %v1120
    %1144 = vst [vmem:[#allocation3] sm:$0x3] %v1142
    %v1145 = vpack.c.bf16 %v1120, %v1120
    %s1146 = scalar_lea.vmem %s5, 4
    %1147 = vst [vmem:[%s1146] sm:$0x1] %v1145
    %v1148 = vpack.c.bf16 %v1142, %v1142
    %s1149 = scalar_lea.vmem %s73, 3
    %1150 = vst [vmem:[%s1149] sm:$0x1] %v1148
    %v1151 = vld [vmem:[#allocation2] sm:$0x3]
    %v1152 = vld [vmem:[#allocation3] sm:$0x3]
    %s1153 = scalar_lea.vmem %s0, 15
    %v1154 = vld [vmem:[%s1153] sm:$0x7]
    %v1155 = vunpack.c.l.bf16 %v1154
    %v1156 = vadd.f32 %v1155, %v184
    %s1157 = scalar_lea.vmem %s66, 6
    %v1158 = vld [vmem:[%s1157] sm:$0x7]
    %v1159 = vunpack.c.l.bf16 %v1158
    %v1160 = vadd.f32 %v1159, %v193
    %v1161 = vpack.c.bf16 %v1151, %v1151
    %1162 = vmatpush.bf16.msra.mxu0 %v298
    %1163 = vmatpush.bf16.msra.mxu0 %v295
    %1164 = vmatpush.bf16.msra.mxu0 %v292
    %1165 = vmatpush.bf16.msra.mxu0 %v289
    %1166 = vmatpush.bf16.msra.mxu0 %v286
    %1167 = vmatpush.bf16.msra.mxu0 %v283
    %1168 = vmatpush.bf16.msra.mxu0 %v280
    %1169 = vmatpush.bf16.msra.mxu0 %v277
    %1170 = vmatmul.bf16.gmra.mxu0 %v1161
    %v1171 = vpop.f32.mrf.mxu0
    %v1172 = vadd.f32 %v160, %v1171
    %v1173 = vpop.f32.mrf.mxu0
    %1174 = vdwg.mxu0
    %1175 = vmatpush.bf16.msra.mxu0 %v299
    %1176 = vmatpush.bf16.msra.mxu0 %v296
    %1177 = vmatpush.bf16.msra.mxu0 %v293
    %1178 = vmatpush.bf16.msra.mxu0 %v290
    %1179 = vmatpush.bf16.msra.mxu0 %v287
    %1180 = vmatpush.bf16.msra.mxu0 %v284
    %1181 = vmatpush.bf16.msra.mxu0 %v281
    %1182 = vmatpush.bf16.msra.mxu0 %v278
    %1183 = vmatmul.bf16.gmra.mxu0 %v1161
    %v1184 = vpop.f32.mrf.mxu0
    %v1185 = vadd.f32 %v161, %v1184
    %v1186 = vpop.f32.mrf.mxu0
    %1187 = vdwg.mxu0
    %1188 = vmatpush.bf16.msra.mxu0 %v300
    %1189 = vmatpush.bf16.msra.mxu0 %v297
    %1190 = vmatpush.bf16.msra.mxu0 %v294
    %1191 = vmatpush.bf16.msra.mxu0 %v291
    %1192 = vmatpush.bf16.msra.mxu0 %v288
    %1193 = vmatpush.bf16.msra.mxu0 %v285
    %1194 = vmatpush.bf16.msra.mxu0 %v282
    %1195 = vmatpush.bf16.msra.mxu0 %v279
    %1196 = vmatmul.bf16.gmra.mxu0 %v1161
    %v1197 = vpop.f32.mrf.mxu0
    %v1198 = vadd.f32 %v162, %v1197
    %v1199 = vpop.f32.mrf.mxu0
    %1200 = vdwg.mxu0
    %v1201 = vpack.c.bf16 %v1152, %v1152
    %1202 = vmatpush.bf16.msra.mxu0 %v466
    %1203 = vmatpush.bf16.msra.mxu0 %v463
    %1204 = vmatpush.bf16.msra.mxu0 %v460
    %1205 = vmatpush.bf16.msra.mxu0 %v457
    %1206 = vmatpush.bf16.msra.mxu0 %v454
    %1207 = vmatpush.bf16.msra.mxu0 %v451
    %1208 = vmatpush.bf16.msra.mxu0 %v448
    %1209 = vmatpush.bf16.msra.mxu0 %v445
    %1210 = vmatmul.bf16.gmra.mxu0 %v1201
    %v1211 = vpop.f32.mrf.mxu0
    %v1212 = vadd.f32 %v169, %v1211
    %v1213 = vpop.f32.mrf.mxu0
    %1214 = vdwg.mxu0
    %1215 = vmatpush.bf16.msra.mxu0 %v467
    %1216 = vmatpush.bf16.msra.mxu0 %v464
    %1217 = vmatpush.bf16.msra.mxu0 %v461
    %1218 = vmatpush.bf16.msra.mxu0 %v458
    %1219 = vmatpush.bf16.msra.mxu0 %v455
    %1220 = vmatpush.bf16.msra.mxu0 %v452
    %1221 = vmatpush.bf16.msra.mxu0 %v449
    %1222 = vmatpush.bf16.msra.mxu0 %v446
    %1223 = vmatmul.bf16.gmra.mxu0 %v1201
    %v1224 = vpop.f32.mrf.mxu0
    %v1225 = vadd.f32 %v170, %v1224
    %v1226 = vpop.f32.mrf.mxu0
    %1227 = vdwg.mxu0
    %1228 = vmatpush.bf16.msra.mxu0 %v468
    %1229 = vmatpush.bf16.msra.mxu0 %v465
    %1230 = vmatpush.bf16.msra.mxu0 %v462
    %1231 = vmatpush.bf16.msra.mxu0 %v459
    %1232 = vmatpush.bf16.msra.mxu0 %v456
    %1233 = vmatpush.bf16.msra.mxu0 %v453
    %1234 = vmatpush.bf16.msra.mxu0 %v450
    %1235 = vmatpush.bf16.msra.mxu0 %v447
    %1236 = vmatmul.bf16.gmra.mxu0 %v1201
    %v1237 = vpop.f32.mrf.mxu0
    %v1238 = vadd.f32 %v171, %v1237
    %v1239 = vpop.f32.mrf.mxu0
    %1240 = vdwg.mxu0
    %v1241 = vadd.f32 %v1156, %v1172
    %v1242 = vmul.f32 %v1241, 0.5
    %v1243 = vtanh.pop %v1242
    %v1244 = vadd.f32 %v1243, 1.0
    %v1245 = vmul.f32 %v1244, 0.5
    %v1247 = vrot.slane %v1156, 2
    %v1249 = vadd.f32 %v1247, %v1185
    %v1250 = vmul.f32 %v1249, 0.5
    %v1251 = vtanh.pop %v1250
    %v1252 = vadd.f32 %v1251, 1.0
    %v1253 = vmul.f32 %v1252, 0.5
    %v1254 = vmul.f32 %v1245, %v1198
    %v1255 = vrot.slane %v1156, 4
    %v1257 = vadd.f32 %v1255, %v1254
    %v1258 = vtanh.pop %v1257
    %v1259 = vsub.f32 1.0, %v1253
    %v1260 = vmul.f32 %v1259, %v1258
    %v1261 = vmul.f32 %v1253, %v1151
    %v1262 = vadd.f32 %v1260, %v1261
    %v1263 = vadd.f32 %v1160, %v1212
    %v1264 = vmul.f32 %v1263, 0.5
    %v1265 = vtanh.pop %v1264
    %v1266 = vadd.f32 %v1265, 1.0
    %v1267 = vmul.f32 %v1266, 0.5
    %v1269 = vrot.slane %v1160, 2
    %v1271 = vadd.f32 %v1269, %v1225
    %v1272 = vmul.f32 %v1271, 0.5
    %v1273 = vtanh.pop %v1272
    %v1274 = vadd.f32 %v1273, 1.0
    %v1275 = vmul.f32 %v1274, 0.5
    %v1276 = vmul.f32 %v1267, %v1238
    %v1277 = vrot.slane %v1160, 4
    %v1279 = vadd.f32 %v1277, %v1276
    %v1280 = vtanh.pop %v1279
    %v1281 = vsub.f32 1.0, %v1275
    %v1282 = vmul.f32 %v1281, %v1280
    %v1283 = vmul.f32 %v1275, %v1152
    %v1284 = vadd.f32 %v1282, %v1283
    %1285 = vst [vmem:[#allocation2] sm:$0x3] %v1262
    %1286 = vst [vmem:[#allocation3] sm:$0x3] %v1284
    %v1287 = vpack.c.bf16 %v1262, %v1262
    %s1288 = scalar_lea.vmem %s5, 5
    %1289 = vst [vmem:[%s1288] sm:$0x1] %v1287
    %v1290 = vpack.c.bf16 %v1284, %v1284
    %s1291 = scalar_lea.vmem %s73, 2
    %1292 = vst [vmem:[%s1291] sm:$0x1] %v1290
    %v1293 = vld [vmem:[#allocation2] sm:$0x3]
    %v1294 = vld [vmem:[#allocation3] sm:$0x3]
    %s1295 = scalar_lea.vmem %s0, 18
    %v1296 = vld [vmem:[%s1295] sm:$0x7]
    %v1297 = vunpack.c.l.bf16 %v1296
    %v1298 = vadd.f32 %v1297, %v184
    %s1299 = scalar_lea.vmem %s66, 3
    %v1300 = vld [vmem:[%s1299] sm:$0x7]
    %v1301 = vunpack.c.l.bf16 %v1300
    %v1302 = vadd.f32 %v1301, %v193
    %v1303 = vpack.c.bf16 %v1293, %v1293
    %1304 = vmatpush.bf16.msra.mxu0 %v298
    %1305 = vmatpush.bf16.msra.mxu0 %v295
    %1306 = vmatpush.bf16.msra.mxu0 %v292
    %1307 = vmatpush.bf16.msra.mxu0 %v289
    %1308 = vmatpush.bf16.msra.mxu0 %v286
    %1309 = vmatpush.bf16.msra.mxu0 %v283
    %1310 = vmatpush.bf16.msra.mxu0 %v280
    %1311 = vmatpush.bf16.msra.mxu0 %v277
    %1312 = vmatmul.bf16.gmra.mxu0 %v1303
    %v1313 = vpop.f32.mrf.mxu0
    %v1314 = vadd.f32 %v160, %v1313
    %v1315 = vpop.f32.mrf.mxu0
    %1316 = vdwg.mxu0
    %1317 = vmatpush.bf16.msra.mxu0 %v299
    %1318 = vmatpush.bf16.msra.mxu0 %v296
    %1319 = vmatpush.bf16.msra.mxu0 %v293
    %1320 = vmatpush.bf16.msra.mxu0 %v290
    %1321 = vmatpush.bf16.msra.mxu0 %v287
    %1322 = vmatpush.bf16.msra.mxu0 %v284
    %1323 = vmatpush.bf16.msra.mxu0 %v281
    %1324 = vmatpush.bf16.msra.mxu0 %v278
    %1325 = vmatmul.bf16.gmra.mxu0 %v1303
    %v1326 = vpop.f32.mrf.mxu0
    %v1327 = vadd.f32 %v161, %v1326
    %v1328 = vpop.f32.mrf.mxu0
    %1329 = vdwg.mxu0
    %1330 = vmatpush.bf16.msra.mxu0 %v300
    %1331 = vmatpush.bf16.msra.mxu0 %v297
    %1332 = vmatpush.bf16.msra.mxu0 %v294
    %1333 = vmatpush.bf16.msra.mxu0 %v291
    %1334 = vmatpush.bf16.msra.mxu0 %v288
    %1335 = vmatpush.bf16.msra.mxu0 %v285
    %1336 = vmatpush.bf16.msra.mxu0 %v282
    %1337 = vmatpush.bf16.msra.mxu0 %v279
    %1338 = vmatmul.bf16.gmra.mxu0 %v1303
    %v1339 = vpop.f32.mrf.mxu0
    %v1340 = vadd.f32 %v162, %v1339
    %v1341 = vpop.f32.mrf.mxu0
    %1342 = vdwg.mxu0
    %v1343 = vpack.c.bf16 %v1294, %v1294
    %1344 = vmatpush.bf16.msra.mxu0 %v466
    %1345 = vmatpush.bf16.msra.mxu0 %v463
    %1346 = vmatpush.bf16.msra.mxu0 %v460
    %1347 = vmatpush.bf16.msra.mxu0 %v457
    %1348 = vmatpush.bf16.msra.mxu0 %v454
    %1349 = vmatpush.bf16.msra.mxu0 %v451
    %1350 = vmatpush.bf16.msra.mxu0 %v448
    %1351 = vmatpush.bf16.msra.mxu0 %v445
    %1352 = vmatmul.bf16.gmra.mxu0 %v1343
    %v1353 = vpop.f32.mrf.mxu0
    %v1354 = vadd.f32 %v169, %v1353
    %v1355 = vpop.f32.mrf.mxu0
    %1356 = vdwg.mxu0
    %1357 = vmatpush.bf16.msra.mxu0 %v467
    %1358 = vmatpush.bf16.msra.mxu0 %v464
    %1359 = vmatpush.bf16.msra.mxu0 %v461
    %1360 = vmatpush.bf16.msra.mxu0 %v458
    %1361 = vmatpush.bf16.msra.mxu0 %v455
    %1362 = vmatpush.bf16.msra.mxu0 %v452
    %1363 = vmatpush.bf16.msra.mxu0 %v449
    %1364 = vmatpush.bf16.msra.mxu0 %v446
    %1365 = vmatmul.bf16.gmra.mxu0 %v1343
    %v1366 = vpop.f32.mrf.mxu0
    %v1367 = vadd.f32 %v170, %v1366
    %v1368 = vpop.f32.mrf.mxu0
    %1369 = vdwg.mxu0
    %1370 = vmatpush.bf16.msra.mxu0 %v468
    %1371 = vmatpush.bf16.msra.mxu0 %v465
    %1372 = vmatpush.bf16.msra.mxu0 %v462
    %1373 = vmatpush.bf16.msra.mxu0 %v459
    %1374 = vmatpush.bf16.msra.mxu0 %v456
    %1375 = vmatpush.bf16.msra.mxu0 %v453
    %1376 = vmatpush.bf16.msra.mxu0 %v450
    %1377 = vmatpush.bf16.msra.mxu0 %v447
    %1378 = vmatmul.bf16.gmra.mxu0 %v1343
    %v1379 = vpop.f32.mrf.mxu0
    %v1380 = vadd.f32 %v171, %v1379
    %v1381 = vpop.f32.mrf.mxu0
    %1382 = vdwg.mxu0
    %v1383 = vadd.f32 %v1298, %v1314
    %v1384 = vmul.f32 %v1383, 0.5
    %v1385 = vtanh.pop %v1384
    %v1386 = vadd.f32 %v1385, 1.0
    %v1387 = vmul.f32 %v1386, 0.5
    %v1389 = vrot.slane %v1298, 2
    %v1391 = vadd.f32 %v1389, %v1327
    %v1392 = vmul.f32 %v1391, 0.5
    %v1393 = vtanh.pop %v1392
    %v1394 = vadd.f32 %v1393, 1.0
    %v1395 = vmul.f32 %v1394, 0.5
    %v1396 = vmul.f32 %v1387, %v1340
    %v1397 = vrot.slane %v1298, 4
    %v1399 = vadd.f32 %v1397, %v1396
    %v1400 = vtanh.pop %v1399
    %v1401 = vsub.f32 1.0, %v1395
    %v1402 = vmul.f32 %v1401, %v1400
    %v1403 = vmul.f32 %v1395, %v1293
    %v1404 = vadd.f32 %v1402, %v1403
    %v1405 = vadd.f32 %v1302, %v1354
    %v1406 = vmul.f32 %v1405, 0.5
    %v1407 = vtanh.pop %v1406
    %v1408 = vadd.f32 %v1407, 1.0
    %v1409 = vmul.f32 %v1408, 0.5
    %v1411 = vrot.slane %v1302, 2
    %v1413 = vadd.f32 %v1411, %v1367
    %v1414 = vmul.f32 %v1413, 0.5
    %v1415 = vtanh.pop %v1414
    %v1416 = vadd.f32 %v1415, 1.0
    %v1417 = vmul.f32 %v1416, 0.5
    %v1418 = vmul.f32 %v1409, %v1380
    %v1419 = vrot.slane %v1302, 4
    %v1421 = vadd.f32 %v1419, %v1418
    %v1422 = vtanh.pop %v1421
    %v1423 = vsub.f32 1.0, %v1417
    %v1424 = vmul.f32 %v1423, %v1422
    %v1425 = vmul.f32 %v1417, %v1294
    %v1426 = vadd.f32 %v1424, %v1425
    %1427 = vst [vmem:[#allocation2] sm:$0x3] %v1404
    %1428 = vst [vmem:[#allocation3] sm:$0x3] %v1426
    %v1429 = vpack.c.bf16 %v1404, %v1404
    %s1430 = scalar_lea.vmem %s5, 6
    %1431 = vst [vmem:[%s1430] sm:$0x1] %v1429
    %v1432 = vpack.c.bf16 %v1426, %v1426
    %s1433 = scalar_lea.vmem %s73, 1
    %1434 = vst [vmem:[%s1433] sm:$0x1] %v1432
    %v1435 = vld [vmem:[#allocation2] sm:$0x3]
    %v1436 = vld [vmem:[#allocation3] sm:$0x3]
    %s1437 = scalar_lea.vmem %s0, 21
    %v1438 = vld [vmem:[%s1437] sm:$0x7]
    %v1439 = vunpack.c.l.bf16 %v1438
    %v1440 = vadd.f32 %v1439, %v184
    %v1441 = vld [vmem:[%s66] sm:$0x7]
    %v1442 = vunpack.c.l.bf16 %v1441
    %v1443 = vadd.f32 %v1442, %v193
    %v1444 = vpack.c.bf16 %v1435, %v1435
    %1445 = vmatpush.bf16.msra.mxu0 %v298
    %1446 = vmatpush.bf16.msra.mxu0 %v295
    %1447 = vmatpush.bf16.msra.mxu0 %v292
    %1448 = vmatpush.bf16.msra.mxu0 %v289
    %1449 = vmatpush.bf16.msra.mxu0 %v286
    %1450 = vmatpush.bf16.msra.mxu0 %v283
    %1451 = vmatpush.bf16.msra.mxu0 %v280
    %1452 = vmatpush.bf16.msra.mxu0 %v277
    %1453 = vmatmul.bf16.gmra.mxu0 %v1444
    %v1454 = vpop.f32.mrf.mxu0
    %v1455 = vadd.f32 %v160, %v1454
    %v1456 = vpop.f32.mrf.mxu0
    %1457 = vdwg.mxu0
    %1458 = vmatpush.bf16.msra.mxu0 %v299
    %1459 = vmatpush.bf16.msra.mxu0 %v296
    %1460 = vmatpush.bf16.msra.mxu0 %v293
    %1461 = vmatpush.bf16.msra.mxu0 %v290
    %1462 = vmatpush.bf16.msra.mxu0 %v287
    %1463 = vmatpush.bf16.msra.mxu0 %v284
    %1464 = vmatpush.bf16.msra.mxu0 %v281
    %1465 = vmatpush.bf16.msra.mxu0 %v278
    %1466 = vmatmul.bf16.gmra.mxu0 %v1444
    %v1467 = vpop.f32.mrf.mxu0
    %v1468 = vadd.f32 %v161, %v1467
    %v1469 = vpop.f32.mrf.mxu0
    %1470 = vdwg.mxu0
    %1471 = vmatpush.bf16.msra.mxu0 %v300
    %1472 = vmatpush.bf16.msra.mxu0 %v297
    %1473 = vmatpush.bf16.msra.mxu0 %v294
    %1474 = vmatpush.bf16.msra.mxu0 %v291
    %1475 = vmatpush.bf16.msra.mxu0 %v288
    %1476 = vmatpush.bf16.msra.mxu0 %v285
    %1477 = vmatpush.bf16.msra.mxu0 %v282
    %1478 = vmatpush.bf16.msra.mxu0 %v279
    %1479 = vmatmul.bf16.gmra.mxu0 %v1444
    %v1480 = vpop.f32.mrf.mxu0
    %v1481 = vadd.f32 %v162, %v1480
    %v1482 = vpop.f32.mrf.mxu0
    %1483 = vdwg.mxu0
    %v1484 = vpack.c.bf16 %v1436, %v1436
    %1485 = vmatpush.bf16.msra.mxu0 %v466
    %1486 = vmatpush.bf16.msra.mxu0 %v463
    %1487 = vmatpush.bf16.msra.mxu0 %v460
    %1488 = vmatpush.bf16.msra.mxu0 %v457
    %1489 = vmatpush.bf16.msra.mxu0 %v454
    %1490 = vmatpush.bf16.msra.mxu0 %v451
    %1491 = vmatpush.bf16.msra.mxu0 %v448
    %1492 = vmatpush.bf16.msra.mxu0 %v445
    %1493 = vmatmul.bf16.gmra.mxu0 %v1484
    %v1494 = vpop.f32.mrf.mxu0
    %v1495 = vadd.f32 %v169, %v1494
    %v1496 = vpop.f32.mrf.mxu0
    %1497 = vdwg.mxu0
    %1498 = vmatpush.bf16.msra.mxu0 %v467
    %1499 = vmatpush.bf16.msra.mxu0 %v464
    %1500 = vmatpush.bf16.msra.mxu0 %v461
    %1501 = vmatpush.bf16.msra.mxu0 %v458
    %1502 = vmatpush.bf16.msra.mxu0 %v455
    %1503 = vmatpush.bf16.msra.mxu0 %v452
    %1504 = vmatpush.bf16.msra.mxu0 %v449
    %1505 = vmatpush.bf16.msra.mxu0 %v446
    %1506 = vmatmul.bf16.gmra.mxu0 %v1484
    %v1507 = vpop.f32.mrf.mxu0
    %v1508 = vadd.f32 %v170, %v1507
    %v1509 = vpop.f32.mrf.mxu0
    %1510 = vdwg.mxu0
    %1511 = vmatpush.bf16.msra.mxu0 %v468
    %1512 = vmatpush.bf16.msra.mxu0 %v465
    %1513 = vmatpush.bf16.msra.mxu0 %v462
    %1514 = vmatpush.bf16.msra.mxu0 %v459
    %1515 = vmatpush.bf16.msra.mxu0 %v456
    %1516 = vmatpush.bf16.msra.mxu0 %v453
    %1517 = vmatpush.bf16.msra.mxu0 %v450
    %1518 = vmatpush.bf16.msra.mxu0 %v447
    %1519 = vmatmul.bf16.gmra.mxu0 %v1484
    %v1520 = vpop.f32.mrf.mxu0
    %v1521 = vadd.f32 %v171, %v1520
    %v1522 = vpop.f32.mrf.mxu0
    %1523 = vdwg.mxu0
    %v1524 = vadd.f32 %v1440, %v1455
    %v1525 = vmul.f32 %v1524, 0.5
    %v1526 = vtanh.pop %v1525
    %v1527 = vadd.f32 %v1526, 1.0
    %v1528 = vmul.f32 %v1527, 0.5
    %v1530 = vrot.slane %v1440, 2
    %v1532 = vadd.f32 %v1530, %v1468
    %v1533 = vmul.f32 %v1532, 0.5
    %v1534 = vtanh.pop %v1533
    %v1535 = vadd.f32 %v1534, 1.0
    %v1536 = vmul.f32 %v1535, 0.5
    %v1537 = vmul.f32 %v1528, %v1481
    %v1538 = vrot.slane %v1440, 4
    %v1540 = vadd.f32 %v1538, %v1537
    %v1541 = vtanh.pop %v1540
    %v1542 = vsub.f32 1.0, %v1536
    %v1543 = vmul.f32 %v1542, %v1541
    %v1544 = vmul.f32 %v1536, %v1435
    %v1545 = vadd.f32 %v1543, %v1544
    %v1546 = vadd.f32 %v1443, %v1495
    %v1547 = vmul.f32 %v1546, 0.5
    %v1548 = vtanh.pop %v1547
    %v1549 = vadd.f32 %v1548, 1.0
    %v1550 = vmul.f32 %v1549, 0.5
    %v1552 = vrot.slane %v1443, 2
    %v1554 = vadd.f32 %v1552, %v1508
    %v1555 = vmul.f32 %v1554, 0.5
    %v1556 = vtanh.pop %v1555
    %v1557 = vadd.f32 %v1556, 1.0
    %v1558 = vmul.f32 %v1557, 0.5
    %v1559 = vmul.f32 %v1550, %v1521
    %v1560 = vrot.slane %v1443, 4
    %v1562 = vadd.f32 %v1560, %v1559
    %v1563 = vtanh.pop %v1562
    %v1564 = vsub.f32 1.0, %v1558
    %v1565 = vmul.f32 %v1564, %v1563
    %v1566 = vmul.f32 %v1558, %v1436
    %v1567 = vadd.f32 %v1565, %v1566
    %1568 = vst [vmem:[#allocation2] sm:$0x3] %v1545
    %1569 = vst [vmem:[#allocation3] sm:$0x3] %v1567
    %v1570 = vpack.c.bf16 %v1545, %v1545
    %s1571 = scalar_lea.vmem %s5, 7
    %1572 = vst [vmem:[%s1571] sm:$0x1] %v1570
    %v1573 = vpack.c.bf16 %v1567, %v1567
    %1574 = vst [vmem:[%s73] sm:$0x1] %v1573
    %v1575 = vld [vmem:[#allocation2] sm:$0x3]
    %1576 = vst [vmem:[%s7] sm:$0x3] %v1575
    %v1577 = vld [vmem:[#allocation3] sm:$0x3]
    %s1578 = scalar_lea.vmem %s7, 2
    %1579 = vst [vmem:[%s1578] sm:$0x3] %v1577
    %s1580 = ssub.s32 0, 0
    %s1581 = smul.u32 8, %s1580
    %p1582 = scmp.lt.s32.totalorder %s1581, 7
    %s1583 = scalar_select %p1582, %s1581, 7
    %s1584 = scalar_lea.vmem %s6, %s1583
    // Predicated region
    $region30: #{encoder_forward.2} parent=1 // pred_check
      _
    $region31: #{encoder_forward.2} parent=1 // pred_check_branch
      %1586 = sbr.rel (0) target = $region33
    $region32: #{encoder_forward.2} parent=1 // pred_region
      _
    $region33: #{encoder_forward.2} parent=1 // pred_fallthru
      _
    // Predicated region
    $region34: #{encoder_forward.2} parent=1 // pred_check
      _
    $region35: #{encoder_forward.2} parent=1 // pred_check_branch
      %1588 = sbr.rel (0) target = $region37
    $region36: #{encoder_forward.2} parent=1 // pred_region
      %s1589 = ssub.s32 0, 0
      %s1590 = smul.u32 8, %s1589
    $region37: #{encoder_forward.2} parent=1 // pred_fallthru
      _
    // Predicated region
    $region38: #{encoder_forward.2} parent=1 // pred_check
      _
    $region39: #{encoder_forward.2} parent=1 // pred_check_branch
      %1592 = sbr.rel (0) target = $region41
    $region40: #{encoder_forward.2} parent=1 // pred_region
      _
    $region41: #{encoder_forward.2} parent=1 // pred_fallthru
      _
    // Predicated region
    $region42: #{encoder_forward.2} parent=1 // pred_check
      _
    $region43: #{encoder_forward.2} parent=1 // pred_check_branch
      %1594 = sbr.rel (0) target = $region45
    $region44: #{encoder_forward.2} parent=1 // pred_region
      _
    $region45: #{encoder_forward.2} parent=1 // pred_fallthru
      _
    // Predicated region
    $region46: #{encoder_forward.2} parent=1 // pred_check
      _
    $region47: #{encoder_forward.2} parent=1 // pred_check_branch
      %1596 = sbr.rel (0) target = $region49
    $region48: #{encoder_forward.2} parent=1 // pred_region
      %s1597 = ssub.s32 0, 0
      %s1598 = smul.u32 8, %s1597
      %p1599 = scmp.lt.s32.totalorder %s1598, 7
      %s1600 = scalar_select %p1599, %s1598, 7
      %s1601 = scalar_lea.vmem %s6, %s1600
    $region49: #{encoder_forward.2} parent=1 // pred_fallthru
      _
    // Predicated region
    $region50: #{encoder_forward.2} parent=1 // pred_check
      _
    $region51: #{encoder_forward.2} parent=1 // pred_check_branch
      %1603 = sbr.rel (0) target = $region53
    $region52: #{encoder_forward.2} parent=1 // pred_region
      _
    $region53: #{encoder_forward.2} parent=1 // pred_fallthru
      _
    %1604 = vsyncpa [#allocation5], 1

</llo_original>
